<compile_context>
chip_gen: v7x
topology: tpu7x:2x2x1
jax: 0.10.0
libtpu: 0.0.40
codegen_flags: <defaults>
</compile_context>

<pallas_src>
import numpy as np

import jax
import jax.numpy as jnp
from jax.experimental import pallas as pl
from jax.experimental.pallas import tpu as pltpu

_K = 5  # conv kernel size (5x5, padding 2)


# ---------------------------------------------------------------------------
# In-kernel helpers
# ---------------------------------------------------------------------------
def _sigmoid(x):
    # exp on the EUP + exact reciprocal (matches the XLA reference closely).
    return pl.reciprocal(1.0 + jnp.exp(-x))


# ---------------------------------------------------------------------------
# Fused kernel: conv1..conv4 (+sigmoid) -> fc0 (+sigmoid) -> fc1
# ---------------------------------------------------------------------------
def _lenet_kernel(x_ref, wb1_ref, b1_ref, wb2_ref, b2_ref, wb3_ref, b3_ref,
                  wb4_ref, b4_ref, wfc0_ref, bfc0_ref, wfc1_ref, bfc1_ref,
                  o_ref, a2_ref, a3_ref, a4_ref):
    n = x_ref.shape[0]

    def band_conv(src_ref, wb_ref, b_ref, ho, stride):
        """5x5 conv as 5 lane-dense MXU matmuls (one per kh tap row).

        src_ref : (n, Hp, Lin)   H-zero-padded, lanes = w*Cin + cin
        wb_ref  : (5, Lin, Lout) band weights, output lanes = wo*Cout + cout
                  (kw taps, W padding and W stride folded into the band).
        returns : (n*ho, Lout)   sigmoid(conv + bias)
        """
        lin = wb_ref.shape[1]
        lout = wb_ref.shape[2]
        acc = jnp.zeros((n * ho, lout), jnp.float32)
        for kh in range(_K):
            if stride == 1:
                xs = src_ref[:, kh:kh + ho, :].reshape(n * ho, lin)
            else:
                # stride-2 along H: leading-dim reshape + static index picks
                # rows kh, kh+2, ... (no strided access, no selection matmul).
                xs = src_ref[:, kh:kh + 2 * ho, :]
                xs = xs.reshape(n * ho, 2, lin)[:, 0, :]
            acc = acc + jnp.dot(xs, wb_ref[kh],
                                preferred_element_type=jnp.float32)
        return _sigmoid(acc + b_ref[...])

    def store_hpad(dst_ref, y, hi, lanes):
        # Write the activation into the interior of an H-zero-padded scratch;
        # zero only the 2-row pad ring (interior is fully overwritten).
        dst_ref[:, 0:2, :] = jnp.zeros((n, 2, lanes), jnp.float32)
        dst_ref[:, 2 + hi:4 + hi, :] = jnp.zeros((n, 2, lanes), jnp.float32)
        dst_ref[:, 2:2 + hi, :] = y.reshape(n, hi, lanes)

    # conv1: 3ch 32x32 -> 12ch 16x16, stride 2 (input already H-padded, 128 lanes)
    y1 = band_conv(x_ref, wb1_ref, b1_ref, ho=16, stride=2)      # (n*16, 192)

    # conv2: 12ch 16x16 -> 12ch 8x8, stride 2
    store_hpad(a2_ref, y1, hi=16, lanes=192)
    y2 = band_conv(a2_ref, wb2_ref, b2_ref, ho=8, stride=2)      # (n*8, 128)

    # conv3: 12ch 8x8 -> 12ch 8x8, stride 1
    store_hpad(a3_ref, y2, hi=8, lanes=128)
    y3 = band_conv(a3_ref, wb3_ref, b3_ref, ho=8, stride=1)      # (n*8, 128)

    # conv4: 12ch 8x8 -> 12ch 8x8, stride 1
    store_hpad(a4_ref, y3, hi=8, lanes=128)
    y4 = band_conv(a4_ref, wb4_ref, b4_ref, ho=8, stride=1)      # (n*8, 128)

    # fc0: Linear(768, 100) + sigmoid as 8 matmuls of (n,128)@(128,128).
    # The PyTorch NCHW flatten permutation and the lane padding are folded
    # into wfc0 at init, so no in-kernel sublane->lane flatten is needed.
    y4r = y4.reshape(n, 8, 128)
    h = jnp.zeros((n, 128), jnp.float32)
    for r in range(8):
        h = h + jnp.dot(y4r[:, r, :], wfc0_ref[r],
                        preferred_element_type=jnp.float32)
    h = _sigmoid(h + bfc0_ref[...])

    # fc1: Linear(100, 10); carried at 128 lanes so the final store is an
    # unmasked vst (wrapper slices [:, :10]).
    o_ref[...] = (jnp.dot(h, wfc1_ref[...], preferred_element_type=jnp.float32)
                  + bfc1_ref[...])


# ---------------------------------------------------------------------------
# Wrapper
# ---------------------------------------------------------------------------
def lenet_svhn_forward(kparams, x, *, block_n=64):
    """x: (N, 3, 32, 32) NCHW float32 -> logits (N, 10)."""
    n = x.shape[0]
    # Wrapper-side layout plumbing only: NCHW -> channels-last, H pad 2,
    # channel pad 3->4, fold W and C into a 128-wide lane dim.
    xt = jnp.transpose(x, (0, 2, 3, 1)).astype(jnp.float32)      # (N, 32, 32, 3)
    xt = jnp.pad(xt, ((0, 0), (2, 2), (0, 0), (0, 1)))           # (N, 36, 32, 4)
    x_p = xt.reshape(n, 36, 128)                                 # lane = w*4 + c

    nb = min(n, block_n)
    n_pad = (-n) % nb
    if n_pad:
        x_p = jnp.pad(x_p, ((0, n_pad), (0, 0), (0, 0)))
    n_tot = n + n_pad
    grid = (n_tot // nb,)

    args = (x_p,
            kparams["wb1"], kparams["b1"], kparams["wb2"], kparams["b2"],
            kparams["wb3"], kparams["b3"], kparams["wb4"], kparams["b4"],
            kparams["wfc0"], kparams["bfc0"], kparams["wfc1"], kparams["bfc1"])

    def rep_spec(shape):
        nd = len(shape)

        def imap(i):
            return (0,) * nd

        return pl.BlockSpec(shape, imap)

    in_specs = [pl.BlockSpec((nb, 36, 128), lambda i: (i, 0, 0))]
    in_specs += [rep_spec(a.shape) for a in args[1:]]

    out = pl.pallas_call(
        _lenet_kernel,
        out_shape=jax.ShapeDtypeStruct((n_tot, 128), jnp.float32),
        grid=grid,
        in_specs=in_specs,
        out_specs=pl.BlockSpec((nb, 128), lambda i: (i, 0)),
        scratch_shapes=[
            pltpu.VMEM((nb, 20, 192), jnp.float32),   # conv2 H-padded input
            pltpu.VMEM((nb, 12, 128), jnp.float32),   # conv3 H-padded input
            pltpu.VMEM((nb, 12, 128), jnp.float32),   # conv4 H-padded input
        ],
        compiler_params=pltpu.CompilerParams(
            dimension_semantics=("parallel",),
            vmem_limit_bytes=32 * 1024 * 1024,
        ),
    )(*args)
    return out[:n, :10]


# ---------------------------------------------------------------------------
# Parameters: synthetic init in PyTorch layout + one-time kernel-layout prep
# ---------------------------------------------------------------------------
def init_params(key):
    keys = jax.random.split(key, 12)
    p = {}
    conv_shapes = [
        (12, 3, 5, 5),   # conv1, stride 2
        (12, 12, 5, 5),  # conv2, stride 2
        (12, 12, 5, 5),  # conv3, stride 1
        (12, 12, 5, 5),  # conv4, stride 1
    ]
    for i, shp in enumerate(conv_shapes):
        p[f"conv{i}_w"] = 0.1 * jax.random.normal(keys[2 * i], shp, jnp.float32)
        p[f"conv{i}_b"] = 0.1 * jax.random.normal(keys[2 * i + 1], (shp[0],), jnp.float32)
    p["fc0_w"] = 0.05 * jax.random.normal(keys[8], (768, 100), jnp.float32)
    p["fc0_b"] = 0.05 * jax.random.normal(keys[9], (100,), jnp.float32)
    p["fc1_w"] = 0.05 * jax.random.normal(keys[10], (100, 10), jnp.float32)
    p["fc1_b"] = 0.05 * jax.random.normal(keys[11], (10,), jnp.float32)
    return p


def prepare_params(p):
    """One-time (init-time) conversion to the band-matmul kernel layout."""

    def band(w, wi_dim, wo_dim, stride, ci_stride, lin, lout):
        # w: (Co, Ci, 5, 5) torch layout -> (5, lin, lout) band matrices.
        w = np.asarray(w)
        co, ci = w.shape[0], w.shape[1]
        B = np.zeros((_K, lin, lout), np.float32)
        for kh in range(_K):
            for wo in range(wo_dim):
                for kw in range(_K):
                    wi = stride * wo + kw - 2
                    if 0 <= wi < wi_dim:
                        B[kh,
                          wi * ci_stride:wi * ci_stride + ci,
                          wo * co:wo * co + co] = w[:, :, kh, kw].T
        return jnp.asarray(B)

    def bias(b, co, wo_dim, lout):
        out = np.zeros((1, lout), np.float32)
        out[0, :wo_dim * co] = np.tile(np.asarray(b), wo_dim)
        return jnp.asarray(out)

    q = {}
    q["wb1"] = band(p["conv0_w"], 32, 16, 2, 4, 128, 192)
    q["b1"] = bias(p["conv0_b"], 12, 16, 192)
    q["wb2"] = band(p["conv1_w"], 16, 8, 2, 12, 192, 128)
    q["b2"] = bias(p["conv1_b"], 12, 8, 128)
    q["wb3"] = band(p["conv2_w"], 8, 8, 1, 12, 128, 128)
    q["b3"] = bias(p["conv2_b"], 12, 8, 128)
    q["wb4"] = band(p["conv3_w"], 8, 8, 1, 12, 128, 128)
    q["b4"] = bias(p["conv3_b"], 12, 8, 128)

    # fc0: fold the NCHW flatten permutation into the weight and lay it out as
    # (h=8, 128 packed lanes (w*12+c, pad>=96), 128 outs (100 real)).
    f0 = np.asarray(p["fc0_w"])                       # (768, 100); idx = c*64+h*8+w
    wfc0 = np.zeros((8, 128, 128), np.float32)
    for c in range(12):
        for h in range(8):
            for w_ in range(8):
                wfc0[h, w_ * 12 + c, :100] = f0[c * 64 + h * 8 + w_, :]
    bfc0 = np.zeros((1, 128), np.float32)
    bfc0[0, :100] = np.asarray(p["fc0_b"])
    wfc1 = np.zeros((128, 128), np.float32)
    wfc1[:100, :10] = np.asarray(p["fc1_w"])
    bfc1 = np.zeros((1, 128), np.float32)
    bfc1[0, :10] = np.asarray(p["fc1_b"])
    q["wfc0"] = jnp.asarray(wfc0)
    q["bfc0"] = jnp.asarray(bfc0)
    q["wfc1"] = jnp.asarray(wfc1)
    q["bfc1"] = jnp.asarray(bfc1)
    return q


# ---------------------------------------------------------------------------
# Plain-JAX reference of the PyTorch module (for a correctness check)
# ---------------------------------------------------------------------------
def _reference_forward(params, x):
    hi = jax.lax.Precision.HIGHEST

    def conv_sig(h, w, b, stride):
        y = jax.lax.conv_general_dilated(
            h, w, window_strides=(stride, stride), padding=((2, 2), (2, 2)),
            dimension_numbers=("NCHW", "OIHW", "NCHW"), precision=hi)
        return jax.nn.sigmoid(y + b[None, :, None, None])

    h = conv_sig(x, params["conv0_w"], params["conv0_b"], 2)
    h = conv_sig(h, params["conv1_w"], params["conv1_b"], 2)
    h = conv_sig(h, params["conv2_w"], params["conv2_b"], 1)
    h = conv_sig(h, params["conv3_w"], params["conv3_b"], 1)
    flat = h.reshape(h.shape[0], -1)                          # NCHW flatten
    hid = jax.nn.sigmoid(jnp.dot(flat, params["fc0_w"], precision=hi)
                         + params["fc0_b"])
    return jnp.dot(hid, params["fc1_w"], precision=hi) + params["fc1_b"]


if __name__ == "__main__":
    key = jax.random.PRNGKey(0)
    pkey, xkey = jax.random.split(key)
    params = init_params(pkey)
    kparams = prepare_params(params)   # weight layout work hoisted out of the hot path
    # SVHN-sized input: Linear(768, ...) implies 3x32x32 inputs. batch=2.
    x = jax.random.normal(xkey, (2, 3, 32, 32), jnp.float32)

    fwd = jax.jit(lenet_svhn_forward)
    out = jax.block_until_ready(fwd(kparams, x))
    assert out.shape == (2, 10), out.shape

    ref = jax.block_until_ready(_reference_forward(params, x))
    np.testing.assert_allclose(np.asarray(out), np.asarray(ref),
                               rtol=5e-3, atol=5e-3)
    print("KERNEL_OK")
</pallas_src>

<mosaic_0001>
module attributes {stable_mosaic.version = 11 : i64} {
  func.func @_lenet_kernel(%arg0: i32, %arg1: memref<2x36x128xf32, #tpu.memory_space<vmem>>, %arg2: memref<5x128x192xf32, #tpu.memory_space<vmem>>, %arg3: memref<1x192xf32, #tpu.memory_space<vmem>>, %arg4: memref<5x192x128xf32, #tpu.memory_space<vmem>>, %arg5: memref<1x128xf32, #tpu.memory_space<vmem>>, %arg6: memref<5x128x128xf32, #tpu.memory_space<vmem>>, %arg7: memref<1x128xf32, #tpu.memory_space<vmem>>, %arg8: memref<5x128x128xf32, #tpu.memory_space<vmem>>, %arg9: memref<1x128xf32, #tpu.memory_space<vmem>>, %arg10: memref<8x128x128xf32, #tpu.memory_space<vmem>>, %arg11: memref<1x128xf32, #tpu.memory_space<vmem>>, %arg12: memref<128x128xf32, #tpu.memory_space<vmem>>, %arg13: memref<1x128xf32, #tpu.memory_space<vmem>>, %arg14: memref<2x128xf32, #tpu.memory_space<vmem>>, %arg15: memref<2x20x192xf32, #tpu.memory_space<vmem>>, %arg16: memref<2x12x128xf32, #tpu.memory_space<vmem>>, %arg17: memref<2x12x128xf32, #tpu.memory_space<vmem>>) attributes {dimension_semantics = [#tpu.dimension_semantics<parallel>], iteration_bounds = array<i64: 1>, scalar_prefetch = 0 : i64, scratch_operands = 3 : i64, tpu.core_type = #tpu.core_type<tc>, window_params = [{transform_indices = @transform_0, window_bounds = array<i64: 2, 36, 128>}, {pipeline_mode = #tpu.pipeline_mode<synchronous>, transform_indices = @transform_1, window_bounds = array<i64: 5, 128, 192>}, {pipeline_mode = #tpu.pipeline_mode<synchronous>, transform_indices = @transform_2, window_bounds = array<i64: 1, 192>}, {pipeline_mode = #tpu.pipeline_mode<synchronous>, transform_indices = @transform_3, window_bounds = array<i64: 5, 192, 128>}, {pipeline_mode = #tpu.pipeline_mode<synchronous>, transform_indices = @transform_4, window_bounds = array<i64: 1, 128>}, {pipeline_mode = #tpu.pipeline_mode<synchronous>, transform_indices = @transform_5, window_bounds = array<i64: 5, 128, 128>}, {pipeline_mode = #tpu.pipeline_mode<synchronous>, transform_indices = @transform_6, window_bounds = array<i64: 1, 128>}, {pipeline_mode = #tpu.pipeline_mode<synchronous>, transform_indices = @transform_7, window_bounds = array<i64: 5, 128, 128>}, {pipeline_mode = #tpu.pipeline_mode<synchronous>, transform_indices = @transform_8, window_bounds = array<i64: 1, 128>}, {pipeline_mode = #tpu.pipeline_mode<synchronous>, transform_indices = @transform_9, window_bounds = array<i64: 8, 128, 128>}, {pipeline_mode = #tpu.pipeline_mode<synchronous>, transform_indices = @transform_10, window_bounds = array<i64: 1, 128>}, {pipeline_mode = #tpu.pipeline_mode<synchronous>, transform_indices = @transform_11, window_bounds = array<i64: 128, 128>}, {pipeline_mode = #tpu.pipeline_mode<synchronous>, transform_indices = @transform_12, window_bounds = array<i64: 1, 128>}, {transform_indices = @transform_13, window_bounds = array<i64: 2, 128>}]} {
    %cst = arith.constant 0.000000e+00 : f32
    %0 = vector.broadcast %cst : f32 to vector<32x192xf32>
    %c0 = arith.constant 0 : index
    %c0_0 = arith.constant 0 : index
    %c0_1 = arith.constant 0 : index
    %1 = vector.load %arg1[%c0, %c0_0, %c0_1] : memref<2x36x128xf32, #tpu.memory_space<vmem>>, vector<2x32x128xf32>
    %2 = vector.shape_cast %1 : vector<2x32x128xf32> to vector<32x2x128xf32>
    %3 = vector.extract_strided_slice %2 {offsets = [0, 0, 0], sizes = [32, 1, 128], strides = [1, 1, 1]} : vector<32x2x128xf32> to vector<32x1x128xf32>
    %4 = vector.shape_cast %3 : vector<32x1x128xf32> to vector<32x128xf32>
    %c0_2 = arith.constant 0 : index
    %c0_3 = arith.constant 0 : index
    %c0_4 = arith.constant 0 : index
    %5 = vector.load %arg2[%c0_2, %c0_3, %c0_4] : memref<5x128x192xf32, #tpu.memory_space<vmem>>, vector<1x128x192xf32>
    %6 = vector.shape_cast %5 : vector<1x128x192xf32> to vector<128x192xf32>
    %cst_5 = arith.constant dense<0.000000e+00> : vector<32x192xf32>
    %7 = tpu.matmul %4, %6, %cst_5 {dimension_numbers = #tpu.dot_dimension_numbers<[1], [0], [0], [1], [0, 0, 1, 1], [], []>} : vector<32x128xf32>, vector<128x192xf32>, vector<32x192xf32> -> vector<32x192xf32>
    %8 = arith.addf %0, %7 : vector<32x192xf32>
    %c0_6 = arith.constant 0 : index
    %c1 = arith.constant 1 : index
    %c0_7 = arith.constant 0 : index
    %9 = vector.load %arg1[%c0_6, %c1, %c0_7] : memref<2x36x128xf32, #tpu.memory_space<vmem>>, vector<2x32x128xf32>
    %10 = vector.shape_cast %9 : vector<2x32x128xf32> to vector<32x2x128xf32>
    %11 = vector.extract_strided_slice %10 {offsets = [0, 0, 0], sizes = [32, 1, 128], strides = [1, 1, 1]} : vector<32x2x128xf32> to vector<32x1x128xf32>
    %12 = vector.shape_cast %11 : vector<32x1x128xf32> to vector<32x128xf32>
    %c1_8 = arith.constant 1 : index
    %c0_9 = arith.constant 0 : index
    %c0_10 = arith.constant 0 : index
    %13 = vector.load %arg2[%c1_8, %c0_9, %c0_10] : memref<5x128x192xf32, #tpu.memory_space<vmem>>, vector<1x128x192xf32>
    %14 = vector.shape_cast %13 : vector<1x128x192xf32> to vector<128x192xf32>
    %cst_11 = arith.constant dense<0.000000e+00> : vector<32x192xf32>
    %15 = tpu.matmul %12, %14, %cst_11 {dimension_numbers = #tpu.dot_dimension_numbers<[1], [0], [0], [1], [0, 0, 1, 1], [], []>} : vector<32x128xf32>, vector<128x192xf32>, vector<32x192xf32> -> vector<32x192xf32>
    %16 = arith.addf %8, %15 : vector<32x192xf32>
    %c0_12 = arith.constant 0 : index
    %c2 = arith.constant 2 : index
    %c0_13 = arith.constant 0 : index
    %17 = vector.load %arg1[%c0_12, %c2, %c0_13] : memref<2x36x128xf32, #tpu.memory_space<vmem>>, vector<2x32x128xf32>
    %18 = vector.shape_cast %17 : vector<2x32x128xf32> to vector<32x2x128xf32>
    %19 = vector.extract_strided_slice %18 {offsets = [0, 0, 0], sizes = [32, 1, 128], strides = [1, 1, 1]} : vector<32x2x128xf32> to vector<32x1x128xf32>
    %20 = vector.shape_cast %19 : vector<32x1x128xf32> to vector<32x128xf32>
    %c2_14 = arith.constant 2 : index
    %c0_15 = arith.constant 0 : index
    %c0_16 = arith.constant 0 : index
    %21 = vector.load %arg2[%c2_14, %c0_15, %c0_16] : memref<5x128x192xf32, #tpu.memory_space<vmem>>, vector<1x128x192xf32>
    %22 = vector.shape_cast %21 : vector<1x128x192xf32> to vector<128x192xf32>
    %cst_17 = arith.constant dense<0.000000e+00> : vector<32x192xf32>
    %23 = tpu.matmul %20, %22, %cst_17 {dimension_numbers = #tpu.dot_dimension_numbers<[1], [0], [0], [1], [0, 0, 1, 1], [], []>} : vector<32x128xf32>, vector<128x192xf32>, vector<32x192xf32> -> vector<32x192xf32>
    %24 = arith.addf %16, %23 : vector<32x192xf32>
    %c0_18 = arith.constant 0 : index
    %c3 = arith.constant 3 : index
    %c0_19 = arith.constant 0 : index
    %25 = vector.load %arg1[%c0_18, %c3, %c0_19] : memref<2x36x128xf32, #tpu.memory_space<vmem>>, vector<2x32x128xf32>
    %26 = vector.shape_cast %25 : vector<2x32x128xf32> to vector<32x2x128xf32>
    %27 = vector.extract_strided_slice %26 {offsets = [0, 0, 0], sizes = [32, 1, 128], strides = [1, 1, 1]} : vector<32x2x128xf32> to vector<32x1x128xf32>
    %28 = vector.shape_cast %27 : vector<32x1x128xf32> to vector<32x128xf32>
    %c3_20 = arith.constant 3 : index
    %c0_21 = arith.constant 0 : index
    %c0_22 = arith.constant 0 : index
    %29 = vector.load %arg2[%c3_20, %c0_21, %c0_22] : memref<5x128x192xf32, #tpu.memory_space<vmem>>, vector<1x128x192xf32>
    %30 = vector.shape_cast %29 : vector<1x128x192xf32> to vector<128x192xf32>
    %cst_23 = arith.constant dense<0.000000e+00> : vector<32x192xf32>
    %31 = tpu.matmul %28, %30, %cst_23 {dimension_numbers = #tpu.dot_dimension_numbers<[1], [0], [0], [1], [0, 0, 1, 1], [], []>} : vector<32x128xf32>, vector<128x192xf32>, vector<32x192xf32> -> vector<32x192xf32>
    %32 = arith.addf %24, %31 : vector<32x192xf32>
    %c0_24 = arith.constant 0 : index
    %c4 = arith.constant 4 : index
    %c0_25 = arith.constant 0 : index
    %33 = vector.load %arg1[%c0_24, %c4, %c0_25] : memref<2x36x128xf32, #tpu.memory_space<vmem>>, vector<2x32x128xf32>
    %34 = vector.shape_cast %33 : vector<2x32x128xf32> to vector<32x2x128xf32>
    %35 = vector.extract_strided_slice %34 {offsets = [0, 0, 0], sizes = [32, 1, 128], strides = [1, 1, 1]} : vector<32x2x128xf32> to vector<32x1x128xf32>
    %36 = vector.shape_cast %35 : vector<32x1x128xf32> to vector<32x128xf32>
    %c4_26 = arith.constant 4 : index
    %c0_27 = arith.constant 0 : index
    %c0_28 = arith.constant 0 : index
    %37 = vector.load %arg2[%c4_26, %c0_27, %c0_28] : memref<5x128x192xf32, #tpu.memory_space<vmem>>, vector<1x128x192xf32>
    %38 = vector.shape_cast %37 : vector<1x128x192xf32> to vector<128x192xf32>
    %cst_29 = arith.constant dense<0.000000e+00> : vector<32x192xf32>
    %39 = tpu.matmul %36, %38, %cst_29 {dimension_numbers = #tpu.dot_dimension_numbers<[1], [0], [0], [1], [0, 0, 1, 1], [], []>} : vector<32x128xf32>, vector<128x192xf32>, vector<32x192xf32> -> vector<32x192xf32>
    %40 = arith.addf %32, %39 : vector<32x192xf32>
    %c0_30 = arith.constant 0 : index
    %c0_31 = arith.constant 0 : index
    %41 = vector.load %arg3[%c0_30, %c0_31] : memref<1x192xf32, #tpu.memory_space<vmem>>, vector<1x192xf32>
    %42 = vector.broadcast %41 : vector<1x192xf32> to vector<32x192xf32>
    %43 = arith.addf %40, %42 : vector<32x192xf32>
    %cst_32 = arith.constant 0.000000e+00 : f32
    %44 = vector.broadcast %cst_32 : f32 to vector<32x192xf32>
    %45 = arith.subf %44, %43 : vector<32x192xf32>
    %46 = math.exp %45 : vector<32x192xf32>
    %cst_33 = arith.constant 1.000000e+00 : f32
    %47 = vector.broadcast %cst_33 : f32 to vector<32x192xf32>
    %48 = arith.addf %47, %46 : vector<32x192xf32>
    %49 = tpu.reciprocal %48 : vector<32x192xf32> -> vector<32x192xf32>
    %cst_34 = arith.constant 0.000000e+00 : f32
    %50 = vector.broadcast %cst_34 : f32 to vector<2x2x192xf32>
    %c0_35 = arith.constant 0 : index
    %c0_36 = arith.constant 0 : index
    %c0_37 = arith.constant 0 : index
    %51 = vector.load %arg15[%c0_35, %c0_36, %c0_37] : memref<2x20x192xf32, #tpu.memory_space<vmem>>, vector<2x2x192xf32>
    tpu.vector_store %arg15[%c0_35, %c0_36, %c0_37], %50 {strides = array<i32>} : memref<2x20x192xf32, #tpu.memory_space<vmem>>, vector<2x2x192xf32>,
    %cst_38 = arith.constant 0.000000e+00 : f32
    %52 = vector.broadcast %cst_38 : f32 to vector<2x2x192xf32>
    %c0_39 = arith.constant 0 : index
    %c18 = arith.constant 18 : index
    %c0_40 = arith.constant 0 : index
    %53 = vector.load %arg15[%c0_39, %c18, %c0_40] : memref<2x20x192xf32, #tpu.memory_space<vmem>>, vector<2x2x192xf32>
    tpu.vector_store %arg15[%c0_39, %c18, %c0_40], %52 {strides = array<i32>} : memref<2x20x192xf32, #tpu.memory_space<vmem>>, vector<2x2x192xf32>,
    %54 = vector.shape_cast %49 : vector<32x192xf32> to vector<2x16x192xf32>
    %c0_41 = arith.constant 0 : index
    %c2_42 = arith.constant 2 : index
    %c0_43 = arith.constant 0 : index
    %55 = vector.load %arg15[%c0_41, %c2_42, %c0_43] : memref<2x20x192xf32, #tpu.memory_space<vmem>>, vector<2x16x192xf32>
    tpu.vector_store %arg15[%c0_41, %c2_42, %c0_43], %54 {strides = array<i32>} : memref<2x20x192xf32, #tpu.memory_space<vmem>>, vector<2x16x192xf32>,
    %cst_44 = arith.constant 0.000000e+00 : f32
    %56 = vector.broadcast %cst_44 : f32 to vector<16x128xf32>
    %c0_45 = arith.constant 0 : index
    %c0_46 = arith.constant 0 : index
    %c0_47 = arith.constant 0 : index
    %57 = vector.load %arg15[%c0_45, %c0_46, %c0_47] : memref<2x20x192xf32, #tpu.memory_space<vmem>>, vector<2x16x192xf32>
    %58 = vector.shape_cast %57 : vector<2x16x192xf32> to vector<16x2x192xf32>
    %59 = vector.extract_strided_slice %58 {offsets = [0, 0, 0], sizes = [16, 1, 192], strides = [1, 1, 1]} : vector<16x2x192xf32> to vector<16x1x192xf32>
    %60 = vector.shape_cast %59 : vector<16x1x192xf32> to vector<16x192xf32>
    %c0_48 = arith.constant 0 : index
    %c0_49 = arith.constant 0 : index
    %c0_50 = arith.constant 0 : index
    %61 = vector.load %arg4[%c0_48, %c0_49, %c0_50] : memref<5x192x128xf32, #tpu.memory_space<vmem>>, vector<1x192x128xf32>
    %62 = vector.shape_cast %61 : vector<1x192x128xf32> to vector<192x128xf32>
    %cst_51 = arith.constant dense<0.000000e+00> : vector<16x128xf32>
    %63 = tpu.matmul %60, %62, %cst_51 {dimension_numbers = #tpu.dot_dimension_numbers<[1], [0], [0], [1], [0, 0, 1, 1], [], []>} : vector<16x192xf32>, vector<192x128xf32>, vector<16x128xf32> -> vector<16x128xf32>
    %64 = arith.addf %56, %63 : vector<16x128xf32>
    %c0_52 = arith.constant 0 : index
    %c1_53 = arith.constant 1 : index
    %c0_54 = arith.constant 0 : index
    %65 = vector.load %arg15[%c0_52, %c1_53, %c0_54] : memref<2x20x192xf32, #tpu.memory_space<vmem>>, vector<2x16x192xf32>
    %66 = vector.shape_cast %65 : vector<2x16x192xf32> to vector<16x2x192xf32>
    %67 = vector.extract_strided_slice %66 {offsets = [0, 0, 0], sizes = [16, 1, 192], strides = [1, 1, 1]} : vector<16x2x192xf32> to vector<16x1x192xf32>
    %68 = vector.shape_cast %67 : vector<16x1x192xf32> to vector<16x192xf32>
    %c1_55 = arith.constant 1 : index
    %c0_56 = arith.constant 0 : index
    %c0_57 = arith.constant 0 : index
    %69 = vector.load %arg4[%c1_55, %c0_56, %c0_57] : memref<5x192x128xf32, #tpu.memory_space<vmem>>, vector<1x192x128xf32>
    %70 = vector.shape_cast %69 : vector<1x192x128xf32> to vector<192x128xf32>
    %cst_58 = arith.constant dense<0.000000e+00> : vector<16x128xf32>
    %71 = tpu.matmul %68, %70, %cst_58 {dimension_numbers = #tpu.dot_dimension_numbers<[1], [0], [0], [1], [0, 0, 1, 1], [], []>} : vector<16x192xf32>, vector<192x128xf32>, vector<16x128xf32> -> vector<16x128xf32>
    %72 = arith.addf %64, %71 : vector<16x128xf32>
    %c0_59 = arith.constant 0 : index
    %c2_60 = arith.constant 2 : index
    %c0_61 = arith.constant 0 : index
    %73 = vector.load %arg15[%c0_59, %c2_60, %c0_61] : memref<2x20x192xf32, #tpu.memory_space<vmem>>, vector<2x16x192xf32>
    %74 = vector.shape_cast %73 : vector<2x16x192xf32> to vector<16x2x192xf32>
    %75 = vector.extract_strided_slice %74 {offsets = [0, 0, 0], sizes = [16, 1, 192], strides = [1, 1, 1]} : vector<16x2x192xf32> to vector<16x1x192xf32>
    %76 = vector.shape_cast %75 : vector<16x1x192xf32> to vector<16x192xf32>
    %c2_62 = arith.constant 2 : index
    %c0_63 = arith.constant 0 : index
    %c0_64 = arith.constant 0 : index
    %77 = vector.load %arg4[%c2_62, %c0_63, %c0_64] : memref<5x192x128xf32, #tpu.memory_space<vmem>>, vector<1x192x128xf32>
    %78 = vector.shape_cast %77 : vector<1x192x128xf32> to vector<192x128xf32>
    %cst_65 = arith.constant dense<0.000000e+00> : vector<16x128xf32>
    %79 = tpu.matmul %76, %78, %cst_65 {dimension_numbers = #tpu.dot_dimension_numbers<[1], [0], [0], [1], [0, 0, 1, 1], [], []>} : vector<16x192xf32>, vector<192x128xf32>, vector<16x128xf32> -> vector<16x128xf32>
    %80 = arith.addf %72, %79 : vector<16x128xf32>
    %c0_66 = arith.constant 0 : index
    %c3_67 = arith.constant 3 : index
    %c0_68 = arith.constant 0 : index
    %81 = vector.load %arg15[%c0_66, %c3_67, %c0_68] : memref<2x20x192xf32, #tpu.memory_space<vmem>>, vector<2x16x192xf32>
    %82 = vector.shape_cast %81 : vector<2x16x192xf32> to vector<16x2x192xf32>
    %83 = vector.extract_strided_slice %82 {offsets = [0, 0, 0], sizes = [16, 1, 192], strides = [1, 1, 1]} : vector<16x2x192xf32> to vector<16x1x192xf32>
    %84 = vector.shape_cast %83 : vector<16x1x192xf32> to vector<16x192xf32>
    %c3_69 = arith.constant 3 : index
    %c0_70 = arith.constant 0 : index
    %c0_71 = arith.constant 0 : index
    %85 = vector.load %arg4[%c3_69, %c0_70, %c0_71] : memref<5x192x128xf32, #tpu.memory_space<vmem>>, vector<1x192x128xf32>
    %86 = vector.shape_cast %85 : vector<1x192x128xf32> to vector<192x128xf32>
    %cst_72 = arith.constant dense<0.000000e+00> : vector<16x128xf32>
    %87 = tpu.matmul %84, %86, %cst_72 {dimension_numbers = #tpu.dot_dimension_numbers<[1], [0], [0], [1], [0, 0, 1, 1], [], []>} : vector<16x192xf32>, vector<192x128xf32>, vector<16x128xf32> -> vector<16x128xf32>
    %88 = arith.addf %80, %87 : vector<16x128xf32>
    %c0_73 = arith.constant 0 : index
    %c4_74 = arith.constant 4 : index
    %c0_75 = arith.constant 0 : index
    %89 = vector.load %arg15[%c0_73, %c4_74, %c0_75] : memref<2x20x192xf32, #tpu.memory_space<vmem>>, vector<2x16x192xf32>
    %90 = vector.shape_cast %89 : vector<2x16x192xf32> to vector<16x2x192xf32>
    %91 = vector.extract_strided_slice %90 {offsets = [0, 0, 0], sizes = [16, 1, 192], strides = [1, 1, 1]} : vector<16x2x192xf32> to vector<16x1x192xf32>
    %92 = vector.shape_cast %91 : vector<16x1x192xf32> to vector<16x192xf32>
    %c4_76 = arith.constant 4 : index
    %c0_77 = arith.constant 0 : index
    %c0_78 = arith.constant 0 : index
    %93 = vector.load %arg4[%c4_76, %c0_77, %c0_78] : memref<5x192x128xf32, #tpu.memory_space<vmem>>, vector<1x192x128xf32>
    %94 = vector.shape_cast %93 : vector<1x192x128xf32> to vector<192x128xf32>
    %cst_79 = arith.constant dense<0.000000e+00> : vector<16x128xf32>
    %95 = tpu.matmul %92, %94, %cst_79 {dimension_numbers = #tpu.dot_dimension_numbers<[1], [0], [0], [1], [0, 0, 1, 1], [], []>} : vector<16x192xf32>, vector<192x128xf32>, vector<16x128xf32> -> vector<16x128xf32>
    %96 = arith.addf %88, %95 : vector<16x128xf32>
    %c0_80 = arith.constant 0 : index
    %c0_81 = arith.constant 0 : index
    %97 = vector.load %arg5[%c0_80, %c0_81] : memref<1x128xf32, #tpu.memory_space<vmem>>, vector<1x128xf32>
    %98 = vector.broadcast %97 : vector<1x128xf32> to vector<16x128xf32>
    %99 = arith.addf %96, %98 : vector<16x128xf32>
    %cst_82 = arith.constant 0.000000e+00 : f32
    %100 = vector.broadcast %cst_82 : f32 to vector<16x128xf32>
    %101 = arith.subf %100, %99 : vector<16x128xf32>
    %102 = math.exp %101 : vector<16x128xf32>
    %cst_83 = arith.constant 1.000000e+00 : f32
    %103 = vector.broadcast %cst_83 : f32 to vector<16x128xf32>
    %104 = arith.addf %103, %102 : vector<16x128xf32>
    %105 = tpu.reciprocal %104 : vector<16x128xf32> -> vector<16x128xf32>
    %cst_84 = arith.constant 0.000000e+00 : f32
    %106 = vector.broadcast %cst_84 : f32 to vector<2x2x128xf32>
    %c0_85 = arith.constant 0 : index
    %c0_86 = arith.constant 0 : index
    %c0_87 = arith.constant 0 : index
    %107 = vector.load %arg16[%c0_85, %c0_86, %c0_87] : memref<2x12x128xf32, #tpu.memory_space<vmem>>, vector<2x2x128xf32>
    tpu.vector_store %arg16[%c0_85, %c0_86, %c0_87], %106 {strides = array<i32>} : memref<2x12x128xf32, #tpu.memory_space<vmem>>, vector<2x2x128xf32>,
    %cst_88 = arith.constant 0.000000e+00 : f32
    %108 = vector.broadcast %cst_88 : f32 to vector<2x2x128xf32>
    %c0_89 = arith.constant 0 : index
    %c10 = arith.constant 10 : index
    %c0_90 = arith.constant 0 : index
    %109 = vector.load %arg16[%c0_89, %c10, %c0_90] : memref<2x12x128xf32, #tpu.memory_space<vmem>>, vector<2x2x128xf32>
    tpu.vector_store %arg16[%c0_89, %c10, %c0_90], %108 {strides = array<i32>} : memref<2x12x128xf32, #tpu.memory_space<vmem>>, vector<2x2x128xf32>,
    %110 = vector.shape_cast %105 : vector<16x128xf32> to vector<2x8x128xf32>
    %c0_91 = arith.constant 0 : index
    %c2_92 = arith.constant 2 : index
    %c0_93 = arith.constant 0 : index
    %111 = vector.load %arg16[%c0_91, %c2_92, %c0_93] : memref<2x12x128xf32, #tpu.memory_space<vmem>>, vector<2x8x128xf32>
    tpu.vector_store %arg16[%c0_91, %c2_92, %c0_93], %110 {strides = array<i32>} : memref<2x12x128xf32, #tpu.memory_space<vmem>>, vector<2x8x128xf32>,
    %cst_94 = arith.constant 0.000000e+00 : f32
    %112 = vector.broadcast %cst_94 : f32 to vector<16x128xf32>
    %c0_95 = arith.constant 0 : index
    %c0_96 = arith.constant 0 : index
    %c0_97 = arith.constant 0 : index
    %113 = vector.load %arg16[%c0_95, %c0_96, %c0_97] : memref<2x12x128xf32, #tpu.memory_space<vmem>>, vector<2x8x128xf32>
    %114 = vector.shape_cast %113 : vector<2x8x128xf32> to vector<16x128xf32>
    %c0_98 = arith.constant 0 : index
    %c0_99 = arith.constant 0 : index
    %c0_100 = arith.constant 0 : index
    %115 = vector.load %arg6[%c0_98, %c0_99, %c0_100] : memref<5x128x128xf32, #tpu.memory_space<vmem>>, vector<1x128x128xf32>
    %116 = vector.shape_cast %115 : vector<1x128x128xf32> to vector<128x128xf32>
    %cst_101 = arith.constant dense<0.000000e+00> : vector<16x128xf32>
    %117 = tpu.matmul %114, %116, %cst_101 {dimension_numbers = #tpu.dot_dimension_numbers<[1], [0], [0], [1], [0, 0, 1, 1], [], []>} : vector<16x128xf32>, vector<128x128xf32>, vector<16x128xf32> -> vector<16x128xf32>
    %118 = arith.addf %112, %117 : vector<16x128xf32>
    %c0_102 = arith.constant 0 : index
    %c1_103 = arith.constant 1 : index
    %c0_104 = arith.constant 0 : index
    %119 = vector.load %arg16[%c0_102, %c1_103, %c0_104] : memref<2x12x128xf32, #tpu.memory_space<vmem>>, vector<2x8x128xf32>
    %120 = vector.shape_cast %119 : vector<2x8x128xf32> to vector<16x128xf32>
    %c1_105 = arith.constant 1 : index
    %c0_106 = arith.constant 0 : index
    %c0_107 = arith.constant 0 : index
    %121 = vector.load %arg6[%c1_105, %c0_106, %c0_107] : memref<5x128x128xf32, #tpu.memory_space<vmem>>, vector<1x128x128xf32>
    %122 = vector.shape_cast %121 : vector<1x128x128xf32> to vector<128x128xf32>
    %cst_108 = arith.constant dense<0.000000e+00> : vector<16x128xf32>
    %123 = tpu.matmul %120, %122, %cst_108 {dimension_numbers = #tpu.dot_dimension_numbers<[1], [0], [0], [1], [0, 0, 1, 1], [], []>} : vector<16x128xf32>, vector<128x128xf32>, vector<16x128xf32> -> vector<16x128xf32>
    %124 = arith.addf %118, %123 : vector<16x128xf32>
    %c0_109 = arith.constant 0 : index
    %c2_110 = arith.constant 2 : index
    %c0_111 = arith.constant 0 : index
    %125 = vector.load %arg16[%c0_109, %c2_110, %c0_111] : memref<2x12x128xf32, #tpu.memory_space<vmem>>, vector<2x8x128xf32>
    %126 = vector.shape_cast %125 : vector<2x8x128xf32> to vector<16x128xf32>
    %c2_112 = arith.constant 2 : index
    %c0_113 = arith.constant 0 : index
    %c0_114 = arith.constant 0 : index
    %127 = vector.load %arg6[%c2_112, %c0_113, %c0_114] : memref<5x128x128xf32, #tpu.memory_space<vmem>>, vector<1x128x128xf32>
    %128 = vector.shape_cast %127 : vector<1x128x128xf32> to vector<128x128xf32>
    %cst_115 = arith.constant dense<0.000000e+00> : vector<16x128xf32>
    %129 = tpu.matmul %126, %128, %cst_115 {dimension_numbers = #tpu.dot_dimension_numbers<[1], [0], [0], [1], [0, 0, 1, 1], [], []>} : vector<16x128xf32>, vector<128x128xf32>, vector<16x128xf32> -> vector<16x128xf32>
    %130 = arith.addf %124, %129 : vector<16x128xf32>
    %c0_116 = arith.constant 0 : index
    %c3_117 = arith.constant 3 : index
    %c0_118 = arith.constant 0 : index
    %131 = vector.load %arg16[%c0_116, %c3_117, %c0_118] : memref<2x12x128xf32, #tpu.memory_space<vmem>>, vector<2x8x128xf32>
    %132 = vector.shape_cast %131 : vector<2x8x128xf32> to vector<16x128xf32>
    %c3_119 = arith.constant 3 : index
    %c0_120 = arith.constant 0 : index
    %c0_121 = arith.constant 0 : index
    %133 = vector.load %arg6[%c3_119, %c0_120, %c0_121] : memref<5x128x128xf32, #tpu.memory_space<vmem>>, vector<1x128x128xf32>
    %134 = vector.shape_cast %133 : vector<1x128x128xf32> to vector<128x128xf32>
    %cst_122 = arith.constant dense<0.000000e+00> : vector<16x128xf32>
    %135 = tpu.matmul %132, %134, %cst_122 {dimension_numbers = #tpu.dot_dimension_numbers<[1], [0], [0], [1], [0, 0, 1, 1], [], []>} : vector<16x128xf32>, vector<128x128xf32>, vector<16x128xf32> -> vector<16x128xf32>
    %136 = arith.addf %130, %135 : vector<16x128xf32>
    %c0_123 = arith.constant 0 : index
    %c4_124 = arith.constant 4 : index
    %c0_125 = arith.constant 0 : index
    %137 = vector.load %arg16[%c0_123, %c4_124, %c0_125] : memref<2x12x128xf32, #tpu.memory_space<vmem>>, vector<2x8x128xf32>
    %138 = vector.shape_cast %137 : vector<2x8x128xf32> to vector<16x128xf32>
    %c4_126 = arith.constant 4 : index
    %c0_127 = arith.constant 0 : index
    %c0_128 = arith.constant 0 : index
    %139 = vector.load %arg6[%c4_126, %c0_127, %c0_128] : memref<5x128x128xf32, #tpu.memory_space<vmem>>, vector<1x128x128xf32>
    %140 = vector.shape_cast %139 : vector<1x128x128xf32> to vector<128x128xf32>
    %cst_129 = arith.constant dense<0.000000e+00> : vector<16x128xf32>
    %141 = tpu.matmul %138, %140, %cst_129 {dimension_numbers = #tpu.dot_dimension_numbers<[1], [0], [0], [1], [0, 0, 1, 1], [], []>} : vector<16x128xf32>, vector<128x128xf32>, vector<16x128xf32> -> vector<16x128xf32>
    %142 = arith.addf %136, %141 : vector<16x128xf32>
    %c0_130 = arith.constant 0 : index
    %c0_131 = arith.constant 0 : index
    %143 = vector.load %arg7[%c0_130, %c0_131] : memref<1x128xf32, #tpu.memory_space<vmem>>, vector<1x128xf32>
    %144 = vector.broadcast %143 : vector<1x128xf32> to vector<16x128xf32>
    %145 = arith.addf %142, %144 : vector<16x128xf32>
    %cst_132 = arith.constant 0.000000e+00 : f32
    %146 = vector.broadcast %cst_132 : f32 to vector<16x128xf32>
    %147 = arith.subf %146, %145 : vector<16x128xf32>
    %148 = math.exp %147 : vector<16x128xf32>
    %cst_133 = arith.constant 1.000000e+00 : f32
    %149 = vector.broadcast %cst_133 : f32 to vector<16x128xf32>
    %150 = arith.addf %149, %148 : vector<16x128xf32>
    %151 = tpu.reciprocal %150 : vector<16x128xf32> -> vector<16x128xf32>
    %cst_134 = arith.constant 0.000000e+00 : f32
    %152 = vector.broadcast %cst_134 : f32 to vector<2x2x128xf32>
    %c0_135 = arith.constant 0 : index
    %c0_136 = arith.constant 0 : index
    %c0_137 = arith.constant 0 : index
    %153 = vector.load %arg17[%c0_135, %c0_136, %c0_137] : memref<2x12x128xf32, #tpu.memory_space<vmem>>, vector<2x2x128xf32>
    tpu.vector_store %arg17[%c0_135, %c0_136, %c0_137], %152 {strides = array<i32>} : memref<2x12x128xf32, #tpu.memory_space<vmem>>, vector<2x2x128xf32>,
    %cst_138 = arith.constant 0.000000e+00 : f32
    %154 = vector.broadcast %cst_138 : f32 to vector<2x2x128xf32>
    %c0_139 = arith.constant 0 : index
    %c10_140 = arith.constant 10 : index
    %c0_141 = arith.constant 0 : index
    %155 = vector.load %arg17[%c0_139, %c10_140, %c0_141] : memref<2x12x128xf32, #tpu.memory_space<vmem>>, vector<2x2x128xf32>
    tpu.vector_store %arg17[%c0_139, %c10_140, %c0_141], %154 {strides = array<i32>} : memref<2x12x128xf32, #tpu.memory_space<vmem>>, vector<2x2x128xf32>,
    %156 = vector.shape_cast %151 : vector<16x128xf32> to vector<2x8x128xf32>
    %c0_142 = arith.constant 0 : index
    %c2_143 = arith.constant 2 : index
    %c0_144 = arith.constant 0 : index
    %157 = vector.load %arg17[%c0_142, %c2_143, %c0_144] : memref<2x12x128xf32, #tpu.memory_space<vmem>>, vector<2x8x128xf32>
    tpu.vector_store %arg17[%c0_142, %c2_143, %c0_144], %156 {strides = array<i32>} : memref<2x12x128xf32, #tpu.memory_space<vmem>>, vector<2x8x128xf32>,
    %cst_145 = arith.constant 0.000000e+00 : f32
    %158 = vector.broadcast %cst_145 : f32 to vector<16x128xf32>
    %c0_146 = arith.constant 0 : index
    %c0_147 = arith.constant 0 : index
    %c0_148 = arith.constant 0 : index
    %159 = vector.load %arg17[%c0_146, %c0_147, %c0_148] : memref<2x12x128xf32, #tpu.memory_space<vmem>>, vector<2x8x128xf32>
    %160 = vector.shape_cast %159 : vector<2x8x128xf32> to vector<16x128xf32>
    %c0_149 = arith.constant 0 : index
    %c0_150 = arith.constant 0 : index
    %c0_151 = arith.constant 0 : index
    %161 = vector.load %arg8[%c0_149, %c0_150, %c0_151] : memref<5x128x128xf32, #tpu.memory_space<vmem>>, vector<1x128x128xf32>
    %162 = vector.shape_cast %161 : vector<1x128x128xf32> to vector<128x128xf32>
    %cst_152 = arith.constant dense<0.000000e+00> : vector<16x128xf32>
    %163 = tpu.matmul %160, %162, %cst_152 {dimension_numbers = #tpu.dot_dimension_numbers<[1], [0], [0], [1], [0, 0, 1, 1], [], []>} : vector<16x128xf32>, vector<128x128xf32>, vector<16x128xf32> -> vector<16x128xf32>
    %164 = arith.addf %158, %163 : vector<16x128xf32>
    %c0_153 = arith.constant 0 : index
    %c1_154 = arith.constant 1 : index
    %c0_155 = arith.constant 0 : index
    %165 = vector.load %arg17[%c0_153, %c1_154, %c0_155] : memref<2x12x128xf32, #tpu.memory_space<vmem>>, vector<2x8x128xf32>
    %166 = vector.shape_cast %165 : vector<2x8x128xf32> to vector<16x128xf32>
    %c1_156 = arith.constant 1 : index
    %c0_157 = arith.constant 0 : index
    %c0_158 = arith.constant 0 : index
    %167 = vector.load %arg8[%c1_156, %c0_157, %c0_158] : memref<5x128x128xf32, #tpu.memory_space<vmem>>, vector<1x128x128xf32>
    %168 = vector.shape_cast %167 : vector<1x128x128xf32> to vector<128x128xf32>
    %cst_159 = arith.constant dense<0.000000e+00> : vector<16x128xf32>
    %169 = tpu.matmul %166, %168, %cst_159 {dimension_numbers = #tpu.dot_dimension_numbers<[1], [0], [0], [1], [0, 0, 1, 1], [], []>} : vector<16x128xf32>, vector<128x128xf32>, vector<16x128xf32> -> vector<16x128xf32>
    %170 = arith.addf %164, %169 : vector<16x128xf32>
    %c0_160 = arith.constant 0 : index
    %c2_161 = arith.constant 2 : index
    %c0_162 = arith.constant 0 : index
    %171 = vector.load %arg17[%c0_160, %c2_161, %c0_162] : memref<2x12x128xf32, #tpu.memory_space<vmem>>, vector<2x8x128xf32>
    %172 = vector.shape_cast %171 : vector<2x8x128xf32> to vector<16x128xf32>
    %c2_163 = arith.constant 2 : index
    %c0_164 = arith.constant 0 : index
    %c0_165 = arith.constant 0 : index
    %173 = vector.load %arg8[%c2_163, %c0_164, %c0_165] : memref<5x128x128xf32, #tpu.memory_space<vmem>>, vector<1x128x128xf32>
    %174 = vector.shape_cast %173 : vector<1x128x128xf32> to vector<128x128xf32>
    %cst_166 = arith.constant dense<0.000000e+00> : vector<16x128xf32>
    %175 = tpu.matmul %172, %174, %cst_166 {dimension_numbers = #tpu.dot_dimension_numbers<[1], [0], [0], [1], [0, 0, 1, 1], [], []>} : vector<16x128xf32>, vector<128x128xf32>, vector<16x128xf32> -> vector<16x128xf32>
    %176 = arith.addf %170, %175 : vector<16x128xf32>
    %c0_167 = arith.constant 0 : index
    %c3_168 = arith.constant 3 : index
    %c0_169 = arith.constant 0 : index
    %177 = vector.load %arg17[%c0_167, %c3_168, %c0_169] : memref<2x12x128xf32, #tpu.memory_space<vmem>>, vector<2x8x128xf32>
    %178 = vector.shape_cast %177 : vector<2x8x128xf32> to vector<16x128xf32>
    %c3_170 = arith.constant 3 : index
    %c0_171 = arith.constant 0 : index
    %c0_172 = arith.constant 0 : index
    %179 = vector.load %arg8[%c3_170, %c0_171, %c0_172] : memref<5x128x128xf32, #tpu.memory_space<vmem>>, vector<1x128x128xf32>
    %180 = vector.shape_cast %179 : vector<1x128x128xf32> to vector<128x128xf32>
    %cst_173 = arith.constant dense<0.000000e+00> : vector<16x128xf32>
    %181 = tpu.matmul %178, %180, %cst_173 {dimension_numbers = #tpu.dot_dimension_numbers<[1], [0], [0], [1], [0, 0, 1, 1], [], []>} : vector<16x128xf32>, vector<128x128xf32>, vector<16x128xf32> -> vector<16x128xf32>
    %182 = arith.addf %176, %181 : vector<16x128xf32>
    %c0_174 = arith.constant 0 : index
    %c4_175 = arith.constant 4 : index
    %c0_176 = arith.constant 0 : index
    %183 = vector.load %arg17[%c0_174, %c4_175, %c0_176] : memref<2x12x128xf32, #tpu.memory_space<vmem>>, vector<2x8x128xf32>
    %184 = vector.shape_cast %183 : vector<2x8x128xf32> to vector<16x128xf32>
    %c4_177 = arith.constant 4 : index
    %c0_178 = arith.constant 0 : index
    %c0_179 = arith.constant 0 : index
    %185 = vector.load %arg8[%c4_177, %c0_178, %c0_179] : memref<5x128x128xf32, #tpu.memory_space<vmem>>, vector<1x128x128xf32>
    %186 = vector.shape_cast %185 : vector<1x128x128xf32> to vector<128x128xf32>
    %cst_180 = arith.constant dense<0.000000e+00> : vector<16x128xf32>
    %187 = tpu.matmul %184, %186, %cst_180 {dimension_numbers = #tpu.dot_dimension_numbers<[1], [0], [0], [1], [0, 0, 1, 1], [], []>} : vector<16x128xf32>, vector<128x128xf32>, vector<16x128xf32> -> vector<16x128xf32>
    %188 = arith.addf %182, %187 : vector<16x128xf32>
    %c0_181 = arith.constant 0 : index
    %c0_182 = arith.constant 0 : index
    %189 = vector.load %arg9[%c0_181, %c0_182] : memref<1x128xf32, #tpu.memory_space<vmem>>, vector<1x128xf32>
    %190 = vector.broadcast %189 : vector<1x128xf32> to vector<16x128xf32>
    %191 = arith.addf %188, %190 : vector<16x128xf32>
    %cst_183 = arith.constant 0.000000e+00 : f32
    %192 = vector.broadcast %cst_183 : f32 to vector<16x128xf32>
    %193 = arith.subf %192, %191 : vector<16x128xf32>
    %194 = math.exp %193 : vector<16x128xf32>
    %cst_184 = arith.constant 1.000000e+00 : f32
    %195 = vector.broadcast %cst_184 : f32 to vector<16x128xf32>
    %196 = arith.addf %195, %194 : vector<16x128xf32>
    %197 = tpu.reciprocal %196 : vector<16x128xf32> -> vector<16x128xf32>
    %198 = vector.shape_cast %197 : vector<16x128xf32> to vector<2x8x128xf32>
    %cst_185 = arith.constant 0.000000e+00 : f32
    %199 = vector.broadcast %cst_185 : f32 to vector<2x128xf32>
    %200 = vector.extract_strided_slice %198 {offsets = [0, 0, 0], sizes = [2, 1, 128], strides = [1, 1, 1]} : vector<2x8x128xf32> to vector<2x1x128xf32>
    %201 = vector.shape_cast %200 : vector<2x1x128xf32> to vector<2x128xf32>
    %c0_186 = arith.constant 0 : index
    %c0_187 = arith.constant 0 : index
    %c0_188 = arith.constant 0 : index
    %202 = vector.load %arg10[%c0_186, %c0_187, %c0_188] : memref<8x128x128xf32, #tpu.memory_space<vmem>>, vector<1x128x128xf32>
    %203 = vector.shape_cast %202 : vector<1x128x128xf32> to vector<128x128xf32>
    %cst_189 = arith.constant dense<0.000000e+00> : vector<2x128xf32>
    %204 = tpu.matmul %201, %203, %cst_189 {dimension_numbers = #tpu.dot_dimension_numbers<[1], [0], [0], [1], [0, 0, 1, 1], [], []>} : vector<2x128xf32>, vector<128x128xf32>, vector<2x128xf32> -> vector<2x128xf32>
    %205 = arith.addf %199, %204 : vector<2x128xf32>
    %206 = vector.extract_strided_slice %198 {offsets = [0, 1, 0], sizes = [2, 1, 128], strides = [1, 1, 1]} : vector<2x8x128xf32> to vector<2x1x128xf32>
    %207 = vector.shape_cast %206 : vector<2x1x128xf32> to vector<2x128xf32>
    %c1_190 = arith.constant 1 : index
    %c0_191 = arith.constant 0 : index
    %c0_192 = arith.constant 0 : index
    %208 = vector.load %arg10[%c1_190, %c0_191, %c0_192] : memref<8x128x128xf32, #tpu.memory_space<vmem>>, vector<1x128x128xf32>
    %209 = vector.shape_cast %208 : vector<1x128x128xf32> to vector<128x128xf32>
    %cst_193 = arith.constant dense<0.000000e+00> : vector<2x128xf32>
    %210 = tpu.matmul %207, %209, %cst_193 {dimension_numbers = #tpu.dot_dimension_numbers<[1], [0], [0], [1], [0, 0, 1, 1], [], []>} : vector<2x128xf32>, vector<128x128xf32>, vector<2x128xf32> -> vector<2x128xf32>
    %211 = arith.addf %205, %210 : vector<2x128xf32>
    %212 = vector.extract_strided_slice %198 {offsets = [0, 2, 0], sizes = [2, 1, 128], strides = [1, 1, 1]} : vector<2x8x128xf32> to vector<2x1x128xf32>
    %213 = vector.shape_cast %212 : vector<2x1x128xf32> to vector<2x128xf32>
    %c2_194 = arith.constant 2 : index
    %c0_195 = arith.constant 0 : index
    %c0_196 = arith.constant 0 : index
    %214 = vector.load %arg10[%c2_194, %c0_195, %c0_196] : memref<8x128x128xf32, #tpu.memory_space<vmem>>, vector<1x128x128xf32>
    %215 = vector.shape_cast %214 : vector<1x128x128xf32> to vector<128x128xf32>
    %cst_197 = arith.constant dense<0.000000e+00> : vector<2x128xf32>
    %216 = tpu.matmul %213, %215, %cst_197 {dimension_numbers = #tpu.dot_dimension_numbers<[1], [0], [0], [1], [0, 0, 1, 1], [], []>} : vector<2x128xf32>, vector<128x128xf32>, vector<2x128xf32> -> vector<2x128xf32>
    %217 = arith.addf %211, %216 : vector<2x128xf32>
    %218 = vector.extract_strided_slice %198 {offsets = [0, 3, 0], sizes = [2, 1, 128], strides = [1, 1, 1]} : vector<2x8x128xf32> to vector<2x1x128xf32>
    %219 = vector.shape_cast %218 : vector<2x1x128xf32> to vector<2x128xf32>
    %c3_198 = arith.constant 3 : index
    %c0_199 = arith.constant 0 : index
    %c0_200 = arith.constant 0 : index
    %220 = vector.load %arg10[%c3_198, %c0_199, %c0_200] : memref<8x128x128xf32, #tpu.memory_space<vmem>>, vector<1x128x128xf32>
    %221 = vector.shape_cast %220 : vector<1x128x128xf32> to vector<128x128xf32>
    %cst_201 = arith.constant dense<0.000000e+00> : vector<2x128xf32>
    %222 = tpu.matmul %219, %221, %cst_201 {dimension_numbers = #tpu.dot_dimension_numbers<[1], [0], [0], [1], [0, 0, 1, 1], [], []>} : vector<2x128xf32>, vector<128x128xf32>, vector<2x128xf32> -> vector<2x128xf32>
    %223 = arith.addf %217, %222 : vector<2x128xf32>
    %224 = vector.extract_strided_slice %198 {offsets = [0, 4, 0], sizes = [2, 1, 128], strides = [1, 1, 1]} : vector<2x8x128xf32> to vector<2x1x128xf32>
    %225 = vector.shape_cast %224 : vector<2x1x128xf32> to vector<2x128xf32>
    %c4_202 = arith.constant 4 : index
    %c0_203 = arith.constant 0 : index
    %c0_204 = arith.constant 0 : index
    %226 = vector.load %arg10[%c4_202, %c0_203, %c0_204] : memref<8x128x128xf32, #tpu.memory_space<vmem>>, vector<1x128x128xf32>
    %227 = vector.shape_cast %226 : vector<1x128x128xf32> to vector<128x128xf32>
    %cst_205 = arith.constant dense<0.000000e+00> : vector<2x128xf32>
    %228 = tpu.matmul %225, %227, %cst_205 {dimension_numbers = #tpu.dot_dimension_numbers<[1], [0], [0], [1], [0, 0, 1, 1], [], []>} : vector<2x128xf32>, vector<128x128xf32>, vector<2x128xf32> -> vector<2x128xf32>
    %229 = arith.addf %223, %228 : vector<2x128xf32>
    %230 = vector.extract_strided_slice %198 {offsets = [0, 5, 0], sizes = [2, 1, 128], strides = [1, 1, 1]} : vector<2x8x128xf32> to vector<2x1x128xf32>
    %231 = vector.shape_cast %230 : vector<2x1x128xf32> to vector<2x128xf32>
    %c5 = arith.constant 5 : index
    %c0_206 = arith.constant 0 : index
    %c0_207 = arith.constant 0 : index
    %232 = vector.load %arg10[%c5, %c0_206, %c0_207] : memref<8x128x128xf32, #tpu.memory_space<vmem>>, vector<1x128x128xf32>
    %233 = vector.shape_cast %232 : vector<1x128x128xf32> to vector<128x128xf32>
    %cst_208 = arith.constant dense<0.000000e+00> : vector<2x128xf32>
    %234 = tpu.matmul %231, %233, %cst_208 {dimension_numbers = #tpu.dot_dimension_numbers<[1], [0], [0], [1], [0, 0, 1, 1], [], []>} : vector<2x128xf32>, vector<128x128xf32>, vector<2x128xf32> -> vector<2x128xf32>
    %235 = arith.addf %229, %234 : vector<2x128xf32>
    %236 = vector.extract_strided_slice %198 {offsets = [0, 6, 0], sizes = [2, 1, 128], strides = [1, 1, 1]} : vector<2x8x128xf32> to vector<2x1x128xf32>
    %237 = vector.shape_cast %236 : vector<2x1x128xf32> to vector<2x128xf32>
    %c6 = arith.constant 6 : index
    %c0_209 = arith.constant 0 : index
    %c0_210 = arith.constant 0 : index
    %238 = vector.load %arg10[%c6, %c0_209, %c0_210] : memref<8x128x128xf32, #tpu.memory_space<vmem>>, vector<1x128x128xf32>
    %239 = vector.shape_cast %238 : vector<1x128x128xf32> to vector<128x128xf32>
    %cst_211 = arith.constant dense<0.000000e+00> : vector<2x128xf32>
    %240 = tpu.matmul %237, %239, %cst_211 {dimension_numbers = #tpu.dot_dimension_numbers<[1], [0], [0], [1], [0, 0, 1, 1], [], []>} : vector<2x128xf32>, vector<128x128xf32>, vector<2x128xf32> -> vector<2x128xf32>
    %241 = arith.addf %235, %240 : vector<2x128xf32>
    %242 = vector.extract_strided_slice %198 {offsets = [0, 7, 0], sizes = [2, 1, 128], strides = [1, 1, 1]} : vector<2x8x128xf32> to vector<2x1x128xf32>
    %243 = vector.shape_cast %242 : vector<2x1x128xf32> to vector<2x128xf32>
    %c7 = arith.constant 7 : index
    %c0_212 = arith.constant 0 : index
    %c0_213 = arith.constant 0 : index
    %244 = vector.load %arg10[%c7, %c0_212, %c0_213] : memref<8x128x128xf32, #tpu.memory_space<vmem>>, vector<1x128x128xf32>
    %245 = vector.shape_cast %244 : vector<1x128x128xf32> to vector<128x128xf32>
    %cst_214 = arith.constant dense<0.000000e+00> : vector<2x128xf32>
    %246 = tpu.matmul %243, %245, %cst_214 {dimension_numbers = #tpu.dot_dimension_numbers<[1], [0], [0], [1], [0, 0, 1, 1], [], []>} : vector<2x128xf32>, vector<128x128xf32>, vector<2x128xf32> -> vector<2x128xf32>
    %247 = arith.addf %241, %246 : vector<2x128xf32>
    %c0_215 = arith.constant 0 : index
    %c0_216 = arith.constant 0 : index
    %248 = vector.load %arg11[%c0_215, %c0_216] : memref<1x128xf32, #tpu.memory_space<vmem>>, vector<1x128xf32>
    %249 = vector.broadcast %248 : vector<1x128xf32> to vector<2x128xf32>
    %250 = arith.addf %247, %249 : vector<2x128xf32>
    %cst_217 = arith.constant 0.000000e+00 : f32
    %251 = vector.broadcast %cst_217 : f32 to vector<2x128xf32>
    %252 = arith.subf %251, %250 : vector<2x128xf32>
    %253 = math.exp %252 : vector<2x128xf32>
    %cst_218 = arith.constant 1.000000e+00 : f32
    %254 = vector.broadcast %cst_218 : f32 to vector<2x128xf32>
    %255 = arith.addf %254, %253 : vector<2x128xf32>
    %256 = tpu.reciprocal %255 : vector<2x128xf32> -> vector<2x128xf32>
    %c0_219 = arith.constant 0 : index
    %c0_220 = arith.constant 0 : index
    %257 = vector.load %arg12[%c0_219, %c0_220] : memref<128x128xf32, #tpu.memory_space<vmem>>, vector<128x128xf32>
    %cst_221 = arith.constant dense<0.000000e+00> : vector<2x128xf32>
    %258 = tpu.matmul %256, %257, %cst_221 {dimension_numbers = #tpu.dot_dimension_numbers<[1], [0], [0], [1], [0, 0, 1, 1], [], []>} : vector<2x128xf32>, vector<128x128xf32>, vector<2x128xf32> -> vector<2x128xf32>
    %c0_222 = arith.constant 0 : index
    %c0_223 = arith.constant 0 : index
    %259 = vector.load %arg13[%c0_222, %c0_223] : memref<1x128xf32, #tpu.memory_space<vmem>>, vector<1x128xf32>
    %260 = vector.broadcast %259 : vector<1x128xf32> to vector<2x128xf32>
    %261 = arith.addf %258, %260 : vector<2x128xf32>
    %c0_224 = arith.constant 0 : index
    %c0_225 = arith.constant 0 : index
    %262 = vector.load %arg14[%c0_224, %c0_225] : memref<2x128xf32, #tpu.memory_space<vmem>>, vector<2x128xf32>
    tpu.vector_store %arg14[%c0_224, %c0_225], %261 {strides = array<i32>} : memref<2x128xf32, #tpu.memory_space<vmem>>, vector<2x128xf32>,
    return
  }
  func.func @transform_0(%arg0: i32) -> (i32, i32, i32) {
    %c0_i32 = arith.constant 0 : i32
    %c0_i32_0 = arith.constant 0 : i32
    %c0_i32_1 = arith.constant 0 : i32
    return %arg0, %c0_i32, %c0_i32_0 : i32, i32, i32
  }
  func.func @transform_1(%arg0: i32) -> (i32, i32, i32) {
    %c0_i32 = arith.constant 0 : i32
    %c0_i32_0 = arith.constant 0 : i32
    %c0_i32_1 = arith.constant 0 : i32
    %c0_i32_2 = arith.constant 0 : i32
    return %c0_i32, %c0_i32_0, %c0_i32_1 : i32, i32, i32
  }
  func.func @transform_2(%arg0: i32) -> (i32, i32) {
    %c0_i32 = arith.constant 0 : i32
    %c0_i32_0 = arith.constant 0 : i32
    %c0_i32_1 = arith.constant 0 : i32
    return %c0_i32, %c0_i32_0 : i32, i32
  }
  func.func @transform_3(%arg0: i32) -> (i32, i32, i32) {
    %c0_i32 = arith.constant 0 : i32
    %c0_i32_0 = arith.constant 0 : i32
    %c0_i32_1 = arith.constant 0 : i32
    %c0_i32_2 = arith.constant 0 : i32
    return %c0_i32, %c0_i32_0, %c0_i32_1 : i32, i32, i32
  }
  func.func @transform_4(%arg0: i32) -> (i32, i32) {
    %c0_i32 = arith.constant 0 : i32
    %c0_i32_0 = arith.constant 0 : i32
    %c0_i32_1 = arith.constant 0 : i32
    return %c0_i32, %c0_i32_0 : i32, i32
  }
  func.func @transform_5(%arg0: i32) -> (i32, i32, i32) {
    %c0_i32 = arith.constant 0 : i32
    %c0_i32_0 = arith.constant 0 : i32
    %c0_i32_1 = arith.constant 0 : i32
    %c0_i32_2 = arith.constant 0 : i32
    return %c0_i32, %c0_i32_0, %c0_i32_1 : i32, i32, i32
  }
  func.func @transform_6(%arg0: i32) -> (i32, i32) {
    %c0_i32 = arith.constant 0 : i32
    %c0_i32_0 = arith.constant 0 : i32
    %c0_i32_1 = arith.constant 0 : i32
    return %c0_i32, %c0_i32_0 : i32, i32
  }
  func.func @transform_7(%arg0: i32) -> (i32, i32, i32) {
    %c0_i32 = arith.constant 0 : i32
    %c0_i32_0 = arith.constant 0 : i32
    %c0_i32_1 = arith.constant 0 : i32
    %c0_i32_2 = arith.constant 0 : i32
    return %c0_i32, %c0_i32_0, %c0_i32_1 : i32, i32, i32
  }
  func.func @transform_8(%arg0: i32) -> (i32, i32) {
    %c0_i32 = arith.constant 0 : i32
    %c0_i32_0 = arith.constant 0 : i32
    %c0_i32_1 = arith.constant 0 : i32
    return %c0_i32, %c0_i32_0 : i32, i32
  }
  func.func @transform_9(%arg0: i32) -> (i32, i32, i32) {
    %c0_i32 = arith.constant 0 : i32
    %c0_i32_0 = arith.constant 0 : i32
    %c0_i32_1 = arith.constant 0 : i32
    %c0_i32_2 = arith.constant 0 : i32
    return %c0_i32, %c0_i32_0, %c0_i32_1 : i32, i32, i32
  }
  func.func @transform_10(%arg0: i32) -> (i32, i32) {
    %c0_i32 = arith.constant 0 : i32
    %c0_i32_0 = arith.constant 0 : i32
    %c0_i32_1 = arith.constant 0 : i32
    return %c0_i32, %c0_i32_0 : i32, i32
  }
  func.func @transform_11(%arg0: i32) -> (i32, i32) {
    %c0_i32 = arith.constant 0 : i32
    %c0_i32_0 = arith.constant 0 : i32
    %c0_i32_1 = arith.constant 0 : i32
    return %c0_i32, %c0_i32_0 : i32, i32
  }
  func.func @transform_12(%arg0: i32) -> (i32, i32) {
    %c0_i32 = arith.constant 0 : i32
    %c0_i32_0 = arith.constant 0 : i32
    %c0_i32_1 = arith.constant 0 : i32
    return %c0_i32, %c0_i32_0 : i32, i32
  }
  func.func @transform_13(%arg0: i32) -> (i32, i32) {
    %c0_i32 = arith.constant 0 : i32
    %c0_i32_0 = arith.constant 0 : i32
    return %arg0, %c0_i32 : i32, i32
  }
}

</mosaic_0001>

<llo_original>
// kernel: lenet_svhn_forward.1
$region0: #{lenet_svhn_forward.1}
  #allocation0 [shape = 'u32[]', space=smem, size = 0x4, offset = 0x4, fixed_abs, tag = 'smem constant byte address 0x4 - core index']
  #allocation1 [shape = 'u32[144,128]{1,0:T(1,128)}', space=vmem, size = 0x12000, scoped, tag = 'internal scratch']
  #allocation2 [shape = 'f32[2,20,192]{2,1,0:T(8,128)}', space=vmem, size = 0xc000, scoped, tag = 'scratch operand']
  #allocation3 [shape = 'f32[2,12,128]{2,1,0:T(8,128)}', space=vmem, size = 0x4000, scoped, tag = 'scratch operand']
  #allocation4 [shape = 'f32[2,12,128]{2,1,0:T(8,128)}', space=vmem, size = 0x4000, scoped, tag = 'scratch operand']
  %s0 = inlined_call_operand.vmem [shape: f32[2,36,128], index: 0, kind: input, shape index: {}]
  %s1 = inlined_call_operand.vmem [shape: f32[5,128,192], index: 1, kind: input, shape index: {}]
  %s2 = inlined_call_operand.vmem [shape: f32[1,192], index: 2, kind: input, shape index: {}]
  %s3 = inlined_call_operand.vmem [shape: f32[5,192,128], index: 3, kind: input, shape index: {}]
  %s4 = inlined_call_operand.vmem [shape: f32[1,128], index: 4, kind: input, shape index: {}]
  %s5 = inlined_call_operand.hbm [shape: f32[5,128,128], index: 5, kind: input, shape index: {}]
  %s6 = inlined_call_operand.vmem [shape: f32[1,128], index: 6, kind: input, shape index: {}]
  %s7 = inlined_call_operand.hbm [shape: f32[5,128,128], index: 7, kind: input, shape index: {}]
  %s8 = inlined_call_operand.vmem [shape: f32[1,128], index: 8, kind: input, shape index: {}]
  %s9 = inlined_call_operand.vmem [shape: f32[8,128,128], index: 9, kind: input, shape index: {}]
  %s10 = inlined_call_operand.vmem [shape: f32[1,128], index: 10, kind: input, shape index: {}]
  %s11 = inlined_call_operand.vmem [shape: f32[128,128], index: 11, kind: input, shape index: {}]
  %s12 = inlined_call_operand.vmem [shape: f32[1,128], index: 12, kind: input, shape index: {}]
  %s13 = inlined_call_operand.hbm [shape: f32[2,128], index: 13, kind: output, shape index: {}]
  %s14 = sld [smem:[#allocation0]]
  $region70: #{lenet_svhn_forward.1} parent=0
    _
  %s16 = ssub.s32 1, %s14
  %s17 = scalar_select 0, %s16, %s14
  $region1: #{lenet_svhn_forward.1} parent=0
    #allocation5 [shape = 'u8[327680]{0}', space=vmem, size = 0x50000, scoped, tag = 'input window, operand 5, single buffered']
    #allocation6 [shape = 's32[1]{0}', space=sflag, size = 0x4, scoped, tag = 'scoped memory for lenet_svhn_forward.1']
    #allocation7 [shape = 's32[1]{0}', space=sflag, size = 0x4, scoped, tag = 'scoped memory for lenet_svhn_forward.1']
    #allocation8 [shape = 'u8[327680]{0}', space=vmem, size = 0x50000, scoped, tag = 'input window, operand 7, single buffered']
    #allocation9 [shape = 's32[1]{0}', space=sflag, size = 0x4, scoped, tag = 'scoped memory for lenet_svhn_forward.1']
    #allocation10 [shape = 'u8[1024]{0}', space=vmem, size = 0x400, scoped, tag = 'output window, operand 0, single buffered']
    %18 = vsyncpa [#allocation6], 0
    %19 = vsyncpa [#allocation9], 0
    %20 = vsyncpa [#allocation7], 0
    // Predicated region
    $region2: #{lenet_svhn_forward.1} parent=1 // pred_check
      _
    $region3: #{lenet_svhn_forward.1} parent=1 // pred_check_branch
      %22 = sbr.rel (0) target = $region5
    $region4: #{lenet_svhn_forward.1} parent=1 // pred_region
      _
    $region5: #{lenet_svhn_forward.1} parent=1 // pred_fallthru
      _
    // Predicated region
    $region6: #{lenet_svhn_forward.1} parent=1 // pred_check
      _
    $region7: #{lenet_svhn_forward.1} parent=1 // pred_check_branch
      %24 = sbr.rel (0) target = $region9
    $region8: #{lenet_svhn_forward.1} parent=1 // pred_region
      _
    $region9: #{lenet_svhn_forward.1} parent=1 // pred_fallthru
      _
    // Predicated region
    $region10: #{lenet_svhn_forward.1} parent=1 // pred_check
      _
    $region11: #{lenet_svhn_forward.1} parent=1 // pred_check_branch
      %26 = sbr.rel (0) target = $region13
    $region12: #{lenet_svhn_forward.1} parent=1 // pred_region
      _
    $region13: #{lenet_svhn_forward.1} parent=1 // pred_fallthru
      _
    // Predicated region
    $region14: #{lenet_svhn_forward.1} parent=1 // pred_check
      _
    $region15: #{lenet_svhn_forward.1} parent=1 // pred_check_branch
      %28 = sbr.rel (0) target = $region17
    $region16: #{lenet_svhn_forward.1} parent=1 // pred_region
      _
    $region17: #{lenet_svhn_forward.1} parent=1 // pred_fallthru
      _
    // Predicated region
    $region18: #{lenet_svhn_forward.1} parent=1 // pred_check
      _
    $region19: #{lenet_svhn_forward.1} parent=1 // pred_check_branch
      %30 = sbr.rel (0) target = $region21
    $region20: #{lenet_svhn_forward.1} parent=1 // pred_region
      _
    $region21: #{lenet_svhn_forward.1} parent=1 // pred_fallthru
      _
    // Predicated region
    $region22: #{lenet_svhn_forward.1} parent=1 // pred_check
      _
    $region23: #{lenet_svhn_forward.1} parent=1 // pred_check_branch
      %32 = sbr.rel (0) target = $region25
    $region24: #{lenet_svhn_forward.1} parent=1 // pred_region
      %s34 = ssub.s32 10240, 10240
      %35 = vsyncadd [#allocation6], %s34
      %s36 = sshll.u32 [#allocation5], 4
      %s37 = int_to_ptr.vmem [resolvable:$true] %s36
      %42 = dma.hbm_to_vmem [thread:$0]  %s5, 10240, %s37, [#allocation6], 128, 128, 8
    $region25: #{lenet_svhn_forward.1} parent=1 // pred_fallthru
      _
    // Predicated region
    $region26: #{lenet_svhn_forward.1} parent=1 // pred_check
      _
    $region27: #{lenet_svhn_forward.1} parent=1 // pred_check_branch
      %44 = sbr.rel (0) target = $region29
    $region28: #{lenet_svhn_forward.1} parent=1 // pred_region
      _
    $region29: #{lenet_svhn_forward.1} parent=1 // pred_fallthru
      _
    // Predicated region
    $region30: #{lenet_svhn_forward.1} parent=1 // pred_check
      _
    $region31: #{lenet_svhn_forward.1} parent=1 // pred_check_branch
      %46 = sbr.rel (0) target = $region33
    $region32: #{lenet_svhn_forward.1} parent=1 // pred_region
      %s48 = ssub.s32 10240, 10240
      %49 = vsyncadd [#allocation9], %s48
      %s50 = sshll.u32 [#allocation8], 4
      %s51 = int_to_ptr.vmem [resolvable:$true] %s50
      %56 = dma.hbm_to_vmem [thread:$0]  %s7, 10240, %s51, [#allocation9], 128, 128, 8
    $region33: #{lenet_svhn_forward.1} parent=1 // pred_fallthru
      _
    // Predicated region
    $region34: #{lenet_svhn_forward.1} parent=1 // pred_check
      _
    $region35: #{lenet_svhn_forward.1} parent=1 // pred_check_branch
      %58 = sbr.rel (0) target = $region37
    $region36: #{lenet_svhn_forward.1} parent=1 // pred_region
      _
    $region37: #{lenet_svhn_forward.1} parent=1 // pred_fallthru
      _
    // Predicated region
    $region38: #{lenet_svhn_forward.1} parent=1 // pred_check
      _
    $region39: #{lenet_svhn_forward.1} parent=1 // pred_check_branch
      %60 = sbr.rel (0) target = $region41
    $region40: #{lenet_svhn_forward.1} parent=1 // pred_region
      _
    $region41: #{lenet_svhn_forward.1} parent=1 // pred_fallthru
      _
    // Predicated region
    $region42: #{lenet_svhn_forward.1} parent=1 // pred_check
      _
    $region43: #{lenet_svhn_forward.1} parent=1 // pred_check_branch
      %62 = sbr.rel (0) target = $region45
    $region44: #{lenet_svhn_forward.1} parent=1 // pred_region
      _
    $region45: #{lenet_svhn_forward.1} parent=1 // pred_fallthru
      _
    // Predicated region
    $region46: #{lenet_svhn_forward.1} parent=1 // pred_check
      _
    $region47: #{lenet_svhn_forward.1} parent=1 // pred_check_branch
      %64 = sbr.rel (0) target = $region49
    $region48: #{lenet_svhn_forward.1} parent=1 // pred_region
      _
    $region49: #{lenet_svhn_forward.1} parent=1 // pred_fallthru
      _
    // Predicated region
    $region50: #{lenet_svhn_forward.1} parent=1 // pred_check
      _
    $region51: #{lenet_svhn_forward.1} parent=1 // pred_check_branch
      %66 = sbr.rel (0) target = $region53
    $region52: #{lenet_svhn_forward.1} parent=1 // pred_region
      _
    $region53: #{lenet_svhn_forward.1} parent=1 // pred_fallthru
      _
    // Predicated region
    $region54: #{lenet_svhn_forward.1} parent=1 // pred_check
      _
    $region55: #{lenet_svhn_forward.1} parent=1 // pred_check_branch
      %68 = sbr.rel (0) target = $region57
    $region56: #{lenet_svhn_forward.1} parent=1 // pred_region
      %69 = dma.done [#allocation6], 10240
    $region57: #{lenet_svhn_forward.1} parent=1 // pred_fallthru
      _
    // Predicated region
    $region58: #{lenet_svhn_forward.1} parent=1 // pred_check
      _
    $region59: #{lenet_svhn_forward.1} parent=1 // pred_check_branch
      %71 = sbr.rel (0) target = $region61
    $region60: #{lenet_svhn_forward.1} parent=1 // pred_region
      %72 = dma.done [#allocation9], 10240
    $region61: #{lenet_svhn_forward.1} parent=1 // pred_fallthru
      _
    %v73 = vld [vmem:[%s0] sm:$0xff]
    %v74 = vld [vmem:[%s0 + $0x8] sm:$0xff]
    %v75 = vld [vmem:[%s0 + $0x10] sm:$0xff]
    %v76 = vld [vmem:[%s0 + $0x18] sm:$0xff]
    %v77 = vld [vmem:[%s0 + $0x28] sm:$0xff]
    %v78 = vld [vmem:[%s0 + $0x30] sm:$0xff]
    %v79 = vld [vmem:[%s0 + $0x38] sm:$0xff]
    %v80 = vld [vmem:[%s0 + $0x40] sm:$0xff]
    %v89 = vcombine.high %v73, %v73
    %v91 = vunpack.c.l.s4 1983009808
    %v92 = vunpack.c.0.s8 %v91
    %v93 = vlaneseq
    %v94 = vshrl.u32 %v93, 7
    %v95 = vsub.s32 %v92, %v94
    %v96 = vrot.slane %v73, %v95
    %v98 = vunpack.c.l.s4 1983009808
    %v99 = vunpack.c.0.s8 %v98
    %v100 = vlaneseq
    %v101 = vshrl.u32 %v100, 7
    %v102 = vsub.s32 %v99, %v101
    %v103 = vrot.slane %v89, %v102
    %v104 = vcombine.high %v96, %v96
    %v105 = vcombine.high %v103, %v103
    %v106 = vcombine.high %v74, %v74
    %v108 = vunpack.c.l.s4 1983009808
    %v109 = vunpack.c.0.s8 %v108
    %v110 = vlaneseq
    %v111 = vshrl.u32 %v110, 7
    %v112 = vsub.s32 %v109, %v111
    %v113 = vrot.slane %v74, %v112
    %v115 = vunpack.c.l.s4 1983009808
    %v116 = vunpack.c.0.s8 %v115
    %v117 = vlaneseq
    %v118 = vshrl.u32 %v117, 7
    %v119 = vsub.s32 %v116, %v118
    %v120 = vrot.slane %v106, %v119
    %v121 = vcombine.high %v113, %v113
    %v122 = vcombine.high %v120, %v120
    %v123 = vcombine.high %v75, %v75
    %v125 = vunpack.c.l.s4 1983009808
    %v126 = vunpack.c.0.s8 %v125
    %v127 = vlaneseq
    %v128 = vshrl.u32 %v127, 7
    %v129 = vsub.s32 %v126, %v128
    %v130 = vrot.slane %v75, %v129
    %v132 = vunpack.c.l.s4 1983009808
    %v133 = vunpack.c.0.s8 %v132
    %v134 = vlaneseq
    %v135 = vshrl.u32 %v134, 7
    %v136 = vsub.s32 %v133, %v135
    %v137 = vrot.slane %v123, %v136
    %v138 = vcombine.high %v130, %v130
    %v139 = vcombine.high %v137, %v137
    %v140 = vcombine.high %v76, %v76
    %v142 = vunpack.c.l.s4 1983009808
    %v143 = vunpack.c.0.s8 %v142
    %v144 = vlaneseq
    %v145 = vshrl.u32 %v144, 7
    %v146 = vsub.s32 %v143, %v145
    %v147 = vrot.slane %v76, %v146
    %v149 = vunpack.c.l.s4 1983009808
    %v150 = vunpack.c.0.s8 %v149
    %v151 = vlaneseq
    %v152 = vshrl.u32 %v151, 7
    %v153 = vsub.s32 %v150, %v152
    %v154 = vrot.slane %v140, %v153
    %v155 = vcombine.high %v147, %v147
    %v156 = vcombine.high %v154, %v154
    %v157 = vcombine.high %v77, %v77
    %v159 = vunpack.c.l.s4 1983009808
    %v160 = vunpack.c.0.s8 %v159
    %v161 = vlaneseq
    %v162 = vshrl.u32 %v161, 7
    %v163 = vsub.s32 %v160, %v162
    %v164 = vrot.slane %v77, %v163
    %v166 = vunpack.c.l.s4 1983009808
    %v167 = vunpack.c.0.s8 %v166
    %v168 = vlaneseq
    %v169 = vshrl.u32 %v168, 7
    %v170 = vsub.s32 %v167, %v169
    %v171 = vrot.slane %v157, %v170
    %v172 = vcombine.high %v164, %v164
    %v173 = vcombine.high %v171, %v171
    %v174 = vcombine.high %v78, %v78
    %v176 = vunpack.c.l.s4 1983009808
    %v177 = vunpack.c.0.s8 %v176
    %v178 = vlaneseq
    %v179 = vshrl.u32 %v178, 7
    %v180 = vsub.s32 %v177, %v179
    %v181 = vrot.slane %v78, %v180
    %v183 = vunpack.c.l.s4 1983009808
    %v184 = vunpack.c.0.s8 %v183
    %v185 = vlaneseq
    %v186 = vshrl.u32 %v185, 7
    %v187 = vsub.s32 %v184, %v186
    %v188 = vrot.slane %v174, %v187
    %v189 = vcombine.high %v181, %v181
    %v190 = vcombine.high %v188, %v188
    %v191 = vcombine.high %v79, %v79
    %v193 = vunpack.c.l.s4 1983009808
    %v194 = vunpack.c.0.s8 %v193
    %v195 = vlaneseq
    %v196 = vshrl.u32 %v195, 7
    %v197 = vsub.s32 %v194, %v196
    %v198 = vrot.slane %v79, %v197
    %v200 = vunpack.c.l.s4 1983009808
    %v201 = vunpack.c.0.s8 %v200
    %v202 = vlaneseq
    %v203 = vshrl.u32 %v202, 7
    %v204 = vsub.s32 %v201, %v203
    %v205 = vrot.slane %v191, %v204
    %v206 = vcombine.high %v198, %v198
    %v207 = vcombine.high %v205, %v205
    %v208 = vcombine.high %v80, %v80
    %v210 = vunpack.c.l.s4 1983009808
    %v211 = vunpack.c.0.s8 %v210
    %v212 = vlaneseq
    %v213 = vshrl.u32 %v212, 7
    %v214 = vsub.s32 %v211, %v213
    %v215 = vrot.slane %v80, %v214
    %v217 = vunpack.c.l.s4 1983009808
    %v218 = vunpack.c.0.s8 %v217
    %v219 = vlaneseq
    %v220 = vshrl.u32 %v219, 7
    %v221 = vsub.s32 %v218, %v220
    %v222 = vrot.slane %v208, %v221
    %v223 = vcombine.high %v215, %v215
    %v224 = vcombine.high %v222, %v222
    %v225 = vld [vmem:[%s1] sm:$0xff]
    %v226 = vld [vmem:[%s1 + $0x8] sm:$0xff]
    %v227 = vld [vmem:[%s1 + $0x10] sm:$0xff]
    %v228 = vld [vmem:[%s1 + $0x18] sm:$0xff]
    %v229 = vld [vmem:[%s1 + $0x20] sm:$0xff]
    %v230 = vld [vmem:[%s1 + $0x28] sm:$0xff]
    %v231 = vld [vmem:[%s1 + $0x30] sm:$0xff]
    %v232 = vld [vmem:[%s1 + $0x38] sm:$0xff]
    %v233 = vld [vmem:[%s1 + $0x40] sm:$0xff]
    %v234 = vld [vmem:[%s1 + $0x48] sm:$0xff]
    %v235 = vld [vmem:[%s1 + $0x50] sm:$0xff]
    %v236 = vld [vmem:[%s1 + $0x58] sm:$0xff]
    %v237 = vld [vmem:[%s1 + $0x60] sm:$0xff]
    %v238 = vld [vmem:[%s1 + $0x68] sm:$0xff]
    %v239 = vld [vmem:[%s1 + $0x70] sm:$0xff]
    %v240 = vld [vmem:[%s1 + $0x78] sm:$0xff]
    %v241 = vld [vmem:[%s1 + $0x80] sm:$0xff]
    %v242 = vld [vmem:[%s1 + $0x88] sm:$0xff]
    %v243 = vld [vmem:[%s1 + $0x90] sm:$0xff]
    %v244 = vld [vmem:[%s1 + $0x98] sm:$0xff]
    %v245 = vld [vmem:[%s1 + $0xa0] sm:$0xff]
    %v246 = vld [vmem:[%s1 + $0xa8] sm:$0xff]
    %v247 = vld [vmem:[%s1 + $0xb0] sm:$0xff]
    %v248 = vld [vmem:[%s1 + $0xb8] sm:$0xff]
    %v249 = vld [vmem:[%s1 + $0xc0] sm:$0xff]
    %v250 = vld [vmem:[%s1 + $0xc8] sm:$0xff]
    %v251 = vld [vmem:[%s1 + $0xd0] sm:$0xff]
    %v252 = vld [vmem:[%s1 + $0xd8] sm:$0xff]
    %v253 = vld [vmem:[%s1 + $0xe0] sm:$0xff]
    %v254 = vld [vmem:[%s1 + $0xe8] sm:$0xff]
    %v255 = vld [vmem:[%s1 + $0xf0] sm:$0xff]
    %v256 = vld [vmem:[%s1 + $0xf8] sm:$0xff]
    %v257 = vld [vmem:[%s0 + $0x1] sm:$0xff]
    %v258 = vld [vmem:[%s0 + $0x9] sm:$0xff]
    %v259 = vld [vmem:[%s0 + $0x11] sm:$0xff]
    %v260 = vld [vmem:[%s0 + $0x19] sm:$0xff]
    %v261 = vld [vmem:[%s0 + $0x29] sm:$0xff]
    %v262 = vld [vmem:[%s0 + $0x31] sm:$0xff]
    %v263 = vld [vmem:[%s0 + $0x39] sm:$0xff]
    %v264 = vld [vmem:[%s0 + $0x41] sm:$0xff]
    %v273 = vcombine.high %v257, %v257
    %v275 = vunpack.c.l.s4 1983009808
    %v276 = vunpack.c.0.s8 %v275
    %v277 = vlaneseq
    %v278 = vshrl.u32 %v277, 7
    %v279 = vsub.s32 %v276, %v278
    %v280 = vrot.slane %v257, %v279
    %v282 = vunpack.c.l.s4 1983009808
    %v283 = vunpack.c.0.s8 %v282
    %v284 = vlaneseq
    %v285 = vshrl.u32 %v284, 7
    %v286 = vsub.s32 %v283, %v285
    %v287 = vrot.slane %v273, %v286
    %v288 = vcombine.high %v280, %v280
    %v289 = vcombine.high %v287, %v287
    %v290 = vcombine.high %v258, %v258
    %v292 = vunpack.c.l.s4 1983009808
    %v293 = vunpack.c.0.s8 %v292
    %v294 = vlaneseq
    %v295 = vshrl.u32 %v294, 7
    %v296 = vsub.s32 %v293, %v295
    %v297 = vrot.slane %v258, %v296
    %v299 = vunpack.c.l.s4 1983009808
    %v300 = vunpack.c.0.s8 %v299
    %v301 = vlaneseq
    %v302 = vshrl.u32 %v301, 7
    %v303 = vsub.s32 %v300, %v302
    %v304 = vrot.slane %v290, %v303
    %v305 = vcombine.high %v297, %v297
    %v306 = vcombine.high %v304, %v304
    %v307 = vcombine.high %v259, %v259
    %v309 = vunpack.c.l.s4 1983009808
    %v310 = vunpack.c.0.s8 %v309
    %v311 = vlaneseq
    %v312 = vshrl.u32 %v311, 7
    %v313 = vsub.s32 %v310, %v312
    %v314 = vrot.slane %v259, %v313
    %v316 = vunpack.c.l.s4 1983009808
    %v317 = vunpack.c.0.s8 %v316
    %v318 = vlaneseq
    %v319 = vshrl.u32 %v318, 7
    %v320 = vsub.s32 %v317, %v319
    %v321 = vrot.slane %v307, %v320
    %v322 = vcombine.high %v314, %v314
    %v323 = vcombine.high %v321, %v321
    %v324 = vcombine.high %v260, %v260
    %v326 = vunpack.c.l.s4 1983009808
    %v327 = vunpack.c.0.s8 %v326
    %v328 = vlaneseq
    %v329 = vshrl.u32 %v328, 7
    %v330 = vsub.s32 %v327, %v329
    %v331 = vrot.slane %v260, %v330
    %v333 = vunpack.c.l.s4 1983009808
    %v334 = vunpack.c.0.s8 %v333
    %v335 = vlaneseq
    %v336 = vshrl.u32 %v335, 7
    %v337 = vsub.s32 %v334, %v336
    %v338 = vrot.slane %v324, %v337
    %v339 = vcombine.high %v331, %v331
    %v340 = vcombine.high %v338, %v338
    %v341 = vcombine.high %v261, %v261
    %v343 = vunpack.c.l.s4 1983009808
    %v344 = vunpack.c.0.s8 %v343
    %v345 = vlaneseq
    %v346 = vshrl.u32 %v345, 7
    %v347 = vsub.s32 %v344, %v346
    %v348 = vrot.slane %v261, %v347
    %v350 = vunpack.c.l.s4 1983009808
    %v351 = vunpack.c.0.s8 %v350
    %v352 = vlaneseq
    %v353 = vshrl.u32 %v352, 7
    %v354 = vsub.s32 %v351, %v353
    %v355 = vrot.slane %v341, %v354
    %v356 = vcombine.high %v348, %v348
    %v357 = vcombine.high %v355, %v355
    %v358 = vcombine.high %v262, %v262
    %v360 = vunpack.c.l.s4 1983009808
    %v361 = vunpack.c.0.s8 %v360
    %v362 = vlaneseq
    %v363 = vshrl.u32 %v362, 7
    %v364 = vsub.s32 %v361, %v363
    %v365 = vrot.slane %v262, %v364
    %v367 = vunpack.c.l.s4 1983009808
    %v368 = vunpack.c.0.s8 %v367
    %v369 = vlaneseq
    %v370 = vshrl.u32 %v369, 7
    %v371 = vsub.s32 %v368, %v370
    %v372 = vrot.slane %v358, %v371
    %v373 = vcombine.high %v365, %v365
    %v374 = vcombine.high %v372, %v372
    %v375 = vcombine.high %v263, %v263
    %v377 = vunpack.c.l.s4 1983009808
    %v378 = vunpack.c.0.s8 %v377
    %v379 = vlaneseq
    %v380 = vshrl.u32 %v379, 7
    %v381 = vsub.s32 %v378, %v380
    %v382 = vrot.slane %v263, %v381
    %v384 = vunpack.c.l.s4 1983009808
    %v385 = vunpack.c.0.s8 %v384
    %v386 = vlaneseq
    %v387 = vshrl.u32 %v386, 7
    %v388 = vsub.s32 %v385, %v387
    %v389 = vrot.slane %v375, %v388
    %v390 = vcombine.high %v382, %v382
    %v391 = vcombine.high %v389, %v389
    %v392 = vcombine.high %v264, %v264
    %v394 = vunpack.c.l.s4 1983009808
    %v395 = vunpack.c.0.s8 %v394
    %v396 = vlaneseq
    %v397 = vshrl.u32 %v396, 7
    %v398 = vsub.s32 %v395, %v397
    %v399 = vrot.slane %v264, %v398
    %v401 = vunpack.c.l.s4 1983009808
    %v402 = vunpack.c.0.s8 %v401
    %v403 = vlaneseq
    %v404 = vshrl.u32 %v403, 7
    %v405 = vsub.s32 %v402, %v404
    %v406 = vrot.slane %v392, %v405
    %v407 = vcombine.high %v399, %v399
    %v408 = vcombine.high %v406, %v406
    %s409 = scalar_lea.vmem %s1, 256
    %v410 = vld [vmem:[%s409] sm:$0xff]
    %v411 = vld [vmem:[%s409 + $0x8] sm:$0xff]
    %v412 = vld [vmem:[%s409 + $0x10] sm:$0xff]
    %v413 = vld [vmem:[%s409 + $0x18] sm:$0xff]
    %v414 = vld [vmem:[%s409 + $0x20] sm:$0xff]
    %v415 = vld [vmem:[%s409 + $0x28] sm:$0xff]
    %v416 = vld [vmem:[%s409 + $0x30] sm:$0xff]
    %v417 = vld [vmem:[%s409 + $0x38] sm:$0xff]
    %v418 = vld [vmem:[%s409 + $0x40] sm:$0xff]
    %v419 = vld [vmem:[%s409 + $0x48] sm:$0xff]
    %v420 = vld [vmem:[%s409 + $0x50] sm:$0xff]
    %v421 = vld [vmem:[%s409 + $0x58] sm:$0xff]
    %v422 = vld [vmem:[%s409 + $0x60] sm:$0xff]
    %v423 = vld [vmem:[%s409 + $0x68] sm:$0xff]
    %v424 = vld [vmem:[%s409 + $0x70] sm:$0xff]
    %v425 = vld [vmem:[%s409 + $0x78] sm:$0xff]
    %v426 = vld [vmem:[%s409 + $0x80] sm:$0xff]
    %v427 = vld [vmem:[%s409 + $0x88] sm:$0xff]
    %v428 = vld [vmem:[%s409 + $0x90] sm:$0xff]
    %v429 = vld [vmem:[%s409 + $0x98] sm:$0xff]
    %v430 = vld [vmem:[%s409 + $0xa0] sm:$0xff]
    %v431 = vld [vmem:[%s409 + $0xa8] sm:$0xff]
    %v432 = vld [vmem:[%s409 + $0xb0] sm:$0xff]
    %v433 = vld [vmem:[%s409 + $0xb8] sm:$0xff]
    %v434 = vld [vmem:[%s409 + $0xc0] sm:$0xff]
    %v435 = vld [vmem:[%s409 + $0xc8] sm:$0xff]
    %v436 = vld [vmem:[%s409 + $0xd0] sm:$0xff]
    %v437 = vld [vmem:[%s409 + $0xd8] sm:$0xff]
    %v438 = vld [vmem:[%s409 + $0xe0] sm:$0xff]
    %v439 = vld [vmem:[%s409 + $0xe8] sm:$0xff]
    %v440 = vld [vmem:[%s409 + $0xf0] sm:$0xff]
    %v441 = vld [vmem:[%s409 + $0xf8] sm:$0xff]
    %v442 = vlaneseq
    %v443 = vshrl.u32 %v442, 7
    %v444 = vsub.s32 0, %v443
    %v445 = vrot.slane %v280, %v444
    %v446 = vlaneseq
    %v447 = vshrl.u32 %v446, 7
    %v448 = vsub.s32 0, %v447
    %v449 = vrot.slane %v288, %v448
    %v450 = vlaneseq
    %v451 = vshrl.u32 %v450, 7
    %v452 = vsub.s32 0, %v451
    %v453 = vrot.slane %v287, %v452
    %v454 = vlaneseq
    %v455 = vshrl.u32 %v454, 7
    %v456 = vsub.s32 0, %v455
    %v457 = vrot.slane %v289, %v456
    %v458 = vlaneseq
    %v459 = vshrl.u32 %v458, 7
    %v460 = vsub.s32 0, %v459
    %v461 = vrot.slane %v297, %v460
    %v462 = vlaneseq
    %v463 = vshrl.u32 %v462, 7
    %v464 = vsub.s32 0, %v463
    %v465 = vrot.slane %v305, %v464
    %v466 = vlaneseq
    %v467 = vshrl.u32 %v466, 7
    %v468 = vsub.s32 0, %v467
    %v469 = vrot.slane %v304, %v468
    %v470 = vlaneseq
    %v471 = vshrl.u32 %v470, 7
    %v472 = vsub.s32 0, %v471
    %v473 = vrot.slane %v306, %v472
    %v474 = vlaneseq
    %v475 = vshrl.u32 %v474, 7
    %v476 = vsub.s32 0, %v475
    %v477 = vrot.slane %v314, %v476
    %v478 = vlaneseq
    %v479 = vshrl.u32 %v478, 7
    %v480 = vsub.s32 0, %v479
    %v481 = vrot.slane %v322, %v480
    %v482 = vlaneseq
    %v483 = vshrl.u32 %v482, 7
    %v484 = vsub.s32 0, %v483
    %v485 = vrot.slane %v321, %v484
    %v486 = vlaneseq
    %v487 = vshrl.u32 %v486, 7
    %v488 = vsub.s32 0, %v487
    %v489 = vrot.slane %v323, %v488
    %v490 = vlaneseq
    %v491 = vshrl.u32 %v490, 7
    %v492 = vsub.s32 0, %v491
    %v493 = vrot.slane %v331, %v492
    %v494 = vlaneseq
    %v495 = vshrl.u32 %v494, 7
    %v496 = vsub.s32 0, %v495
    %v497 = vrot.slane %v339, %v496
    %v498 = vlaneseq
    %v499 = vshrl.u32 %v498, 7
    %v500 = vsub.s32 0, %v499
    %v501 = vrot.slane %v338, %v500
    %v502 = vlaneseq
    %v503 = vshrl.u32 %v502, 7
    %v504 = vsub.s32 0, %v503
    %v505 = vrot.slane %v340, %v504
    %v506 = vlaneseq
    %v507 = vshrl.u32 %v506, 7
    %v508 = vsub.s32 0, %v507
    %v509 = vrot.slane %v348, %v508
    %v510 = vlaneseq
    %v511 = vshrl.u32 %v510, 7
    %v512 = vsub.s32 0, %v511
    %v513 = vrot.slane %v356, %v512
    %v514 = vlaneseq
    %v515 = vshrl.u32 %v514, 7
    %v516 = vsub.s32 0, %v515
    %v517 = vrot.slane %v355, %v516
    %v518 = vlaneseq
    %v519 = vshrl.u32 %v518, 7
    %v520 = vsub.s32 0, %v519
    %v521 = vrot.slane %v357, %v520
    %v522 = vlaneseq
    %v523 = vshrl.u32 %v522, 7
    %v524 = vsub.s32 0, %v523
    %v525 = vrot.slane %v365, %v524
    %v526 = vlaneseq
    %v527 = vshrl.u32 %v526, 7
    %v528 = vsub.s32 0, %v527
    %v529 = vrot.slane %v373, %v528
    %v530 = vlaneseq
    %v531 = vshrl.u32 %v530, 7
    %v532 = vsub.s32 0, %v531
    %v533 = vrot.slane %v372, %v532
    %v534 = vlaneseq
    %v535 = vshrl.u32 %v534, 7
    %v536 = vsub.s32 0, %v535
    %v537 = vrot.slane %v374, %v536
    %v538 = vlaneseq
    %v539 = vshrl.u32 %v538, 7
    %v540 = vsub.s32 0, %v539
    %v541 = vrot.slane %v382, %v540
    %v542 = vlaneseq
    %v543 = vshrl.u32 %v542, 7
    %v544 = vsub.s32 0, %v543
    %v545 = vrot.slane %v390, %v544
    %v546 = vlaneseq
    %v547 = vshrl.u32 %v546, 7
    %v548 = vsub.s32 0, %v547
    %v549 = vrot.slane %v389, %v548
    %v550 = vlaneseq
    %v551 = vshrl.u32 %v550, 7
    %v552 = vsub.s32 0, %v551
    %v553 = vrot.slane %v391, %v552
    %v554 = vlaneseq
    %v555 = vshrl.u32 %v554, 7
    %v556 = vsub.s32 0, %v555
    %v557 = vrot.slane %v399, %v556
    %v558 = vlaneseq
    %v559 = vshrl.u32 %v558, 7
    %v560 = vsub.s32 0, %v559
    %v561 = vrot.slane %v407, %v560
    %v562 = vlaneseq
    %v563 = vshrl.u32 %v562, 7
    %v564 = vsub.s32 0, %v563
    %v565 = vrot.slane %v406, %v564
    %v566 = vlaneseq
    %v567 = vshrl.u32 %v566, 7
    %v568 = vsub.s32 0, %v567
    %v569 = vrot.slane %v408, %v568
    %vm570 = vcmask 1041409
    %v571 = vsel %vm570, %v449, %v445
    %vm572 = vcmask 1042434
    %v573 = vsel %vm572, %v453, %v571
    %vm574 = vcmask 1043459
    %v575 = vsel %vm574, %v457, %v573
    %vm576 = vcmask 1044484
    %v577 = vsel %vm576, %v461, %v575
    %vm578 = vcmask 1045509
    %v579 = vsel %vm578, %v465, %v577
    %vm580 = vcmask 1046534
    %v581 = vsel %vm580, %v469, %v579
    %vm582 = vcmask 1047559
    %v583 = vsel %vm582, %v473, %v581
    %v584 = vsel %vm570, %v481, %v477
    %v585 = vsel %vm572, %v485, %v584
    %v586 = vsel %vm574, %v489, %v585
    %v587 = vsel %vm576, %v493, %v586
    %v588 = vsel %vm578, %v497, %v587
    %v589 = vsel %vm580, %v501, %v588
    %v590 = vsel %vm582, %v505, %v589
    %v591 = vsel %vm570, %v513, %v509
    %v592 = vsel %vm572, %v517, %v591
    %v593 = vsel %vm574, %v521, %v592
    %v594 = vsel %vm576, %v525, %v593
    %v595 = vsel %vm578, %v529, %v594
    %v596 = vsel %vm580, %v533, %v595
    %v597 = vsel %vm582, %v537, %v596
    %v598 = vsel %vm570, %v545, %v541
    %v599 = vsel %vm572, %v549, %v598
    %v600 = vsel %vm574, %v553, %v599
    %v601 = vsel %vm576, %v557, %v600
    %v602 = vsel %vm578, %v561, %v601
    %v603 = vsel %vm580, %v565, %v602
    %v604 = vsel %vm582, %v569, %v603
    %609 = vmatprep.subr.mxu0 %v411
    %610 = vmatpush1.msra.mxu0 %v410
    %611 = vmatprep.subr.mxu0 %v413
    %612 = vmatpush1.msra.mxu0 %v412
    %613 = vmatprep.subr.mxu0 %v415
    %614 = vmatpush1.msra.mxu0 %v414
    %615 = vmatprep.subr.mxu0 %v417
    %616 = vmatpush1.msra.mxu0 %v416
    %617 = vmatprep.subr.mxu0 %v419
    %618 = vmatpush1.msra.mxu0 %v418
    %619 = vmatprep.subr.mxu0 %v421
    %620 = vmatpush1.msra.mxu0 %v420
    %621 = vmatprep.subr.mxu0 %v423
    %622 = vmatpush1.msra.mxu0 %v422
    %623 = vmatprep.subr.mxu0 %v425
    %624 = vmatpush1.msra.mxu0 %v424
    %625 = vmatprep.subr.mxu0 %v427
    %626 = vmatpush1.msra.mxu0 %v426
    %627 = vmatprep.subr.mxu0 %v429
    %628 = vmatpush1.msra.mxu0 %v428
    %629 = vmatprep.subr.mxu0 %v431
    %630 = vmatpush1.msra.mxu0 %v430
    %631 = vmatprep.subr.mxu0 %v433
    %632 = vmatpush1.msra.mxu0 %v432
    %633 = vmatprep.subr.mxu0 %v435
    %634 = vmatpush1.msra.mxu0 %v434
    %635 = vmatprep.subr.mxu0 %v437
    %636 = vmatpush1.msra.mxu0 %v436
    %637 = vmatprep.subr.mxu0 %v439
    %638 = vmatpush1.msra.mxu0 %v438
    %639 = vmatprep.subr.mxu0 %v441
    %640 = vmatpush1.msra.mxu0 %v440
    %641 = vmatprep.subr.mxu0 0.0
    %642 = vmatpush1.msra.mxu0 0.0
    %643 = vmatprep.subr.mxu0 0.0
    %644 = vmatpush1.msra.mxu0 0.0
    %645 = vmatprep.subr.mxu0 0.0
    %646 = vmatpush1.msra.mxu0 0.0
    %647 = vmatprep.subr.mxu0 0.0
    %648 = vmatpush1.msra.mxu0 0.0
    %649 = vmatprep.subr.mxu0 0.0
    %650 = vmatpush1.msra.mxu0 0.0
    %651 = vmatprep.subr.mxu0 0.0
    %652 = vmatpush1.msra.mxu0 0.0
    %653 = vmatprep.subr.mxu0 0.0
    %654 = vmatpush1.msra.mxu0 0.0
    %655 = vmatprep.subr.mxu0 0.0
    %656 = vmatpush1.msra.mxu0 0.0
    %657 = vmatprep.subr.mxu0 0.0
    %658 = vmatpush1.msra.mxu0 0.0
    %659 = vmatprep.subr.mxu0 0.0
    %660 = vmatpush1.msra.mxu0 0.0
    %661 = vmatprep.subr.mxu0 0.0
    %662 = vmatpush1.msra.mxu0 0.0
    %663 = vmatprep.subr.mxu0 0.0
    %664 = vmatpush1.msra.mxu0 0.0
    %665 = vmatprep.subr.mxu0 0.0
    %666 = vmatpush1.msra.mxu0 0.0
    %667 = vmatprep.subr.mxu0 0.0
    %668 = vmatpush1.msra.mxu0 0.0
    %669 = vmatprep.subr.mxu0 0.0
    %670 = vmatpush1.msra.mxu0 0.0
    %671 = vmatprep.subr.mxu0 0.0
    %672 = vmatpush1.msra.mxu0 0.0
    %673 = vmatprep.mubr.f32.mxu0 0.0
    %674 = vmatmul.mubr.f32.gmra.mrb[0].mxu0 %v583
    %v675 = vpop.f32.mrb[0].mxu0
    %v676 = vadd.f32 0.0, %v675
    %v677 = vpop.f32.mrb[0].mxu0
    %v678 = vadd.f32 0.0, %v677
    %679 = vmatprep.mubr.f32.mxu0 0.0
    %680 = vmatmul.mubr.f32.gmra.mrb[0].mxu0 %v590
    %v681 = vpop.f32.mrb[0].mxu0
    %v682 = vadd.f32 0.0, %v681
    %v683 = vpop.f32.mrb[0].mxu0
    %v684 = vadd.f32 0.0, %v683
    %685 = vmatprep.mubr.f32.mxu0 0.0
    %686 = vmatmul.mubr.f32.gmra.mrb[0].mxu0 %v597
    %v687 = vpop.f32.mrb[0].mxu0
    %v688 = vadd.f32 0.0, %v687
    %v689 = vpop.f32.mrb[0].mxu0
    %v690 = vadd.f32 0.0, %v689
    %691 = vmatprep.mubr.f32.mxu0 0.0
    %692 = vmatmul.mubr.f32.gmra.mrb[0].mxu0 %v604
    %v693 = vpop.f32.mrb[0].mxu0
    %v694 = vadd.f32 0.0, %v693
    %v695 = vpop.f32.mrb[0].mxu0
    %v696 = vadd.f32 0.0, %v695
    %697 = vdwg.mxu0
    %v698 = vlaneseq
    %v699 = vshrl.u32 %v698, 7
    %v700 = vsub.s32 0, %v699
    %v701 = vrot.slane %v96, %v700
    %v702 = vlaneseq
    %v703 = vshrl.u32 %v702, 7
    %v704 = vsub.s32 0, %v703
    %v705 = vrot.slane %v104, %v704
    %v706 = vlaneseq
    %v707 = vshrl.u32 %v706, 7
    %v708 = vsub.s32 0, %v707
    %v709 = vrot.slane %v103, %v708
    %v710 = vlaneseq
    %v711 = vshrl.u32 %v710, 7
    %v712 = vsub.s32 0, %v711
    %v713 = vrot.slane %v105, %v712
    %v714 = vlaneseq
    %v715 = vshrl.u32 %v714, 7
    %v716 = vsub.s32 0, %v715
    %v717 = vrot.slane %v113, %v716
    %v718 = vlaneseq
    %v719 = vshrl.u32 %v718, 7
    %v720 = vsub.s32 0, %v719
    %v721 = vrot.slane %v121, %v720
    %v722 = vlaneseq
    %v723 = vshrl.u32 %v722, 7
    %v724 = vsub.s32 0, %v723
    %v725 = vrot.slane %v120, %v724
    %v726 = vlaneseq
    %v727 = vshrl.u32 %v726, 7
    %v728 = vsub.s32 0, %v727
    %v729 = vrot.slane %v122, %v728
    %v730 = vlaneseq
    %v731 = vshrl.u32 %v730, 7
    %v732 = vsub.s32 0, %v731
    %v733 = vrot.slane %v130, %v732
    %v734 = vlaneseq
    %v735 = vshrl.u32 %v734, 7
    %v736 = vsub.s32 0, %v735
    %v737 = vrot.slane %v138, %v736
    %v738 = vlaneseq
    %v739 = vshrl.u32 %v738, 7
    %v740 = vsub.s32 0, %v739
    %v741 = vrot.slane %v137, %v740
    %v742 = vlaneseq
    %v743 = vshrl.u32 %v742, 7
    %v744 = vsub.s32 0, %v743
    %v745 = vrot.slane %v139, %v744
    %v746 = vlaneseq
    %v747 = vshrl.u32 %v746, 7
    %v748 = vsub.s32 0, %v747
    %v749 = vrot.slane %v147, %v748
    %v750 = vlaneseq
    %v751 = vshrl.u32 %v750, 7
    %v752 = vsub.s32 0, %v751
    %v753 = vrot.slane %v155, %v752
    %v754 = vlaneseq
    %v755 = vshrl.u32 %v754, 7
    %v756 = vsub.s32 0, %v755
    %v757 = vrot.slane %v154, %v756
    %v758 = vlaneseq
    %v759 = vshrl.u32 %v758, 7
    %v760 = vsub.s32 0, %v759
    %v761 = vrot.slane %v156, %v760
    %v762 = vlaneseq
    %v763 = vshrl.u32 %v762, 7
    %v764 = vsub.s32 0, %v763
    %v765 = vrot.slane %v164, %v764
    %v766 = vlaneseq
    %v767 = vshrl.u32 %v766, 7
    %v768 = vsub.s32 0, %v767
    %v769 = vrot.slane %v172, %v768
    %v770 = vlaneseq
    %v771 = vshrl.u32 %v770, 7
    %v772 = vsub.s32 0, %v771
    %v773 = vrot.slane %v171, %v772
    %v774 = vlaneseq
    %v775 = vshrl.u32 %v774, 7
    %v776 = vsub.s32 0, %v775
    %v777 = vrot.slane %v173, %v776
    %v778 = vlaneseq
    %v779 = vshrl.u32 %v778, 7
    %v780 = vsub.s32 0, %v779
    %v781 = vrot.slane %v181, %v780
    %v782 = vlaneseq
    %v783 = vshrl.u32 %v782, 7
    %v784 = vsub.s32 0, %v783
    %v785 = vrot.slane %v189, %v784
    %v786 = vlaneseq
    %v787 = vshrl.u32 %v786, 7
    %v788 = vsub.s32 0, %v787
    %v789 = vrot.slane %v188, %v788
    %v790 = vlaneseq
    %v791 = vshrl.u32 %v790, 7
    %v792 = vsub.s32 0, %v791
    %v793 = vrot.slane %v190, %v792
    %v794 = vlaneseq
    %v795 = vshrl.u32 %v794, 7
    %v796 = vsub.s32 0, %v795
    %v797 = vrot.slane %v198, %v796
    %v798 = vlaneseq
    %v799 = vshrl.u32 %v798, 7
    %v800 = vsub.s32 0, %v799
    %v801 = vrot.slane %v206, %v800
    %v802 = vlaneseq
    %v803 = vshrl.u32 %v802, 7
    %v804 = vsub.s32 0, %v803
    %v805 = vrot.slane %v205, %v804
    %v806 = vlaneseq
    %v807 = vshrl.u32 %v806, 7
    %v808 = vsub.s32 0, %v807
    %v809 = vrot.slane %v207, %v808
    %v810 = vlaneseq
    %v811 = vshrl.u32 %v810, 7
    %v812 = vsub.s32 0, %v811
    %v813 = vrot.slane %v215, %v812
    %v814 = vlaneseq
    %v815 = vshrl.u32 %v814, 7
    %v816 = vsub.s32 0, %v815
    %v817 = vrot.slane %v223, %v816
    %v818 = vlaneseq
    %v819 = vshrl.u32 %v818, 7
    %v820 = vsub.s32 0, %v819
    %v821 = vrot.slane %v222, %v820
    %v822 = vlaneseq
    %v823 = vshrl.u32 %v822, 7
    %v824 = vsub.s32 0, %v823
    %v825 = vrot.slane %v224, %v824
    %v826 = vsel %vm570, %v705, %v701
    %v827 = vsel %vm572, %v709, %v826
    %v828 = vsel %vm574, %v713, %v827
    %v829 = vsel %vm576, %v717, %v828
    %v830 = vsel %vm578, %v721, %v829
    %v831 = vsel %vm580, %v725, %v830
    %v832 = vsel %vm582, %v729, %v831
    %v833 = vsel %vm570, %v737, %v733
    %v834 = vsel %vm572, %v741, %v833
    %v835 = vsel %vm574, %v745, %v834
    %v836 = vsel %vm576, %v749, %v835
    %v837 = vsel %vm578, %v753, %v836
    %v838 = vsel %vm580, %v757, %v837
    %v839 = vsel %vm582, %v761, %v838
    %v840 = vsel %vm570, %v769, %v765
    %v841 = vsel %vm572, %v773, %v840
    %v842 = vsel %vm574, %v777, %v841
    %v843 = vsel %vm576, %v781, %v842
    %v844 = vsel %vm578, %v785, %v843
    %v845 = vsel %vm580, %v789, %v844
    %v846 = vsel %vm582, %v793, %v845
    %v847 = vsel %vm570, %v801, %v797
    %v848 = vsel %vm572, %v805, %v847
    %v849 = vsel %vm574, %v809, %v848
    %v850 = vsel %vm576, %v813, %v849
    %v851 = vsel %vm578, %v817, %v850
    %v852 = vsel %vm580, %v821, %v851
    %v853 = vsel %vm582, %v825, %v852
    %858 = vmatprep.subr.mxu0 %v226
    %859 = vmatpush1.msra.mxu0 %v225
    %860 = vmatprep.subr.mxu0 %v228
    %861 = vmatpush1.msra.mxu0 %v227
    %862 = vmatprep.subr.mxu0 %v230
    %863 = vmatpush1.msra.mxu0 %v229
    %864 = vmatprep.subr.mxu0 %v232
    %865 = vmatpush1.msra.mxu0 %v231
    %866 = vmatprep.subr.mxu0 %v234
    %867 = vmatpush1.msra.mxu0 %v233
    %868 = vmatprep.subr.mxu0 %v236
    %869 = vmatpush1.msra.mxu0 %v235
    %870 = vmatprep.subr.mxu0 %v238
    %871 = vmatpush1.msra.mxu0 %v237
    %872 = vmatprep.subr.mxu0 %v240
    %873 = vmatpush1.msra.mxu0 %v239
    %874 = vmatprep.subr.mxu0 %v242
    %875 = vmatpush1.msra.mxu0 %v241
    %876 = vmatprep.subr.mxu0 %v244
    %877 = vmatpush1.msra.mxu0 %v243
    %878 = vmatprep.subr.mxu0 %v246
    %879 = vmatpush1.msra.mxu0 %v245
    %880 = vmatprep.subr.mxu0 %v248
    %881 = vmatpush1.msra.mxu0 %v247
    %882 = vmatprep.subr.mxu0 %v250
    %883 = vmatpush1.msra.mxu0 %v249
    %884 = vmatprep.subr.mxu0 %v252
    %885 = vmatpush1.msra.mxu0 %v251
    %886 = vmatprep.subr.mxu0 %v254
    %887 = vmatpush1.msra.mxu0 %v253
    %888 = vmatprep.subr.mxu0 %v256
    %889 = vmatpush1.msra.mxu0 %v255
    %890 = vmatprep.subr.mxu0 0.0
    %891 = vmatpush1.msra.mxu0 0.0
    %892 = vmatprep.subr.mxu0 0.0
    %893 = vmatpush1.msra.mxu0 0.0
    %894 = vmatprep.subr.mxu0 0.0
    %895 = vmatpush1.msra.mxu0 0.0
    %896 = vmatprep.subr.mxu0 0.0
    %897 = vmatpush1.msra.mxu0 0.0
    %898 = vmatprep.subr.mxu0 0.0
    %899 = vmatpush1.msra.mxu0 0.0
    %900 = vmatprep.subr.mxu0 0.0
    %901 = vmatpush1.msra.mxu0 0.0
    %902 = vmatprep.subr.mxu0 0.0
    %903 = vmatpush1.msra.mxu0 0.0
    %904 = vmatprep.subr.mxu0 0.0
    %905 = vmatpush1.msra.mxu0 0.0
    %906 = vmatprep.subr.mxu0 0.0
    %907 = vmatpush1.msra.mxu0 0.0
    %908 = vmatprep.subr.mxu0 0.0
    %909 = vmatpush1.msra.mxu0 0.0
    %910 = vmatprep.subr.mxu0 0.0
    %911 = vmatpush1.msra.mxu0 0.0
    %912 = vmatprep.subr.mxu0 0.0
    %913 = vmatpush1.msra.mxu0 0.0
    %914 = vmatprep.subr.mxu0 0.0
    %915 = vmatpush1.msra.mxu0 0.0
    %916 = vmatprep.subr.mxu0 0.0
    %917 = vmatpush1.msra.mxu0 0.0
    %918 = vmatprep.subr.mxu0 0.0
    %919 = vmatpush1.msra.mxu0 0.0
    %920 = vmatprep.subr.mxu0 0.0
    %921 = vmatpush1.msra.mxu0 0.0
    %922 = vmatprep.mubr.f32.mxu0 0.0
    %923 = vmatmul.mubr.f32.gmra.mrb[0].mxu0 %v832
    %v924 = vpop.f32.mrb[0].mxu0
    %v925 = vadd.f32 %v676, %v924
    %v926 = vpop.f32.mrb[0].mxu0
    %v927 = vadd.f32 %v678, %v926
    %928 = vmatprep.mubr.f32.mxu0 0.0
    %929 = vmatmul.mubr.f32.gmra.mrb[0].mxu0 %v839
    %v930 = vpop.f32.mrb[0].mxu0
    %v931 = vadd.f32 %v682, %v930
    %v932 = vpop.f32.mrb[0].mxu0
    %v933 = vadd.f32 %v684, %v932
    %934 = vmatprep.mubr.f32.mxu0 0.0
    %935 = vmatmul.mubr.f32.gmra.mrb[0].mxu0 %v846
    %v936 = vpop.f32.mrb[0].mxu0
    %v937 = vadd.f32 %v688, %v936
    %v938 = vpop.f32.mrb[0].mxu0
    %v939 = vadd.f32 %v690, %v938
    %940 = vmatprep.mubr.f32.mxu0 0.0
    %941 = vmatmul.mubr.f32.gmra.mrb[0].mxu0 %v853
    %v942 = vpop.f32.mrb[0].mxu0
    %v943 = vadd.f32 %v694, %v942
    %v944 = vpop.f32.mrb[0].mxu0
    %v945 = vadd.f32 %v696, %v944
    %946 = vdwg.mxu0
    %v947 = vld [vmem:[%s0 + $0x2] sm:$0xff]
    %v948 = vld [vmem:[%s0 + $0xa] sm:$0xff]
    %v949 = vld [vmem:[%s0 + $0x12] sm:$0xff]
    %v950 = vld [vmem:[%s0 + $0x1a] sm:$0xff]
    %v951 = vld [vmem:[%s0 + $0x2a] sm:$0xff]
    %v952 = vld [vmem:[%s0 + $0x32] sm:$0xff]
    %v953 = vld [vmem:[%s0 + $0x3a] sm:$0xff]
    %v954 = vld [vmem:[%s0 + $0x42] sm:$0xff]
    %v963 = vcombine.high %v947, %v947
    %v965 = vunpack.c.l.s4 1983009808
    %v966 = vunpack.c.0.s8 %v965
    %v967 = vlaneseq
    %v968 = vshrl.u32 %v967, 7
    %v969 = vsub.s32 %v966, %v968
    %v970 = vrot.slane %v947, %v969
    %v972 = vunpack.c.l.s4 1983009808
    %v973 = vunpack.c.0.s8 %v972
    %v974 = vlaneseq
    %v975 = vshrl.u32 %v974, 7
    %v976 = vsub.s32 %v973, %v975
    %v977 = vrot.slane %v963, %v976
    %v978 = vcombine.high %v970, %v970
    %v979 = vcombine.high %v977, %v977
    %v980 = vcombine.high %v948, %v948
    %v982 = vunpack.c.l.s4 1983009808
    %v983 = vunpack.c.0.s8 %v982
    %v984 = vlaneseq
    %v985 = vshrl.u32 %v984, 7
    %v986 = vsub.s32 %v983, %v985
    %v987 = vrot.slane %v948, %v986
    %v989 = vunpack.c.l.s4 1983009808
    %v990 = vunpack.c.0.s8 %v989
    %v991 = vlaneseq
    %v992 = vshrl.u32 %v991, 7
    %v993 = vsub.s32 %v990, %v992
    %v994 = vrot.slane %v980, %v993
    %v995 = vcombine.high %v987, %v987
    %v996 = vcombine.high %v994, %v994
    %v997 = vcombine.high %v949, %v949
    %v999 = vunpack.c.l.s4 1983009808
    %v1000 = vunpack.c.0.s8 %v999
    %v1001 = vlaneseq
    %v1002 = vshrl.u32 %v1001, 7
    %v1003 = vsub.s32 %v1000, %v1002
    %v1004 = vrot.slane %v949, %v1003
    %v1006 = vunpack.c.l.s4 1983009808
    %v1007 = vunpack.c.0.s8 %v1006
    %v1008 = vlaneseq
    %v1009 = vshrl.u32 %v1008, 7
    %v1010 = vsub.s32 %v1007, %v1009
    %v1011 = vrot.slane %v997, %v1010
    %v1012 = vcombine.high %v1004, %v1004
    %v1013 = vcombine.high %v1011, %v1011
    %v1014 = vcombine.high %v950, %v950
    %v1016 = vunpack.c.l.s4 1983009808
    %v1017 = vunpack.c.0.s8 %v1016
    %v1018 = vlaneseq
    %v1019 = vshrl.u32 %v1018, 7
    %v1020 = vsub.s32 %v1017, %v1019
    %v1021 = vrot.slane %v950, %v1020
    %v1023 = vunpack.c.l.s4 1983009808
    %v1024 = vunpack.c.0.s8 %v1023
    %v1025 = vlaneseq
    %v1026 = vshrl.u32 %v1025, 7
    %v1027 = vsub.s32 %v1024, %v1026
    %v1028 = vrot.slane %v1014, %v1027
    %v1029 = vcombine.high %v1021, %v1021
    %v1030 = vcombine.high %v1028, %v1028
    %v1031 = vcombine.high %v951, %v951
    %v1033 = vunpack.c.l.s4 1983009808
    %v1034 = vunpack.c.0.s8 %v1033
    %v1035 = vlaneseq
    %v1036 = vshrl.u32 %v1035, 7
    %v1037 = vsub.s32 %v1034, %v1036
    %v1038 = vrot.slane %v951, %v1037
    %v1040 = vunpack.c.l.s4 1983009808
    %v1041 = vunpack.c.0.s8 %v1040
    %v1042 = vlaneseq
    %v1043 = vshrl.u32 %v1042, 7
    %v1044 = vsub.s32 %v1041, %v1043
    %v1045 = vrot.slane %v1031, %v1044
    %v1046 = vcombine.high %v1038, %v1038
    %v1047 = vcombine.high %v1045, %v1045
    %v1048 = vcombine.high %v952, %v952
    %v1050 = vunpack.c.l.s4 1983009808
    %v1051 = vunpack.c.0.s8 %v1050
    %v1052 = vlaneseq
    %v1053 = vshrl.u32 %v1052, 7
    %v1054 = vsub.s32 %v1051, %v1053
    %v1055 = vrot.slane %v952, %v1054
    %v1057 = vunpack.c.l.s4 1983009808
    %v1058 = vunpack.c.0.s8 %v1057
    %v1059 = vlaneseq
    %v1060 = vshrl.u32 %v1059, 7
    %v1061 = vsub.s32 %v1058, %v1060
    %v1062 = vrot.slane %v1048, %v1061
    %v1063 = vcombine.high %v1055, %v1055
    %v1064 = vcombine.high %v1062, %v1062
    %v1065 = vcombine.high %v953, %v953
    %v1067 = vunpack.c.l.s4 1983009808
    %v1068 = vunpack.c.0.s8 %v1067
    %v1069 = vlaneseq
    %v1070 = vshrl.u32 %v1069, 7
    %v1071 = vsub.s32 %v1068, %v1070
    %v1072 = vrot.slane %v953, %v1071
    %v1074 = vunpack.c.l.s4 1983009808
    %v1075 = vunpack.c.0.s8 %v1074
    %v1076 = vlaneseq
    %v1077 = vshrl.u32 %v1076, 7
    %v1078 = vsub.s32 %v1075, %v1077
    %v1079 = vrot.slane %v1065, %v1078
    %v1080 = vcombine.high %v1072, %v1072
    %v1081 = vcombine.high %v1079, %v1079
    %v1082 = vcombine.high %v954, %v954
    %v1084 = vunpack.c.l.s4 1983009808
    %v1085 = vunpack.c.0.s8 %v1084
    %v1086 = vlaneseq
    %v1087 = vshrl.u32 %v1086, 7
    %v1088 = vsub.s32 %v1085, %v1087
    %v1089 = vrot.slane %v954, %v1088
    %v1091 = vunpack.c.l.s4 1983009808
    %v1092 = vunpack.c.0.s8 %v1091
    %v1093 = vlaneseq
    %v1094 = vshrl.u32 %v1093, 7
    %v1095 = vsub.s32 %v1092, %v1094
    %v1096 = vrot.slane %v1082, %v1095
    %v1097 = vcombine.high %v1089, %v1089
    %v1098 = vcombine.high %v1096, %v1096
    %s1099 = scalar_lea.vmem %s1, 512
    %v1100 = vld [vmem:[%s1099] sm:$0xff]
    %v1101 = vld [vmem:[%s1099 + $0x8] sm:$0xff]
    %v1102 = vld [vmem:[%s1099 + $0x10] sm:$0xff]
    %v1103 = vld [vmem:[%s1099 + $0x18] sm:$0xff]
    %v1104 = vld [vmem:[%s1099 + $0x20] sm:$0xff]
    %v1105 = vld [vmem:[%s1099 + $0x28] sm:$0xff]
    %v1106 = vld [vmem:[%s1099 + $0x30] sm:$0xff]
    %v1107 = vld [vmem:[%s1099 + $0x38] sm:$0xff]
    %v1108 = vld [vmem:[%s1099 + $0x40] sm:$0xff]
    %v1109 = vld [vmem:[%s1099 + $0x48] sm:$0xff]
    %v1110 = vld [vmem:[%s1099 + $0x50] sm:$0xff]
    %v1111 = vld [vmem:[%s1099 + $0x58] sm:$0xff]
    %v1112 = vld [vmem:[%s1099 + $0x60] sm:$0xff]
    %v1113 = vld [vmem:[%s1099 + $0x68] sm:$0xff]
    %v1114 = vld [vmem:[%s1099 + $0x70] sm:$0xff]
    %v1115 = vld [vmem:[%s1099 + $0x78] sm:$0xff]
    %v1116 = vld [vmem:[%s1099 + $0x80] sm:$0xff]
    %v1117 = vld [vmem:[%s1099 + $0x88] sm:$0xff]
    %v1118 = vld [vmem:[%s1099 + $0x90] sm:$0xff]
    %v1119 = vld [vmem:[%s1099 + $0x98] sm:$0xff]
    %v1120 = vld [vmem:[%s1099 + $0xa0] sm:$0xff]
    %v1121 = vld [vmem:[%s1099 + $0xa8] sm:$0xff]
    %v1122 = vld [vmem:[%s1099 + $0xb0] sm:$0xff]
    %v1123 = vld [vmem:[%s1099 + $0xb8] sm:$0xff]
    %v1124 = vld [vmem:[%s1099 + $0xc0] sm:$0xff]
    %v1125 = vld [vmem:[%s1099 + $0xc8] sm:$0xff]
    %v1126 = vld [vmem:[%s1099 + $0xd0] sm:$0xff]
    %v1127 = vld [vmem:[%s1099 + $0xd8] sm:$0xff]
    %v1128 = vld [vmem:[%s1099 + $0xe0] sm:$0xff]
    %v1129 = vld [vmem:[%s1099 + $0xe8] sm:$0xff]
    %v1130 = vld [vmem:[%s1099 + $0xf0] sm:$0xff]
    %v1131 = vld [vmem:[%s1099 + $0xf8] sm:$0xff]
    %v1132 = vlaneseq
    %v1133 = vshrl.u32 %v1132, 7
    %v1134 = vsub.s32 0, %v1133
    %v1135 = vrot.slane %v970, %v1134
    %v1136 = vlaneseq
    %v1137 = vshrl.u32 %v1136, 7
    %v1138 = vsub.s32 0, %v1137
    %v1139 = vrot.slane %v978, %v1138
    %v1140 = vlaneseq
    %v1141 = vshrl.u32 %v1140, 7
    %v1142 = vsub.s32 0, %v1141
    %v1143 = vrot.slane %v977, %v1142
    %v1144 = vlaneseq
    %v1145 = vshrl.u32 %v1144, 7
    %v1146 = vsub.s32 0, %v1145
    %v1147 = vrot.slane %v979, %v1146
    %v1148 = vlaneseq
    %v1149 = vshrl.u32 %v1148, 7
    %v1150 = vsub.s32 0, %v1149
    %v1151 = vrot.slane %v987, %v1150
    %v1152 = vlaneseq
    %v1153 = vshrl.u32 %v1152, 7
    %v1154 = vsub.s32 0, %v1153
    %v1155 = vrot.slane %v995, %v1154
    %v1156 = vlaneseq
    %v1157 = vshrl.u32 %v1156, 7
    %v1158 = vsub.s32 0, %v1157
    %v1159 = vrot.slane %v994, %v1158
    %v1160 = vlaneseq
    %v1161 = vshrl.u32 %v1160, 7
    %v1162 = vsub.s32 0, %v1161
    %v1163 = vrot.slane %v996, %v1162
    %v1164 = vlaneseq
    %v1165 = vshrl.u32 %v1164, 7
    %v1166 = vsub.s32 0, %v1165
    %v1167 = vrot.slane %v1004, %v1166
    %v1168 = vlaneseq
    %v1169 = vshrl.u32 %v1168, 7
    %v1170 = vsub.s32 0, %v1169
    %v1171 = vrot.slane %v1012, %v1170
    %v1172 = vlaneseq
    %v1173 = vshrl.u32 %v1172, 7
    %v1174 = vsub.s32 0, %v1173
    %v1175 = vrot.slane %v1011, %v1174
    %v1176 = vlaneseq
    %v1177 = vshrl.u32 %v1176, 7
    %v1178 = vsub.s32 0, %v1177
    %v1179 = vrot.slane %v1013, %v1178
    %v1180 = vlaneseq
    %v1181 = vshrl.u32 %v1180, 7
    %v1182 = vsub.s32 0, %v1181
    %v1183 = vrot.slane %v1021, %v1182
    %v1184 = vlaneseq
    %v1185 = vshrl.u32 %v1184, 7
    %v1186 = vsub.s32 0, %v1185
    %v1187 = vrot.slane %v1029, %v1186
    %v1188 = vlaneseq
    %v1189 = vshrl.u32 %v1188, 7
    %v1190 = vsub.s32 0, %v1189
    %v1191 = vrot.slane %v1028, %v1190
    %v1192 = vlaneseq
    %v1193 = vshrl.u32 %v1192, 7
    %v1194 = vsub.s32 0, %v1193
    %v1195 = vrot.slane %v1030, %v1194
    %v1196 = vlaneseq
    %v1197 = vshrl.u32 %v1196, 7
    %v1198 = vsub.s32 0, %v1197
    %v1199 = vrot.slane %v1038, %v1198
    %v1200 = vlaneseq
    %v1201 = vshrl.u32 %v1200, 7
    %v1202 = vsub.s32 0, %v1201
    %v1203 = vrot.slane %v1046, %v1202
    %v1204 = vlaneseq
    %v1205 = vshrl.u32 %v1204, 7
    %v1206 = vsub.s32 0, %v1205
    %v1207 = vrot.slane %v1045, %v1206
    %v1208 = vlaneseq
    %v1209 = vshrl.u32 %v1208, 7
    %v1210 = vsub.s32 0, %v1209
    %v1211 = vrot.slane %v1047, %v1210
    %v1212 = vlaneseq
    %v1213 = vshrl.u32 %v1212, 7
    %v1214 = vsub.s32 0, %v1213
    %v1215 = vrot.slane %v1055, %v1214
    %v1216 = vlaneseq
    %v1217 = vshrl.u32 %v1216, 7
    %v1218 = vsub.s32 0, %v1217
    %v1219 = vrot.slane %v1063, %v1218
    %v1220 = vlaneseq
    %v1221 = vshrl.u32 %v1220, 7
    %v1222 = vsub.s32 0, %v1221
    %v1223 = vrot.slane %v1062, %v1222
    %v1224 = vlaneseq
    %v1225 = vshrl.u32 %v1224, 7
    %v1226 = vsub.s32 0, %v1225
    %v1227 = vrot.slane %v1064, %v1226
    %v1228 = vlaneseq
    %v1229 = vshrl.u32 %v1228, 7
    %v1230 = vsub.s32 0, %v1229
    %v1231 = vrot.slane %v1072, %v1230
    %v1232 = vlaneseq
    %v1233 = vshrl.u32 %v1232, 7
    %v1234 = vsub.s32 0, %v1233
    %v1235 = vrot.slane %v1080, %v1234
    %v1236 = vlaneseq
    %v1237 = vshrl.u32 %v1236, 7
    %v1238 = vsub.s32 0, %v1237
    %v1239 = vrot.slane %v1079, %v1238
    %v1240 = vlaneseq
    %v1241 = vshrl.u32 %v1240, 7
    %v1242 = vsub.s32 0, %v1241
    %v1243 = vrot.slane %v1081, %v1242
    %v1244 = vlaneseq
    %v1245 = vshrl.u32 %v1244, 7
    %v1246 = vsub.s32 0, %v1245
    %v1247 = vrot.slane %v1089, %v1246
    %v1248 = vlaneseq
    %v1249 = vshrl.u32 %v1248, 7
    %v1250 = vsub.s32 0, %v1249
    %v1251 = vrot.slane %v1097, %v1250
    %v1252 = vlaneseq
    %v1253 = vshrl.u32 %v1252, 7
    %v1254 = vsub.s32 0, %v1253
    %v1255 = vrot.slane %v1096, %v1254
    %v1256 = vlaneseq
    %v1257 = vshrl.u32 %v1256, 7
    %v1258 = vsub.s32 0, %v1257
    %v1259 = vrot.slane %v1098, %v1258
    %v1260 = vsel %vm570, %v1139, %v1135
    %v1261 = vsel %vm572, %v1143, %v1260
    %v1262 = vsel %vm574, %v1147, %v1261
    %v1263 = vsel %vm576, %v1151, %v1262
    %v1264 = vsel %vm578, %v1155, %v1263
    %v1265 = vsel %vm580, %v1159, %v1264
    %v1266 = vsel %vm582, %v1163, %v1265
    %v1267 = vsel %vm570, %v1171, %v1167
    %v1268 = vsel %vm572, %v1175, %v1267
    %v1269 = vsel %vm574, %v1179, %v1268
    %v1270 = vsel %vm576, %v1183, %v1269
    %v1271 = vsel %vm578, %v1187, %v1270
    %v1272 = vsel %vm580, %v1191, %v1271
    %v1273 = vsel %vm582, %v1195, %v1272
    %v1274 = vsel %vm570, %v1203, %v1199
    %v1275 = vsel %vm572, %v1207, %v1274
    %v1276 = vsel %vm574, %v1211, %v1275
    %v1277 = vsel %vm576, %v1215, %v1276
    %v1278 = vsel %vm578, %v1219, %v1277
    %v1279 = vsel %vm580, %v1223, %v1278
    %v1280 = vsel %vm582, %v1227, %v1279
    %v1281 = vsel %vm570, %v1235, %v1231
    %v1282 = vsel %vm572, %v1239, %v1281
    %v1283 = vsel %vm574, %v1243, %v1282
    %v1284 = vsel %vm576, %v1247, %v1283
    %v1285 = vsel %vm578, %v1251, %v1284
    %v1286 = vsel %vm580, %v1255, %v1285
    %v1287 = vsel %vm582, %v1259, %v1286
    %1292 = vmatprep.subr.mxu0 %v1101
    %1293 = vmatpush1.msra.mxu0 %v1100
    %1294 = vmatprep.subr.mxu0 %v1103
    %1295 = vmatpush1.msra.mxu0 %v1102
    %1296 = vmatprep.subr.mxu0 %v1105
    %1297 = vmatpush1.msra.mxu0 %v1104
    %1298 = vmatprep.subr.mxu0 %v1107
    %1299 = vmatpush1.msra.mxu0 %v1106
    %1300 = vmatprep.subr.mxu0 %v1109
    %1301 = vmatpush1.msra.mxu0 %v1108
    %1302 = vmatprep.subr.mxu0 %v1111
    %1303 = vmatpush1.msra.mxu0 %v1110
    %1304 = vmatprep.subr.mxu0 %v1113
    %1305 = vmatpush1.msra.mxu0 %v1112
    %1306 = vmatprep.subr.mxu0 %v1115
    %1307 = vmatpush1.msra.mxu0 %v1114
    %1308 = vmatprep.subr.mxu0 %v1117
    %1309 = vmatpush1.msra.mxu0 %v1116
    %1310 = vmatprep.subr.mxu0 %v1119
    %1311 = vmatpush1.msra.mxu0 %v1118
    %1312 = vmatprep.subr.mxu0 %v1121
    %1313 = vmatpush1.msra.mxu0 %v1120
    %1314 = vmatprep.subr.mxu0 %v1123
    %1315 = vmatpush1.msra.mxu0 %v1122
    %1316 = vmatprep.subr.mxu0 %v1125
    %1317 = vmatpush1.msra.mxu0 %v1124
    %1318 = vmatprep.subr.mxu0 %v1127
    %1319 = vmatpush1.msra.mxu0 %v1126
    %1320 = vmatprep.subr.mxu0 %v1129
    %1321 = vmatpush1.msra.mxu0 %v1128
    %1322 = vmatprep.subr.mxu0 %v1131
    %1323 = vmatpush1.msra.mxu0 %v1130
    %1324 = vmatprep.subr.mxu0 0.0
    %1325 = vmatpush1.msra.mxu0 0.0
    %1326 = vmatprep.subr.mxu0 0.0
    %1327 = vmatpush1.msra.mxu0 0.0
    %1328 = vmatprep.subr.mxu0 0.0
    %1329 = vmatpush1.msra.mxu0 0.0
    %1330 = vmatprep.subr.mxu0 0.0
    %1331 = vmatpush1.msra.mxu0 0.0
    %1332 = vmatprep.subr.mxu0 0.0
    %1333 = vmatpush1.msra.mxu0 0.0
    %1334 = vmatprep.subr.mxu0 0.0
    %1335 = vmatpush1.msra.mxu0 0.0
    %1336 = vmatprep.subr.mxu0 0.0
    %1337 = vmatpush1.msra.mxu0 0.0
    %1338 = vmatprep.subr.mxu0 0.0
    %1339 = vmatpush1.msra.mxu0 0.0
    %1340 = vmatprep.subr.mxu0 0.0
    %1341 = vmatpush1.msra.mxu0 0.0
    %1342 = vmatprep.subr.mxu0 0.0
    %1343 = vmatpush1.msra.mxu0 0.0
    %1344 = vmatprep.subr.mxu0 0.0
    %1345 = vmatpush1.msra.mxu0 0.0
    %1346 = vmatprep.subr.mxu0 0.0
    %1347 = vmatpush1.msra.mxu0 0.0
    %1348 = vmatprep.subr.mxu0 0.0
    %1349 = vmatpush1.msra.mxu0 0.0
    %1350 = vmatprep.subr.mxu0 0.0
    %1351 = vmatpush1.msra.mxu0 0.0
    %1352 = vmatprep.subr.mxu0 0.0
    %1353 = vmatpush1.msra.mxu0 0.0
    %1354 = vmatprep.subr.mxu0 0.0
    %1355 = vmatpush1.msra.mxu0 0.0
    %1356 = vmatprep.mubr.f32.mxu0 0.0
    %1357 = vmatmul.mubr.f32.gmra.mrb[0].mxu0 %v1266
    %v1358 = vpop.f32.mrb[0].mxu0
    %v1359 = vadd.f32 0.0, %v1358
    %v1360 = vpop.f32.mrb[0].mxu0
    %v1361 = vadd.f32 0.0, %v1360
    %1362 = vmatprep.mubr.f32.mxu0 0.0
    %1363 = vmatmul.mubr.f32.gmra.mrb[0].mxu0 %v1273
    %v1364 = vpop.f32.mrb[0].mxu0
    %v1365 = vadd.f32 0.0, %v1364
    %v1366 = vpop.f32.mrb[0].mxu0
    %v1367 = vadd.f32 0.0, %v1366
    %1368 = vmatprep.mubr.f32.mxu0 0.0
    %1369 = vmatmul.mubr.f32.gmra.mrb[0].mxu0 %v1280
    %v1370 = vpop.f32.mrb[0].mxu0
    %v1371 = vadd.f32 0.0, %v1370
    %v1372 = vpop.f32.mrb[0].mxu0
    %v1373 = vadd.f32 0.0, %v1372
    %1374 = vmatprep.mubr.f32.mxu0 0.0
    %1375 = vmatmul.mubr.f32.gmra.mrb[0].mxu0 %v1287
    %v1376 = vpop.f32.mrb[0].mxu0
    %v1377 = vadd.f32 0.0, %v1376
    %v1378 = vpop.f32.mrb[0].mxu0
    %v1379 = vadd.f32 0.0, %v1378
    %1380 = vdwg.mxu0
    %v1381 = vadd.f32 %v925, %v1359
    %v1382 = vadd.f32 %v927, %v1361
    %v1383 = vadd.f32 %v931, %v1365
    %v1384 = vadd.f32 %v933, %v1367
    %v1385 = vadd.f32 %v937, %v1371
    %v1386 = vadd.f32 %v939, %v1373
    %v1387 = vadd.f32 %v943, %v1377
    %v1388 = vadd.f32 %v945, %v1379
    %v1389 = vld [vmem:[%s0 + $0x3] sm:$0xff]
    %v1390 = vld [vmem:[%s0 + $0xb] sm:$0xff]
    %v1391 = vld [vmem:[%s0 + $0x13] sm:$0xff]
    %v1392 = vld [vmem:[%s0 + $0x1b] sm:$0xff]
    %v1393 = vld [vmem:[%s0 + $0x2b] sm:$0xff]
    %v1394 = vld [vmem:[%s0 + $0x33] sm:$0xff]
    %v1395 = vld [vmem:[%s0 + $0x3b] sm:$0xff]
    %v1396 = vld [vmem:[%s0 + $0x43] sm:$0xff]
    %v1405 = vcombine.high %v1389, %v1389
    %v1407 = vunpack.c.l.s4 1983009808
    %v1408 = vunpack.c.0.s8 %v1407
    %v1409 = vlaneseq
    %v1410 = vshrl.u32 %v1409, 7
    %v1411 = vsub.s32 %v1408, %v1410
    %v1412 = vrot.slane %v1389, %v1411
    %v1414 = vunpack.c.l.s4 1983009808
    %v1415 = vunpack.c.0.s8 %v1414
    %v1416 = vlaneseq
    %v1417 = vshrl.u32 %v1416, 7
    %v1418 = vsub.s32 %v1415, %v1417
    %v1419 = vrot.slane %v1405, %v1418
    %v1420 = vcombine.high %v1412, %v1412
    %v1421 = vcombine.high %v1419, %v1419
    %v1422 = vcombine.high %v1390, %v1390
    %v1424 = vunpack.c.l.s4 1983009808
    %v1425 = vunpack.c.0.s8 %v1424
    %v1426 = vlaneseq
    %v1427 = vshrl.u32 %v1426, 7
    %v1428 = vsub.s32 %v1425, %v1427
    %v1429 = vrot.slane %v1390, %v1428
    %v1431 = vunpack.c.l.s4 1983009808
    %v1432 = vunpack.c.0.s8 %v1431
    %v1433 = vlaneseq
    %v1434 = vshrl.u32 %v1433, 7
    %v1435 = vsub.s32 %v1432, %v1434
    %v1436 = vrot.slane %v1422, %v1435
    %v1437 = vcombine.high %v1429, %v1429
    %v1438 = vcombine.high %v1436, %v1436
    %v1439 = vcombine.high %v1391, %v1391
    %v1441 = vunpack.c.l.s4 1983009808
    %v1442 = vunpack.c.0.s8 %v1441
    %v1443 = vlaneseq
    %v1444 = vshrl.u32 %v1443, 7
    %v1445 = vsub.s32 %v1442, %v1444
    %v1446 = vrot.slane %v1391, %v1445
    %v1448 = vunpack.c.l.s4 1983009808
    %v1449 = vunpack.c.0.s8 %v1448
    %v1450 = vlaneseq
    %v1451 = vshrl.u32 %v1450, 7
    %v1452 = vsub.s32 %v1449, %v1451
    %v1453 = vrot.slane %v1439, %v1452
    %v1454 = vcombine.high %v1446, %v1446
    %v1455 = vcombine.high %v1453, %v1453
    %v1456 = vcombine.high %v1392, %v1392
    %v1458 = vunpack.c.l.s4 1983009808
    %v1459 = vunpack.c.0.s8 %v1458
    %v1460 = vlaneseq
    %v1461 = vshrl.u32 %v1460, 7
    %v1462 = vsub.s32 %v1459, %v1461
    %v1463 = vrot.slane %v1392, %v1462
    %v1465 = vunpack.c.l.s4 1983009808
    %v1466 = vunpack.c.0.s8 %v1465
    %v1467 = vlaneseq
    %v1468 = vshrl.u32 %v1467, 7
    %v1469 = vsub.s32 %v1466, %v1468
    %v1470 = vrot.slane %v1456, %v1469
    %v1471 = vcombine.high %v1463, %v1463
    %v1472 = vcombine.high %v1470, %v1470
    %v1473 = vcombine.high %v1393, %v1393
    %v1475 = vunpack.c.l.s4 1983009808
    %v1476 = vunpack.c.0.s8 %v1475
    %v1477 = vlaneseq
    %v1478 = vshrl.u32 %v1477, 7
    %v1479 = vsub.s32 %v1476, %v1478
    %v1480 = vrot.slane %v1393, %v1479
    %v1482 = vunpack.c.l.s4 1983009808
    %v1483 = vunpack.c.0.s8 %v1482
    %v1484 = vlaneseq
    %v1485 = vshrl.u32 %v1484, 7
    %v1486 = vsub.s32 %v1483, %v1485
    %v1487 = vrot.slane %v1473, %v1486
    %v1488 = vcombine.high %v1480, %v1480
    %v1489 = vcombine.high %v1487, %v1487
    %v1490 = vcombine.high %v1394, %v1394
    %v1492 = vunpack.c.l.s4 1983009808
    %v1493 = vunpack.c.0.s8 %v1492
    %v1494 = vlaneseq
    %v1495 = vshrl.u32 %v1494, 7
    %v1496 = vsub.s32 %v1493, %v1495
    %v1497 = vrot.slane %v1394, %v1496
    %v1499 = vunpack.c.l.s4 1983009808
    %v1500 = vunpack.c.0.s8 %v1499
    %v1501 = vlaneseq
    %v1502 = vshrl.u32 %v1501, 7
    %v1503 = vsub.s32 %v1500, %v1502
    %v1504 = vrot.slane %v1490, %v1503
    %v1505 = vcombine.high %v1497, %v1497
    %v1506 = vcombine.high %v1504, %v1504
    %v1507 = vcombine.high %v1395, %v1395
    %v1509 = vunpack.c.l.s4 1983009808
    %v1510 = vunpack.c.0.s8 %v1509
    %v1511 = vlaneseq
    %v1512 = vshrl.u32 %v1511, 7
    %v1513 = vsub.s32 %v1510, %v1512
    %v1514 = vrot.slane %v1395, %v1513
    %v1516 = vunpack.c.l.s4 1983009808
    %v1517 = vunpack.c.0.s8 %v1516
    %v1518 = vlaneseq
    %v1519 = vshrl.u32 %v1518, 7
    %v1520 = vsub.s32 %v1517, %v1519
    %v1521 = vrot.slane %v1507, %v1520
    %v1522 = vcombine.high %v1514, %v1514
    %v1523 = vcombine.high %v1521, %v1521
    %v1524 = vcombine.high %v1396, %v1396
    %v1526 = vunpack.c.l.s4 1983009808
    %v1527 = vunpack.c.0.s8 %v1526
    %v1528 = vlaneseq
    %v1529 = vshrl.u32 %v1528, 7
    %v1530 = vsub.s32 %v1527, %v1529
    %v1531 = vrot.slane %v1396, %v1530
    %v1533 = vunpack.c.l.s4 1983009808
    %v1534 = vunpack.c.0.s8 %v1533
    %v1535 = vlaneseq
    %v1536 = vshrl.u32 %v1535, 7
    %v1537 = vsub.s32 %v1534, %v1536
    %v1538 = vrot.slane %v1524, %v1537
    %v1539 = vcombine.high %v1531, %v1531
    %v1540 = vcombine.high %v1538, %v1538
    %s1541 = scalar_lea.vmem %s1, 768
    %v1542 = vld [vmem:[%s1541] sm:$0xff]
    %v1543 = vld [vmem:[%s1541 + $0x8] sm:$0xff]
    %v1544 = vld [vmem:[%s1541 + $0x10] sm:$0xff]
    %v1545 = vld [vmem:[%s1541 + $0x18] sm:$0xff]
    %v1546 = vld [vmem:[%s1541 + $0x20] sm:$0xff]
    %v1547 = vld [vmem:[%s1541 + $0x28] sm:$0xff]
    %v1548 = vld [vmem:[%s1541 + $0x30] sm:$0xff]
    %v1549 = vld [vmem:[%s1541 + $0x38] sm:$0xff]
    %v1550 = vld [vmem:[%s1541 + $0x40] sm:$0xff]
    %v1551 = vld [vmem:[%s1541 + $0x48] sm:$0xff]
    %v1552 = vld [vmem:[%s1541 + $0x50] sm:$0xff]
    %v1553 = vld [vmem:[%s1541 + $0x58] sm:$0xff]
    %v1554 = vld [vmem:[%s1541 + $0x60] sm:$0xff]
    %v1555 = vld [vmem:[%s1541 + $0x68] sm:$0xff]
    %v1556 = vld [vmem:[%s1541 + $0x70] sm:$0xff]
    %v1557 = vld [vmem:[%s1541 + $0x78] sm:$0xff]
    %v1558 = vld [vmem:[%s1541 + $0x80] sm:$0xff]
    %v1559 = vld [vmem:[%s1541 + $0x88] sm:$0xff]
    %v1560 = vld [vmem:[%s1541 + $0x90] sm:$0xff]
    %v1561 = vld [vmem:[%s1541 + $0x98] sm:$0xff]
    %v1562 = vld [vmem:[%s1541 + $0xa0] sm:$0xff]
    %v1563 = vld [vmem:[%s1541 + $0xa8] sm:$0xff]
    %v1564 = vld [vmem:[%s1541 + $0xb0] sm:$0xff]
    %v1565 = vld [vmem:[%s1541 + $0xb8] sm:$0xff]
    %v1566 = vld [vmem:[%s1541 + $0xc0] sm:$0xff]
    %v1567 = vld [vmem:[%s1541 + $0xc8] sm:$0xff]
    %v1568 = vld [vmem:[%s1541 + $0xd0] sm:$0xff]
    %v1569 = vld [vmem:[%s1541 + $0xd8] sm:$0xff]
    %v1570 = vld [vmem:[%s1541 + $0xe0] sm:$0xff]
    %v1571 = vld [vmem:[%s1541 + $0xe8] sm:$0xff]
    %v1572 = vld [vmem:[%s1541 + $0xf0] sm:$0xff]
    %v1573 = vld [vmem:[%s1541 + $0xf8] sm:$0xff]
    %v1574 = vlaneseq
    %v1575 = vshrl.u32 %v1574, 7
    %v1576 = vsub.s32 0, %v1575
    %v1577 = vrot.slane %v1412, %v1576
    %v1578 = vlaneseq
    %v1579 = vshrl.u32 %v1578, 7
    %v1580 = vsub.s32 0, %v1579
    %v1581 = vrot.slane %v1420, %v1580
    %v1582 = vlaneseq
    %v1583 = vshrl.u32 %v1582, 7
    %v1584 = vsub.s32 0, %v1583
    %v1585 = vrot.slane %v1419, %v1584
    %v1586 = vlaneseq
    %v1587 = vshrl.u32 %v1586, 7
    %v1588 = vsub.s32 0, %v1587
    %v1589 = vrot.slane %v1421, %v1588
    %v1590 = vlaneseq
    %v1591 = vshrl.u32 %v1590, 7
    %v1592 = vsub.s32 0, %v1591
    %v1593 = vrot.slane %v1429, %v1592
    %v1594 = vlaneseq
    %v1595 = vshrl.u32 %v1594, 7
    %v1596 = vsub.s32 0, %v1595
    %v1597 = vrot.slane %v1437, %v1596
    %v1598 = vlaneseq
    %v1599 = vshrl.u32 %v1598, 7
    %v1600 = vsub.s32 0, %v1599
    %v1601 = vrot.slane %v1436, %v1600
    %v1602 = vlaneseq
    %v1603 = vshrl.u32 %v1602, 7
    %v1604 = vsub.s32 0, %v1603
    %v1605 = vrot.slane %v1438, %v1604
    %v1606 = vlaneseq
    %v1607 = vshrl.u32 %v1606, 7
    %v1608 = vsub.s32 0, %v1607
    %v1609 = vrot.slane %v1446, %v1608
    %v1610 = vlaneseq
    %v1611 = vshrl.u32 %v1610, 7
    %v1612 = vsub.s32 0, %v1611
    %v1613 = vrot.slane %v1454, %v1612
    %v1614 = vlaneseq
    %v1615 = vshrl.u32 %v1614, 7
    %v1616 = vsub.s32 0, %v1615
    %v1617 = vrot.slane %v1453, %v1616
    %v1618 = vlaneseq
    %v1619 = vshrl.u32 %v1618, 7
    %v1620 = vsub.s32 0, %v1619
    %v1621 = vrot.slane %v1455, %v1620
    %v1622 = vlaneseq
    %v1623 = vshrl.u32 %v1622, 7
    %v1624 = vsub.s32 0, %v1623
    %v1625 = vrot.slane %v1463, %v1624
    %v1626 = vlaneseq
    %v1627 = vshrl.u32 %v1626, 7
    %v1628 = vsub.s32 0, %v1627
    %v1629 = vrot.slane %v1471, %v1628
    %v1630 = vlaneseq
    %v1631 = vshrl.u32 %v1630, 7
    %v1632 = vsub.s32 0, %v1631
    %v1633 = vrot.slane %v1470, %v1632
    %v1634 = vlaneseq
    %v1635 = vshrl.u32 %v1634, 7
    %v1636 = vsub.s32 0, %v1635
    %v1637 = vrot.slane %v1472, %v1636
    %v1638 = vlaneseq
    %v1639 = vshrl.u32 %v1638, 7
    %v1640 = vsub.s32 0, %v1639
    %v1641 = vrot.slane %v1480, %v1640
    %v1642 = vlaneseq
    %v1643 = vshrl.u32 %v1642, 7
    %v1644 = vsub.s32 0, %v1643
    %v1645 = vrot.slane %v1488, %v1644
    %v1646 = vlaneseq
    %v1647 = vshrl.u32 %v1646, 7
    %v1648 = vsub.s32 0, %v1647
    %v1649 = vrot.slane %v1487, %v1648
    %v1650 = vlaneseq
    %v1651 = vshrl.u32 %v1650, 7
    %v1652 = vsub.s32 0, %v1651
    %v1653 = vrot.slane %v1489, %v1652
    %v1654 = vlaneseq
    %v1655 = vshrl.u32 %v1654, 7
    %v1656 = vsub.s32 0, %v1655
    %v1657 = vrot.slane %v1497, %v1656
    %v1658 = vlaneseq
    %v1659 = vshrl.u32 %v1658, 7
    %v1660 = vsub.s32 0, %v1659
    %v1661 = vrot.slane %v1505, %v1660
    %v1662 = vlaneseq
    %v1663 = vshrl.u32 %v1662, 7
    %v1664 = vsub.s32 0, %v1663
    %v1665 = vrot.slane %v1504, %v1664
    %v1666 = vlaneseq
    %v1667 = vshrl.u32 %v1666, 7
    %v1668 = vsub.s32 0, %v1667
    %v1669 = vrot.slane %v1506, %v1668
    %v1670 = vlaneseq
    %v1671 = vshrl.u32 %v1670, 7
    %v1672 = vsub.s32 0, %v1671
    %v1673 = vrot.slane %v1514, %v1672
    %v1674 = vlaneseq
    %v1675 = vshrl.u32 %v1674, 7
    %v1676 = vsub.s32 0, %v1675
    %v1677 = vrot.slane %v1522, %v1676
    %v1678 = vlaneseq
    %v1679 = vshrl.u32 %v1678, 7
    %v1680 = vsub.s32 0, %v1679
    %v1681 = vrot.slane %v1521, %v1680
    %v1682 = vlaneseq
    %v1683 = vshrl.u32 %v1682, 7
    %v1684 = vsub.s32 0, %v1683
    %v1685 = vrot.slane %v1523, %v1684
    %v1686 = vlaneseq
    %v1687 = vshrl.u32 %v1686, 7
    %v1688 = vsub.s32 0, %v1687
    %v1689 = vrot.slane %v1531, %v1688
    %v1690 = vlaneseq
    %v1691 = vshrl.u32 %v1690, 7
    %v1692 = vsub.s32 0, %v1691
    %v1693 = vrot.slane %v1539, %v1692
    %v1694 = vlaneseq
    %v1695 = vshrl.u32 %v1694, 7
    %v1696 = vsub.s32 0, %v1695
    %v1697 = vrot.slane %v1538, %v1696
    %v1698 = vlaneseq
    %v1699 = vshrl.u32 %v1698, 7
    %v1700 = vsub.s32 0, %v1699
    %v1701 = vrot.slane %v1540, %v1700
    %v1702 = vsel %vm570, %v1581, %v1577
    %v1703 = vsel %vm572, %v1585, %v1702
    %v1704 = vsel %vm574, %v1589, %v1703
    %v1705 = vsel %vm576, %v1593, %v1704
    %v1706 = vsel %vm578, %v1597, %v1705
    %v1707 = vsel %vm580, %v1601, %v1706
    %v1708 = vsel %vm582, %v1605, %v1707
    %v1709 = vsel %vm570, %v1613, %v1609
    %v1710 = vsel %vm572, %v1617, %v1709
    %v1711 = vsel %vm574, %v1621, %v1710
    %v1712 = vsel %vm576, %v1625, %v1711
    %v1713 = vsel %vm578, %v1629, %v1712
    %v1714 = vsel %vm580, %v1633, %v1713
    %v1715 = vsel %vm582, %v1637, %v1714
    %v1716 = vsel %vm570, %v1645, %v1641
    %v1717 = vsel %vm572, %v1649, %v1716
    %v1718 = vsel %vm574, %v1653, %v1717
    %v1719 = vsel %vm576, %v1657, %v1718
    %v1720 = vsel %vm578, %v1661, %v1719
    %v1721 = vsel %vm580, %v1665, %v1720
    %v1722 = vsel %vm582, %v1669, %v1721
    %v1723 = vsel %vm570, %v1677, %v1673
    %v1724 = vsel %vm572, %v1681, %v1723
    %v1725 = vsel %vm574, %v1685, %v1724
    %v1726 = vsel %vm576, %v1689, %v1725
    %v1727 = vsel %vm578, %v1693, %v1726
    %v1728 = vsel %vm580, %v1697, %v1727
    %v1729 = vsel %vm582, %v1701, %v1728
    %1734 = vmatprep.subr.mxu0 %v1543
    %1735 = vmatpush1.msra.mxu0 %v1542
    %1736 = vmatprep.subr.mxu0 %v1545
    %1737 = vmatpush1.msra.mxu0 %v1544
    %1738 = vmatprep.subr.mxu0 %v1547
    %1739 = vmatpush1.msra.mxu0 %v1546
    %1740 = vmatprep.subr.mxu0 %v1549
    %1741 = vmatpush1.msra.mxu0 %v1548
    %1742 = vmatprep.subr.mxu0 %v1551
    %1743 = vmatpush1.msra.mxu0 %v1550
    %1744 = vmatprep.subr.mxu0 %v1553
    %1745 = vmatpush1.msra.mxu0 %v1552
    %1746 = vmatprep.subr.mxu0 %v1555
    %1747 = vmatpush1.msra.mxu0 %v1554
    %1748 = vmatprep.subr.mxu0 %v1557
    %1749 = vmatpush1.msra.mxu0 %v1556
    %1750 = vmatprep.subr.mxu0 %v1559
    %1751 = vmatpush1.msra.mxu0 %v1558
    %1752 = vmatprep.subr.mxu0 %v1561
    %1753 = vmatpush1.msra.mxu0 %v1560
    %1754 = vmatprep.subr.mxu0 %v1563
    %1755 = vmatpush1.msra.mxu0 %v1562
    %1756 = vmatprep.subr.mxu0 %v1565
    %1757 = vmatpush1.msra.mxu0 %v1564
    %1758 = vmatprep.subr.mxu0 %v1567
    %1759 = vmatpush1.msra.mxu0 %v1566
    %1760 = vmatprep.subr.mxu0 %v1569
    %1761 = vmatpush1.msra.mxu0 %v1568
    %1762 = vmatprep.subr.mxu0 %v1571
    %1763 = vmatpush1.msra.mxu0 %v1570
    %1764 = vmatprep.subr.mxu0 %v1573
    %1765 = vmatpush1.msra.mxu0 %v1572
    %1766 = vmatprep.subr.mxu0 0.0
    %1767 = vmatpush1.msra.mxu0 0.0
    %1768 = vmatprep.subr.mxu0 0.0
    %1769 = vmatpush1.msra.mxu0 0.0
    %1770 = vmatprep.subr.mxu0 0.0
    %1771 = vmatpush1.msra.mxu0 0.0
    %1772 = vmatprep.subr.mxu0 0.0
    %1773 = vmatpush1.msra.mxu0 0.0
    %1774 = vmatprep.subr.mxu0 0.0
    %1775 = vmatpush1.msra.mxu0 0.0
    %1776 = vmatprep.subr.mxu0 0.0
    %1777 = vmatpush1.msra.mxu0 0.0
    %1778 = vmatprep.subr.mxu0 0.0
    %1779 = vmatpush1.msra.mxu0 0.0
    %1780 = vmatprep.subr.mxu0 0.0
    %1781 = vmatpush1.msra.mxu0 0.0
    %1782 = vmatprep.subr.mxu0 0.0
    %1783 = vmatpush1.msra.mxu0 0.0
    %1784 = vmatprep.subr.mxu0 0.0
    %1785 = vmatpush1.msra.mxu0 0.0
    %1786 = vmatprep.subr.mxu0 0.0
    %1787 = vmatpush1.msra.mxu0 0.0
    %1788 = vmatprep.subr.mxu0 0.0
    %1789 = vmatpush1.msra.mxu0 0.0
    %1790 = vmatprep.subr.mxu0 0.0
    %1791 = vmatpush1.msra.mxu0 0.0
    %1792 = vmatprep.subr.mxu0 0.0
    %1793 = vmatpush1.msra.mxu0 0.0
    %1794 = vmatprep.subr.mxu0 0.0
    %1795 = vmatpush1.msra.mxu0 0.0
    %1796 = vmatprep.subr.mxu0 0.0
    %1797 = vmatpush1.msra.mxu0 0.0
    %1798 = vmatprep.mubr.f32.mxu0 0.0
    %1799 = vmatmul.mubr.f32.gmra.mrb[0].mxu0 %v1708
    %v1800 = vpop.f32.mrb[0].mxu0
    %v1801 = vadd.f32 0.0, %v1800
    %v1802 = vpop.f32.mrb[0].mxu0
    %v1803 = vadd.f32 0.0, %v1802
    %1804 = vmatprep.mubr.f32.mxu0 0.0
    %1805 = vmatmul.mubr.f32.gmra.mrb[0].mxu0 %v1715
    %v1806 = vpop.f32.mrb[0].mxu0
    %v1807 = vadd.f32 0.0, %v1806
    %v1808 = vpop.f32.mrb[0].mxu0
    %v1809 = vadd.f32 0.0, %v1808
    %1810 = vmatprep.mubr.f32.mxu0 0.0
    %1811 = vmatmul.mubr.f32.gmra.mrb[0].mxu0 %v1722
    %v1812 = vpop.f32.mrb[0].mxu0
    %v1813 = vadd.f32 0.0, %v1812
    %v1814 = vpop.f32.mrb[0].mxu0
    %v1815 = vadd.f32 0.0, %v1814
    %1816 = vmatprep.mubr.f32.mxu0 0.0
    %1817 = vmatmul.mubr.f32.gmra.mrb[0].mxu0 %v1729
    %v1818 = vpop.f32.mrb[0].mxu0
    %v1819 = vadd.f32 0.0, %v1818
    %v1820 = vpop.f32.mrb[0].mxu0
    %v1821 = vadd.f32 0.0, %v1820
    %1822 = vdwg.mxu0
    %v1823 = vadd.f32 %v1381, %v1801
    %v1824 = vadd.f32 %v1382, %v1803
    %v1825 = vadd.f32 %v1383, %v1807
    %v1826 = vadd.f32 %v1384, %v1809
    %v1827 = vadd.f32 %v1385, %v1813
    %v1828 = vadd.f32 %v1386, %v1815
    %v1829 = vadd.f32 %v1387, %v1819
    %v1830 = vadd.f32 %v1388, %v1821
    %v1831 = vld [vmem:[%s0 + $0x4] sm:$0xff]
    %v1832 = vld [vmem:[%s0 + $0xc] sm:$0xff]
    %v1833 = vld [vmem:[%s0 + $0x14] sm:$0xff]
    %v1834 = vld [vmem:[%s0 + $0x1c] sm:$0xff]
    %v1835 = vld [vmem:[%s0 + $0x2c] sm:$0xff]
    %v1836 = vld [vmem:[%s0 + $0x34] sm:$0xff]
    %v1837 = vld [vmem:[%s0 + $0x3c] sm:$0xff]
    %v1838 = vld [vmem:[%s0 + $0x44] sm:$0xff]
    %v1847 = vcombine.high %v1831, %v1831
    %v1849 = vunpack.c.l.s4 1983009808
    %v1850 = vunpack.c.0.s8 %v1849
    %v1851 = vlaneseq
    %v1852 = vshrl.u32 %v1851, 7
    %v1853 = vsub.s32 %v1850, %v1852
    %v1854 = vrot.slane %v1831, %v1853
    %v1856 = vunpack.c.l.s4 1983009808
    %v1857 = vunpack.c.0.s8 %v1856
    %v1858 = vlaneseq
    %v1859 = vshrl.u32 %v1858, 7
    %v1860 = vsub.s32 %v1857, %v1859
    %v1861 = vrot.slane %v1847, %v1860
    %v1862 = vcombine.high %v1854, %v1854
    %v1863 = vcombine.high %v1861, %v1861
    %v1864 = vcombine.high %v1832, %v1832
    %v1866 = vunpack.c.l.s4 1983009808
    %v1867 = vunpack.c.0.s8 %v1866
    %v1868 = vlaneseq
    %v1869 = vshrl.u32 %v1868, 7
    %v1870 = vsub.s32 %v1867, %v1869
    %v1871 = vrot.slane %v1832, %v1870
    %v1873 = vunpack.c.l.s4 1983009808
    %v1874 = vunpack.c.0.s8 %v1873
    %v1875 = vlaneseq
    %v1876 = vshrl.u32 %v1875, 7
    %v1877 = vsub.s32 %v1874, %v1876
    %v1878 = vrot.slane %v1864, %v1877
    %v1879 = vcombine.high %v1871, %v1871
    %v1880 = vcombine.high %v1878, %v1878
    %v1881 = vcombine.high %v1833, %v1833
    %v1883 = vunpack.c.l.s4 1983009808
    %v1884 = vunpack.c.0.s8 %v1883
    %v1885 = vlaneseq
    %v1886 = vshrl.u32 %v1885, 7
    %v1887 = vsub.s32 %v1884, %v1886
    %v1888 = vrot.slane %v1833, %v1887
    %v1890 = vunpack.c.l.s4 1983009808
    %v1891 = vunpack.c.0.s8 %v1890
    %v1892 = vlaneseq
    %v1893 = vshrl.u32 %v1892, 7
    %v1894 = vsub.s32 %v1891, %v1893
    %v1895 = vrot.slane %v1881, %v1894
    %v1896 = vcombine.high %v1888, %v1888
    %v1897 = vcombine.high %v1895, %v1895
    %v1898 = vcombine.high %v1834, %v1834
    %v1900 = vunpack.c.l.s4 1983009808
    %v1901 = vunpack.c.0.s8 %v1900
    %v1902 = vlaneseq
    %v1903 = vshrl.u32 %v1902, 7
    %v1904 = vsub.s32 %v1901, %v1903
    %v1905 = vrot.slane %v1834, %v1904
    %v1907 = vunpack.c.l.s4 1983009808
    %v1908 = vunpack.c.0.s8 %v1907
    %v1909 = vlaneseq
    %v1910 = vshrl.u32 %v1909, 7
    %v1911 = vsub.s32 %v1908, %v1910
    %v1912 = vrot.slane %v1898, %v1911
    %v1913 = vcombine.high %v1905, %v1905
    %v1914 = vcombine.high %v1912, %v1912
    %v1915 = vcombine.high %v1835, %v1835
    %v1917 = vunpack.c.l.s4 1983009808
    %v1918 = vunpack.c.0.s8 %v1917
    %v1919 = vlaneseq
    %v1920 = vshrl.u32 %v1919, 7
    %v1921 = vsub.s32 %v1918, %v1920
    %v1922 = vrot.slane %v1835, %v1921
    %v1924 = vunpack.c.l.s4 1983009808
    %v1925 = vunpack.c.0.s8 %v1924
    %v1926 = vlaneseq
    %v1927 = vshrl.u32 %v1926, 7
    %v1928 = vsub.s32 %v1925, %v1927
    %v1929 = vrot.slane %v1915, %v1928
    %v1930 = vcombine.high %v1922, %v1922
    %v1931 = vcombine.high %v1929, %v1929
    %v1932 = vcombine.high %v1836, %v1836
    %v1934 = vunpack.c.l.s4 1983009808
    %v1935 = vunpack.c.0.s8 %v1934
    %v1936 = vlaneseq
    %v1937 = vshrl.u32 %v1936, 7
    %v1938 = vsub.s32 %v1935, %v1937
    %v1939 = vrot.slane %v1836, %v1938
    %v1941 = vunpack.c.l.s4 1983009808
    %v1942 = vunpack.c.0.s8 %v1941
    %v1943 = vlaneseq
    %v1944 = vshrl.u32 %v1943, 7
    %v1945 = vsub.s32 %v1942, %v1944
    %v1946 = vrot.slane %v1932, %v1945
    %v1947 = vcombine.high %v1939, %v1939
    %v1948 = vcombine.high %v1946, %v1946
    %v1949 = vcombine.high %v1837, %v1837
    %v1951 = vunpack.c.l.s4 1983009808
    %v1952 = vunpack.c.0.s8 %v1951
    %v1953 = vlaneseq
    %v1954 = vshrl.u32 %v1953, 7
    %v1955 = vsub.s32 %v1952, %v1954
    %v1956 = vrot.slane %v1837, %v1955
    %v1958 = vunpack.c.l.s4 1983009808
    %v1959 = vunpack.c.0.s8 %v1958
    %v1960 = vlaneseq
    %v1961 = vshrl.u32 %v1960, 7
    %v1962 = vsub.s32 %v1959, %v1961
    %v1963 = vrot.slane %v1949, %v1962
    %v1964 = vcombine.high %v1956, %v1956
    %v1965 = vcombine.high %v1963, %v1963
    %v1966 = vcombine.high %v1838, %v1838
    %v1968 = vunpack.c.l.s4 1983009808
    %v1969 = vunpack.c.0.s8 %v1968
    %v1970 = vlaneseq
    %v1971 = vshrl.u32 %v1970, 7
    %v1972 = vsub.s32 %v1969, %v1971
    %v1973 = vrot.slane %v1838, %v1972
    %v1975 = vunpack.c.l.s4 1983009808
    %v1976 = vunpack.c.0.s8 %v1975
    %v1977 = vlaneseq
    %v1978 = vshrl.u32 %v1977, 7
    %v1979 = vsub.s32 %v1976, %v1978
    %v1980 = vrot.slane %v1966, %v1979
    %v1981 = vcombine.high %v1973, %v1973
    %v1982 = vcombine.high %v1980, %v1980
    %s1983 = scalar_lea.vmem %s1, 1024
    %v1984 = vld [vmem:[%s1983] sm:$0xff]
    %v1985 = vld [vmem:[%s1983 + $0x8] sm:$0xff]
    %v1986 = vld [vmem:[%s1983 + $0x10] sm:$0xff]
    %v1987 = vld [vmem:[%s1983 + $0x18] sm:$0xff]
    %v1988 = vld [vmem:[%s1983 + $0x20] sm:$0xff]
    %v1989 = vld [vmem:[%s1983 + $0x28] sm:$0xff]
    %v1990 = vld [vmem:[%s1983 + $0x30] sm:$0xff]
    %v1991 = vld [vmem:[%s1983 + $0x38] sm:$0xff]
    %v1992 = vld [vmem:[%s1983 + $0x40] sm:$0xff]
    %v1993 = vld [vmem:[%s1983 + $0x48] sm:$0xff]
    %v1994 = vld [vmem:[%s1983 + $0x50] sm:$0xff]
    %v1995 = vld [vmem:[%s1983 + $0x58] sm:$0xff]
    %v1996 = vld [vmem:[%s1983 + $0x60] sm:$0xff]
    %v1997 = vld [vmem:[%s1983 + $0x68] sm:$0xff]
    %v1998 = vld [vmem:[%s1983 + $0x70] sm:$0xff]
    %v1999 = vld [vmem:[%s1983 + $0x78] sm:$0xff]
    %v2000 = vld [vmem:[%s1983 + $0x80] sm:$0xff]
    %v2001 = vld [vmem:[%s1983 + $0x88] sm:$0xff]
    %v2002 = vld [vmem:[%s1983 + $0x90] sm:$0xff]
    %v2003 = vld [vmem:[%s1983 + $0x98] sm:$0xff]
    %v2004 = vld [vmem:[%s1983 + $0xa0] sm:$0xff]
    %v2005 = vld [vmem:[%s1983 + $0xa8] sm:$0xff]
    %v2006 = vld [vmem:[%s1983 + $0xb0] sm:$0xff]
    %v2007 = vld [vmem:[%s1983 + $0xb8] sm:$0xff]
    %v2008 = vld [vmem:[%s1983 + $0xc0] sm:$0xff]
    %v2009 = vld [vmem:[%s1983 + $0xc8] sm:$0xff]
    %v2010 = vld [vmem:[%s1983 + $0xd0] sm:$0xff]
    %v2011 = vld [vmem:[%s1983 + $0xd8] sm:$0xff]
    %v2012 = vld [vmem:[%s1983 + $0xe0] sm:$0xff]
    %v2013 = vld [vmem:[%s1983 + $0xe8] sm:$0xff]
    %v2014 = vld [vmem:[%s1983 + $0xf0] sm:$0xff]
    %v2015 = vld [vmem:[%s1983 + $0xf8] sm:$0xff]
    %v2016 = vlaneseq
    %v2017 = vshrl.u32 %v2016, 7
    %v2018 = vsub.s32 0, %v2017
    %v2019 = vrot.slane %v1854, %v2018
    %v2020 = vlaneseq
    %v2021 = vshrl.u32 %v2020, 7
    %v2022 = vsub.s32 0, %v2021
    %v2023 = vrot.slane %v1862, %v2022
    %v2024 = vlaneseq
    %v2025 = vshrl.u32 %v2024, 7
    %v2026 = vsub.s32 0, %v2025
    %v2027 = vrot.slane %v1861, %v2026
    %v2028 = vlaneseq
    %v2029 = vshrl.u32 %v2028, 7
    %v2030 = vsub.s32 0, %v2029
    %v2031 = vrot.slane %v1863, %v2030
    %v2032 = vlaneseq
    %v2033 = vshrl.u32 %v2032, 7
    %v2034 = vsub.s32 0, %v2033
    %v2035 = vrot.slane %v1871, %v2034
    %v2036 = vlaneseq
    %v2037 = vshrl.u32 %v2036, 7
    %v2038 = vsub.s32 0, %v2037
    %v2039 = vrot.slane %v1879, %v2038
    %v2040 = vlaneseq
    %v2041 = vshrl.u32 %v2040, 7
    %v2042 = vsub.s32 0, %v2041
    %v2043 = vrot.slane %v1878, %v2042
    %v2044 = vlaneseq
    %v2045 = vshrl.u32 %v2044, 7
    %v2046 = vsub.s32 0, %v2045
    %v2047 = vrot.slane %v1880, %v2046
    %v2048 = vlaneseq
    %v2049 = vshrl.u32 %v2048, 7
    %v2050 = vsub.s32 0, %v2049
    %v2051 = vrot.slane %v1888, %v2050
    %v2052 = vlaneseq
    %v2053 = vshrl.u32 %v2052, 7
    %v2054 = vsub.s32 0, %v2053
    %v2055 = vrot.slane %v1896, %v2054
    %v2056 = vlaneseq
    %v2057 = vshrl.u32 %v2056, 7
    %v2058 = vsub.s32 0, %v2057
    %v2059 = vrot.slane %v1895, %v2058
    %v2060 = vlaneseq
    %v2061 = vshrl.u32 %v2060, 7
    %v2062 = vsub.s32 0, %v2061
    %v2063 = vrot.slane %v1897, %v2062
    %v2064 = vlaneseq
    %v2065 = vshrl.u32 %v2064, 7
    %v2066 = vsub.s32 0, %v2065
    %v2067 = vrot.slane %v1905, %v2066
    %v2068 = vlaneseq
    %v2069 = vshrl.u32 %v2068, 7
    %v2070 = vsub.s32 0, %v2069
    %v2071 = vrot.slane %v1913, %v2070
    %v2072 = vlaneseq
    %v2073 = vshrl.u32 %v2072, 7
    %v2074 = vsub.s32 0, %v2073
    %v2075 = vrot.slane %v1912, %v2074
    %v2076 = vlaneseq
    %v2077 = vshrl.u32 %v2076, 7
    %v2078 = vsub.s32 0, %v2077
    %v2079 = vrot.slane %v1914, %v2078
    %v2080 = vlaneseq
    %v2081 = vshrl.u32 %v2080, 7
    %v2082 = vsub.s32 0, %v2081
    %v2083 = vrot.slane %v1922, %v2082
    %v2084 = vlaneseq
    %v2085 = vshrl.u32 %v2084, 7
    %v2086 = vsub.s32 0, %v2085
    %v2087 = vrot.slane %v1930, %v2086
    %v2088 = vlaneseq
    %v2089 = vshrl.u32 %v2088, 7
    %v2090 = vsub.s32 0, %v2089
    %v2091 = vrot.slane %v1929, %v2090
    %v2092 = vlaneseq
    %v2093 = vshrl.u32 %v2092, 7
    %v2094 = vsub.s32 0, %v2093
    %v2095 = vrot.slane %v1931, %v2094
    %v2096 = vlaneseq
    %v2097 = vshrl.u32 %v2096, 7
    %v2098 = vsub.s32 0, %v2097
    %v2099 = vrot.slane %v1939, %v2098
    %v2100 = vlaneseq
    %v2101 = vshrl.u32 %v2100, 7
    %v2102 = vsub.s32 0, %v2101
    %v2103 = vrot.slane %v1947, %v2102
    %v2104 = vlaneseq
    %v2105 = vshrl.u32 %v2104, 7
    %v2106 = vsub.s32 0, %v2105
    %v2107 = vrot.slane %v1946, %v2106
    %v2108 = vlaneseq
    %v2109 = vshrl.u32 %v2108, 7
    %v2110 = vsub.s32 0, %v2109
    %v2111 = vrot.slane %v1948, %v2110
    %v2112 = vlaneseq
    %v2113 = vshrl.u32 %v2112, 7
    %v2114 = vsub.s32 0, %v2113
    %v2115 = vrot.slane %v1956, %v2114
    %v2116 = vlaneseq
    %v2117 = vshrl.u32 %v2116, 7
    %v2118 = vsub.s32 0, %v2117
    %v2119 = vrot.slane %v1964, %v2118
    %v2120 = vlaneseq
    %v2121 = vshrl.u32 %v2120, 7
    %v2122 = vsub.s32 0, %v2121
    %v2123 = vrot.slane %v1963, %v2122
    %v2124 = vlaneseq
    %v2125 = vshrl.u32 %v2124, 7
    %v2126 = vsub.s32 0, %v2125
    %v2127 = vrot.slane %v1965, %v2126
    %v2128 = vlaneseq
    %v2129 = vshrl.u32 %v2128, 7
    %v2130 = vsub.s32 0, %v2129
    %v2131 = vrot.slane %v1973, %v2130
    %v2132 = vlaneseq
    %v2133 = vshrl.u32 %v2132, 7
    %v2134 = vsub.s32 0, %v2133
    %v2135 = vrot.slane %v1981, %v2134
    %v2136 = vlaneseq
    %v2137 = vshrl.u32 %v2136, 7
    %v2138 = vsub.s32 0, %v2137
    %v2139 = vrot.slane %v1980, %v2138
    %v2140 = vlaneseq
    %v2141 = vshrl.u32 %v2140, 7
    %v2142 = vsub.s32 0, %v2141
    %v2143 = vrot.slane %v1982, %v2142
    %v2144 = vsel %vm570, %v2023, %v2019
    %v2145 = vsel %vm572, %v2027, %v2144
    %v2146 = vsel %vm574, %v2031, %v2145
    %v2147 = vsel %vm576, %v2035, %v2146
    %v2148 = vsel %vm578, %v2039, %v2147
    %v2149 = vsel %vm580, %v2043, %v2148
    %v2150 = vsel %vm582, %v2047, %v2149
    %v2151 = vsel %vm570, %v2055, %v2051
    %v2152 = vsel %vm572, %v2059, %v2151
    %v2153 = vsel %vm574, %v2063, %v2152
    %v2154 = vsel %vm576, %v2067, %v2153
    %v2155 = vsel %vm578, %v2071, %v2154
    %v2156 = vsel %vm580, %v2075, %v2155
    %v2157 = vsel %vm582, %v2079, %v2156
    %v2158 = vsel %vm570, %v2087, %v2083
    %v2159 = vsel %vm572, %v2091, %v2158
    %v2160 = vsel %vm574, %v2095, %v2159
    %v2161 = vsel %vm576, %v2099, %v2160
    %v2162 = vsel %vm578, %v2103, %v2161
    %v2163 = vsel %vm580, %v2107, %v2162
    %v2164 = vsel %vm582, %v2111, %v2163
    %v2165 = vsel %vm570, %v2119, %v2115
    %v2166 = vsel %vm572, %v2123, %v2165
    %v2167 = vsel %vm574, %v2127, %v2166
    %v2168 = vsel %vm576, %v2131, %v2167
    %v2169 = vsel %vm578, %v2135, %v2168
    %v2170 = vsel %vm580, %v2139, %v2169
    %v2171 = vsel %vm582, %v2143, %v2170
    %2176 = vmatprep.subr.mxu0 %v1985
    %2177 = vmatpush1.msra.mxu0 %v1984
    %2178 = vmatprep.subr.mxu0 %v1987
    %2179 = vmatpush1.msra.mxu0 %v1986
    %2180 = vmatprep.subr.mxu0 %v1989
    %2181 = vmatpush1.msra.mxu0 %v1988
    %2182 = vmatprep.subr.mxu0 %v1991
    %2183 = vmatpush1.msra.mxu0 %v1990
    %2184 = vmatprep.subr.mxu0 %v1993
    %2185 = vmatpush1.msra.mxu0 %v1992
    %2186 = vmatprep.subr.mxu0 %v1995
    %2187 = vmatpush1.msra.mxu0 %v1994
    %2188 = vmatprep.subr.mxu0 %v1997
    %2189 = vmatpush1.msra.mxu0 %v1996
    %2190 = vmatprep.subr.mxu0 %v1999
    %2191 = vmatpush1.msra.mxu0 %v1998
    %2192 = vmatprep.subr.mxu0 %v2001
    %2193 = vmatpush1.msra.mxu0 %v2000
    %2194 = vmatprep.subr.mxu0 %v2003
    %2195 = vmatpush1.msra.mxu0 %v2002
    %2196 = vmatprep.subr.mxu0 %v2005
    %2197 = vmatpush1.msra.mxu0 %v2004
    %2198 = vmatprep.subr.mxu0 %v2007
    %2199 = vmatpush1.msra.mxu0 %v2006
    %2200 = vmatprep.subr.mxu0 %v2009
    %2201 = vmatpush1.msra.mxu0 %v2008
    %2202 = vmatprep.subr.mxu0 %v2011
    %2203 = vmatpush1.msra.mxu0 %v2010
    %2204 = vmatprep.subr.mxu0 %v2013
    %2205 = vmatpush1.msra.mxu0 %v2012
    %2206 = vmatprep.subr.mxu0 %v2015
    %2207 = vmatpush1.msra.mxu0 %v2014
    %2208 = vmatprep.subr.mxu0 0.0
    %2209 = vmatpush1.msra.mxu0 0.0
    %2210 = vmatprep.subr.mxu0 0.0
    %2211 = vmatpush1.msra.mxu0 0.0
    %2212 = vmatprep.subr.mxu0 0.0
    %2213 = vmatpush1.msra.mxu0 0.0
    %2214 = vmatprep.subr.mxu0 0.0
    %2215 = vmatpush1.msra.mxu0 0.0
    %2216 = vmatprep.subr.mxu0 0.0
    %2217 = vmatpush1.msra.mxu0 0.0
    %2218 = vmatprep.subr.mxu0 0.0
    %2219 = vmatpush1.msra.mxu0 0.0
    %2220 = vmatprep.subr.mxu0 0.0
    %2221 = vmatpush1.msra.mxu0 0.0
    %2222 = vmatprep.subr.mxu0 0.0
    %2223 = vmatpush1.msra.mxu0 0.0
    %2224 = vmatprep.subr.mxu0 0.0
    %2225 = vmatpush1.msra.mxu0 0.0
    %2226 = vmatprep.subr.mxu0 0.0
    %2227 = vmatpush1.msra.mxu0 0.0
    %2228 = vmatprep.subr.mxu0 0.0
    %2229 = vmatpush1.msra.mxu0 0.0
    %2230 = vmatprep.subr.mxu0 0.0
    %2231 = vmatpush1.msra.mxu0 0.0
    %2232 = vmatprep.subr.mxu0 0.0
    %2233 = vmatpush1.msra.mxu0 0.0
    %2234 = vmatprep.subr.mxu0 0.0
    %2235 = vmatpush1.msra.mxu0 0.0
    %2236 = vmatprep.subr.mxu0 0.0
    %2237 = vmatpush1.msra.mxu0 0.0
    %2238 = vmatprep.subr.mxu0 0.0
    %2239 = vmatpush1.msra.mxu0 0.0
    %2240 = vmatprep.mubr.f32.mxu0 0.0
    %2241 = vmatmul.mubr.f32.gmra.mrb[0].mxu0 %v2150
    %v2242 = vpop.f32.mrb[0].mxu0
    %v2243 = vadd.f32 0.0, %v2242
    %v2244 = vpop.f32.mrb[0].mxu0
    %v2245 = vadd.f32 0.0, %v2244
    %2246 = vmatprep.mubr.f32.mxu0 0.0
    %2247 = vmatmul.mubr.f32.gmra.mrb[0].mxu0 %v2157
    %v2248 = vpop.f32.mrb[0].mxu0
    %v2249 = vadd.f32 0.0, %v2248
    %v2250 = vpop.f32.mrb[0].mxu0
    %v2251 = vadd.f32 0.0, %v2250
    %2252 = vmatprep.mubr.f32.mxu0 0.0
    %2253 = vmatmul.mubr.f32.gmra.mrb[0].mxu0 %v2164
    %v2254 = vpop.f32.mrb[0].mxu0
    %v2255 = vadd.f32 0.0, %v2254
    %v2256 = vpop.f32.mrb[0].mxu0
    %v2257 = vadd.f32 0.0, %v2256
    %2258 = vmatprep.mubr.f32.mxu0 0.0
    %2259 = vmatmul.mubr.f32.gmra.mrb[0].mxu0 %v2171
    %v2260 = vpop.f32.mrb[0].mxu0
    %v2261 = vadd.f32 0.0, %v2260
    %v2262 = vpop.f32.mrb[0].mxu0
    %v2263 = vadd.f32 0.0, %v2262
    %2264 = vdwg.mxu0
    %v2265 = vadd.f32 %v1823, %v2243
    %v2266 = vadd.f32 %v1824, %v2245
    %v2267 = vadd.f32 %v1825, %v2249
    %v2268 = vadd.f32 %v1826, %v2251
    %v2269 = vadd.f32 %v1827, %v2255
    %v2270 = vadd.f32 %v1828, %v2257
    %v2271 = vadd.f32 %v1829, %v2261
    %v2272 = vadd.f32 %v1830, %v2263
    %v2273 = vld [vmem:[%s2] sm:$0x3]
    %v2275 = vlaneseq
    %v2276 = vshrl.u32 %v2275, 7
    %v2277 = vsub.s32 0, %v2276
    %v2278 = vrot.slane %v2273, %v2277
    %v2279 = vlaneseq
    %v2280 = vshrl.u32 %v2279, 7
    %v2281 = vsub.s32 1, %v2280
    %v2282 = vrot.slane %v2273, %v2281
    %v2285 = vadd.f32 %v2265, %v2278
    %v2286 = vadd.f32 %v2266, %v2282
    %v2287 = vadd.f32 %v2267, %v2278
    %v2288 = vadd.f32 %v2268, %v2282
    %v2289 = vadd.f32 %v2269, %v2278
    %v2290 = vadd.f32 %v2270, %v2282
    %v2291 = vadd.f32 %v2271, %v2278
    %v2292 = vadd.f32 %v2272, %v2282
    %v2293 = vsub.f32 0.0, %v2285
    %v2294 = vsub.f32 0.0, %v2286
    %v2295 = vsub.f32 0.0, %v2287
    %v2296 = vsub.f32 0.0, %v2288
    %v2297 = vsub.f32 0.0, %v2289
    %v2298 = vsub.f32 0.0, %v2290
    %v2299 = vsub.f32 0.0, %v2291
    %v2300 = vsub.f32 0.0, %v2292
    %v2301 = vmul.f32 %v2293, 1.442695
    %v2302 = vpow.pop %v2301
    %v2303 = vmul.f32 %v2294, 1.442695
    %v2304 = vpow.pop %v2303
    %v2305 = vmul.f32 %v2295, 1.442695
    %v2306 = vpow.pop %v2305
    %v2307 = vmul.f32 %v2296, 1.442695
    %v2308 = vpow.pop %v2307
    %v2309 = vmul.f32 %v2297, 1.442695
    %v2310 = vpow.pop %v2309
    %v2311 = vmul.f32 %v2298, 1.442695
    %v2312 = vpow.pop %v2311
    %v2313 = vmul.f32 %v2299, 1.442695
    %v2314 = vpow.pop %v2313
    %v2315 = vmul.f32 %v2300, 1.442695
    %v2316 = vpow.pop %v2315
    %v2317 = vadd.f32 %v2302, 1.0
    %v2318 = vadd.f32 %v2304, 1.0
    %v2319 = vadd.f32 %v2306, 1.0
    %v2320 = vadd.f32 %v2308, 1.0
    %v2321 = vadd.f32 %v2310, 1.0
    %v2322 = vadd.f32 %v2312, 1.0
    %v2323 = vadd.f32 %v2314, 1.0
    %v2324 = vadd.f32 %v2316, 1.0
    %v2325 = vrcp.pop %v2317
    %v2326 = vrcp.pop %v2318
    %v2327 = vrcp.pop %v2319
    %v2328 = vrcp.pop %v2320
    %v2329 = vrcp.pop %v2321
    %v2330 = vrcp.pop %v2322
    %v2331 = vrcp.pop %v2323
    %v2332 = vrcp.pop %v2324
    %2333 = vst [vmem:[#allocation2] sm:$0x3] 0.0
    %vm2334 = vcmask 517120
    %2335 = vst.msk [vmem:[#allocation2 + $0x8] sm:$0x3] %vm2334, 0.0
    %2336 = vst [vmem:[#allocation2 + $0x30] sm:$0x3] 0.0
    %2337 = vst.msk [vmem:[#allocation2 + $0x38] sm:$0x3] %vm2334, 0.0
    %2338 = vst [vmem:[#allocation2 + $0x20] sm:$0xc] 0.0
    %vm2339 = vcmask 519170
    %2340 = vst.msk [vmem:[#allocation2 + $0x28] sm:$0xc] %vm2339, 0.0
    %2341 = vst [vmem:[#allocation2 + $0x50] sm:$0xc] 0.0
    %2342 = vst.msk [vmem:[#allocation2 + $0x58] sm:$0xc] %vm2339, 0.0
    %vm2351 = vcmask 1041408
    %v2352 = vrot.slane %v2325, 6
    %v2353 = vrot.slane %v2326, 6
    %v2354 = vrot.slane %v2327, 6
    %v2355 = vsel %vm2351, %v2352, %v2354
    %v2356 = vrot.slane %v2328, 6
    %v2357 = vsel %vm2351, %v2353, %v2356
    %v2358 = vrot.slane %v2329, 6
    %v2359 = vrot.slane %v2330, 6
    %v2360 = vrot.slane %v2331, 6
    %v2361 = vsel %vm2351, %v2358, %v2360
    %v2362 = vrot.slane %v2332, 6
    %v2363 = vsel %vm2351, %v2359, %v2362
    %2376 = vst [vmem:[#allocation2] sm:$0xfc] %v2352
    %vm2377 = vcmask 523266
    %2378 = vst.msk [vmem:[#allocation2 + $0x8] sm:$0xfc] %vm2377, %v2353
    %2379 = vst [vmem:[#allocation2 + $0x10] sm:$0xff] %v2355
    %vm2380 = vcmask 523264
    %2381 = vst.msk [vmem:[#allocation2 + $0x18] sm:$0xff] %vm2380, %v2357
    %2382 = vst [vmem:[#allocation2 + $0x20] sm:$0x3] %v2354
    %2383 = vst.msk [vmem:[#allocation2 + $0x28] sm:$0x3] %vm2334, %v2356
    %2384 = vst [vmem:[#allocation2 + $0x30] sm:$0xfc] %v2358
    %2385 = vst.msk [vmem:[#allocation2 + $0x38] sm:$0xfc] %vm2377, %v2359
    %2386 = vst [vmem:[#allocation2 + $0x40] sm:$0xff] %v2361
    %2387 = vst.msk [vmem:[#allocation2 + $0x48] sm:$0xff] %vm2380, %v2363
    %2388 = vst [vmem:[#allocation2 + $0x50] sm:$0x3] %v2360
    %2389 = vst.msk [vmem:[#allocation2 + $0x58] sm:$0x3] %vm2334, %v2362
    %v2390 = vld [vmem:[#allocation2] sm:$0xff]
    %v2391 = vld [vmem:[#allocation2 + $0x8] sm:$0xff]
    %v2392 = vld [vmem:[#allocation2 + $0x10] sm:$0xff]
    %v2393 = vld [vmem:[#allocation2 + $0x18] sm:$0xff]
    %v2394 = vld [vmem:[#allocation2 + $0x30] sm:$0xff]
    %v2395 = vld [vmem:[#allocation2 + $0x38] sm:$0xff]
    %v2396 = vld [vmem:[#allocation2 + $0x40] sm:$0xff]
    %v2397 = vld [vmem:[#allocation2 + $0x48] sm:$0xff]
    %v2406 = vcombine.low %v2390, %v2391
    %v2407 = vcombine.high %v2390, %v2391
    %v2409 = vunpack.c.l.s4 1983009808
    %v2410 = vunpack.c.0.s8 %v2409
    %v2411 = vlaneseq
    %v2412 = vshrl.u32 %v2411, 7
    %v2413 = vsub.s32 %v2410, %v2412
    %v2414 = vrot.slane %v2406, %v2413
    %v2416 = vunpack.c.l.s4 1983009808
    %v2417 = vunpack.c.0.s8 %v2416
    %v2418 = vlaneseq
    %v2419 = vshrl.u32 %v2418, 7
    %v2420 = vsub.s32 %v2417, %v2419
    %v2421 = vrot.slane %v2407, %v2420
    %v2422 = vcombine.high %v2414, %v2414
    %v2423 = vcombine.high %v2421, %v2421
    %v2424 = vcombine.low %v2392, %v2393
    %v2425 = vcombine.high %v2392, %v2393
    %v2427 = vunpack.c.l.s4 1983009808
    %v2428 = vunpack.c.0.s8 %v2427
    %v2429 = vlaneseq
    %v2430 = vshrl.u32 %v2429, 7
    %v2431 = vsub.s32 %v2428, %v2430
    %v2432 = vrot.slane %v2424, %v2431
    %v2434 = vunpack.c.l.s4 1983009808
    %v2435 = vunpack.c.0.s8 %v2434
    %v2436 = vlaneseq
    %v2437 = vshrl.u32 %v2436, 7
    %v2438 = vsub.s32 %v2435, %v2437
    %v2439 = vrot.slane %v2425, %v2438
    %v2440 = vcombine.high %v2432, %v2432
    %v2441 = vcombine.high %v2439, %v2439
    %v2442 = vcombine.low %v2394, %v2395
    %v2443 = vcombine.high %v2394, %v2395
    %v2445 = vunpack.c.l.s4 1983009808
    %v2446 = vunpack.c.0.s8 %v2445
    %v2447 = vlaneseq
    %v2448 = vshrl.u32 %v2447, 7
    %v2449 = vsub.s32 %v2446, %v2448
    %v2450 = vrot.slane %v2442, %v2449
    %v2452 = vunpack.c.l.s4 1983009808
    %v2453 = vunpack.c.0.s8 %v2452
    %v2454 = vlaneseq
    %v2455 = vshrl.u32 %v2454, 7
    %v2456 = vsub.s32 %v2453, %v2455
    %v2457 = vrot.slane %v2443, %v2456
    %v2458 = vcombine.high %v2450, %v2450
    %v2459 = vcombine.high %v2457, %v2457
    %v2460 = vcombine.low %v2396, %v2397
    %v2461 = vcombine.high %v2396, %v2397
    %v2463 = vunpack.c.l.s4 1983009808
    %v2464 = vunpack.c.0.s8 %v2463
    %v2465 = vlaneseq
    %v2466 = vshrl.u32 %v2465, 7
    %v2467 = vsub.s32 %v2464, %v2466
    %v2468 = vrot.slane %v2460, %v2467
    %v2470 = vunpack.c.l.s4 1983009808
    %v2471 = vunpack.c.0.s8 %v2470
    %v2472 = vlaneseq
    %v2473 = vshrl.u32 %v2472, 7
    %v2474 = vsub.s32 %v2471, %v2473
    %v2475 = vrot.slane %v2461, %v2474
    %v2476 = vcombine.high %v2468, %v2468
    %v2477 = vcombine.high %v2475, %v2475
    %v2478 = vld [vmem:[%s3] sm:$0xff]
    %v2479 = vld [vmem:[%s3 + $0x8] sm:$0xff]
    %v2480 = vld [vmem:[%s3 + $0x10] sm:$0xff]
    %v2481 = vld [vmem:[%s3 + $0x18] sm:$0xff]
    %v2482 = vld [vmem:[%s3 + $0x20] sm:$0xff]
    %v2483 = vld [vmem:[%s3 + $0x28] sm:$0xff]
    %v2484 = vld [vmem:[%s3 + $0x30] sm:$0xff]
    %v2485 = vld [vmem:[%s3 + $0x38] sm:$0xff]
    %v2486 = vld [vmem:[%s3 + $0x40] sm:$0xff]
    %v2487 = vld [vmem:[%s3 + $0x48] sm:$0xff]
    %v2488 = vld [vmem:[%s3 + $0x50] sm:$0xff]
    %v2489 = vld [vmem:[%s3 + $0x58] sm:$0xff]
    %v2490 = vld [vmem:[%s3 + $0x60] sm:$0xff]
    %v2491 = vld [vmem:[%s3 + $0x68] sm:$0xff]
    %v2492 = vld [vmem:[%s3 + $0x70] sm:$0xff]
    %v2493 = vld [vmem:[%s3 + $0x78] sm:$0xff]
    %v2494 = vld [vmem:[%s3 + $0x80] sm:$0xff]
    %v2495 = vld [vmem:[%s3 + $0x88] sm:$0xff]
    %v2496 = vld [vmem:[%s3 + $0x90] sm:$0xff]
    %v2497 = vld [vmem:[%s3 + $0x98] sm:$0xff]
    %v2498 = vld [vmem:[%s3 + $0xa0] sm:$0xff]
    %v2499 = vld [vmem:[%s3 + $0xa8] sm:$0xff]
    %v2500 = vld [vmem:[%s3 + $0xb0] sm:$0xff]
    %v2501 = vld [vmem:[%s3 + $0xb8] sm:$0xff]
    %v2502 = vld [vmem:[#allocation2] sm:$0xfe]
    %v2503 = vld [vmem:[#allocation2 + $0x8] sm:$0xfe]
    %v2504 = vld [vmem:[#allocation2 + $0x20] sm:$0x1]
    %v2505 = vld [vmem:[#allocation2 + $0x28] sm:$0x1]
    %v2506 = vld [vmem:[#allocation2 + $0x30] sm:$0xfe]
    %v2507 = vld [vmem:[#allocation2 + $0x38] sm:$0xfe]
    %v2508 = vld [vmem:[#allocation2 + $0x50] sm:$0x1]
    %v2509 = vld [vmem:[#allocation2 + $0x58] sm:$0x1]
    %v2518 = vcombine.low %v2502, %v2503
    %v2519 = vcombine.high %v2502, %v2503
    %v2521 = vunpack.c.l.s4 1983009808
    %v2522 = vunpack.c.0.s8 %v2521
    %v2523 = vlaneseq
    %v2524 = vshrl.u32 %v2523, 7
    %v2525 = vsub.s32 %v2522, %v2524
    %v2526 = vrot.slane %v2518, %v2525
    %v2528 = vunpack.c.l.s4 1983009808
    %v2529 = vunpack.c.0.s8 %v2528
    %v2530 = vlaneseq
    %v2531 = vshrl.u32 %v2530, 7
    %v2532 = vsub.s32 %v2529, %v2531
    %v2533 = vrot.slane %v2519, %v2532
    %v2534 = vcombine.high %v2526, %v2526
    %v2535 = vcombine.high %v2533, %v2533
    %v2536 = vcombine.low %v2504, %v2505
    %v2538 = vunpack.c.l.s4 1983009808
    %v2539 = vunpack.c.0.s8 %v2538
    %v2540 = vlaneseq
    %v2541 = vshrl.u32 %v2540, 7
    %v2542 = vsub.s32 %v2539, %v2541
    %v2543 = vrot.slane %v2536, %v2542
    %v2544 = vcombine.low %v2506, %v2507
    %v2545 = vcombine.high %v2506, %v2507
    %v2547 = vunpack.c.l.s4 1983009808
    %v2548 = vunpack.c.0.s8 %v2547
    %v2549 = vlaneseq
    %v2550 = vshrl.u32 %v2549, 7
    %v2551 = vsub.s32 %v2548, %v2550
    %v2552 = vrot.slane %v2544, %v2551
    %v2554 = vunpack.c.l.s4 1983009808
    %v2555 = vunpack.c.0.s8 %v2554
    %v2556 = vlaneseq
    %v2557 = vshrl.u32 %v2556, 7
    %v2558 = vsub.s32 %v2555, %v2557
    %v2559 = vrot.slane %v2545, %v2558
    %v2560 = vcombine.high %v2552, %v2552
    %v2561 = vcombine.high %v2559, %v2559
    %v2562 = vcombine.low %v2508, %v2509
    %v2564 = vunpack.c.l.s4 1983009808
    %v2565 = vunpack.c.0.s8 %v2564
    %v2566 = vlaneseq
    %v2567 = vshrl.u32 %v2566, 7
    %v2568 = vsub.s32 %v2565, %v2567
    %v2569 = vrot.slane %v2562, %v2568
    %vm2570 = vcmask 1040384
    %vm2571 = vmor %vm2570, %vm572
    %vm2572 = vmor %vm2571, %vm576
    %vm2573 = vmor %vm2572, %vm580
    %v2574 = vrot.slane %v2526, 7
    %v2575 = vrot.slane %v2574, 2
    %v2576 = vrot.slane %v2534, 7
    %v2577 = vsel %vm2573, %v2575, %v2576
    %v2578 = vrot.slane %v2576, 2
    %v2579 = vrot.slane %v2533, 7
    %v2580 = vsel %vm2573, %v2578, %v2579
    %v2581 = vrot.slane %v2579, 2
    %v2582 = vrot.slane %v2535, 7
    %v2583 = vsel %vm2573, %v2581, %v2582
    %v2584 = vrot.slane %v2582, 2
    %v2585 = vrot.slane %v2432, 7
    %v2586 = vsel %vm2573, %v2584, %v2585
    %v2587 = vrot.slane %v2585, 2
    %v2588 = vrot.slane %v2440, 7
    %v2589 = vsel %vm2573, %v2587, %v2588
    %v2590 = vrot.slane %v2588, 2
    %v2591 = vrot.slane %v2439, 7
    %v2592 = vsel %vm2573, %v2590, %v2591
    %v2593 = vrot.slane %v2591, 2
    %v2594 = vrot.slane %v2441, 7
    %v2595 = vsel %vm2573, %v2593, %v2594
    %v2596 = vrot.slane %v2594, 2
    %v2597 = vrot.slane %v2543, 7
    %v2598 = vsel %vm2573, %v2596, %v2597
    %v2599 = vrot.slane %v2552, 7
    %v2600 = vrot.slane %v2599, 2
    %v2601 = vrot.slane %v2560, 7
    %v2602 = vsel %vm2573, %v2600, %v2601
    %v2603 = vrot.slane %v2601, 2
    %v2604 = vrot.slane %v2559, 7
    %v2605 = vsel %vm2573, %v2603, %v2604
    %v2606 = vrot.slane %v2604, 2
    %v2607 = vrot.slane %v2561, 7
    %v2608 = vsel %vm2573, %v2606, %v2607
    %v2609 = vrot.slane %v2607, 2
    %v2610 = vrot.slane %v2468, 7
    %v2611 = vsel %vm2573, %v2609, %v2610
    %v2612 = vrot.slane %v2610, 2
    %v2613 = vrot.slane %v2476, 7
    %v2614 = vsel %vm2573, %v2612, %v2613
    %v2615 = vrot.slane %v2613, 2
    %v2616 = vrot.slane %v2475, 7
    %v2617 = vsel %vm2573, %v2615, %v2616
    %v2618 = vrot.slane %v2616, 2
    %v2619 = vrot.slane %v2477, 7
    %v2620 = vsel %vm2573, %v2618, %v2619
    %v2621 = vrot.slane %v2619, 2
    %v2622 = vrot.slane %v2569, 7
    %v2623 = vsel %vm2573, %v2621, %v2622
    %s2624 = scalar_lea.vmem %s3, 192
    %v2625 = vld [vmem:[%s2624] sm:$0xff]
    %v2626 = vld [vmem:[%s2624 + $0x8] sm:$0xff]
    %v2627 = vld [vmem:[%s2624 + $0x10] sm:$0xff]
    %v2628 = vld [vmem:[%s2624 + $0x18] sm:$0xff]
    %v2629 = vld [vmem:[%s2624 + $0x20] sm:$0xff]
    %v2630 = vld [vmem:[%s2624 + $0x28] sm:$0xff]
    %v2631 = vld [vmem:[%s2624 + $0x30] sm:$0xff]
    %v2632 = vld [vmem:[%s2624 + $0x38] sm:$0xff]
    %v2633 = vld [vmem:[%s2624 + $0x40] sm:$0xff]
    %v2634 = vld [vmem:[%s2624 + $0x48] sm:$0xff]
    %v2635 = vld [vmem:[%s2624 + $0x50] sm:$0xff]
    %v2636 = vld [vmem:[%s2624 + $0x58] sm:$0xff]
    %v2637 = vld [vmem:[%s2624 + $0x60] sm:$0xff]
    %v2638 = vld [vmem:[%s2624 + $0x68] sm:$0xff]
    %v2639 = vld [vmem:[%s2624 + $0x70] sm:$0xff]
    %v2640 = vld [vmem:[%s2624 + $0x78] sm:$0xff]
    %v2641 = vld [vmem:[%s2624 + $0x80] sm:$0xff]
    %v2642 = vld [vmem:[%s2624 + $0x88] sm:$0xff]
    %v2643 = vld [vmem:[%s2624 + $0x90] sm:$0xff]
    %v2644 = vld [vmem:[%s2624 + $0x98] sm:$0xff]
    %v2645 = vld [vmem:[%s2624 + $0xa0] sm:$0xff]
    %v2646 = vld [vmem:[%s2624 + $0xa8] sm:$0xff]
    %v2647 = vld [vmem:[%s2624 + $0xb0] sm:$0xff]
    %v2648 = vld [vmem:[%s2624 + $0xb8] sm:$0xff]
    %v2649 = vlaneseq
    %v2650 = vshrl.u32 %v2649, 7
    %v2651 = vsub.s32 0, %v2650
    %v2652 = vrot.slane %v2577, %v2651
    %v2653 = vlaneseq
    %v2654 = vshrl.u32 %v2653, 7
    %v2655 = vsub.s32 2, %v2654
    %v2656 = vrot.slane %v2577, %v2655
    %v2657 = vlaneseq
    %v2658 = vshrl.u32 %v2657, 7
    %v2659 = vsub.s32 0, %v2658
    %v2660 = vrot.slane %v2580, %v2659
    %v2661 = vlaneseq
    %v2662 = vshrl.u32 %v2661, 7
    %v2663 = vsub.s32 2, %v2662
    %v2664 = vrot.slane %v2580, %v2663
    %v2665 = vlaneseq
    %v2666 = vshrl.u32 %v2665, 7
    %v2667 = vsub.s32 0, %v2666
    %v2668 = vrot.slane %v2583, %v2667
    %v2669 = vlaneseq
    %v2670 = vshrl.u32 %v2669, 7
    %v2671 = vsub.s32 2, %v2670
    %v2672 = vrot.slane %v2583, %v2671
    %v2673 = vlaneseq
    %v2674 = vshrl.u32 %v2673, 7
    %v2675 = vsub.s32 0, %v2674
    %v2676 = vrot.slane %v2586, %v2675
    %v2677 = vlaneseq
    %v2678 = vshrl.u32 %v2677, 7
    %v2679 = vsub.s32 2, %v2678
    %v2680 = vrot.slane %v2586, %v2679
    %v2681 = vlaneseq
    %v2682 = vshrl.u32 %v2681, 7
    %v2683 = vsub.s32 0, %v2682
    %v2684 = vrot.slane %v2589, %v2683
    %v2685 = vlaneseq
    %v2686 = vshrl.u32 %v2685, 7
    %v2687 = vsub.s32 2, %v2686
    %v2688 = vrot.slane %v2589, %v2687
    %v2689 = vlaneseq
    %v2690 = vshrl.u32 %v2689, 7
    %v2691 = vsub.s32 0, %v2690
    %v2692 = vrot.slane %v2592, %v2691
    %v2693 = vlaneseq
    %v2694 = vshrl.u32 %v2693, 7
    %v2695 = vsub.s32 2, %v2694
    %v2696 = vrot.slane %v2592, %v2695
    %v2697 = vlaneseq
    %v2698 = vshrl.u32 %v2697, 7
    %v2699 = vsub.s32 0, %v2698
    %v2700 = vrot.slane %v2595, %v2699
    %v2701 = vlaneseq
    %v2702 = vshrl.u32 %v2701, 7
    %v2703 = vsub.s32 2, %v2702
    %v2704 = vrot.slane %v2595, %v2703
    %v2705 = vlaneseq
    %v2706 = vshrl.u32 %v2705, 7
    %v2707 = vsub.s32 0, %v2706
    %v2708 = vrot.slane %v2598, %v2707
    %v2709 = vlaneseq
    %v2710 = vshrl.u32 %v2709, 7
    %v2711 = vsub.s32 2, %v2710
    %v2712 = vrot.slane %v2598, %v2711
    %v2713 = vlaneseq
    %v2714 = vshrl.u32 %v2713, 7
    %v2715 = vsub.s32 0, %v2714
    %v2716 = vrot.slane %v2602, %v2715
    %v2717 = vlaneseq
    %v2718 = vshrl.u32 %v2717, 7
    %v2719 = vsub.s32 2, %v2718
    %v2720 = vrot.slane %v2602, %v2719
    %v2721 = vlaneseq
    %v2722 = vshrl.u32 %v2721, 7
    %v2723 = vsub.s32 0, %v2722
    %v2724 = vrot.slane %v2605, %v2723
    %v2725 = vlaneseq
    %v2726 = vshrl.u32 %v2725, 7
    %v2727 = vsub.s32 2, %v2726
    %v2728 = vrot.slane %v2605, %v2727
    %v2729 = vlaneseq
    %v2730 = vshrl.u32 %v2729, 7
    %v2731 = vsub.s32 0, %v2730
    %v2732 = vrot.slane %v2608, %v2731
    %v2733 = vlaneseq
    %v2734 = vshrl.u32 %v2733, 7
    %v2735 = vsub.s32 2, %v2734
    %v2736 = vrot.slane %v2608, %v2735
    %v2737 = vlaneseq
    %v2738 = vshrl.u32 %v2737, 7
    %v2739 = vsub.s32 0, %v2738
    %v2740 = vrot.slane %v2611, %v2739
    %v2741 = vlaneseq
    %v2742 = vshrl.u32 %v2741, 7
    %v2743 = vsub.s32 2, %v2742
    %v2744 = vrot.slane %v2611, %v2743
    %v2745 = vlaneseq
    %v2746 = vshrl.u32 %v2745, 7
    %v2747 = vsub.s32 0, %v2746
    %v2748 = vrot.slane %v2614, %v2747
    %v2749 = vlaneseq
    %v2750 = vshrl.u32 %v2749, 7
    %v2751 = vsub.s32 2, %v2750
    %v2752 = vrot.slane %v2614, %v2751
    %v2753 = vlaneseq
    %v2754 = vshrl.u32 %v2753, 7
    %v2755 = vsub.s32 0, %v2754
    %v2756 = vrot.slane %v2617, %v2755
    %v2757 = vlaneseq
    %v2758 = vshrl.u32 %v2757, 7
    %v2759 = vsub.s32 2, %v2758
    %v2760 = vrot.slane %v2617, %v2759
    %v2761 = vlaneseq
    %v2762 = vshrl.u32 %v2761, 7
    %v2763 = vsub.s32 0, %v2762
    %v2764 = vrot.slane %v2620, %v2763
    %v2765 = vlaneseq
    %v2766 = vshrl.u32 %v2765, 7
    %v2767 = vsub.s32 2, %v2766
    %v2768 = vrot.slane %v2620, %v2767
    %v2769 = vlaneseq
    %v2770 = vshrl.u32 %v2769, 7
    %v2771 = vsub.s32 0, %v2770
    %v2772 = vrot.slane %v2623, %v2771
    %v2773 = vlaneseq
    %v2774 = vshrl.u32 %v2773, 7
    %v2775 = vsub.s32 2, %v2774
    %v2776 = vrot.slane %v2623, %v2775
    %v2777 = vsel %vm570, %v2660, %v2652
    %v2778 = vsel %vm572, %v2668, %v2777
    %v2779 = vsel %vm574, %v2676, %v2778
    %v2780 = vsel %vm576, %v2684, %v2779
    %v2781 = vsel %vm578, %v2692, %v2780
    %v2782 = vsel %vm580, %v2700, %v2781
    %v2783 = vsel %vm582, %v2708, %v2782
    %v2784 = vsel %vm570, %v2664, %v2656
    %v2785 = vsel %vm572, %v2672, %v2784
    %v2786 = vsel %vm574, %v2680, %v2785
    %v2787 = vsel %vm576, %v2688, %v2786
    %v2788 = vsel %vm578, %v2696, %v2787
    %v2789 = vsel %vm580, %v2704, %v2788
    %v2790 = vsel %vm582, %v2712, %v2789
    %v2791 = vsel %vm570, %v2724, %v2716
    %v2792 = vsel %vm572, %v2732, %v2791
    %v2793 = vsel %vm574, %v2740, %v2792
    %v2794 = vsel %vm576, %v2748, %v2793
    %v2795 = vsel %vm578, %v2756, %v2794
    %v2796 = vsel %vm580, %v2764, %v2795
    %v2797 = vsel %vm582, %v2772, %v2796
    %v2798 = vsel %vm570, %v2728, %v2720
    %v2799 = vsel %vm572, %v2736, %v2798
    %v2800 = vsel %vm574, %v2744, %v2799
    %v2801 = vsel %vm576, %v2752, %v2800
    %v2802 = vsel %vm578, %v2760, %v2801
    %v2803 = vsel %vm580, %v2768, %v2802
    %v2804 = vsel %vm582, %v2776, %v2803
    %v2807 = vsel %vm2380, %v2790, 0
    %v2809 = vsel %vm2380, %v2804, 0
    %2811 = vmatprep.subr.mxu0 0.0
    %2812 = vmatpush1.msra.mxu0 %v2625
    %2813 = vmatprep.subr.mxu0 0.0
    %2814 = vmatpush1.msra.mxu0 %v2626
    %2815 = vmatprep.subr.mxu0 0.0
    %2816 = vmatpush1.msra.mxu0 %v2627
    %2817 = vmatprep.subr.mxu0 0.0
    %2818 = vmatpush1.msra.mxu0 %v2628
    %2819 = vmatprep.subr.mxu0 0.0
    %2820 = vmatpush1.msra.mxu0 %v2629
    %2821 = vmatprep.subr.mxu0 0.0
    %2822 = vmatpush1.msra.mxu0 %v2630
    %2823 = vmatprep.subr.mxu0 0.0
    %2824 = vmatpush1.msra.mxu0 %v2631
    %2825 = vmatprep.subr.mxu0 0.0
    %2826 = vmatpush1.msra.mxu0 %v2632
    %2827 = vmatprep.subr.mxu0 0.0
    %2828 = vmatpush1.msra.mxu0 %v2633
    %2829 = vmatprep.subr.mxu0 0.0
    %2830 = vmatpush1.msra.mxu0 %v2634
    %2831 = vmatprep.subr.mxu0 0.0
    %2832 = vmatpush1.msra.mxu0 %v2635
    %2833 = vmatprep.subr.mxu0 0.0
    %2834 = vmatpush1.msra.mxu0 %v2636
    %2835 = vmatprep.subr.mxu0 0.0
    %2836 = vmatpush1.msra.mxu0 %v2637
    %2837 = vmatprep.subr.mxu0 0.0
    %2838 = vmatpush1.msra.mxu0 %v2638
    %2839 = vmatprep.subr.mxu0 0.0
    %2840 = vmatpush1.msra.mxu0 %v2639
    %2841 = vmatprep.subr.mxu0 0.0
    %2842 = vmatpush1.msra.mxu0 %v2640
    %2843 = vmatprep.subr.mxu0 0.0
    %2844 = vmatpush1.msra.mxu0 %v2641
    %2845 = vmatprep.subr.mxu0 0.0
    %2846 = vmatpush1.msra.mxu0 %v2642
    %2847 = vmatprep.subr.mxu0 0.0
    %2848 = vmatpush1.msra.mxu0 %v2643
    %2849 = vmatprep.subr.mxu0 0.0
    %2850 = vmatpush1.msra.mxu0 %v2644
    %2851 = vmatprep.subr.mxu0 0.0
    %2852 = vmatpush1.msra.mxu0 %v2645
    %2853 = vmatprep.subr.mxu0 0.0
    %2854 = vmatpush1.msra.mxu0 %v2646
    %2855 = vmatprep.subr.mxu0 0.0
    %2856 = vmatpush1.msra.mxu0 %v2647
    %2857 = vmatprep.subr.mxu0 0.0
    %2858 = vmatpush1.msra.mxu0 %v2648
    %2859 = vmatprep.subr.mxu0 0.0
    %2860 = vmatpush1.msra.mxu0 0.0
    %2861 = vmatprep.subr.mxu0 0.0
    %2862 = vmatpush1.msra.mxu0 0.0
    %2863 = vmatprep.subr.mxu0 0.0
    %2864 = vmatpush1.msra.mxu0 0.0
    %2865 = vmatprep.subr.mxu0 0.0
    %2866 = vmatpush1.msra.mxu0 0.0
    %2867 = vmatprep.subr.mxu0 0.0
    %2868 = vmatpush1.msra.mxu0 0.0
    %2869 = vmatprep.subr.mxu0 0.0
    %2870 = vmatpush1.msra.mxu0 0.0
    %2871 = vmatprep.subr.mxu0 0.0
    %2872 = vmatpush1.msra.mxu0 0.0
    %2873 = vmatprep.subr.mxu0 0.0
    %2874 = vmatpush1.msra.mxu0 0.0
    %2875 = vmatprep.mubr.f32.mxu0 %v2807
    %2876 = vmatmul.mubr.f32.gmra.mrb[0].mxu0 %v2783
    %v2877 = vpop.f32.mrb[0].mxu0
    %v2878 = vadd.f32 0.0, %v2877
    %v2879 = vpop.f32.mrb[0].mxu0
    %2880 = vmatprep.mubr.f32.mxu0 %v2809
    %2881 = vmatmul.mubr.f32.gmra.mrb[0].mxu0 %v2797
    %v2882 = vpop.f32.mrb[0].mxu0
    %v2883 = vadd.f32 0.0, %v2882
    %v2884 = vpop.f32.mrb[0].mxu0
    %2885 = vdwg.mxu0
    %v2886 = vlaneseq
    %v2887 = vshrl.u32 %v2886, 7
    %v2888 = vsub.s32 0, %v2887
    %v2889 = vrot.slane %v2414, %v2888
    %v2890 = vlaneseq
    %v2891 = vshrl.u32 %v2890, 7
    %v2892 = vsub.s32 2, %v2891
    %v2893 = vrot.slane %v2414, %v2892
    %v2894 = vlaneseq
    %v2895 = vshrl.u32 %v2894, 7
    %v2896 = vsub.s32 0, %v2895
    %v2897 = vrot.slane %v2422, %v2896
    %v2898 = vlaneseq
    %v2899 = vshrl.u32 %v2898, 7
    %v2900 = vsub.s32 2, %v2899
    %v2901 = vrot.slane %v2422, %v2900
    %v2902 = vlaneseq
    %v2903 = vshrl.u32 %v2902, 7
    %v2904 = vsub.s32 0, %v2903
    %v2905 = vrot.slane %v2421, %v2904
    %v2906 = vlaneseq
    %v2907 = vshrl.u32 %v2906, 7
    %v2908 = vsub.s32 2, %v2907
    %v2909 = vrot.slane %v2421, %v2908
    %v2910 = vlaneseq
    %v2911 = vshrl.u32 %v2910, 7
    %v2912 = vsub.s32 0, %v2911
    %v2913 = vrot.slane %v2423, %v2912
    %v2914 = vlaneseq
    %v2915 = vshrl.u32 %v2914, 7
    %v2916 = vsub.s32 2, %v2915
    %v2917 = vrot.slane %v2423, %v2916
    %v2918 = vlaneseq
    %v2919 = vshrl.u32 %v2918, 7
    %v2920 = vsub.s32 0, %v2919
    %v2921 = vrot.slane %v2432, %v2920
    %v2922 = vlaneseq
    %v2923 = vshrl.u32 %v2922, 7
    %v2924 = vsub.s32 2, %v2923
    %v2925 = vrot.slane %v2432, %v2924
    %v2926 = vlaneseq
    %v2927 = vshrl.u32 %v2926, 7
    %v2928 = vsub.s32 0, %v2927
    %v2929 = vrot.slane %v2440, %v2928
    %v2930 = vlaneseq
    %v2931 = vshrl.u32 %v2930, 7
    %v2932 = vsub.s32 2, %v2931
    %v2933 = vrot.slane %v2440, %v2932
    %v2934 = vlaneseq
    %v2935 = vshrl.u32 %v2934, 7
    %v2936 = vsub.s32 0, %v2935
    %v2937 = vrot.slane %v2439, %v2936
    %v2938 = vlaneseq
    %v2939 = vshrl.u32 %v2938, 7
    %v2940 = vsub.s32 2, %v2939
    %v2941 = vrot.slane %v2439, %v2940
    %v2942 = vlaneseq
    %v2943 = vshrl.u32 %v2942, 7
    %v2944 = vsub.s32 0, %v2943
    %v2945 = vrot.slane %v2441, %v2944
    %v2946 = vlaneseq
    %v2947 = vshrl.u32 %v2946, 7
    %v2948 = vsub.s32 2, %v2947
    %v2949 = vrot.slane %v2441, %v2948
    %v2950 = vlaneseq
    %v2951 = vshrl.u32 %v2950, 7
    %v2952 = vsub.s32 0, %v2951
    %v2953 = vrot.slane %v2450, %v2952
    %v2954 = vlaneseq
    %v2955 = vshrl.u32 %v2954, 7
    %v2956 = vsub.s32 2, %v2955
    %v2957 = vrot.slane %v2450, %v2956
    %v2958 = vlaneseq
    %v2959 = vshrl.u32 %v2958, 7
    %v2960 = vsub.s32 0, %v2959
    %v2961 = vrot.slane %v2458, %v2960
    %v2962 = vlaneseq
    %v2963 = vshrl.u32 %v2962, 7
    %v2964 = vsub.s32 2, %v2963
    %v2965 = vrot.slane %v2458, %v2964
    %v2966 = vlaneseq
    %v2967 = vshrl.u32 %v2966, 7
    %v2968 = vsub.s32 0, %v2967
    %v2969 = vrot.slane %v2457, %v2968
    %v2970 = vlaneseq
    %v2971 = vshrl.u32 %v2970, 7
    %v2972 = vsub.s32 2, %v2971
    %v2973 = vrot.slane %v2457, %v2972
    %v2974 = vlaneseq
    %v2975 = vshrl.u32 %v2974, 7
    %v2976 = vsub.s32 0, %v2975
    %v2977 = vrot.slane %v2459, %v2976
    %v2978 = vlaneseq
    %v2979 = vshrl.u32 %v2978, 7
    %v2980 = vsub.s32 2, %v2979
    %v2981 = vrot.slane %v2459, %v2980
    %v2982 = vlaneseq
    %v2983 = vshrl.u32 %v2982, 7
    %v2984 = vsub.s32 0, %v2983
    %v2985 = vrot.slane %v2468, %v2984
    %v2986 = vlaneseq
    %v2987 = vshrl.u32 %v2986, 7
    %v2988 = vsub.s32 2, %v2987
    %v2989 = vrot.slane %v2468, %v2988
    %v2990 = vlaneseq
    %v2991 = vshrl.u32 %v2990, 7
    %v2992 = vsub.s32 0, %v2991
    %v2993 = vrot.slane %v2476, %v2992
    %v2994 = vlaneseq
    %v2995 = vshrl.u32 %v2994, 7
    %v2996 = vsub.s32 2, %v2995
    %v2997 = vrot.slane %v2476, %v2996
    %v2998 = vlaneseq
    %v2999 = vshrl.u32 %v2998, 7
    %v3000 = vsub.s32 0, %v2999
    %v3001 = vrot.slane %v2475, %v3000
    %v3002 = vlaneseq
    %v3003 = vshrl.u32 %v3002, 7
    %v3004 = vsub.s32 2, %v3003
    %v3005 = vrot.slane %v2475, %v3004
    %v3006 = vlaneseq
    %v3007 = vshrl.u32 %v3006, 7
    %v3008 = vsub.s32 0, %v3007
    %v3009 = vrot.slane %v2477, %v3008
    %v3010 = vlaneseq
    %v3011 = vshrl.u32 %v3010, 7
    %v3012 = vsub.s32 2, %v3011
    %v3013 = vrot.slane %v2477, %v3012
    %v3014 = vsel %vm570, %v2897, %v2889
    %v3015 = vsel %vm572, %v2905, %v3014
    %v3016 = vsel %vm574, %v2913, %v3015
    %v3017 = vsel %vm576, %v2921, %v3016
    %v3018 = vsel %vm578, %v2929, %v3017
    %v3019 = vsel %vm580, %v2937, %v3018
    %v3020 = vsel %vm582, %v2945, %v3019
    %v3021 = vsel %vm570, %v2901, %v2893
    %v3022 = vsel %vm572, %v2909, %v3021
    %v3023 = vsel %vm574, %v2917, %v3022
    %v3024 = vsel %vm576, %v2925, %v3023
    %v3025 = vsel %vm578, %v2933, %v3024
    %v3026 = vsel %vm580, %v2941, %v3025
    %v3027 = vsel %vm582, %v2949, %v3026
    %v3028 = vsel %vm570, %v2961, %v2953
    %v3029 = vsel %vm572, %v2969, %v3028
    %v3030 = vsel %vm574, %v2977, %v3029
    %v3031 = vsel %vm576, %v2985, %v3030
    %v3032 = vsel %vm578, %v2993, %v3031
    %v3033 = vsel %vm580, %v3001, %v3032
    %v3034 = vsel %vm582, %v3009, %v3033
    %v3035 = vsel %vm570, %v2965, %v2957
    %v3036 = vsel %vm572, %v2973, %v3035
    %v3037 = vsel %vm574, %v2981, %v3036
    %v3038 = vsel %vm576, %v2989, %v3037
    %v3039 = vsel %vm578, %v2997, %v3038
    %v3040 = vsel %vm580, %v3005, %v3039
    %v3041 = vsel %vm582, %v3013, %v3040
    %v3044 = vsel %vm2380, %v3027, 0
    %v3046 = vsel %vm2380, %v3041, 0
    %3048 = vmatprep.subr.mxu0 0.0
    %3049 = vmatpush1.msra.mxu0 %v2478
    %3050 = vmatprep.subr.mxu0 0.0
    %3051 = vmatpush1.msra.mxu0 %v2479
    %3052 = vmatprep.subr.mxu0 0.0
    %3053 = vmatpush1.msra.mxu0 %v2480
    %3054 = vmatprep.subr.mxu0 0.0
    %3055 = vmatpush1.msra.mxu0 %v2481
    %3056 = vmatprep.subr.mxu0 0.0
    %3057 = vmatpush1.msra.mxu0 %v2482
    %3058 = vmatprep.subr.mxu0 0.0
    %3059 = vmatpush1.msra.mxu0 %v2483
    %3060 = vmatprep.subr.mxu0 0.0
    %3061 = vmatpush1.msra.mxu0 %v2484
    %3062 = vmatprep.subr.mxu0 0.0
    %3063 = vmatpush1.msra.mxu0 %v2485
    %3064 = vmatprep.subr.mxu0 0.0
    %3065 = vmatpush1.msra.mxu0 %v2486
    %3066 = vmatprep.subr.mxu0 0.0
    %3067 = vmatpush1.msra.mxu0 %v2487
    %3068 = vmatprep.subr.mxu0 0.0
    %3069 = vmatpush1.msra.mxu0 %v2488
    %3070 = vmatprep.subr.mxu0 0.0
    %3071 = vmatpush1.msra.mxu0 %v2489
    %3072 = vmatprep.subr.mxu0 0.0
    %3073 = vmatpush1.msra.mxu0 %v2490
    %3074 = vmatprep.subr.mxu0 0.0
    %3075 = vmatpush1.msra.mxu0 %v2491
    %3076 = vmatprep.subr.mxu0 0.0
    %3077 = vmatpush1.msra.mxu0 %v2492
    %3078 = vmatprep.subr.mxu0 0.0
    %3079 = vmatpush1.msra.mxu0 %v2493
    %3080 = vmatprep.subr.mxu0 0.0
    %3081 = vmatpush1.msra.mxu0 %v2494
    %3082 = vmatprep.subr.mxu0 0.0
    %3083 = vmatpush1.msra.mxu0 %v2495
    %3084 = vmatprep.subr.mxu0 0.0
    %3085 = vmatpush1.msra.mxu0 %v2496
    %3086 = vmatprep.subr.mxu0 0.0
    %3087 = vmatpush1.msra.mxu0 %v2497
    %3088 = vmatprep.subr.mxu0 0.0
    %3089 = vmatpush1.msra.mxu0 %v2498
    %3090 = vmatprep.subr.mxu0 0.0
    %3091 = vmatpush1.msra.mxu0 %v2499
    %3092 = vmatprep.subr.mxu0 0.0
    %3093 = vmatpush1.msra.mxu0 %v2500
    %3094 = vmatprep.subr.mxu0 0.0
    %3095 = vmatpush1.msra.mxu0 %v2501
    %3096 = vmatprep.subr.mxu0 0.0
    %3097 = vmatpush1.msra.mxu0 0.0
    %3098 = vmatprep.subr.mxu0 0.0
    %3099 = vmatpush1.msra.mxu0 0.0
    %3100 = vmatprep.subr.mxu0 0.0
    %3101 = vmatpush1.msra.mxu0 0.0
    %3102 = vmatprep.subr.mxu0 0.0
    %3103 = vmatpush1.msra.mxu0 0.0
    %3104 = vmatprep.subr.mxu0 0.0
    %3105 = vmatpush1.msra.mxu0 0.0
    %3106 = vmatprep.subr.mxu0 0.0
    %3107 = vmatpush1.msra.mxu0 0.0
    %3108 = vmatprep.subr.mxu0 0.0
    %3109 = vmatpush1.msra.mxu0 0.0
    %3110 = vmatprep.subr.mxu0 0.0
    %3111 = vmatpush1.msra.mxu0 0.0
    %3112 = vmatprep.mubr.f32.mxu0 %v3044
    %3113 = vmatmul.mubr.f32.gmra.mrb[0].mxu0 %v3020
    %v3114 = vpop.f32.mrb[0].mxu0
    %v3115 = vadd.f32 %v2878, %v3114
    %v3116 = vpop.f32.mrb[0].mxu0
    %3117 = vmatprep.mubr.f32.mxu0 %v3046
    %3118 = vmatmul.mubr.f32.gmra.mrb[0].mxu0 %v3034
    %v3119 = vpop.f32.mrb[0].mxu0
    %v3120 = vadd.f32 %v2883, %v3119
    %v3121 = vpop.f32.mrb[0].mxu0
    %3122 = vdwg.mxu0
    %v3123 = vld [vmem:[#allocation2] sm:$0xfc]
    %v3124 = vld [vmem:[#allocation2 + $0x8] sm:$0xfc]
    %v3125 = vld [vmem:[#allocation2 + $0x10] sm:$0xff]
    %v3126 = vld [vmem:[#allocation2 + $0x18] sm:$0xff]
    %v3127 = vld [vmem:[#allocation2 + $0x20] sm:$0x3]
    %v3128 = vld [vmem:[#allocation2 + $0x28] sm:$0x3]
    %v3129 = vld [vmem:[#allocation2 + $0x30] sm:$0xfc]
    %v3130 = vld [vmem:[#allocation2 + $0x38] sm:$0xfc]
    %v3131 = vld [vmem:[#allocation2 + $0x40] sm:$0xff]
    %v3132 = vld [vmem:[#allocation2 + $0x48] sm:$0xff]
    %v3133 = vld [vmem:[#allocation2 + $0x50] sm:$0x3]
    %v3134 = vld [vmem:[#allocation2 + $0x58] sm:$0x3]
    %v3147 = vcombine.low %v3123, %v3124
    %v3148 = vcombine.high %v3123, %v3124
    %v3150 = vunpack.c.l.s4 1983009808
    %v3151 = vunpack.c.0.s8 %v3150
    %v3152 = vlaneseq
    %v3153 = vshrl.u32 %v3152, 7
    %v3154 = vsub.s32 %v3151, %v3153
    %v3155 = vrot.slane %v3147, %v3154
    %v3157 = vunpack.c.l.s4 1983009808
    %v3158 = vunpack.c.0.s8 %v3157
    %v3159 = vlaneseq
    %v3160 = vshrl.u32 %v3159, 7
    %v3161 = vsub.s32 %v3158, %v3160
    %v3162 = vrot.slane %v3148, %v3161
    %v3163 = vcombine.high %v3155, %v3155
    %v3164 = vcombine.high %v3162, %v3162
    %v3165 = vcombine.low %v3125, %v3126
    %v3166 = vcombine.high %v3125, %v3126
    %v3168 = vunpack.c.l.s4 1983009808
    %v3169 = vunpack.c.0.s8 %v3168
    %v3170 = vlaneseq
    %v3171 = vshrl.u32 %v3170, 7
    %v3172 = vsub.s32 %v3169, %v3171
    %v3173 = vrot.slane %v3165, %v3172
    %v3175 = vunpack.c.l.s4 1983009808
    %v3176 = vunpack.c.0.s8 %v3175
    %v3177 = vlaneseq
    %v3178 = vshrl.u32 %v3177, 7
    %v3179 = vsub.s32 %v3176, %v3178
    %v3180 = vrot.slane %v3166, %v3179
    %v3181 = vcombine.high %v3173, %v3173
    %v3182 = vcombine.high %v3180, %v3180
    %v3183 = vcombine.low %v3127, %v3128
    %v3185 = vunpack.c.l.s4 1983009808
    %v3186 = vunpack.c.0.s8 %v3185
    %v3187 = vlaneseq
    %v3188 = vshrl.u32 %v3187, 7
    %v3189 = vsub.s32 %v3186, %v3188
    %v3190 = vrot.slane %v3183, %v3189
    %v3191 = vcombine.low %v3129, %v3130
    %v3192 = vcombine.high %v3129, %v3130
    %v3194 = vunpack.c.l.s4 1983009808
    %v3195 = vunpack.c.0.s8 %v3194
    %v3196 = vlaneseq
    %v3197 = vshrl.u32 %v3196, 7
    %v3198 = vsub.s32 %v3195, %v3197
    %v3199 = vrot.slane %v3191, %v3198
    %v3201 = vunpack.c.l.s4 1983009808
    %v3202 = vunpack.c.0.s8 %v3201
    %v3203 = vlaneseq
    %v3204 = vshrl.u32 %v3203, 7
    %v3205 = vsub.s32 %v3202, %v3204
    %v3206 = vrot.slane %v3192, %v3205
    %v3207 = vcombine.high %v3199, %v3199
    %v3208 = vcombine.high %v3206, %v3206
    %v3209 = vcombine.low %v3131, %v3132
    %v3210 = vcombine.high %v3131, %v3132
    %v3212 = vunpack.c.l.s4 1983009808
    %v3213 = vunpack.c.0.s8 %v3212
    %v3214 = vlaneseq
    %v3215 = vshrl.u32 %v3214, 7
    %v3216 = vsub.s32 %v3213, %v3215
    %v3217 = vrot.slane %v3209, %v3216
    %v3219 = vunpack.c.l.s4 1983009808
    %v3220 = vunpack.c.0.s8 %v3219
    %v3221 = vlaneseq
    %v3222 = vshrl.u32 %v3221, 7
    %v3223 = vsub.s32 %v3220, %v3222
    %v3224 = vrot.slane %v3210, %v3223
    %v3225 = vcombine.high %v3217, %v3217
    %v3226 = vcombine.high %v3224, %v3224
    %v3227 = vcombine.low %v3133, %v3134
    %v3229 = vunpack.c.l.s4 1983009808
    %v3230 = vunpack.c.0.s8 %v3229
    %v3231 = vlaneseq
    %v3232 = vshrl.u32 %v3231, 7
    %v3233 = vsub.s32 %v3230, %v3232
    %v3234 = vrot.slane %v3227, %v3233
    %s3235 = scalar_lea.vmem %s3, 384
    %v3236 = vld [vmem:[%s3235] sm:$0xff]
    %v3237 = vld [vmem:[%s3235 + $0x8] sm:$0xff]
    %v3238 = vld [vmem:[%s3235 + $0x10] sm:$0xff]
    %v3239 = vld [vmem:[%s3235 + $0x18] sm:$0xff]
    %v3240 = vld [vmem:[%s3235 + $0x20] sm:$0xff]
    %v3241 = vld [vmem:[%s3235 + $0x28] sm:$0xff]
    %v3242 = vld [vmem:[%s3235 + $0x30] sm:$0xff]
    %v3243 = vld [vmem:[%s3235 + $0x38] sm:$0xff]
    %v3244 = vld [vmem:[%s3235 + $0x40] sm:$0xff]
    %v3245 = vld [vmem:[%s3235 + $0x48] sm:$0xff]
    %v3246 = vld [vmem:[%s3235 + $0x50] sm:$0xff]
    %v3247 = vld [vmem:[%s3235 + $0x58] sm:$0xff]
    %v3248 = vld [vmem:[%s3235 + $0x60] sm:$0xff]
    %v3249 = vld [vmem:[%s3235 + $0x68] sm:$0xff]
    %v3250 = vld [vmem:[%s3235 + $0x70] sm:$0xff]
    %v3251 = vld [vmem:[%s3235 + $0x78] sm:$0xff]
    %v3252 = vld [vmem:[%s3235 + $0x80] sm:$0xff]
    %v3253 = vld [vmem:[%s3235 + $0x88] sm:$0xff]
    %v3254 = vld [vmem:[%s3235 + $0x90] sm:$0xff]
    %v3255 = vld [vmem:[%s3235 + $0x98] sm:$0xff]
    %v3256 = vld [vmem:[%s3235 + $0xa0] sm:$0xff]
    %v3257 = vld [vmem:[%s3235 + $0xa8] sm:$0xff]
    %v3258 = vld [vmem:[%s3235 + $0xb0] sm:$0xff]
    %v3259 = vld [vmem:[%s3235 + $0xb8] sm:$0xff]
    %v3260 = vlaneseq
    %v3261 = vshrl.u32 %v3260, 7
    %v3262 = vsub.s32 0, %v3261
    %v3263 = vrot.slane %v3163, %v3262
    %v3264 = vlaneseq
    %v3265 = vshrl.u32 %v3264, 7
    %v3266 = vsub.s32 2, %v3265
    %v3267 = vrot.slane %v3163, %v3266
    %v3268 = vlaneseq
    %v3269 = vshrl.u32 %v3268, 7
    %v3270 = vsub.s32 0, %v3269
    %v3271 = vrot.slane %v3162, %v3270
    %v3272 = vlaneseq
    %v3273 = vshrl.u32 %v3272, 7
    %v3274 = vsub.s32 2, %v3273
    %v3275 = vrot.slane %v3162, %v3274
    %v3276 = vlaneseq
    %v3277 = vshrl.u32 %v3276, 7
    %v3278 = vsub.s32 0, %v3277
    %v3279 = vrot.slane %v3164, %v3278
    %v3280 = vlaneseq
    %v3281 = vshrl.u32 %v3280, 7
    %v3282 = vsub.s32 2, %v3281
    %v3283 = vrot.slane %v3164, %v3282
    %v3284 = vlaneseq
    %v3285 = vshrl.u32 %v3284, 7
    %v3286 = vsub.s32 0, %v3285
    %v3287 = vrot.slane %v3173, %v3286
    %v3288 = vlaneseq
    %v3289 = vshrl.u32 %v3288, 7
    %v3290 = vsub.s32 2, %v3289
    %v3291 = vrot.slane %v3173, %v3290
    %v3292 = vlaneseq
    %v3293 = vshrl.u32 %v3292, 7
    %v3294 = vsub.s32 0, %v3293
    %v3295 = vrot.slane %v3181, %v3294
    %v3296 = vlaneseq
    %v3297 = vshrl.u32 %v3296, 7
    %v3298 = vsub.s32 2, %v3297
    %v3299 = vrot.slane %v3181, %v3298
    %v3300 = vlaneseq
    %v3301 = vshrl.u32 %v3300, 7
    %v3302 = vsub.s32 0, %v3301
    %v3303 = vrot.slane %v3180, %v3302
    %v3304 = vlaneseq
    %v3305 = vshrl.u32 %v3304, 7
    %v3306 = vsub.s32 2, %v3305
    %v3307 = vrot.slane %v3180, %v3306
    %v3308 = vlaneseq
    %v3309 = vshrl.u32 %v3308, 7
    %v3310 = vsub.s32 0, %v3309
    %v3311 = vrot.slane %v3182, %v3310
    %v3312 = vlaneseq
    %v3313 = vshrl.u32 %v3312, 7
    %v3314 = vsub.s32 2, %v3313
    %v3315 = vrot.slane %v3182, %v3314
    %v3316 = vlaneseq
    %v3317 = vshrl.u32 %v3316, 7
    %v3318 = vsub.s32 0, %v3317
    %v3319 = vrot.slane %v3190, %v3318
    %v3320 = vlaneseq
    %v3321 = vshrl.u32 %v3320, 7
    %v3322 = vsub.s32 2, %v3321
    %v3323 = vrot.slane %v3190, %v3322
    %v3324 = vlaneseq
    %v3325 = vshrl.u32 %v3324, 7
    %v3326 = vsub.s32 0, %v3325
    %v3327 = vrot.slane %v3207, %v3326
    %v3328 = vlaneseq
    %v3329 = vshrl.u32 %v3328, 7
    %v3330 = vsub.s32 2, %v3329
    %v3331 = vrot.slane %v3207, %v3330
    %v3332 = vlaneseq
    %v3333 = vshrl.u32 %v3332, 7
    %v3334 = vsub.s32 0, %v3333
    %v3335 = vrot.slane %v3206, %v3334
    %v3336 = vlaneseq
    %v3337 = vshrl.u32 %v3336, 7
    %v3338 = vsub.s32 2, %v3337
    %v3339 = vrot.slane %v3206, %v3338
    %v3340 = vlaneseq
    %v3341 = vshrl.u32 %v3340, 7
    %v3342 = vsub.s32 0, %v3341
    %v3343 = vrot.slane %v3208, %v3342
    %v3344 = vlaneseq
    %v3345 = vshrl.u32 %v3344, 7
    %v3346 = vsub.s32 2, %v3345
    %v3347 = vrot.slane %v3208, %v3346
    %v3348 = vlaneseq
    %v3349 = vshrl.u32 %v3348, 7
    %v3350 = vsub.s32 0, %v3349
    %v3351 = vrot.slane %v3217, %v3350
    %v3352 = vlaneseq
    %v3353 = vshrl.u32 %v3352, 7
    %v3354 = vsub.s32 2, %v3353
    %v3355 = vrot.slane %v3217, %v3354
    %v3356 = vlaneseq
    %v3357 = vshrl.u32 %v3356, 7
    %v3358 = vsub.s32 0, %v3357
    %v3359 = vrot.slane %v3225, %v3358
    %v3360 = vlaneseq
    %v3361 = vshrl.u32 %v3360, 7
    %v3362 = vsub.s32 2, %v3361
    %v3363 = vrot.slane %v3225, %v3362
    %v3364 = vlaneseq
    %v3365 = vshrl.u32 %v3364, 7
    %v3366 = vsub.s32 0, %v3365
    %v3367 = vrot.slane %v3224, %v3366
    %v3368 = vlaneseq
    %v3369 = vshrl.u32 %v3368, 7
    %v3370 = vsub.s32 2, %v3369
    %v3371 = vrot.slane %v3224, %v3370
    %v3372 = vlaneseq
    %v3373 = vshrl.u32 %v3372, 7
    %v3374 = vsub.s32 0, %v3373
    %v3375 = vrot.slane %v3226, %v3374
    %v3376 = vlaneseq
    %v3377 = vshrl.u32 %v3376, 7
    %v3378 = vsub.s32 2, %v3377
    %v3379 = vrot.slane %v3226, %v3378
    %v3380 = vlaneseq
    %v3381 = vshrl.u32 %v3380, 7
    %v3382 = vsub.s32 0, %v3381
    %v3383 = vrot.slane %v3234, %v3382
    %v3384 = vlaneseq
    %v3385 = vshrl.u32 %v3384, 7
    %v3386 = vsub.s32 2, %v3385
    %v3387 = vrot.slane %v3234, %v3386
    %v3388 = vsel %vm570, %v3271, %v3263
    %v3389 = vsel %vm572, %v3279, %v3388
    %v3390 = vsel %vm574, %v3287, %v3389
    %v3391 = vsel %vm576, %v3295, %v3390
    %v3392 = vsel %vm578, %v3303, %v3391
    %v3393 = vsel %vm580, %v3311, %v3392
    %v3394 = vsel %vm582, %v3319, %v3393
    %v3395 = vsel %vm570, %v3275, %v3267
    %v3396 = vsel %vm572, %v3283, %v3395
    %v3397 = vsel %vm574, %v3291, %v3396
    %v3398 = vsel %vm576, %v3299, %v3397
    %v3399 = vsel %vm578, %v3307, %v3398
    %v3400 = vsel %vm580, %v3315, %v3399
    %v3401 = vsel %vm582, %v3323, %v3400
    %v3402 = vsel %vm570, %v3335, %v3327
    %v3403 = vsel %vm572, %v3343, %v3402
    %v3404 = vsel %vm574, %v3351, %v3403
    %v3405 = vsel %vm576, %v3359, %v3404
    %v3406 = vsel %vm578, %v3367, %v3405
    %v3407 = vsel %vm580, %v3375, %v3406
    %v3408 = vsel %vm582, %v3383, %v3407
    %v3409 = vsel %vm570, %v3339, %v3331
    %v3410 = vsel %vm572, %v3347, %v3409
    %v3411 = vsel %vm574, %v3355, %v3410
    %v3412 = vsel %vm576, %v3363, %v3411
    %v3413 = vsel %vm578, %v3371, %v3412
    %v3414 = vsel %vm580, %v3379, %v3413
    %v3415 = vsel %vm582, %v3387, %v3414
    %v3418 = vsel %vm2380, %v3401, 0
    %v3420 = vsel %vm2380, %v3415, 0
    %3422 = vmatprep.subr.mxu0 0.0
    %3423 = vmatpush1.msra.mxu0 %v3236
    %3424 = vmatprep.subr.mxu0 0.0
    %3425 = vmatpush1.msra.mxu0 %v3237
    %3426 = vmatprep.subr.mxu0 0.0
    %3427 = vmatpush1.msra.mxu0 %v3238
    %3428 = vmatprep.subr.mxu0 0.0
    %3429 = vmatpush1.msra.mxu0 %v3239
    %3430 = vmatprep.subr.mxu0 0.0
    %3431 = vmatpush1.msra.mxu0 %v3240
    %3432 = vmatprep.subr.mxu0 0.0
    %3433 = vmatpush1.msra.mxu0 %v3241
    %3434 = vmatprep.subr.mxu0 0.0
    %3435 = vmatpush1.msra.mxu0 %v3242
    %3436 = vmatprep.subr.mxu0 0.0
    %3437 = vmatpush1.msra.mxu0 %v3243
    %3438 = vmatprep.subr.mxu0 0.0
    %3439 = vmatpush1.msra.mxu0 %v3244
    %3440 = vmatprep.subr.mxu0 0.0
    %3441 = vmatpush1.msra.mxu0 %v3245
    %3442 = vmatprep.subr.mxu0 0.0
    %3443 = vmatpush1.msra.mxu0 %v3246
    %3444 = vmatprep.subr.mxu0 0.0
    %3445 = vmatpush1.msra.mxu0 %v3247
    %3446 = vmatprep.subr.mxu0 0.0
    %3447 = vmatpush1.msra.mxu0 %v3248
    %3448 = vmatprep.subr.mxu0 0.0
    %3449 = vmatpush1.msra.mxu0 %v3249
    %3450 = vmatprep.subr.mxu0 0.0
    %3451 = vmatpush1.msra.mxu0 %v3250
    %3452 = vmatprep.subr.mxu0 0.0
    %3453 = vmatpush1.msra.mxu0 %v3251
    %3454 = vmatprep.subr.mxu0 0.0
    %3455 = vmatpush1.msra.mxu0 %v3252
    %3456 = vmatprep.subr.mxu0 0.0
    %3457 = vmatpush1.msra.mxu0 %v3253
    %3458 = vmatprep.subr.mxu0 0.0
    %3459 = vmatpush1.msra.mxu0 %v3254
    %3460 = vmatprep.subr.mxu0 0.0
    %3461 = vmatpush1.msra.mxu0 %v3255
    %3462 = vmatprep.subr.mxu0 0.0
    %3463 = vmatpush1.msra.mxu0 %v3256
    %3464 = vmatprep.subr.mxu0 0.0
    %3465 = vmatpush1.msra.mxu0 %v3257
    %3466 = vmatprep.subr.mxu0 0.0
    %3467 = vmatpush1.msra.mxu0 %v3258
    %3468 = vmatprep.subr.mxu0 0.0
    %3469 = vmatpush1.msra.mxu0 %v3259
    %3470 = vmatprep.subr.mxu0 0.0
    %3471 = vmatpush1.msra.mxu0 0.0
    %3472 = vmatprep.subr.mxu0 0.0
    %3473 = vmatpush1.msra.mxu0 0.0
    %3474 = vmatprep.subr.mxu0 0.0
    %3475 = vmatpush1.msra.mxu0 0.0
    %3476 = vmatprep.subr.mxu0 0.0
    %3477 = vmatpush1.msra.mxu0 0.0
    %3478 = vmatprep.subr.mxu0 0.0
    %3479 = vmatpush1.msra.mxu0 0.0
    %3480 = vmatprep.subr.mxu0 0.0
    %3481 = vmatpush1.msra.mxu0 0.0
    %3482 = vmatprep.subr.mxu0 0.0
    %3483 = vmatpush1.msra.mxu0 0.0
    %3484 = vmatprep.subr.mxu0 0.0
    %3485 = vmatpush1.msra.mxu0 0.0
    %3486 = vmatprep.mubr.f32.mxu0 %v3418
    %3487 = vmatmul.mubr.f32.gmra.mrb[0].mxu0 %v3394
    %v3488 = vpop.f32.mrb[0].mxu0
    %v3489 = vadd.f32 0.0, %v3488
    %v3490 = vpop.f32.mrb[0].mxu0
    %3491 = vmatprep.mubr.f32.mxu0 %v3420
    %3492 = vmatmul.mubr.f32.gmra.mrb[0].mxu0 %v3408
    %v3493 = vpop.f32.mrb[0].mxu0
    %v3494 = vadd.f32 0.0, %v3493
    %v3495 = vpop.f32.mrb[0].mxu0
    %3496 = vdwg.mxu0
    %v3497 = vadd.f32 %v3115, %v3489
    %v3498 = vadd.f32 %v3120, %v3494
    %v3499 = vld [vmem:[#allocation2] sm:$0xf8]
    %v3500 = vld [vmem:[#allocation2 + $0x8] sm:$0xf8]
    %v3501 = vld [vmem:[#allocation2 + $0x10] sm:$0xff]
    %v3502 = vld [vmem:[#allocation2 + $0x18] sm:$0xff]
    %v3503 = vld [vmem:[#allocation2 + $0x20] sm:$0x7]
    %v3504 = vld [vmem:[#allocation2 + $0x28] sm:$0x7]
    %v3505 = vld [vmem:[#allocation2 + $0x30] sm:$0xf8]
    %v3506 = vld [vmem:[#allocation2 + $0x38] sm:$0xf8]
    %v3507 = vld [vmem:[#allocation2 + $0x40] sm:$0xff]
    %v3508 = vld [vmem:[#allocation2 + $0x48] sm:$0xff]
    %v3509 = vld [vmem:[#allocation2 + $0x50] sm:$0x7]
    %v3510 = vld [vmem:[#allocation2 + $0x58] sm:$0x7]
    %v3523 = vcombine.low %v3499, %v3500
    %v3524 = vcombine.high %v3499, %v3500
    %v3526 = vunpack.c.l.s4 1983009808
    %v3527 = vunpack.c.0.s8 %v3526
    %v3528 = vlaneseq
    %v3529 = vshrl.u32 %v3528, 7
    %v3530 = vsub.s32 %v3527, %v3529
    %v3531 = vrot.slane %v3523, %v3530
    %v3533 = vunpack.c.l.s4 1983009808
    %v3534 = vunpack.c.0.s8 %v3533
    %v3535 = vlaneseq
    %v3536 = vshrl.u32 %v3535, 7
    %v3537 = vsub.s32 %v3534, %v3536
    %v3538 = vrot.slane %v3524, %v3537
    %v3539 = vcombine.high %v3531, %v3531
    %v3540 = vcombine.high %v3538, %v3538
    %v3541 = vcombine.low %v3501, %v3502
    %v3542 = vcombine.high %v3501, %v3502
    %v3544 = vunpack.c.l.s4 1983009808
    %v3545 = vunpack.c.0.s8 %v3544
    %v3546 = vlaneseq
    %v3547 = vshrl.u32 %v3546, 7
    %v3548 = vsub.s32 %v3545, %v3547
    %v3549 = vrot.slane %v3541, %v3548
    %v3551 = vunpack.c.l.s4 1983009808
    %v3552 = vunpack.c.0.s8 %v3551
    %v3553 = vlaneseq
    %v3554 = vshrl.u32 %v3553, 7
    %v3555 = vsub.s32 %v3552, %v3554
    %v3556 = vrot.slane %v3542, %v3555
    %v3557 = vcombine.high %v3549, %v3549
    %v3558 = vcombine.high %v3556, %v3556
    %v3559 = vcombine.low %v3503, %v3504
    %v3561 = vunpack.c.l.s4 1983009808
    %v3562 = vunpack.c.0.s8 %v3561
    %v3563 = vlaneseq
    %v3564 = vshrl.u32 %v3563, 7
    %v3565 = vsub.s32 %v3562, %v3564
    %v3566 = vrot.slane %v3559, %v3565
    %v3567 = vcombine.high %v3566, %v3566
    %v3568 = vcombine.low %v3505, %v3506
    %v3569 = vcombine.high %v3505, %v3506
    %v3571 = vunpack.c.l.s4 1983009808
    %v3572 = vunpack.c.0.s8 %v3571
    %v3573 = vlaneseq
    %v3574 = vshrl.u32 %v3573, 7
    %v3575 = vsub.s32 %v3572, %v3574
    %v3576 = vrot.slane %v3568, %v3575
    %v3578 = vunpack.c.l.s4 1983009808
    %v3579 = vunpack.c.0.s8 %v3578
    %v3580 = vlaneseq
    %v3581 = vshrl.u32 %v3580, 7
    %v3582 = vsub.s32 %v3579, %v3581
    %v3583 = vrot.slane %v3569, %v3582
    %v3584 = vcombine.high %v3576, %v3576
    %v3585 = vcombine.high %v3583, %v3583
    %v3586 = vcombine.low %v3507, %v3508
    %v3587 = vcombine.high %v3507, %v3508
    %v3589 = vunpack.c.l.s4 1983009808
    %v3590 = vunpack.c.0.s8 %v3589
    %v3591 = vlaneseq
    %v3592 = vshrl.u32 %v3591, 7
    %v3593 = vsub.s32 %v3590, %v3592
    %v3594 = vrot.slane %v3586, %v3593
    %v3596 = vunpack.c.l.s4 1983009808
    %v3597 = vunpack.c.0.s8 %v3596
    %v3598 = vlaneseq
    %v3599 = vshrl.u32 %v3598, 7
    %v3600 = vsub.s32 %v3597, %v3599
    %v3601 = vrot.slane %v3587, %v3600
    %v3602 = vcombine.high %v3594, %v3594
    %v3603 = vcombine.high %v3601, %v3601
    %v3604 = vcombine.low %v3509, %v3510
    %v3606 = vunpack.c.l.s4 1983009808
    %v3607 = vunpack.c.0.s8 %v3606
    %v3608 = vlaneseq
    %v3609 = vshrl.u32 %v3608, 7
    %v3610 = vsub.s32 %v3607, %v3609
    %v3611 = vrot.slane %v3604, %v3610
    %v3612 = vcombine.high %v3611, %v3611
    %v3613 = vrot.slane %v3539, 7
    %v3614 = vrot.slane %v3613, 2
    %v3615 = vrot.slane %v3538, 7
    %v3616 = vsel %vm2573, %v3614, %v3615
    %v3617 = vrot.slane %v3615, 2
    %v3618 = vrot.slane %v3540, 7
    %v3619 = vsel %vm2573, %v3617, %v3618
    %v3620 = vrot.slane %v3618, 2
    %v3621 = vrot.slane %v3549, 7
    %v3622 = vsel %vm2573, %v3620, %v3621
    %v3623 = vrot.slane %v3621, 2
    %v3624 = vrot.slane %v3557, 7
    %v3625 = vsel %vm2573, %v3623, %v3624
    %v3626 = vrot.slane %v3624, 2
    %v3627 = vrot.slane %v3556, 7
    %v3628 = vsel %vm2573, %v3626, %v3627
    %v3629 = vrot.slane %v3627, 2
    %v3630 = vrot.slane %v3558, 7
    %v3631 = vsel %vm2573, %v3629, %v3630
    %v3632 = vrot.slane %v3630, 2
    %v3633 = vrot.slane %v3566, 7
    %v3634 = vsel %vm2573, %v3632, %v3633
    %v3635 = vrot.slane %v3633, 2
    %v3636 = vrot.slane %v3567, 7
    %v3637 = vsel %vm2573, %v3635, %v3636
    %v3638 = vrot.slane %v3584, 7
    %v3639 = vrot.slane %v3638, 2
    %v3640 = vrot.slane %v3583, 7
    %v3641 = vsel %vm2573, %v3639, %v3640
    %v3642 = vrot.slane %v3640, 2
    %v3643 = vrot.slane %v3585, 7
    %v3644 = vsel %vm2573, %v3642, %v3643
    %v3645 = vrot.slane %v3643, 2
    %v3646 = vrot.slane %v3594, 7
    %v3647 = vsel %vm2573, %v3645, %v3646
    %v3648 = vrot.slane %v3646, 2
    %v3649 = vrot.slane %v3602, 7
    %v3650 = vsel %vm2573, %v3648, %v3649
    %v3651 = vrot.slane %v3649, 2
    %v3652 = vrot.slane %v3601, 7
    %v3653 = vsel %vm2573, %v3651, %v3652
    %v3654 = vrot.slane %v3652, 2
    %v3655 = vrot.slane %v3603, 7
    %v3656 = vsel %vm2573, %v3654, %v3655
    %v3657 = vrot.slane %v3655, 2
    %v3658 = vrot.slane %v3611, 7
    %v3659 = vsel %vm2573, %v3657, %v3658
    %v3660 = vrot.slane %v3658, 2
    %v3661 = vrot.slane %v3612, 7
    %v3662 = vsel %vm2573, %v3660, %v3661
    %s3663 = scalar_lea.vmem %s3, 576
    %v3664 = vld [vmem:[%s3663] sm:$0xff]
    %v3665 = vld [vmem:[%s3663 + $0x8] sm:$0xff]
    %v3666 = vld [vmem:[%s3663 + $0x10] sm:$0xff]
    %v3667 = vld [vmem:[%s3663 + $0x18] sm:$0xff]
    %v3668 = vld [vmem:[%s3663 + $0x20] sm:$0xff]
    %v3669 = vld [vmem:[%s3663 + $0x28] sm:$0xff]
    %v3670 = vld [vmem:[%s3663 + $0x30] sm:$0xff]
    %v3671 = vld [vmem:[%s3663 + $0x38] sm:$0xff]
    %v3672 = vld [vmem:[%s3663 + $0x40] sm:$0xff]
    %v3673 = vld [vmem:[%s3663 + $0x48] sm:$0xff]
    %v3674 = vld [vmem:[%s3663 + $0x50] sm:$0xff]
    %v3675 = vld [vmem:[%s3663 + $0x58] sm:$0xff]
    %v3676 = vld [vmem:[%s3663 + $0x60] sm:$0xff]
    %v3677 = vld [vmem:[%s3663 + $0x68] sm:$0xff]
    %v3678 = vld [vmem:[%s3663 + $0x70] sm:$0xff]
    %v3679 = vld [vmem:[%s3663 + $0x78] sm:$0xff]
    %v3680 = vld [vmem:[%s3663 + $0x80] sm:$0xff]
    %v3681 = vld [vmem:[%s3663 + $0x88] sm:$0xff]
    %v3682 = vld [vmem:[%s3663 + $0x90] sm:$0xff]
    %v3683 = vld [vmem:[%s3663 + $0x98] sm:$0xff]
    %v3684 = vld [vmem:[%s3663 + $0xa0] sm:$0xff]
    %v3685 = vld [vmem:[%s3663 + $0xa8] sm:$0xff]
    %v3686 = vld [vmem:[%s3663 + $0xb0] sm:$0xff]
    %v3687 = vld [vmem:[%s3663 + $0xb8] sm:$0xff]
    %v3688 = vlaneseq
    %v3689 = vshrl.u32 %v3688, 7
    %v3690 = vsub.s32 0, %v3689
    %v3691 = vrot.slane %v3616, %v3690
    %v3692 = vlaneseq
    %v3693 = vshrl.u32 %v3692, 7
    %v3694 = vsub.s32 2, %v3693
    %v3695 = vrot.slane %v3616, %v3694
    %v3696 = vlaneseq
    %v3697 = vshrl.u32 %v3696, 7
    %v3698 = vsub.s32 0, %v3697
    %v3699 = vrot.slane %v3619, %v3698
    %v3700 = vlaneseq
    %v3701 = vshrl.u32 %v3700, 7
    %v3702 = vsub.s32 2, %v3701
    %v3703 = vrot.slane %v3619, %v3702
    %v3704 = vlaneseq
    %v3705 = vshrl.u32 %v3704, 7
    %v3706 = vsub.s32 0, %v3705
    %v3707 = vrot.slane %v3622, %v3706
    %v3708 = vlaneseq
    %v3709 = vshrl.u32 %v3708, 7
    %v3710 = vsub.s32 2, %v3709
    %v3711 = vrot.slane %v3622, %v3710
    %v3712 = vlaneseq
    %v3713 = vshrl.u32 %v3712, 7
    %v3714 = vsub.s32 0, %v3713
    %v3715 = vrot.slane %v3625, %v3714
    %v3716 = vlaneseq
    %v3717 = vshrl.u32 %v3716, 7
    %v3718 = vsub.s32 2, %v3717
    %v3719 = vrot.slane %v3625, %v3718
    %v3720 = vlaneseq
    %v3721 = vshrl.u32 %v3720, 7
    %v3722 = vsub.s32 0, %v3721
    %v3723 = vrot.slane %v3628, %v3722
    %v3724 = vlaneseq
    %v3725 = vshrl.u32 %v3724, 7
    %v3726 = vsub.s32 2, %v3725
    %v3727 = vrot.slane %v3628, %v3726
    %v3728 = vlaneseq
    %v3729 = vshrl.u32 %v3728, 7
    %v3730 = vsub.s32 0, %v3729
    %v3731 = vrot.slane %v3631, %v3730
    %v3732 = vlaneseq
    %v3733 = vshrl.u32 %v3732, 7
    %v3734 = vsub.s32 2, %v3733
    %v3735 = vrot.slane %v3631, %v3734
    %v3736 = vlaneseq
    %v3737 = vshrl.u32 %v3736, 7
    %v3738 = vsub.s32 0, %v3737
    %v3739 = vrot.slane %v3634, %v3738
    %v3740 = vlaneseq
    %v3741 = vshrl.u32 %v3740, 7
    %v3742 = vsub.s32 2, %v3741
    %v3743 = vrot.slane %v3634, %v3742
    %v3744 = vlaneseq
    %v3745 = vshrl.u32 %v3744, 7
    %v3746 = vsub.s32 0, %v3745
    %v3747 = vrot.slane %v3637, %v3746
    %v3748 = vlaneseq
    %v3749 = vshrl.u32 %v3748, 7
    %v3750 = vsub.s32 2, %v3749
    %v3751 = vrot.slane %v3637, %v3750
    %v3752 = vlaneseq
    %v3753 = vshrl.u32 %v3752, 7
    %v3754 = vsub.s32 0, %v3753
    %v3755 = vrot.slane %v3641, %v3754
    %v3756 = vlaneseq
    %v3757 = vshrl.u32 %v3756, 7
    %v3758 = vsub.s32 2, %v3757
    %v3759 = vrot.slane %v3641, %v3758
    %v3760 = vlaneseq
    %v3761 = vshrl.u32 %v3760, 7
    %v3762 = vsub.s32 0, %v3761
    %v3763 = vrot.slane %v3644, %v3762
    %v3764 = vlaneseq
    %v3765 = vshrl.u32 %v3764, 7
    %v3766 = vsub.s32 2, %v3765
    %v3767 = vrot.slane %v3644, %v3766
    %v3768 = vlaneseq
    %v3769 = vshrl.u32 %v3768, 7
    %v3770 = vsub.s32 0, %v3769
    %v3771 = vrot.slane %v3647, %v3770
    %v3772 = vlaneseq
    %v3773 = vshrl.u32 %v3772, 7
    %v3774 = vsub.s32 2, %v3773
    %v3775 = vrot.slane %v3647, %v3774
    %v3776 = vlaneseq
    %v3777 = vshrl.u32 %v3776, 7
    %v3778 = vsub.s32 0, %v3777
    %v3779 = vrot.slane %v3650, %v3778
    %v3780 = vlaneseq
    %v3781 = vshrl.u32 %v3780, 7
    %v3782 = vsub.s32 2, %v3781
    %v3783 = vrot.slane %v3650, %v3782
    %v3784 = vlaneseq
    %v3785 = vshrl.u32 %v3784, 7
    %v3786 = vsub.s32 0, %v3785
    %v3787 = vrot.slane %v3653, %v3786
    %v3788 = vlaneseq
    %v3789 = vshrl.u32 %v3788, 7
    %v3790 = vsub.s32 2, %v3789
    %v3791 = vrot.slane %v3653, %v3790
    %v3792 = vlaneseq
    %v3793 = vshrl.u32 %v3792, 7
    %v3794 = vsub.s32 0, %v3793
    %v3795 = vrot.slane %v3656, %v3794
    %v3796 = vlaneseq
    %v3797 = vshrl.u32 %v3796, 7
    %v3798 = vsub.s32 2, %v3797
    %v3799 = vrot.slane %v3656, %v3798
    %v3800 = vlaneseq
    %v3801 = vshrl.u32 %v3800, 7
    %v3802 = vsub.s32 0, %v3801
    %v3803 = vrot.slane %v3659, %v3802
    %v3804 = vlaneseq
    %v3805 = vshrl.u32 %v3804, 7
    %v3806 = vsub.s32 2, %v3805
    %v3807 = vrot.slane %v3659, %v3806
    %v3808 = vlaneseq
    %v3809 = vshrl.u32 %v3808, 7
    %v3810 = vsub.s32 0, %v3809
    %v3811 = vrot.slane %v3662, %v3810
    %v3812 = vlaneseq
    %v3813 = vshrl.u32 %v3812, 7
    %v3814 = vsub.s32 2, %v3813
    %v3815 = vrot.slane %v3662, %v3814
    %v3816 = vsel %vm570, %v3699, %v3691
    %v3817 = vsel %vm572, %v3707, %v3816
    %v3818 = vsel %vm574, %v3715, %v3817
    %v3819 = vsel %vm576, %v3723, %v3818
    %v3820 = vsel %vm578, %v3731, %v3819
    %v3821 = vsel %vm580, %v3739, %v3820
    %v3822 = vsel %vm582, %v3747, %v3821
    %v3823 = vsel %vm570, %v3703, %v3695
    %v3824 = vsel %vm572, %v3711, %v3823
    %v3825 = vsel %vm574, %v3719, %v3824
    %v3826 = vsel %vm576, %v3727, %v3825
    %v3827 = vsel %vm578, %v3735, %v3826
    %v3828 = vsel %vm580, %v3743, %v3827
    %v3829 = vsel %vm582, %v3751, %v3828
    %v3830 = vsel %vm570, %v3763, %v3755
    %v3831 = vsel %vm572, %v3771, %v3830
    %v3832 = vsel %vm574, %v3779, %v3831
    %v3833 = vsel %vm576, %v3787, %v3832
    %v3834 = vsel %vm578, %v3795, %v3833
    %v3835 = vsel %vm580, %v3803, %v3834
    %v3836 = vsel %vm582, %v3811, %v3835
    %v3837 = vsel %vm570, %v3767, %v3759
    %v3838 = vsel %vm572, %v3775, %v3837
    %v3839 = vsel %vm574, %v3783, %v3838
    %v3840 = vsel %vm576, %v3791, %v3839
    %v3841 = vsel %vm578, %v3799, %v3840
    %v3842 = vsel %vm580, %v3807, %v3841
    %v3843 = vsel %vm582, %v3815, %v3842
    %v3846 = vsel %vm2380, %v3829, 0
    %v3848 = vsel %vm2380, %v3843, 0
    %3850 = vmatprep.subr.mxu0 0.0
    %3851 = vmatpush1.msra.mxu0 %v3664
    %3852 = vmatprep.subr.mxu0 0.0
    %3853 = vmatpush1.msra.mxu0 %v3665
    %3854 = vmatprep.subr.mxu0 0.0
    %3855 = vmatpush1.msra.mxu0 %v3666
    %3856 = vmatprep.subr.mxu0 0.0
    %3857 = vmatpush1.msra.mxu0 %v3667
    %3858 = vmatprep.subr.mxu0 0.0
    %3859 = vmatpush1.msra.mxu0 %v3668
    %3860 = vmatprep.subr.mxu0 0.0
    %3861 = vmatpush1.msra.mxu0 %v3669
    %3862 = vmatprep.subr.mxu0 0.0
    %3863 = vmatpush1.msra.mxu0 %v3670
    %3864 = vmatprep.subr.mxu0 0.0
    %3865 = vmatpush1.msra.mxu0 %v3671
    %3866 = vmatprep.subr.mxu0 0.0
    %3867 = vmatpush1.msra.mxu0 %v3672
    %3868 = vmatprep.subr.mxu0 0.0
    %3869 = vmatpush1.msra.mxu0 %v3673
    %3870 = vmatprep.subr.mxu0 0.0
    %3871 = vmatpush1.msra.mxu0 %v3674
    %3872 = vmatprep.subr.mxu0 0.0
    %3873 = vmatpush1.msra.mxu0 %v3675
    %3874 = vmatprep.subr.mxu0 0.0
    %3875 = vmatpush1.msra.mxu0 %v3676
    %3876 = vmatprep.subr.mxu0 0.0
    %3877 = vmatpush1.msra.mxu0 %v3677
    %3878 = vmatprep.subr.mxu0 0.0
    %3879 = vmatpush1.msra.mxu0 %v3678
    %3880 = vmatprep.subr.mxu0 0.0
    %3881 = vmatpush1.msra.mxu0 %v3679
    %3882 = vmatprep.subr.mxu0 0.0
    %3883 = vmatpush1.msra.mxu0 %v3680
    %3884 = vmatprep.subr.mxu0 0.0
    %3885 = vmatpush1.msra.mxu0 %v3681
    %3886 = vmatprep.subr.mxu0 0.0
    %3887 = vmatpush1.msra.mxu0 %v3682
    %3888 = vmatprep.subr.mxu0 0.0
    %3889 = vmatpush1.msra.mxu0 %v3683
    %3890 = vmatprep.subr.mxu0 0.0
    %3891 = vmatpush1.msra.mxu0 %v3684
    %3892 = vmatprep.subr.mxu0 0.0
    %3893 = vmatpush1.msra.mxu0 %v3685
    %3894 = vmatprep.subr.mxu0 0.0
    %3895 = vmatpush1.msra.mxu0 %v3686
    %3896 = vmatprep.subr.mxu0 0.0
    %3897 = vmatpush1.msra.mxu0 %v3687
    %3898 = vmatprep.subr.mxu0 0.0
    %3899 = vmatpush1.msra.mxu0 0.0
    %3900 = vmatprep.subr.mxu0 0.0
    %3901 = vmatpush1.msra.mxu0 0.0
    %3902 = vmatprep.subr.mxu0 0.0
    %3903 = vmatpush1.msra.mxu0 0.0
    %3904 = vmatprep.subr.mxu0 0.0
    %3905 = vmatpush1.msra.mxu0 0.0
    %3906 = vmatprep.subr.mxu0 0.0
    %3907 = vmatpush1.msra.mxu0 0.0
    %3908 = vmatprep.subr.mxu0 0.0
    %3909 = vmatpush1.msra.mxu0 0.0
    %3910 = vmatprep.subr.mxu0 0.0
    %3911 = vmatpush1.msra.mxu0 0.0
    %3912 = vmatprep.subr.mxu0 0.0
    %3913 = vmatpush1.msra.mxu0 0.0
    %3914 = vmatprep.mubr.f32.mxu0 %v3846
    %3915 = vmatmul.mubr.f32.gmra.mrb[0].mxu0 %v3822
    %v3916 = vpop.f32.mrb[0].mxu0
    %v3917 = vadd.f32 0.0, %v3916
    %v3918 = vpop.f32.mrb[0].mxu0
    %3919 = vmatprep.mubr.f32.mxu0 %v3848
    %3920 = vmatmul.mubr.f32.gmra.mrb[0].mxu0 %v3836
    %v3921 = vpop.f32.mrb[0].mxu0
    %v3922 = vadd.f32 0.0, %v3921
    %v3923 = vpop.f32.mrb[0].mxu0
    %3924 = vdwg.mxu0
    %v3925 = vadd.f32 %v3497, %v3917
    %v3926 = vadd.f32 %v3498, %v3922
    %v3927 = vld [vmem:[#allocation2] sm:$0xf0]
    %v3928 = vld [vmem:[#allocation2 + $0x8] sm:$0xf0]
    %v3929 = vld [vmem:[#allocation2 + $0x10] sm:$0xff]
    %v3930 = vld [vmem:[#allocation2 + $0x18] sm:$0xff]
    %v3931 = vld [vmem:[#allocation2 + $0x20] sm:$0xf]
    %v3932 = vld [vmem:[#allocation2 + $0x28] sm:$0xf]
    %v3933 = vld [vmem:[#allocation2 + $0x30] sm:$0xf0]
    %v3934 = vld [vmem:[#allocation2 + $0x38] sm:$0xf0]
    %v3935 = vld [vmem:[#allocation2 + $0x40] sm:$0xff]
    %v3936 = vld [vmem:[#allocation2 + $0x48] sm:$0xff]
    %v3937 = vld [vmem:[#allocation2 + $0x50] sm:$0xf]
    %v3938 = vld [vmem:[#allocation2 + $0x58] sm:$0xf]
    %v3951 = vcombine.high %v3927, %v3928
    %v3953 = vunpack.c.l.s4 1983009808
    %v3954 = vunpack.c.0.s8 %v3953
    %v3955 = vlaneseq
    %v3956 = vshrl.u32 %v3955, 7
    %v3957 = vsub.s32 %v3954, %v3956
    %v3958 = vrot.slane %v3951, %v3957
    %v3959 = vcombine.high %v3958, %v3958
    %v3960 = vcombine.low %v3929, %v3930
    %v3961 = vcombine.high %v3929, %v3930
    %v3963 = vunpack.c.l.s4 1983009808
    %v3964 = vunpack.c.0.s8 %v3963
    %v3965 = vlaneseq
    %v3966 = vshrl.u32 %v3965, 7
    %v3967 = vsub.s32 %v3964, %v3966
    %v3968 = vrot.slane %v3960, %v3967
    %v3970 = vunpack.c.l.s4 1983009808
    %v3971 = vunpack.c.0.s8 %v3970
    %v3972 = vlaneseq
    %v3973 = vshrl.u32 %v3972, 7
    %v3974 = vsub.s32 %v3971, %v3973
    %v3975 = vrot.slane %v3961, %v3974
    %v3976 = vcombine.high %v3968, %v3968
    %v3977 = vcombine.high %v3975, %v3975
    %v3978 = vcombine.low %v3931, %v3932
    %v3980 = vunpack.c.l.s4 1983009808
    %v3981 = vunpack.c.0.s8 %v3980
    %v3982 = vlaneseq
    %v3983 = vshrl.u32 %v3982, 7
    %v3984 = vsub.s32 %v3981, %v3983
    %v3985 = vrot.slane %v3978, %v3984
    %v3986 = vcombine.high %v3985, %v3985
    %v3987 = vcombine.high %v3933, %v3934
    %v3989 = vunpack.c.l.s4 1983009808
    %v3990 = vunpack.c.0.s8 %v3989
    %v3991 = vlaneseq
    %v3992 = vshrl.u32 %v3991, 7
    %v3993 = vsub.s32 %v3990, %v3992
    %v3994 = vrot.slane %v3987, %v3993
    %v3995 = vcombine.high %v3994, %v3994
    %v3996 = vcombine.low %v3935, %v3936
    %v3997 = vcombine.high %v3935, %v3936
    %v3999 = vunpack.c.l.s4 1983009808
    %v4000 = vunpack.c.0.s8 %v3999
    %v4001 = vlaneseq
    %v4002 = vshrl.u32 %v4001, 7
    %v4003 = vsub.s32 %v4000, %v4002
    %v4004 = vrot.slane %v3996, %v4003
    %v4006 = vunpack.c.l.s4 1983009808
    %v4007 = vunpack.c.0.s8 %v4006
    %v4008 = vlaneseq
    %v4009 = vshrl.u32 %v4008, 7
    %v4010 = vsub.s32 %v4007, %v4009
    %v4011 = vrot.slane %v3997, %v4010
    %v4012 = vcombine.high %v4004, %v4004
    %v4013 = vcombine.high %v4011, %v4011
    %v4014 = vcombine.low %v3937, %v3938
    %v4016 = vunpack.c.l.s4 1983009808
    %v4017 = vunpack.c.0.s8 %v4016
    %v4018 = vlaneseq
    %v4019 = vshrl.u32 %v4018, 7
    %v4020 = vsub.s32 %v4017, %v4019
    %v4021 = vrot.slane %v4014, %v4020
    %v4022 = vcombine.high %v4021, %v4021
    %s4023 = scalar_lea.vmem %s3, 768
    %v4024 = vld [vmem:[%s4023] sm:$0xff]
    %v4025 = vld [vmem:[%s4023 + $0x8] sm:$0xff]
    %v4026 = vld [vmem:[%s4023 + $0x10] sm:$0xff]
    %v4027 = vld [vmem:[%s4023 + $0x18] sm:$0xff]
    %v4028 = vld [vmem:[%s4023 + $0x20] sm:$0xff]
    %v4029 = vld [vmem:[%s4023 + $0x28] sm:$0xff]
    %v4030 = vld [vmem:[%s4023 + $0x30] sm:$0xff]
    %v4031 = vld [vmem:[%s4023 + $0x38] sm:$0xff]
    %v4032 = vld [vmem:[%s4023 + $0x40] sm:$0xff]
    %v4033 = vld [vmem:[%s4023 + $0x48] sm:$0xff]
    %v4034 = vld [vmem:[%s4023 + $0x50] sm:$0xff]
    %v4035 = vld [vmem:[%s4023 + $0x58] sm:$0xff]
    %v4036 = vld [vmem:[%s4023 + $0x60] sm:$0xff]
    %v4037 = vld [vmem:[%s4023 + $0x68] sm:$0xff]
    %v4038 = vld [vmem:[%s4023 + $0x70] sm:$0xff]
    %v4039 = vld [vmem:[%s4023 + $0x78] sm:$0xff]
    %v4040 = vld [vmem:[%s4023 + $0x80] sm:$0xff]
    %v4041 = vld [vmem:[%s4023 + $0x88] sm:$0xff]
    %v4042 = vld [vmem:[%s4023 + $0x90] sm:$0xff]
    %v4043 = vld [vmem:[%s4023 + $0x98] sm:$0xff]
    %v4044 = vld [vmem:[%s4023 + $0xa0] sm:$0xff]
    %v4045 = vld [vmem:[%s4023 + $0xa8] sm:$0xff]
    %v4046 = vld [vmem:[%s4023 + $0xb0] sm:$0xff]
    %v4047 = vld [vmem:[%s4023 + $0xb8] sm:$0xff]
    %v4048 = vlaneseq
    %v4049 = vshrl.u32 %v4048, 7
    %v4050 = vsub.s32 0, %v4049
    %v4051 = vrot.slane %v3958, %v4050
    %v4052 = vlaneseq
    %v4053 = vshrl.u32 %v4052, 7
    %v4054 = vsub.s32 2, %v4053
    %v4055 = vrot.slane %v3958, %v4054
    %v4056 = vlaneseq
    %v4057 = vshrl.u32 %v4056, 7
    %v4058 = vsub.s32 0, %v4057
    %v4059 = vrot.slane %v3959, %v4058
    %v4060 = vlaneseq
    %v4061 = vshrl.u32 %v4060, 7
    %v4062 = vsub.s32 2, %v4061
    %v4063 = vrot.slane %v3959, %v4062
    %v4064 = vlaneseq
    %v4065 = vshrl.u32 %v4064, 7
    %v4066 = vsub.s32 0, %v4065
    %v4067 = vrot.slane %v3968, %v4066
    %v4068 = vlaneseq
    %v4069 = vshrl.u32 %v4068, 7
    %v4070 = vsub.s32 2, %v4069
    %v4071 = vrot.slane %v3968, %v4070
    %v4072 = vlaneseq
    %v4073 = vshrl.u32 %v4072, 7
    %v4074 = vsub.s32 0, %v4073
    %v4075 = vrot.slane %v3976, %v4074
    %v4076 = vlaneseq
    %v4077 = vshrl.u32 %v4076, 7
    %v4078 = vsub.s32 2, %v4077
    %v4079 = vrot.slane %v3976, %v4078
    %v4080 = vlaneseq
    %v4081 = vshrl.u32 %v4080, 7
    %v4082 = vsub.s32 0, %v4081
    %v4083 = vrot.slane %v3975, %v4082
    %v4084 = vlaneseq
    %v4085 = vshrl.u32 %v4084, 7
    %v4086 = vsub.s32 2, %v4085
    %v4087 = vrot.slane %v3975, %v4086
    %v4088 = vlaneseq
    %v4089 = vshrl.u32 %v4088, 7
    %v4090 = vsub.s32 0, %v4089
    %v4091 = vrot.slane %v3977, %v4090
    %v4092 = vlaneseq
    %v4093 = vshrl.u32 %v4092, 7
    %v4094 = vsub.s32 2, %v4093
    %v4095 = vrot.slane %v3977, %v4094
    %v4096 = vlaneseq
    %v4097 = vshrl.u32 %v4096, 7
    %v4098 = vsub.s32 0, %v4097
    %v4099 = vrot.slane %v3985, %v4098
    %v4100 = vlaneseq
    %v4101 = vshrl.u32 %v4100, 7
    %v4102 = vsub.s32 2, %v4101
    %v4103 = vrot.slane %v3985, %v4102
    %v4104 = vlaneseq
    %v4105 = vshrl.u32 %v4104, 7
    %v4106 = vsub.s32 0, %v4105
    %v4107 = vrot.slane %v3986, %v4106
    %v4108 = vlaneseq
    %v4109 = vshrl.u32 %v4108, 7
    %v4110 = vsub.s32 2, %v4109
    %v4111 = vrot.slane %v3986, %v4110
    %v4112 = vlaneseq
    %v4113 = vshrl.u32 %v4112, 7
    %v4114 = vsub.s32 0, %v4113
    %v4115 = vrot.slane %v3994, %v4114
    %v4116 = vlaneseq
    %v4117 = vshrl.u32 %v4116, 7
    %v4118 = vsub.s32 2, %v4117
    %v4119 = vrot.slane %v3994, %v4118
    %v4120 = vlaneseq
    %v4121 = vshrl.u32 %v4120, 7
    %v4122 = vsub.s32 0, %v4121
    %v4123 = vrot.slane %v3995, %v4122
    %v4124 = vlaneseq
    %v4125 = vshrl.u32 %v4124, 7
    %v4126 = vsub.s32 2, %v4125
    %v4127 = vrot.slane %v3995, %v4126
    %v4128 = vlaneseq
    %v4129 = vshrl.u32 %v4128, 7
    %v4130 = vsub.s32 0, %v4129
    %v4131 = vrot.slane %v4004, %v4130
    %v4132 = vlaneseq
    %v4133 = vshrl.u32 %v4132, 7
    %v4134 = vsub.s32 2, %v4133
    %v4135 = vrot.slane %v4004, %v4134
    %v4136 = vlaneseq
    %v4137 = vshrl.u32 %v4136, 7
    %v4138 = vsub.s32 0, %v4137
    %v4139 = vrot.slane %v4012, %v4138
    %v4140 = vlaneseq
    %v4141 = vshrl.u32 %v4140, 7
    %v4142 = vsub.s32 2, %v4141
    %v4143 = vrot.slane %v4012, %v4142
    %v4144 = vlaneseq
    %v4145 = vshrl.u32 %v4144, 7
    %v4146 = vsub.s32 0, %v4145
    %v4147 = vrot.slane %v4011, %v4146
    %v4148 = vlaneseq
    %v4149 = vshrl.u32 %v4148, 7
    %v4150 = vsub.s32 2, %v4149
    %v4151 = vrot.slane %v4011, %v4150
    %v4152 = vlaneseq
    %v4153 = vshrl.u32 %v4152, 7
    %v4154 = vsub.s32 0, %v4153
    %v4155 = vrot.slane %v4013, %v4154
    %v4156 = vlaneseq
    %v4157 = vshrl.u32 %v4156, 7
    %v4158 = vsub.s32 2, %v4157
    %v4159 = vrot.slane %v4013, %v4158
    %v4160 = vlaneseq
    %v4161 = vshrl.u32 %v4160, 7
    %v4162 = vsub.s32 0, %v4161
    %v4163 = vrot.slane %v4021, %v4162
    %v4164 = vlaneseq
    %v4165 = vshrl.u32 %v4164, 7
    %v4166 = vsub.s32 2, %v4165
    %v4167 = vrot.slane %v4021, %v4166
    %v4168 = vlaneseq
    %v4169 = vshrl.u32 %v4168, 7
    %v4170 = vsub.s32 0, %v4169
    %v4171 = vrot.slane %v4022, %v4170
    %v4172 = vlaneseq
    %v4173 = vshrl.u32 %v4172, 7
    %v4174 = vsub.s32 2, %v4173
    %v4175 = vrot.slane %v4022, %v4174
    %v4176 = vsel %vm570, %v4059, %v4051
    %v4177 = vsel %vm572, %v4067, %v4176
    %v4178 = vsel %vm574, %v4075, %v4177
    %v4179 = vsel %vm576, %v4083, %v4178
    %v4180 = vsel %vm578, %v4091, %v4179
    %v4181 = vsel %vm580, %v4099, %v4180
    %v4182 = vsel %vm582, %v4107, %v4181
    %v4183 = vsel %vm570, %v4063, %v4055
    %v4184 = vsel %vm572, %v4071, %v4183
    %v4185 = vsel %vm574, %v4079, %v4184
    %v4186 = vsel %vm576, %v4087, %v4185
    %v4187 = vsel %vm578, %v4095, %v4186
    %v4188 = vsel %vm580, %v4103, %v4187
    %v4189 = vsel %vm582, %v4111, %v4188
    %v4190 = vsel %vm570, %v4123, %v4115
    %v4191 = vsel %vm572, %v4131, %v4190
    %v4192 = vsel %vm574, %v4139, %v4191
    %v4193 = vsel %vm576, %v4147, %v4192
    %v4194 = vsel %vm578, %v4155, %v4193
    %v4195 = vsel %vm580, %v4163, %v4194
    %v4196 = vsel %vm582, %v4171, %v4195
    %v4197 = vsel %vm570, %v4127, %v4119
    %v4198 = vsel %vm572, %v4135, %v4197
    %v4199 = vsel %vm574, %v4143, %v4198
    %v4200 = vsel %vm576, %v4151, %v4199
    %v4201 = vsel %vm578, %v4159, %v4200
    %v4202 = vsel %vm580, %v4167, %v4201
    %v4203 = vsel %vm582, %v4175, %v4202
    %v4206 = vsel %vm2380, %v4189, 0
    %v4208 = vsel %vm2380, %v4203, 0
    %4210 = vmatprep.subr.mxu0 0.0
    %4211 = vmatpush1.msra.mxu0 %v4024
    %4212 = vmatprep.subr.mxu0 0.0
    %4213 = vmatpush1.msra.mxu0 %v4025
    %4214 = vmatprep.subr.mxu0 0.0
    %4215 = vmatpush1.msra.mxu0 %v4026
    %4216 = vmatprep.subr.mxu0 0.0
    %4217 = vmatpush1.msra.mxu0 %v4027
    %4218 = vmatprep.subr.mxu0 0.0
    %4219 = vmatpush1.msra.mxu0 %v4028
    %4220 = vmatprep.subr.mxu0 0.0
    %4221 = vmatpush1.msra.mxu0 %v4029
    %4222 = vmatprep.subr.mxu0 0.0
    %4223 = vmatpush1.msra.mxu0 %v4030
    %4224 = vmatprep.subr.mxu0 0.0
    %4225 = vmatpush1.msra.mxu0 %v4031
    %4226 = vmatprep.subr.mxu0 0.0
    %4227 = vmatpush1.msra.mxu0 %v4032
    %4228 = vmatprep.subr.mxu0 0.0
    %4229 = vmatpush1.msra.mxu0 %v4033
    %4230 = vmatprep.subr.mxu0 0.0
    %4231 = vmatpush1.msra.mxu0 %v4034
    %4232 = vmatprep.subr.mxu0 0.0
    %4233 = vmatpush1.msra.mxu0 %v4035
    %4234 = vmatprep.subr.mxu0 0.0
    %4235 = vmatpush1.msra.mxu0 %v4036
    %4236 = vmatprep.subr.mxu0 0.0
    %4237 = vmatpush1.msra.mxu0 %v4037
    %4238 = vmatprep.subr.mxu0 0.0
    %4239 = vmatpush1.msra.mxu0 %v4038
    %4240 = vmatprep.subr.mxu0 0.0
    %4241 = vmatpush1.msra.mxu0 %v4039
    %4242 = vmatprep.subr.mxu0 0.0
    %4243 = vmatpush1.msra.mxu0 %v4040
    %4244 = vmatprep.subr.mxu0 0.0
    %4245 = vmatpush1.msra.mxu0 %v4041
    %4246 = vmatprep.subr.mxu0 0.0
    %4247 = vmatpush1.msra.mxu0 %v4042
    %4248 = vmatprep.subr.mxu0 0.0
    %4249 = vmatpush1.msra.mxu0 %v4043
    %4250 = vmatprep.subr.mxu0 0.0
    %4251 = vmatpush1.msra.mxu0 %v4044
    %4252 = vmatprep.subr.mxu0 0.0
    %4253 = vmatpush1.msra.mxu0 %v4045
    %4254 = vmatprep.subr.mxu0 0.0
    %4255 = vmatpush1.msra.mxu0 %v4046
    %4256 = vmatprep.subr.mxu0 0.0
    %4257 = vmatpush1.msra.mxu0 %v4047
    %4258 = vmatprep.subr.mxu0 0.0
    %4259 = vmatpush1.msra.mxu0 0.0
    %4260 = vmatprep.subr.mxu0 0.0
    %4261 = vmatpush1.msra.mxu0 0.0
    %4262 = vmatprep.subr.mxu0 0.0
    %4263 = vmatpush1.msra.mxu0 0.0
    %4264 = vmatprep.subr.mxu0 0.0
    %4265 = vmatpush1.msra.mxu0 0.0
    %4266 = vmatprep.subr.mxu0 0.0
    %4267 = vmatpush1.msra.mxu0 0.0
    %4268 = vmatprep.subr.mxu0 0.0
    %4269 = vmatpush1.msra.mxu0 0.0
    %4270 = vmatprep.subr.mxu0 0.0
    %4271 = vmatpush1.msra.mxu0 0.0
    %4272 = vmatprep.subr.mxu0 0.0
    %4273 = vmatpush1.msra.mxu0 0.0
    %4274 = vmatprep.mubr.f32.mxu0 %v4206
    %4275 = vmatmul.mubr.f32.gmra.mrb[0].mxu0 %v4182
    %v4276 = vpop.f32.mrb[0].mxu0
    %v4277 = vadd.f32 0.0, %v4276
    %v4278 = vpop.f32.mrb[0].mxu0
    %4279 = vmatprep.mubr.f32.mxu0 %v4208
    %4280 = vmatmul.mubr.f32.gmra.mrb[0].mxu0 %v4196
    %v4281 = vpop.f32.mrb[0].mxu0
    %v4282 = vadd.f32 0.0, %v4281
    %v4283 = vpop.f32.mrb[0].mxu0
    %4284 = vdwg.mxu0
    %v4285 = vadd.f32 %v3925, %v4277
    %v4286 = vadd.f32 %v3926, %v4282
    %v4287 = vld [vmem:[%s4] sm:$0x1]
    %v4289 = vlaneseq
    %v4290 = vshrl.u32 %v4289, 7
    %v4291 = vsub.s32 0, %v4290
    %v4292 = vrot.slane %v4287, %v4291
    %v4294 = vadd.f32 %v4285, %v4292
    %v4295 = vadd.f32 %v4286, %v4292
    %v4296 = vsub.f32 0.0, %v4294
    %v4297 = vsub.f32 0.0, %v4295
    %v4298 = vmul.f32 %v4296, 1.442695
    %v4299 = vpow.pop %v4298
    %v4300 = vmul.f32 %v4297, 1.442695
    %v4301 = vpow.pop %v4300
    %v4302 = vadd.f32 %v4299, 1.0
    %v4303 = vadd.f32 %v4301, 1.0
    %v4304 = vrcp.pop %v4302
    %v4305 = vrcp.pop %v4303
    %4306 = vst [vmem:[#allocation3] sm:$0x3] 0.0
    %4307 = vst [vmem:[#allocation3 + $0x10] sm:$0x3] 0.0
    %4308 = vst [vmem:[#allocation3 + $0xa] sm:$0x3] 0.0
    %4309 = vst [vmem:[#allocation3 + $0x1a] sm:$0x3] 0.0
    %4310 = vst [vmem:[#allocation3 + $0x2] sm:$0xff] %v4304
    %4311 = vst [vmem:[#allocation3 + $0x12] sm:$0xff] %v4305
    %v4312 = vld [vmem:[#allocation3] sm:$0xff]
    %v4313 = vld [vmem:[#allocation3 + $0x10] sm:$0xff]
    %v4314 = vld [vmem:[#allocation5] sm:$0xff]
    %v4315 = vld [vmem:[#allocation5 + $0x8] sm:$0xff]
    %v4316 = vld [vmem:[#allocation5 + $0x10] sm:$0xff]
    %v4317 = vld [vmem:[#allocation5 + $0x18] sm:$0xff]
    %v4318 = vld [vmem:[#allocation5 + $0x20] sm:$0xff]
    %v4319 = vld [vmem:[#allocation5 + $0x28] sm:$0xff]
    %v4320 = vld [vmem:[#allocation5 + $0x30] sm:$0xff]
    %v4321 = vld [vmem:[#allocation5 + $0x38] sm:$0xff]
    %v4322 = vld [vmem:[#allocation5 + $0x40] sm:$0xff]
    %v4323 = vld [vmem:[#allocation5 + $0x48] sm:$0xff]
    %v4324 = vld [vmem:[#allocation5 + $0x50] sm:$0xff]
    %v4325 = vld [vmem:[#allocation5 + $0x58] sm:$0xff]
    %v4326 = vld [vmem:[#allocation5 + $0x60] sm:$0xff]
    %v4327 = vld [vmem:[#allocation5 + $0x68] sm:$0xff]
    %v4328 = vld [vmem:[#allocation5 + $0x70] sm:$0xff]
    %v4329 = vld [vmem:[#allocation5 + $0x78] sm:$0xff]
    %v4330 = vld [vmem:[#allocation3 + $0x1] sm:$0xff]
    %v4331 = vld [vmem:[#allocation3 + $0x11] sm:$0xff]
    %s4332 = scalar_lea.vmem [#allocation5], 128
    %v4333 = vld [vmem:[%s4332] sm:$0xff]
    %v4334 = vld [vmem:[%s4332 + $0x8] sm:$0xff]
    %v4335 = vld [vmem:[%s4332 + $0x10] sm:$0xff]
    %v4336 = vld [vmem:[%s4332 + $0x18] sm:$0xff]
    %v4337 = vld [vmem:[%s4332 + $0x20] sm:$0xff]
    %v4338 = vld [vmem:[%s4332 + $0x28] sm:$0xff]
    %v4339 = vld [vmem:[%s4332 + $0x30] sm:$0xff]
    %v4340 = vld [vmem:[%s4332 + $0x38] sm:$0xff]
    %v4341 = vld [vmem:[%s4332 + $0x40] sm:$0xff]
    %v4342 = vld [vmem:[%s4332 + $0x48] sm:$0xff]
    %v4343 = vld [vmem:[%s4332 + $0x50] sm:$0xff]
    %v4344 = vld [vmem:[%s4332 + $0x58] sm:$0xff]
    %v4345 = vld [vmem:[%s4332 + $0x60] sm:$0xff]
    %v4346 = vld [vmem:[%s4332 + $0x68] sm:$0xff]
    %v4347 = vld [vmem:[%s4332 + $0x70] sm:$0xff]
    %v4348 = vld [vmem:[%s4332 + $0x78] sm:$0xff]
    %4349 = vmatprep.subr.mxu0 0.0
    %4350 = vmatpush1.msra.mxu0 %v4333
    %4351 = vmatprep.subr.mxu0 0.0
    %4352 = vmatpush1.msra.mxu0 %v4334
    %4353 = vmatprep.subr.mxu0 0.0
    %4354 = vmatpush1.msra.mxu0 %v4335
    %4355 = vmatprep.subr.mxu0 0.0
    %4356 = vmatpush1.msra.mxu0 %v4336
    %4357 = vmatprep.subr.mxu0 0.0
    %4358 = vmatpush1.msra.mxu0 %v4337
    %4359 = vmatprep.subr.mxu0 0.0
    %4360 = vmatpush1.msra.mxu0 %v4338
    %4361 = vmatprep.subr.mxu0 0.0
    %4362 = vmatpush1.msra.mxu0 %v4339
    %4363 = vmatprep.subr.mxu0 0.0
    %4364 = vmatpush1.msra.mxu0 %v4340
    %4365 = vmatprep.subr.mxu0 0.0
    %4366 = vmatpush1.msra.mxu0 %v4341
    %4367 = vmatprep.subr.mxu0 0.0
    %4368 = vmatpush1.msra.mxu0 %v4342
    %4369 = vmatprep.subr.mxu0 0.0
    %4370 = vmatpush1.msra.mxu0 %v4343
    %4371 = vmatprep.subr.mxu0 0.0
    %4372 = vmatpush1.msra.mxu0 %v4344
    %4373 = vmatprep.subr.mxu0 0.0
    %4374 = vmatpush1.msra.mxu0 %v4345
    %4375 = vmatprep.subr.mxu0 0.0
    %4376 = vmatpush1.msra.mxu0 %v4346
    %4377 = vmatprep.subr.mxu0 0.0
    %4378 = vmatpush1.msra.mxu0 %v4347
    %4379 = vmatprep.subr.mxu0 0.0
    %4380 = vmatpush1.msra.mxu0 %v4348
    %4381 = vmatprep.subr.mxu0 0.0
    %4382 = vmatpush1.msra.mxu0 0.0
    %4383 = vmatprep.subr.mxu0 0.0
    %4384 = vmatpush1.msra.mxu0 0.0
    %4385 = vmatprep.subr.mxu0 0.0
    %4386 = vmatpush1.msra.mxu0 0.0
    %4387 = vmatprep.subr.mxu0 0.0
    %4388 = vmatpush1.msra.mxu0 0.0
    %4389 = vmatprep.subr.mxu0 0.0
    %4390 = vmatpush1.msra.mxu0 0.0
    %4391 = vmatprep.subr.mxu0 0.0
    %4392 = vmatpush1.msra.mxu0 0.0
    %4393 = vmatprep.subr.mxu0 0.0
    %4394 = vmatpush1.msra.mxu0 0.0
    %4395 = vmatprep.subr.mxu0 0.0
    %4396 = vmatpush1.msra.mxu0 0.0
    %4397 = vmatprep.subr.mxu0 0.0
    %4398 = vmatpush1.msra.mxu0 0.0
    %4399 = vmatprep.subr.mxu0 0.0
    %4400 = vmatpush1.msra.mxu0 0.0
    %4401 = vmatprep.subr.mxu0 0.0
    %4402 = vmatpush1.msra.mxu0 0.0
    %4403 = vmatprep.subr.mxu0 0.0
    %4404 = vmatpush1.msra.mxu0 0.0
    %4405 = vmatprep.subr.mxu0 0.0
    %4406 = vmatpush1.msra.mxu0 0.0
    %4407 = vmatprep.subr.mxu0 0.0
    %4408 = vmatpush1.msra.mxu0 0.0
    %4409 = vmatprep.subr.mxu0 0.0
    %4410 = vmatpush1.msra.mxu0 0.0
    %4411 = vmatprep.subr.mxu0 0.0
    %4412 = vmatpush1.msra.mxu0 0.0
    %4413 = vmatprep.mubr.f32.mxu0 0.0
    %4414 = vmatmul.mubr.f32.gmra.mrb[0].mxu0 %v4330
    %v4415 = vpop.f32.mrb[0].mxu0
    %v4416 = vadd.f32 0.0, %v4415
    %v4417 = vpop.f32.mrb[0].mxu0
    %4418 = vmatprep.mubr.f32.mxu0 0.0
    %4419 = vmatmul.mubr.f32.gmra.mrb[0].mxu0 %v4331
    %v4420 = vpop.f32.mrb[0].mxu0
    %v4421 = vadd.f32 0.0, %v4420
    %v4422 = vpop.f32.mrb[0].mxu0
    %4423 = vdwg.mxu0
    %4424 = vmatprep.subr.mxu0 0.0
    %4425 = vmatpush1.msra.mxu0 %v4314
    %4426 = vmatprep.subr.mxu0 0.0
    %4427 = vmatpush1.msra.mxu0 %v4315
    %4428 = vmatprep.subr.mxu0 0.0
    %4429 = vmatpush1.msra.mxu0 %v4316
    %4430 = vmatprep.subr.mxu0 0.0
    %4431 = vmatpush1.msra.mxu0 %v4317
    %4432 = vmatprep.subr.mxu0 0.0
    %4433 = vmatpush1.msra.mxu0 %v4318
    %4434 = vmatprep.subr.mxu0 0.0
    %4435 = vmatpush1.msra.mxu0 %v4319
    %4436 = vmatprep.subr.mxu0 0.0
    %4437 = vmatpush1.msra.mxu0 %v4320
    %4438 = vmatprep.subr.mxu0 0.0
    %4439 = vmatpush1.msra.mxu0 %v4321
    %4440 = vmatprep.subr.mxu0 0.0
    %4441 = vmatpush1.msra.mxu0 %v4322
    %4442 = vmatprep.subr.mxu0 0.0
    %4443 = vmatpush1.msra.mxu0 %v4323
    %4444 = vmatprep.subr.mxu0 0.0
    %4445 = vmatpush1.msra.mxu0 %v4324
    %4446 = vmatprep.subr.mxu0 0.0
    %4447 = vmatpush1.msra.mxu0 %v4325
    %4448 = vmatprep.subr.mxu0 0.0
    %4449 = vmatpush1.msra.mxu0 %v4326
    %4450 = vmatprep.subr.mxu0 0.0
    %4451 = vmatpush1.msra.mxu0 %v4327
    %4452 = vmatprep.subr.mxu0 0.0
    %4453 = vmatpush1.msra.mxu0 %v4328
    %4454 = vmatprep.subr.mxu0 0.0
    %4455 = vmatpush1.msra.mxu0 %v4329
    %4456 = vmatprep.subr.mxu0 0.0
    %4457 = vmatpush1.msra.mxu0 0.0
    %4458 = vmatprep.subr.mxu0 0.0
    %4459 = vmatpush1.msra.mxu0 0.0
    %4460 = vmatprep.subr.mxu0 0.0
    %4461 = vmatpush1.msra.mxu0 0.0
    %4462 = vmatprep.subr.mxu0 0.0
    %4463 = vmatpush1.msra.mxu0 0.0
    %4464 = vmatprep.subr.mxu0 0.0
    %4465 = vmatpush1.msra.mxu0 0.0
    %4466 = vmatprep.subr.mxu0 0.0
    %4467 = vmatpush1.msra.mxu0 0.0
    %4468 = vmatprep.subr.mxu0 0.0
    %4469 = vmatpush1.msra.mxu0 0.0
    %4470 = vmatprep.subr.mxu0 0.0
    %4471 = vmatpush1.msra.mxu0 0.0
    %4472 = vmatprep.subr.mxu0 0.0
    %4473 = vmatpush1.msra.mxu0 0.0
    %4474 = vmatprep.subr.mxu0 0.0
    %4475 = vmatpush1.msra.mxu0 0.0
    %4476 = vmatprep.subr.mxu0 0.0
    %4477 = vmatpush1.msra.mxu0 0.0
    %4478 = vmatprep.subr.mxu0 0.0
    %4479 = vmatpush1.msra.mxu0 0.0
    %4480 = vmatprep.subr.mxu0 0.0
    %4481 = vmatpush1.msra.mxu0 0.0
    %4482 = vmatprep.subr.mxu0 0.0
    %4483 = vmatpush1.msra.mxu0 0.0
    %4484 = vmatprep.subr.mxu0 0.0
    %4485 = vmatpush1.msra.mxu0 0.0
    %4486 = vmatprep.subr.mxu0 0.0
    %4487 = vmatpush1.msra.mxu0 0.0
    %4488 = vmatprep.mubr.f32.mxu0 0.0
    %4489 = vmatmul.mubr.f32.gmra.mrb[0].mxu0 %v4312
    %v4490 = vpop.f32.mrb[0].mxu0
    %v4491 = vadd.f32 %v4416, %v4490
    %v4492 = vpop.f32.mrb[0].mxu0
    %4493 = vmatprep.mubr.f32.mxu0 0.0
    %4494 = vmatmul.mubr.f32.gmra.mrb[0].mxu0 %v4313
    %v4495 = vpop.f32.mrb[0].mxu0
    %v4496 = vadd.f32 %v4421, %v4495
    %v4497 = vpop.f32.mrb[0].mxu0
    %4498 = vdwg.mxu0
    %v4499 = vld [vmem:[#allocation3 + $0x2] sm:$0xff]
    %v4500 = vld [vmem:[#allocation3 + $0x12] sm:$0xff]
    %s4501 = scalar_lea.vmem [#allocation5], 256
    %v4502 = vld [vmem:[%s4501] sm:$0xff]
    %v4503 = vld [vmem:[%s4501 + $0x8] sm:$0xff]
    %v4504 = vld [vmem:[%s4501 + $0x10] sm:$0xff]
    %v4505 = vld [vmem:[%s4501 + $0x18] sm:$0xff]
    %v4506 = vld [vmem:[%s4501 + $0x20] sm:$0xff]
    %v4507 = vld [vmem:[%s4501 + $0x28] sm:$0xff]
    %v4508 = vld [vmem:[%s4501 + $0x30] sm:$0xff]
    %v4509 = vld [vmem:[%s4501 + $0x38] sm:$0xff]
    %v4510 = vld [vmem:[%s4501 + $0x40] sm:$0xff]
    %v4511 = vld [vmem:[%s4501 + $0x48] sm:$0xff]
    %v4512 = vld [vmem:[%s4501 + $0x50] sm:$0xff]
    %v4513 = vld [vmem:[%s4501 + $0x58] sm:$0xff]
    %v4514 = vld [vmem:[%s4501 + $0x60] sm:$0xff]
    %v4515 = vld [vmem:[%s4501 + $0x68] sm:$0xff]
    %v4516 = vld [vmem:[%s4501 + $0x70] sm:$0xff]
    %v4517 = vld [vmem:[%s4501 + $0x78] sm:$0xff]
    %4518 = vmatprep.subr.mxu0 0.0
    %4519 = vmatpush1.msra.mxu0 %v4502
    %4520 = vmatprep.subr.mxu0 0.0
    %4521 = vmatpush1.msra.mxu0 %v4503
    %4522 = vmatprep.subr.mxu0 0.0
    %4523 = vmatpush1.msra.mxu0 %v4504
    %4524 = vmatprep.subr.mxu0 0.0
    %4525 = vmatpush1.msra.mxu0 %v4505
    %4526 = vmatprep.subr.mxu0 0.0
    %4527 = vmatpush1.msra.mxu0 %v4506
    %4528 = vmatprep.subr.mxu0 0.0
    %4529 = vmatpush1.msra.mxu0 %v4507
    %4530 = vmatprep.subr.mxu0 0.0
    %4531 = vmatpush1.msra.mxu0 %v4508
    %4532 = vmatprep.subr.mxu0 0.0
    %4533 = vmatpush1.msra.mxu0 %v4509
    %4534 = vmatprep.subr.mxu0 0.0
    %4535 = vmatpush1.msra.mxu0 %v4510
    %4536 = vmatprep.subr.mxu0 0.0
    %4537 = vmatpush1.msra.mxu0 %v4511
    %4538 = vmatprep.subr.mxu0 0.0
    %4539 = vmatpush1.msra.mxu0 %v4512
    %4540 = vmatprep.subr.mxu0 0.0
    %4541 = vmatpush1.msra.mxu0 %v4513
    %4542 = vmatprep.subr.mxu0 0.0
    %4543 = vmatpush1.msra.mxu0 %v4514
    %4544 = vmatprep.subr.mxu0 0.0
    %4545 = vmatpush1.msra.mxu0 %v4515
    %4546 = vmatprep.subr.mxu0 0.0
    %4547 = vmatpush1.msra.mxu0 %v4516
    %4548 = vmatprep.subr.mxu0 0.0
    %4549 = vmatpush1.msra.mxu0 %v4517
    %4550 = vmatprep.subr.mxu0 0.0
    %4551 = vmatpush1.msra.mxu0 0.0
    %4552 = vmatprep.subr.mxu0 0.0
    %4553 = vmatpush1.msra.mxu0 0.0
    %4554 = vmatprep.subr.mxu0 0.0
    %4555 = vmatpush1.msra.mxu0 0.0
    %4556 = vmatprep.subr.mxu0 0.0
    %4557 = vmatpush1.msra.mxu0 0.0
    %4558 = vmatprep.subr.mxu0 0.0
    %4559 = vmatpush1.msra.mxu0 0.0
    %4560 = vmatprep.subr.mxu0 0.0
    %4561 = vmatpush1.msra.mxu0 0.0
    %4562 = vmatprep.subr.mxu0 0.0
    %4563 = vmatpush1.msra.mxu0 0.0
    %4564 = vmatprep.subr.mxu0 0.0
    %4565 = vmatpush1.msra.mxu0 0.0
    %4566 = vmatprep.subr.mxu0 0.0
    %4567 = vmatpush1.msra.mxu0 0.0
    %4568 = vmatprep.subr.mxu0 0.0
    %4569 = vmatpush1.msra.mxu0 0.0
    %4570 = vmatprep.subr.mxu0 0.0
    %4571 = vmatpush1.msra.mxu0 0.0
    %4572 = vmatprep.subr.mxu0 0.0
    %4573 = vmatpush1.msra.mxu0 0.0
    %4574 = vmatprep.subr.mxu0 0.0
    %4575 = vmatpush1.msra.mxu0 0.0
    %4576 = vmatprep.subr.mxu0 0.0
    %4577 = vmatpush1.msra.mxu0 0.0
    %4578 = vmatprep.subr.mxu0 0.0
    %4579 = vmatpush1.msra.mxu0 0.0
    %4580 = vmatprep.subr.mxu0 0.0
    %4581 = vmatpush1.msra.mxu0 0.0
    %4582 = vmatprep.mubr.f32.mxu0 0.0
    %4583 = vmatmul.mubr.f32.gmra.mrb[0].mxu0 %v4499
    %v4584 = vpop.f32.mrb[0].mxu0
    %v4585 = vadd.f32 0.0, %v4584
    %v4586 = vpop.f32.mrb[0].mxu0
    %4587 = vmatprep.mubr.f32.mxu0 0.0
    %4588 = vmatmul.mubr.f32.gmra.mrb[0].mxu0 %v4500
    %v4589 = vpop.f32.mrb[0].mxu0
    %v4590 = vadd.f32 0.0, %v4589
    %v4591 = vpop.f32.mrb[0].mxu0
    %4592 = vdwg.mxu0
    %v4593 = vadd.f32 %v4491, %v4585
    %v4594 = vadd.f32 %v4496, %v4590
    %v4595 = vld [vmem:[#allocation3 + $0x3] sm:$0xff]
    %v4596 = vld [vmem:[#allocation3 + $0x13] sm:$0xff]
    %s4597 = scalar_lea.vmem [#allocation5], 384
    %v4598 = vld [vmem:[%s4597] sm:$0xff]
    %v4599 = vld [vmem:[%s4597 + $0x8] sm:$0xff]
    %v4600 = vld [vmem:[%s4597 + $0x10] sm:$0xff]
    %v4601 = vld [vmem:[%s4597 + $0x18] sm:$0xff]
    %v4602 = vld [vmem:[%s4597 + $0x20] sm:$0xff]
    %v4603 = vld [vmem:[%s4597 + $0x28] sm:$0xff]
    %v4604 = vld [vmem:[%s4597 + $0x30] sm:$0xff]
    %v4605 = vld [vmem:[%s4597 + $0x38] sm:$0xff]
    %v4606 = vld [vmem:[%s4597 + $0x40] sm:$0xff]
    %v4607 = vld [vmem:[%s4597 + $0x48] sm:$0xff]
    %v4608 = vld [vmem:[%s4597 + $0x50] sm:$0xff]
    %v4609 = vld [vmem:[%s4597 + $0x58] sm:$0xff]
    %v4610 = vld [vmem:[%s4597 + $0x60] sm:$0xff]
    %v4611 = vld [vmem:[%s4597 + $0x68] sm:$0xff]
    %v4612 = vld [vmem:[%s4597 + $0x70] sm:$0xff]
    %v4613 = vld [vmem:[%s4597 + $0x78] sm:$0xff]
    %4614 = vmatprep.subr.mxu0 0.0
    %4615 = vmatpush1.msra.mxu0 %v4598
    %4616 = vmatprep.subr.mxu0 0.0
    %4617 = vmatpush1.msra.mxu0 %v4599
    %4618 = vmatprep.subr.mxu0 0.0
    %4619 = vmatpush1.msra.mxu0 %v4600
    %4620 = vmatprep.subr.mxu0 0.0
    %4621 = vmatpush1.msra.mxu0 %v4601
    %4622 = vmatprep.subr.mxu0 0.0
    %4623 = vmatpush1.msra.mxu0 %v4602
    %4624 = vmatprep.subr.mxu0 0.0
    %4625 = vmatpush1.msra.mxu0 %v4603
    %4626 = vmatprep.subr.mxu0 0.0
    %4627 = vmatpush1.msra.mxu0 %v4604
    %4628 = vmatprep.subr.mxu0 0.0
    %4629 = vmatpush1.msra.mxu0 %v4605
    %4630 = vmatprep.subr.mxu0 0.0
    %4631 = vmatpush1.msra.mxu0 %v4606
    %4632 = vmatprep.subr.mxu0 0.0
    %4633 = vmatpush1.msra.mxu0 %v4607
    %4634 = vmatprep.subr.mxu0 0.0
    %4635 = vmatpush1.msra.mxu0 %v4608
    %4636 = vmatprep.subr.mxu0 0.0
    %4637 = vmatpush1.msra.mxu0 %v4609
    %4638 = vmatprep.subr.mxu0 0.0
    %4639 = vmatpush1.msra.mxu0 %v4610
    %4640 = vmatprep.subr.mxu0 0.0
    %4641 = vmatpush1.msra.mxu0 %v4611
    %4642 = vmatprep.subr.mxu0 0.0
    %4643 = vmatpush1.msra.mxu0 %v4612
    %4644 = vmatprep.subr.mxu0 0.0
    %4645 = vmatpush1.msra.mxu0 %v4613
    %4646 = vmatprep.subr.mxu0 0.0
    %4647 = vmatpush1.msra.mxu0 0.0
    %4648 = vmatprep.subr.mxu0 0.0
    %4649 = vmatpush1.msra.mxu0 0.0
    %4650 = vmatprep.subr.mxu0 0.0
    %4651 = vmatpush1.msra.mxu0 0.0
    %4652 = vmatprep.subr.mxu0 0.0
    %4653 = vmatpush1.msra.mxu0 0.0
    %4654 = vmatprep.subr.mxu0 0.0
    %4655 = vmatpush1.msra.mxu0 0.0
    %4656 = vmatprep.subr.mxu0 0.0
    %4657 = vmatpush1.msra.mxu0 0.0
    %4658 = vmatprep.subr.mxu0 0.0
    %4659 = vmatpush1.msra.mxu0 0.0
    %4660 = vmatprep.subr.mxu0 0.0
    %4661 = vmatpush1.msra.mxu0 0.0
    %4662 = vmatprep.subr.mxu0 0.0
    %4663 = vmatpush1.msra.mxu0 0.0
    %4664 = vmatprep.subr.mxu0 0.0
    %4665 = vmatpush1.msra.mxu0 0.0
    %4666 = vmatprep.subr.mxu0 0.0
    %4667 = vmatpush1.msra.mxu0 0.0
    %4668 = vmatprep.subr.mxu0 0.0
    %4669 = vmatpush1.msra.mxu0 0.0
    %4670 = vmatprep.subr.mxu0 0.0
    %4671 = vmatpush1.msra.mxu0 0.0
    %4672 = vmatprep.subr.mxu0 0.0
    %4673 = vmatpush1.msra.mxu0 0.0
    %4674 = vmatprep.subr.mxu0 0.0
    %4675 = vmatpush1.msra.mxu0 0.0
    %4676 = vmatprep.subr.mxu0 0.0
    %4677 = vmatpush1.msra.mxu0 0.0
    %4678 = vmatprep.mubr.f32.mxu0 0.0
    %4679 = vmatmul.mubr.f32.gmra.mrb[0].mxu0 %v4595
    %v4680 = vpop.f32.mrb[0].mxu0
    %v4681 = vadd.f32 0.0, %v4680
    %v4682 = vpop.f32.mrb[0].mxu0
    %4683 = vmatprep.mubr.f32.mxu0 0.0
    %4684 = vmatmul.mubr.f32.gmra.mrb[0].mxu0 %v4596
    %v4685 = vpop.f32.mrb[0].mxu0
    %v4686 = vadd.f32 0.0, %v4685
    %v4687 = vpop.f32.mrb[0].mxu0
    %4688 = vdwg.mxu0
    %v4689 = vadd.f32 %v4593, %v4681
    %v4690 = vadd.f32 %v4594, %v4686
    %v4691 = vld [vmem:[#allocation3 + $0x4] sm:$0xff]
    %v4692 = vld [vmem:[#allocation3 + $0x14] sm:$0xff]
    %s4693 = scalar_lea.vmem [#allocation5], 512
    %v4694 = vld [vmem:[%s4693] sm:$0xff]
    %v4695 = vld [vmem:[%s4693 + $0x8] sm:$0xff]
    %v4696 = vld [vmem:[%s4693 + $0x10] sm:$0xff]
    %v4697 = vld [vmem:[%s4693 + $0x18] sm:$0xff]
    %v4698 = vld [vmem:[%s4693 + $0x20] sm:$0xff]
    %v4699 = vld [vmem:[%s4693 + $0x28] sm:$0xff]
    %v4700 = vld [vmem:[%s4693 + $0x30] sm:$0xff]
    %v4701 = vld [vmem:[%s4693 + $0x38] sm:$0xff]
    %v4702 = vld [vmem:[%s4693 + $0x40] sm:$0xff]
    %v4703 = vld [vmem:[%s4693 + $0x48] sm:$0xff]
    %v4704 = vld [vmem:[%s4693 + $0x50] sm:$0xff]
    %v4705 = vld [vmem:[%s4693 + $0x58] sm:$0xff]
    %v4706 = vld [vmem:[%s4693 + $0x60] sm:$0xff]
    %v4707 = vld [vmem:[%s4693 + $0x68] sm:$0xff]
    %v4708 = vld [vmem:[%s4693 + $0x70] sm:$0xff]
    %v4709 = vld [vmem:[%s4693 + $0x78] sm:$0xff]
    %4710 = vmatprep.subr.mxu0 0.0
    %4711 = vmatpush1.msra.mxu0 %v4694
    %4712 = vmatprep.subr.mxu0 0.0
    %4713 = vmatpush1.msra.mxu0 %v4695
    %4714 = vmatprep.subr.mxu0 0.0
    %4715 = vmatpush1.msra.mxu0 %v4696
    %4716 = vmatprep.subr.mxu0 0.0
    %4717 = vmatpush1.msra.mxu0 %v4697
    %4718 = vmatprep.subr.mxu0 0.0
    %4719 = vmatpush1.msra.mxu0 %v4698
    %4720 = vmatprep.subr.mxu0 0.0
    %4721 = vmatpush1.msra.mxu0 %v4699
    %4722 = vmatprep.subr.mxu0 0.0
    %4723 = vmatpush1.msra.mxu0 %v4700
    %4724 = vmatprep.subr.mxu0 0.0
    %4725 = vmatpush1.msra.mxu0 %v4701
    %4726 = vmatprep.subr.mxu0 0.0
    %4727 = vmatpush1.msra.mxu0 %v4702
    %4728 = vmatprep.subr.mxu0 0.0
    %4729 = vmatpush1.msra.mxu0 %v4703
    %4730 = vmatprep.subr.mxu0 0.0
    %4731 = vmatpush1.msra.mxu0 %v4704
    %4732 = vmatprep.subr.mxu0 0.0
    %4733 = vmatpush1.msra.mxu0 %v4705
    %4734 = vmatprep.subr.mxu0 0.0
    %4735 = vmatpush1.msra.mxu0 %v4706
    %4736 = vmatprep.subr.mxu0 0.0
    %4737 = vmatpush1.msra.mxu0 %v4707
    %4738 = vmatprep.subr.mxu0 0.0
    %4739 = vmatpush1.msra.mxu0 %v4708
    %4740 = vmatprep.subr.mxu0 0.0
    %4741 = vmatpush1.msra.mxu0 %v4709
    %4742 = vmatprep.subr.mxu0 0.0
    %4743 = vmatpush1.msra.mxu0 0.0
    %4744 = vmatprep.subr.mxu0 0.0
    %4745 = vmatpush1.msra.mxu0 0.0
    %4746 = vmatprep.subr.mxu0 0.0
    %4747 = vmatpush1.msra.mxu0 0.0
    %4748 = vmatprep.subr.mxu0 0.0
    %4749 = vmatpush1.msra.mxu0 0.0
    %4750 = vmatprep.subr.mxu0 0.0
    %4751 = vmatpush1.msra.mxu0 0.0
    %4752 = vmatprep.subr.mxu0 0.0
    %4753 = vmatpush1.msra.mxu0 0.0
    %4754 = vmatprep.subr.mxu0 0.0
    %4755 = vmatpush1.msra.mxu0 0.0
    %4756 = vmatprep.subr.mxu0 0.0
    %4757 = vmatpush1.msra.mxu0 0.0
    %4758 = vmatprep.subr.mxu0 0.0
    %4759 = vmatpush1.msra.mxu0 0.0
    %4760 = vmatprep.subr.mxu0 0.0
    %4761 = vmatpush1.msra.mxu0 0.0
    %4762 = vmatprep.subr.mxu0 0.0
    %4763 = vmatpush1.msra.mxu0 0.0
    %4764 = vmatprep.subr.mxu0 0.0
    %4765 = vmatpush1.msra.mxu0 0.0
    %4766 = vmatprep.subr.mxu0 0.0
    %4767 = vmatpush1.msra.mxu0 0.0
    %4768 = vmatprep.subr.mxu0 0.0
    %4769 = vmatpush1.msra.mxu0 0.0
    %4770 = vmatprep.subr.mxu0 0.0
    %4771 = vmatpush1.msra.mxu0 0.0
    %4772 = vmatprep.subr.mxu0 0.0
    %4773 = vmatpush1.msra.mxu0 0.0
    %4774 = vmatprep.mubr.f32.mxu0 0.0
    %4775 = vmatmul.mubr.f32.gmra.mrb[0].mxu0 %v4691
    %v4776 = vpop.f32.mrb[0].mxu0
    %v4777 = vadd.f32 0.0, %v4776
    %v4778 = vpop.f32.mrb[0].mxu0
    %4779 = vmatprep.mubr.f32.mxu0 0.0
    %4780 = vmatmul.mubr.f32.gmra.mrb[0].mxu0 %v4692
    %v4781 = vpop.f32.mrb[0].mxu0
    %v4782 = vadd.f32 0.0, %v4781
    %v4783 = vpop.f32.mrb[0].mxu0
    %4784 = vdwg.mxu0
    %v4785 = vadd.f32 %v4689, %v4777
    %v4786 = vadd.f32 %v4690, %v4782
    %v4787 = vld [vmem:[%s6] sm:$0x1]
    %v4789 = vlaneseq
    %v4790 = vshrl.u32 %v4789, 7
    %v4791 = vsub.s32 0, %v4790
    %v4792 = vrot.slane %v4787, %v4791
    %v4794 = vadd.f32 %v4785, %v4792
    %v4795 = vadd.f32 %v4786, %v4792
    %v4796 = vsub.f32 0.0, %v4794
    %v4797 = vsub.f32 0.0, %v4795
    %v4798 = vmul.f32 %v4796, 1.442695
    %v4799 = vpow.pop %v4798
    %v4800 = vmul.f32 %v4797, 1.442695
    %v4801 = vpow.pop %v4800
    %v4802 = vadd.f32 %v4799, 1.0
    %v4803 = vadd.f32 %v4801, 1.0
    %v4804 = vrcp.pop %v4802
    %v4805 = vrcp.pop %v4803
    %4806 = vst [vmem:[#allocation4] sm:$0x3] 0.0
    %4807 = vst [vmem:[#allocation4 + $0x10] sm:$0x3] 0.0
    %4808 = vst [vmem:[#allocation4 + $0xa] sm:$0x3] 0.0
    %4809 = vst [vmem:[#allocation4 + $0x1a] sm:$0x3] 0.0
    %4810 = vst [vmem:[#allocation4 + $0x2] sm:$0xff] %v4804
    %4811 = vst [vmem:[#allocation4 + $0x12] sm:$0xff] %v4805
    %v4812 = vld [vmem:[#allocation4] sm:$0xff]
    %v4813 = vld [vmem:[#allocation4 + $0x10] sm:$0xff]
    %v4814 = vld [vmem:[#allocation8] sm:$0xff]
    %v4815 = vld [vmem:[#allocation8 + $0x8] sm:$0xff]
    %v4816 = vld [vmem:[#allocation8 + $0x10] sm:$0xff]
    %v4817 = vld [vmem:[#allocation8 + $0x18] sm:$0xff]
    %v4818 = vld [vmem:[#allocation8 + $0x20] sm:$0xff]
    %v4819 = vld [vmem:[#allocation8 + $0x28] sm:$0xff]
    %v4820 = vld [vmem:[#allocation8 + $0x30] sm:$0xff]
    %v4821 = vld [vmem:[#allocation8 + $0x38] sm:$0xff]
    %v4822 = vld [vmem:[#allocation8 + $0x40] sm:$0xff]
    %v4823 = vld [vmem:[#allocation8 + $0x48] sm:$0xff]
    %v4824 = vld [vmem:[#allocation8 + $0x50] sm:$0xff]
    %v4825 = vld [vmem:[#allocation8 + $0x58] sm:$0xff]
    %v4826 = vld [vmem:[#allocation8 + $0x60] sm:$0xff]
    %v4827 = vld [vmem:[#allocation8 + $0x68] sm:$0xff]
    %v4828 = vld [vmem:[#allocation8 + $0x70] sm:$0xff]
    %v4829 = vld [vmem:[#allocation8 + $0x78] sm:$0xff]
    %v4830 = vld [vmem:[#allocation4 + $0x1] sm:$0xff]
    %v4831 = vld [vmem:[#allocation4 + $0x11] sm:$0xff]
    %s4832 = scalar_lea.vmem [#allocation8], 128
    %v4833 = vld [vmem:[%s4832] sm:$0xff]
    %v4834 = vld [vmem:[%s4832 + $0x8] sm:$0xff]
    %v4835 = vld [vmem:[%s4832 + $0x10] sm:$0xff]
    %v4836 = vld [vmem:[%s4832 + $0x18] sm:$0xff]
    %v4837 = vld [vmem:[%s4832 + $0x20] sm:$0xff]
    %v4838 = vld [vmem:[%s4832 + $0x28] sm:$0xff]
    %v4839 = vld [vmem:[%s4832 + $0x30] sm:$0xff]
    %v4840 = vld [vmem:[%s4832 + $0x38] sm:$0xff]
    %v4841 = vld [vmem:[%s4832 + $0x40] sm:$0xff]
    %v4842 = vld [vmem:[%s4832 + $0x48] sm:$0xff]
    %v4843 = vld [vmem:[%s4832 + $0x50] sm:$0xff]
    %v4844 = vld [vmem:[%s4832 + $0x58] sm:$0xff]
    %v4845 = vld [vmem:[%s4832 + $0x60] sm:$0xff]
    %v4846 = vld [vmem:[%s4832 + $0x68] sm:$0xff]
    %v4847 = vld [vmem:[%s4832 + $0x70] sm:$0xff]
    %v4848 = vld [vmem:[%s4832 + $0x78] sm:$0xff]
    %4849 = vmatprep.subr.mxu0 0.0
    %4850 = vmatpush1.msra.mxu0 %v4833
    %4851 = vmatprep.subr.mxu0 0.0
    %4852 = vmatpush1.msra.mxu0 %v4834
    %4853 = vmatprep.subr.mxu0 0.0
    %4854 = vmatpush1.msra.mxu0 %v4835
    %4855 = vmatprep.subr.mxu0 0.0
    %4856 = vmatpush1.msra.mxu0 %v4836
    %4857 = vmatprep.subr.mxu0 0.0
    %4858 = vmatpush1.msra.mxu0 %v4837
    %4859 = vmatprep.subr.mxu0 0.0
    %4860 = vmatpush1.msra.mxu0 %v4838
    %4861 = vmatprep.subr.mxu0 0.0
    %4862 = vmatpush1.msra.mxu0 %v4839
    %4863 = vmatprep.subr.mxu0 0.0
    %4864 = vmatpush1.msra.mxu0 %v4840
    %4865 = vmatprep.subr.mxu0 0.0
    %4866 = vmatpush1.msra.mxu0 %v4841
    %4867 = vmatprep.subr.mxu0 0.0
    %4868 = vmatpush1.msra.mxu0 %v4842
    %4869 = vmatprep.subr.mxu0 0.0
    %4870 = vmatpush1.msra.mxu0 %v4843
    %4871 = vmatprep.subr.mxu0 0.0
    %4872 = vmatpush1.msra.mxu0 %v4844
    %4873 = vmatprep.subr.mxu0 0.0
    %4874 = vmatpush1.msra.mxu0 %v4845
    %4875 = vmatprep.subr.mxu0 0.0
    %4876 = vmatpush1.msra.mxu0 %v4846
    %4877 = vmatprep.subr.mxu0 0.0
    %4878 = vmatpush1.msra.mxu0 %v4847
    %4879 = vmatprep.subr.mxu0 0.0
    %4880 = vmatpush1.msra.mxu0 %v4848
    %4881 = vmatprep.subr.mxu0 0.0
    %4882 = vmatpush1.msra.mxu0 0.0
    %4883 = vmatprep.subr.mxu0 0.0
    %4884 = vmatpush1.msra.mxu0 0.0
    %4885 = vmatprep.subr.mxu0 0.0
    %4886 = vmatpush1.msra.mxu0 0.0
    %4887 = vmatprep.subr.mxu0 0.0
    %4888 = vmatpush1.msra.mxu0 0.0
    %4889 = vmatprep.subr.mxu0 0.0
    %4890 = vmatpush1.msra.mxu0 0.0
    %4891 = vmatprep.subr.mxu0 0.0
    %4892 = vmatpush1.msra.mxu0 0.0
    %4893 = vmatprep.subr.mxu0 0.0
    %4894 = vmatpush1.msra.mxu0 0.0
    %4895 = vmatprep.subr.mxu0 0.0
    %4896 = vmatpush1.msra.mxu0 0.0
    %4897 = vmatprep.subr.mxu0 0.0
    %4898 = vmatpush1.msra.mxu0 0.0
    %4899 = vmatprep.subr.mxu0 0.0
    %4900 = vmatpush1.msra.mxu0 0.0
    %4901 = vmatprep.subr.mxu0 0.0
    %4902 = vmatpush1.msra.mxu0 0.0
    %4903 = vmatprep.subr.mxu0 0.0
    %4904 = vmatpush1.msra.mxu0 0.0
    %4905 = vmatprep.subr.mxu0 0.0
    %4906 = vmatpush1.msra.mxu0 0.0
    %4907 = vmatprep.subr.mxu0 0.0
    %4908 = vmatpush1.msra.mxu0 0.0
    %4909 = vmatprep.subr.mxu0 0.0
    %4910 = vmatpush1.msra.mxu0 0.0
    %4911 = vmatprep.subr.mxu0 0.0
    %4912 = vmatpush1.msra.mxu0 0.0
    %4913 = vmatprep.mubr.f32.mxu0 0.0
    %4914 = vmatmul.mubr.f32.gmra.mrb[0].mxu0 %v4830
    %v4915 = vpop.f32.mrb[0].mxu0
    %v4916 = vadd.f32 0.0, %v4915
    %v4917 = vpop.f32.mrb[0].mxu0
    %4918 = vmatprep.mubr.f32.mxu0 0.0
    %4919 = vmatmul.mubr.f32.gmra.mrb[0].mxu0 %v4831
    %v4920 = vpop.f32.mrb[0].mxu0
    %v4921 = vadd.f32 0.0, %v4920
    %v4922 = vpop.f32.mrb[0].mxu0
    %4923 = vdwg.mxu0
    %4924 = vmatprep.subr.mxu0 0.0
    %4925 = vmatpush1.msra.mxu0 %v4814
    %4926 = vmatprep.subr.mxu0 0.0
    %4927 = vmatpush1.msra.mxu0 %v4815
    %4928 = vmatprep.subr.mxu0 0.0
    %4929 = vmatpush1.msra.mxu0 %v4816
    %4930 = vmatprep.subr.mxu0 0.0
    %4931 = vmatpush1.msra.mxu0 %v4817
    %4932 = vmatprep.subr.mxu0 0.0
    %4933 = vmatpush1.msra.mxu0 %v4818
    %4934 = vmatprep.subr.mxu0 0.0
    %4935 = vmatpush1.msra.mxu0 %v4819
    %4936 = vmatprep.subr.mxu0 0.0
    %4937 = vmatpush1.msra.mxu0 %v4820
    %4938 = vmatprep.subr.mxu0 0.0
    %4939 = vmatpush1.msra.mxu0 %v4821
    %4940 = vmatprep.subr.mxu0 0.0
    %4941 = vmatpush1.msra.mxu0 %v4822
    %4942 = vmatprep.subr.mxu0 0.0
    %4943 = vmatpush1.msra.mxu0 %v4823
    %4944 = vmatprep.subr.mxu0 0.0
    %4945 = vmatpush1.msra.mxu0 %v4824
    %4946 = vmatprep.subr.mxu0 0.0
    %4947 = vmatpush1.msra.mxu0 %v4825
    %4948 = vmatprep.subr.mxu0 0.0
    %4949 = vmatpush1.msra.mxu0 %v4826
    %4950 = vmatprep.subr.mxu0 0.0
    %4951 = vmatpush1.msra.mxu0 %v4827
    %4952 = vmatprep.subr.mxu0 0.0
    %4953 = vmatpush1.msra.mxu0 %v4828
    %4954 = vmatprep.subr.mxu0 0.0
    %4955 = vmatpush1.msra.mxu0 %v4829
    %4956 = vmatprep.subr.mxu0 0.0
    %4957 = vmatpush1.msra.mxu0 0.0
    %4958 = vmatprep.subr.mxu0 0.0
    %4959 = vmatpush1.msra.mxu0 0.0
    %4960 = vmatprep.subr.mxu0 0.0
    %4961 = vmatpush1.msra.mxu0 0.0
    %4962 = vmatprep.subr.mxu0 0.0
    %4963 = vmatpush1.msra.mxu0 0.0
    %4964 = vmatprep.subr.mxu0 0.0
    %4965 = vmatpush1.msra.mxu0 0.0
    %4966 = vmatprep.subr.mxu0 0.0
    %4967 = vmatpush1.msra.mxu0 0.0
    %4968 = vmatprep.subr.mxu0 0.0
    %4969 = vmatpush1.msra.mxu0 0.0
    %4970 = vmatprep.subr.mxu0 0.0
    %4971 = vmatpush1.msra.mxu0 0.0
    %4972 = vmatprep.subr.mxu0 0.0
    %4973 = vmatpush1.msra.mxu0 0.0
    %4974 = vmatprep.subr.mxu0 0.0
    %4975 = vmatpush1.msra.mxu0 0.0
    %4976 = vmatprep.subr.mxu0 0.0
    %4977 = vmatpush1.msra.mxu0 0.0
    %4978 = vmatprep.subr.mxu0 0.0
    %4979 = vmatpush1.msra.mxu0 0.0
    %4980 = vmatprep.subr.mxu0 0.0
    %4981 = vmatpush1.msra.mxu0 0.0
    %4982 = vmatprep.subr.mxu0 0.0
    %4983 = vmatpush1.msra.mxu0 0.0
    %4984 = vmatprep.subr.mxu0 0.0
    %4985 = vmatpush1.msra.mxu0 0.0
    %4986 = vmatprep.subr.mxu0 0.0
    %4987 = vmatpush1.msra.mxu0 0.0
    %4988 = vmatprep.mubr.f32.mxu0 0.0
    %4989 = vmatmul.mubr.f32.gmra.mrb[0].mxu0 %v4812
    %v4990 = vpop.f32.mrb[0].mxu0
    %v4991 = vadd.f32 %v4916, %v4990
    %v4992 = vpop.f32.mrb[0].mxu0
    %4993 = vmatprep.mubr.f32.mxu0 0.0
    %4994 = vmatmul.mubr.f32.gmra.mrb[0].mxu0 %v4813
    %v4995 = vpop.f32.mrb[0].mxu0
    %v4996 = vadd.f32 %v4921, %v4995
    %v4997 = vpop.f32.mrb[0].mxu0
    %4998 = vdwg.mxu0
    %v4999 = vld [vmem:[#allocation4 + $0x2] sm:$0xff]
    %v5000 = vld [vmem:[#allocation4 + $0x12] sm:$0xff]
    %s5001 = scalar_lea.vmem [#allocation8], 256
    %v5002 = vld [vmem:[%s5001] sm:$0xff]
    %v5003 = vld [vmem:[%s5001 + $0x8] sm:$0xff]
    %v5004 = vld [vmem:[%s5001 + $0x10] sm:$0xff]
    %v5005 = vld [vmem:[%s5001 + $0x18] sm:$0xff]
    %v5006 = vld [vmem:[%s5001 + $0x20] sm:$0xff]
    %v5007 = vld [vmem:[%s5001 + $0x28] sm:$0xff]
    %v5008 = vld [vmem:[%s5001 + $0x30] sm:$0xff]
    %v5009 = vld [vmem:[%s5001 + $0x38] sm:$0xff]
    %v5010 = vld [vmem:[%s5001 + $0x40] sm:$0xff]
    %v5011 = vld [vmem:[%s5001 + $0x48] sm:$0xff]
    %v5012 = vld [vmem:[%s5001 + $0x50] sm:$0xff]
    %v5013 = vld [vmem:[%s5001 + $0x58] sm:$0xff]
    %v5014 = vld [vmem:[%s5001 + $0x60] sm:$0xff]
    %v5015 = vld [vmem:[%s5001 + $0x68] sm:$0xff]
    %v5016 = vld [vmem:[%s5001 + $0x70] sm:$0xff]
    %v5017 = vld [vmem:[%s5001 + $0x78] sm:$0xff]
    %5018 = vmatprep.subr.mxu0 0.0
    %5019 = vmatpush1.msra.mxu0 %v5002
    %5020 = vmatprep.subr.mxu0 0.0
    %5021 = vmatpush1.msra.mxu0 %v5003
    %5022 = vmatprep.subr.mxu0 0.0
    %5023 = vmatpush1.msra.mxu0 %v5004
    %5024 = vmatprep.subr.mxu0 0.0
    %5025 = vmatpush1.msra.mxu0 %v5005
    %5026 = vmatprep.subr.mxu0 0.0
    %5027 = vmatpush1.msra.mxu0 %v5006
    %5028 = vmatprep.subr.mxu0 0.0
    %5029 = vmatpush1.msra.mxu0 %v5007
    %5030 = vmatprep.subr.mxu0 0.0
    %5031 = vmatpush1.msra.mxu0 %v5008
    %5032 = vmatprep.subr.mxu0 0.0
    %5033 = vmatpush1.msra.mxu0 %v5009
    %5034 = vmatprep.subr.mxu0 0.0
    %5035 = vmatpush1.msra.mxu0 %v5010
    %5036 = vmatprep.subr.mxu0 0.0
    %5037 = vmatpush1.msra.mxu0 %v5011
    %5038 = vmatprep.subr.mxu0 0.0
    %5039 = vmatpush1.msra.mxu0 %v5012
    %5040 = vmatprep.subr.mxu0 0.0
    %5041 = vmatpush1.msra.mxu0 %v5013
    %5042 = vmatprep.subr.mxu0 0.0
    %5043 = vmatpush1.msra.mxu0 %v5014
    %5044 = vmatprep.subr.mxu0 0.0
    %5045 = vmatpush1.msra.mxu0 %v5015
    %5046 = vmatprep.subr.mxu0 0.0
    %5047 = vmatpush1.msra.mxu0 %v5016
    %5048 = vmatprep.subr.mxu0 0.0
    %5049 = vmatpush1.msra.mxu0 %v5017
    %5050 = vmatprep.subr.mxu0 0.0
    %5051 = vmatpush1.msra.mxu0 0.0
    %5052 = vmatprep.subr.mxu0 0.0
    %5053 = vmatpush1.msra.mxu0 0.0
    %5054 = vmatprep.subr.mxu0 0.0
    %5055 = vmatpush1.msra.mxu0 0.0
    %5056 = vmatprep.subr.mxu0 0.0
    %5057 = vmatpush1.msra.mxu0 0.0
    %5058 = vmatprep.subr.mxu0 0.0
    %5059 = vmatpush1.msra.mxu0 0.0
    %5060 = vmatprep.subr.mxu0 0.0
    %5061 = vmatpush1.msra.mxu0 0.0
    %5062 = vmatprep.subr.mxu0 0.0
    %5063 = vmatpush1.msra.mxu0 0.0
    %5064 = vmatprep.subr.mxu0 0.0
    %5065 = vmatpush1.msra.mxu0 0.0
    %5066 = vmatprep.subr.mxu0 0.0
    %5067 = vmatpush1.msra.mxu0 0.0
    %5068 = vmatprep.subr.mxu0 0.0
    %5069 = vmatpush1.msra.mxu0 0.0
    %5070 = vmatprep.subr.mxu0 0.0
    %5071 = vmatpush1.msra.mxu0 0.0
    %5072 = vmatprep.subr.mxu0 0.0
    %5073 = vmatpush1.msra.mxu0 0.0
    %5074 = vmatprep.subr.mxu0 0.0
    %5075 = vmatpush1.msra.mxu0 0.0
    %5076 = vmatprep.subr.mxu0 0.0
    %5077 = vmatpush1.msra.mxu0 0.0
    %5078 = vmatprep.subr.mxu0 0.0
    %5079 = vmatpush1.msra.mxu0 0.0
    %5080 = vmatprep.subr.mxu0 0.0
    %5081 = vmatpush1.msra.mxu0 0.0
    %5082 = vmatprep.mubr.f32.mxu0 0.0
    %5083 = vmatmul.mubr.f32.gmra.mrb[0].mxu0 %v4999
    %v5084 = vpop.f32.mrb[0].mxu0
    %v5085 = vadd.f32 0.0, %v5084
    %v5086 = vpop.f32.mrb[0].mxu0
    %5087 = vmatprep.mubr.f32.mxu0 0.0
    %5088 = vmatmul.mubr.f32.gmra.mrb[0].mxu0 %v5000
    %v5089 = vpop.f32.mrb[0].mxu0
    %v5090 = vadd.f32 0.0, %v5089
    %v5091 = vpop.f32.mrb[0].mxu0
    %5092 = vdwg.mxu0
    %v5093 = vadd.f32 %v4991, %v5085
    %v5094 = vadd.f32 %v4996, %v5090
    %v5095 = vld [vmem:[#allocation4 + $0x3] sm:$0xff]
    %v5096 = vld [vmem:[#allocation4 + $0x13] sm:$0xff]
    %s5097 = scalar_lea.vmem [#allocation8], 384
    %v5098 = vld [vmem:[%s5097] sm:$0xff]
    %v5099 = vld [vmem:[%s5097 + $0x8] sm:$0xff]
    %v5100 = vld [vmem:[%s5097 + $0x10] sm:$0xff]
    %v5101 = vld [vmem:[%s5097 + $0x18] sm:$0xff]
    %v5102 = vld [vmem:[%s5097 + $0x20] sm:$0xff]
    %v5103 = vld [vmem:[%s5097 + $0x28] sm:$0xff]
    %v5104 = vld [vmem:[%s5097 + $0x30] sm:$0xff]
    %v5105 = vld [vmem:[%s5097 + $0x38] sm:$0xff]
    %v5106 = vld [vmem:[%s5097 + $0x40] sm:$0xff]
    %v5107 = vld [vmem:[%s5097 + $0x48] sm:$0xff]
    %v5108 = vld [vmem:[%s5097 + $0x50] sm:$0xff]
    %v5109 = vld [vmem:[%s5097 + $0x58] sm:$0xff]
    %v5110 = vld [vmem:[%s5097 + $0x60] sm:$0xff]
    %v5111 = vld [vmem:[%s5097 + $0x68] sm:$0xff]
    %v5112 = vld [vmem:[%s5097 + $0x70] sm:$0xff]
    %v5113 = vld [vmem:[%s5097 + $0x78] sm:$0xff]
    %5114 = vmatprep.subr.mxu0 0.0
    %5115 = vmatpush1.msra.mxu0 %v5098
    %5116 = vmatprep.subr.mxu0 0.0
    %5117 = vmatpush1.msra.mxu0 %v5099
    %5118 = vmatprep.subr.mxu0 0.0
    %5119 = vmatpush1.msra.mxu0 %v5100
    %5120 = vmatprep.subr.mxu0 0.0
    %5121 = vmatpush1.msra.mxu0 %v5101
    %5122 = vmatprep.subr.mxu0 0.0
    %5123 = vmatpush1.msra.mxu0 %v5102
    %5124 = vmatprep.subr.mxu0 0.0
    %5125 = vmatpush1.msra.mxu0 %v5103
    %5126 = vmatprep.subr.mxu0 0.0
    %5127 = vmatpush1.msra.mxu0 %v5104
    %5128 = vmatprep.subr.mxu0 0.0
    %5129 = vmatpush1.msra.mxu0 %v5105
    %5130 = vmatprep.subr.mxu0 0.0
    %5131 = vmatpush1.msra.mxu0 %v5106
    %5132 = vmatprep.subr.mxu0 0.0
    %5133 = vmatpush1.msra.mxu0 %v5107
    %5134 = vmatprep.subr.mxu0 0.0
    %5135 = vmatpush1.msra.mxu0 %v5108
    %5136 = vmatprep.subr.mxu0 0.0
    %5137 = vmatpush1.msra.mxu0 %v5109
    %5138 = vmatprep.subr.mxu0 0.0
    %5139 = vmatpush1.msra.mxu0 %v5110
    %5140 = vmatprep.subr.mxu0 0.0
    %5141 = vmatpush1.msra.mxu0 %v5111
    %5142 = vmatprep.subr.mxu0 0.0
    %5143 = vmatpush1.msra.mxu0 %v5112
    %5144 = vmatprep.subr.mxu0 0.0
    %5145 = vmatpush1.msra.mxu0 %v5113
    %5146 = vmatprep.subr.mxu0 0.0
    %5147 = vmatpush1.msra.mxu0 0.0
    %5148 = vmatprep.subr.mxu0 0.0
    %5149 = vmatpush1.msra.mxu0 0.0
    %5150 = vmatprep.subr.mxu0 0.0
    %5151 = vmatpush1.msra.mxu0 0.0
    %5152 = vmatprep.subr.mxu0 0.0
    %5153 = vmatpush1.msra.mxu0 0.0
    %5154 = vmatprep.subr.mxu0 0.0
    %5155 = vmatpush1.msra.mxu0 0.0
    %5156 = vmatprep.subr.mxu0 0.0
    %5157 = vmatpush1.msra.mxu0 0.0
    %5158 = vmatprep.subr.mxu0 0.0
    %5159 = vmatpush1.msra.mxu0 0.0
    %5160 = vmatprep.subr.mxu0 0.0
    %5161 = vmatpush1.msra.mxu0 0.0
    %5162 = vmatprep.subr.mxu0 0.0
    %5163 = vmatpush1.msra.mxu0 0.0
    %5164 = vmatprep.subr.mxu0 0.0
    %5165 = vmatpush1.msra.mxu0 0.0
    %5166 = vmatprep.subr.mxu0 0.0
    %5167 = vmatpush1.msra.mxu0 0.0
    %5168 = vmatprep.subr.mxu0 0.0
    %5169 = vmatpush1.msra.mxu0 0.0
    %5170 = vmatprep.subr.mxu0 0.0
    %5171 = vmatpush1.msra.mxu0 0.0
    %5172 = vmatprep.subr.mxu0 0.0
    %5173 = vmatpush1.msra.mxu0 0.0
    %5174 = vmatprep.subr.mxu0 0.0
    %5175 = vmatpush1.msra.mxu0 0.0
    %5176 = vmatprep.subr.mxu0 0.0
    %5177 = vmatpush1.msra.mxu0 0.0
    %5178 = vmatprep.mubr.f32.mxu0 0.0
    %5179 = vmatmul.mubr.f32.gmra.mrb[0].mxu0 %v5095
    %v5180 = vpop.f32.mrb[0].mxu0
    %v5181 = vadd.f32 0.0, %v5180
    %v5182 = vpop.f32.mrb[0].mxu0
    %5183 = vmatprep.mubr.f32.mxu0 0.0
    %5184 = vmatmul.mubr.f32.gmra.mrb[0].mxu0 %v5096
    %v5185 = vpop.f32.mrb[0].mxu0
    %v5186 = vadd.f32 0.0, %v5185
    %v5187 = vpop.f32.mrb[0].mxu0
    %5188 = vdwg.mxu0
    %v5189 = vadd.f32 %v5093, %v5181
    %v5190 = vadd.f32 %v5094, %v5186
    %v5191 = vld [vmem:[#allocation4 + $0x4] sm:$0xff]
    %v5192 = vld [vmem:[#allocation4 + $0x14] sm:$0xff]
    %s5193 = scalar_lea.vmem [#allocation8], 512
    %v5194 = vld [vmem:[%s5193] sm:$0xff]
    %v5195 = vld [vmem:[%s5193 + $0x8] sm:$0xff]
    %v5196 = vld [vmem:[%s5193 + $0x10] sm:$0xff]
    %v5197 = vld [vmem:[%s5193 + $0x18] sm:$0xff]
    %v5198 = vld [vmem:[%s5193 + $0x20] sm:$0xff]
    %v5199 = vld [vmem:[%s5193 + $0x28] sm:$0xff]
    %v5200 = vld [vmem:[%s5193 + $0x30] sm:$0xff]
    %v5201 = vld [vmem:[%s5193 + $0x38] sm:$0xff]
    %v5202 = vld [vmem:[%s5193 + $0x40] sm:$0xff]
    %v5203 = vld [vmem:[%s5193 + $0x48] sm:$0xff]
    %v5204 = vld [vmem:[%s5193 + $0x50] sm:$0xff]
    %v5205 = vld [vmem:[%s5193 + $0x58] sm:$0xff]
    %v5206 = vld [vmem:[%s5193 + $0x60] sm:$0xff]
    %v5207 = vld [vmem:[%s5193 + $0x68] sm:$0xff]
    %v5208 = vld [vmem:[%s5193 + $0x70] sm:$0xff]
    %v5209 = vld [vmem:[%s5193 + $0x78] sm:$0xff]
    %5210 = vmatprep.subr.mxu0 0.0
    %5211 = vmatpush1.msra.mxu0 %v5194
    %5212 = vmatprep.subr.mxu0 0.0
    %5213 = vmatpush1.msra.mxu0 %v5195
    %5214 = vmatprep.subr.mxu0 0.0
    %5215 = vmatpush1.msra.mxu0 %v5196
    %5216 = vmatprep.subr.mxu0 0.0
    %5217 = vmatpush1.msra.mxu0 %v5197
    %5218 = vmatprep.subr.mxu0 0.0
    %5219 = vmatpush1.msra.mxu0 %v5198
    %5220 = vmatprep.subr.mxu0 0.0
    %5221 = vmatpush1.msra.mxu0 %v5199
    %5222 = vmatprep.subr.mxu0 0.0
    %5223 = vmatpush1.msra.mxu0 %v5200
    %5224 = vmatprep.subr.mxu0 0.0
    %5225 = vmatpush1.msra.mxu0 %v5201
    %5226 = vmatprep.subr.mxu0 0.0
    %5227 = vmatpush1.msra.mxu0 %v5202
    %5228 = vmatprep.subr.mxu0 0.0
    %5229 = vmatpush1.msra.mxu0 %v5203
    %5230 = vmatprep.subr.mxu0 0.0
    %5231 = vmatpush1.msra.mxu0 %v5204
    %5232 = vmatprep.subr.mxu0 0.0
    %5233 = vmatpush1.msra.mxu0 %v5205
    %5234 = vmatprep.subr.mxu0 0.0
    %5235 = vmatpush1.msra.mxu0 %v5206
    %5236 = vmatprep.subr.mxu0 0.0
    %5237 = vmatpush1.msra.mxu0 %v5207
    %5238 = vmatprep.subr.mxu0 0.0
    %5239 = vmatpush1.msra.mxu0 %v5208
    %5240 = vmatprep.subr.mxu0 0.0
    %5241 = vmatpush1.msra.mxu0 %v5209
    %5242 = vmatprep.subr.mxu0 0.0
    %5243 = vmatpush1.msra.mxu0 0.0
    %5244 = vmatprep.subr.mxu0 0.0
    %5245 = vmatpush1.msra.mxu0 0.0
    %5246 = vmatprep.subr.mxu0 0.0
    %5247 = vmatpush1.msra.mxu0 0.0
    %5248 = vmatprep.subr.mxu0 0.0
    %5249 = vmatpush1.msra.mxu0 0.0
    %5250 = vmatprep.subr.mxu0 0.0
    %5251 = vmatpush1.msra.mxu0 0.0
    %5252 = vmatprep.subr.mxu0 0.0
    %5253 = vmatpush1.msra.mxu0 0.0
    %5254 = vmatprep.subr.mxu0 0.0
    %5255 = vmatpush1.msra.mxu0 0.0
    %5256 = vmatprep.subr.mxu0 0.0
    %5257 = vmatpush1.msra.mxu0 0.0
    %5258 = vmatprep.subr.mxu0 0.0
    %5259 = vmatpush1.msra.mxu0 0.0
    %5260 = vmatprep.subr.mxu0 0.0
    %5261 = vmatpush1.msra.mxu0 0.0
    %5262 = vmatprep.subr.mxu0 0.0
    %5263 = vmatpush1.msra.mxu0 0.0
    %5264 = vmatprep.subr.mxu0 0.0
    %5265 = vmatpush1.msra.mxu0 0.0
    %5266 = vmatprep.subr.mxu0 0.0
    %5267 = vmatpush1.msra.mxu0 0.0
    %5268 = vmatprep.subr.mxu0 0.0
    %5269 = vmatpush1.msra.mxu0 0.0
    %5270 = vmatprep.subr.mxu0 0.0
    %5271 = vmatpush1.msra.mxu0 0.0
    %5272 = vmatprep.subr.mxu0 0.0
    %5273 = vmatpush1.msra.mxu0 0.0
    %5274 = vmatprep.mubr.f32.mxu0 0.0
    %5275 = vmatmul.mubr.f32.gmra.mrb[0].mxu0 %v5191
    %v5276 = vpop.f32.mrb[0].mxu0
    %v5277 = vadd.f32 0.0, %v5276
    %v5278 = vpop.f32.mrb[0].mxu0
    %5279 = vmatprep.mubr.f32.mxu0 0.0
    %5280 = vmatmul.mubr.f32.gmra.mrb[0].mxu0 %v5192
    %v5281 = vpop.f32.mrb[0].mxu0
    %v5282 = vadd.f32 0.0, %v5281
    %v5283 = vpop.f32.mrb[0].mxu0
    %5284 = vdwg.mxu0
    %v5285 = vadd.f32 %v5189, %v5277
    %v5286 = vadd.f32 %v5190, %v5282
    %v5287 = vld [vmem:[%s8] sm:$0x1]
    %v5289 = vlaneseq
    %v5290 = vshrl.u32 %v5289, 7
    %v5291 = vsub.s32 0, %v5290
    %v5292 = vrot.slane %v5287, %v5291
    %v5294 = vadd.f32 %v5285, %v5292
    %v5295 = vadd.f32 %v5286, %v5292
    %v5296 = vsub.f32 0.0, %v5294
    %v5297 = vsub.f32 0.0, %v5295
    %v5298 = vmul.f32 %v5296, 1.442695
    %v5299 = vpow.pop %v5298
    %v5300 = vmul.f32 %v5297, 1.442695
    %v5301 = vpow.pop %v5300
    %v5302 = vadd.f32 %v5299, 1.0
    %v5303 = vadd.f32 %v5301, 1.0
    %v5304 = vrcp.pop %v5302
    %v5305 = vrcp.pop %v5303
    %v5306 = vld [vmem:[%s9] sm:$0xff]
    %v5307 = vld [vmem:[%s9 + $0x8] sm:$0xff]
    %v5308 = vld [vmem:[%s9 + $0x10] sm:$0xff]
    %v5309 = vld [vmem:[%s9 + $0x18] sm:$0xff]
    %v5310 = vld [vmem:[%s9 + $0x20] sm:$0xff]
    %v5311 = vld [vmem:[%s9 + $0x28] sm:$0xff]
    %v5312 = vld [vmem:[%s9 + $0x30] sm:$0xff]
    %v5313 = vld [vmem:[%s9 + $0x38] sm:$0xff]
    %v5314 = vld [vmem:[%s9 + $0x40] sm:$0xff]
    %v5315 = vld [vmem:[%s9 + $0x48] sm:$0xff]
    %v5316 = vld [vmem:[%s9 + $0x50] sm:$0xff]
    %v5317 = vld [vmem:[%s9 + $0x58] sm:$0xff]
    %v5318 = vld [vmem:[%s9 + $0x60] sm:$0xff]
    %v5319 = vld [vmem:[%s9 + $0x68] sm:$0xff]
    %v5320 = vld [vmem:[%s9 + $0x70] sm:$0xff]
    %v5321 = vld [vmem:[%s9 + $0x78] sm:$0xff]
    %s5322 = scalar_lea.vmem %s9, 128
    %v5323 = vld [vmem:[%s5322] sm:$0xff]
    %v5324 = vld [vmem:[%s5322 + $0x8] sm:$0xff]
    %v5325 = vld [vmem:[%s5322 + $0x10] sm:$0xff]
    %v5326 = vld [vmem:[%s5322 + $0x18] sm:$0xff]
    %v5327 = vld [vmem:[%s5322 + $0x20] sm:$0xff]
    %v5328 = vld [vmem:[%s5322 + $0x28] sm:$0xff]
    %v5329 = vld [vmem:[%s5322 + $0x30] sm:$0xff]
    %v5330 = vld [vmem:[%s5322 + $0x38] sm:$0xff]
    %v5331 = vld [vmem:[%s5322 + $0x40] sm:$0xff]
    %v5332 = vld [vmem:[%s5322 + $0x48] sm:$0xff]
    %v5333 = vld [vmem:[%s5322 + $0x50] sm:$0xff]
    %v5334 = vld [vmem:[%s5322 + $0x58] sm:$0xff]
    %v5335 = vld [vmem:[%s5322 + $0x60] sm:$0xff]
    %v5336 = vld [vmem:[%s5322 + $0x68] sm:$0xff]
    %v5337 = vld [vmem:[%s5322 + $0x70] sm:$0xff]
    %v5338 = vld [vmem:[%s5322 + $0x78] sm:$0xff]
    %v5341 = vrot.slane %v5304, 1
    %v5342 = vsel %vm570, %v5305, %v5341
    %5344 = vmatprep.subr.mxu0 0.0
    %5345 = vmatpush1.msra.mxu0 %v5323
    %5346 = vmatprep.subr.mxu0 0.0
    %5347 = vmatpush1.msra.mxu0 %v5324
    %5348 = vmatprep.subr.mxu0 0.0
    %5349 = vmatpush1.msra.mxu0 %v5325
    %5350 = vmatprep.subr.mxu0 0.0
    %5351 = vmatpush1.msra.mxu0 %v5326
    %5352 = vmatprep.subr.mxu0 0.0
    %5353 = vmatpush1.msra.mxu0 %v5327
    %5354 = vmatprep.subr.mxu0 0.0
    %5355 = vmatpush1.msra.mxu0 %v5328
    %5356 = vmatprep.subr.mxu0 0.0
    %5357 = vmatpush1.msra.mxu0 %v5329
    %5358 = vmatprep.subr.mxu0 0.0
    %5359 = vmatpush1.msra.mxu0 %v5330
    %5360 = vmatprep.subr.mxu0 0.0
    %5361 = vmatpush1.msra.mxu0 %v5331
    %5362 = vmatprep.subr.mxu0 0.0
    %5363 = vmatpush1.msra.mxu0 %v5332
    %5364 = vmatprep.subr.mxu0 0.0
    %5365 = vmatpush1.msra.mxu0 %v5333
    %5366 = vmatprep.subr.mxu0 0.0
    %5367 = vmatpush1.msra.mxu0 %v5334
    %5368 = vmatprep.subr.mxu0 0.0
    %5369 = vmatpush1.msra.mxu0 %v5335
    %5370 = vmatprep.subr.mxu0 0.0
    %5371 = vmatpush1.msra.mxu0 %v5336
    %5372 = vmatprep.subr.mxu0 0.0
    %5373 = vmatpush1.msra.mxu0 %v5337
    %5374 = vmatprep.subr.mxu0 0.0
    %5375 = vmatpush1.msra.mxu0 %v5338
    %5376 = vmatprep.subr.mxu0 0.0
    %5377 = vmatpush1.msra.mxu0 0.0
    %5378 = vmatprep.subr.mxu0 0.0
    %5379 = vmatpush1.msra.mxu0 0.0
    %5380 = vmatprep.subr.mxu0 0.0
    %5381 = vmatpush1.msra.mxu0 0.0
    %5382 = vmatprep.subr.mxu0 0.0
    %5383 = vmatpush1.msra.mxu0 0.0
    %5384 = vmatprep.subr.mxu0 0.0
    %5385 = vmatpush1.msra.mxu0 0.0
    %5386 = vmatprep.subr.mxu0 0.0
    %5387 = vmatpush1.msra.mxu0 0.0
    %5388 = vmatprep.subr.mxu0 0.0
    %5389 = vmatpush1.msra.mxu0 0.0
    %5390 = vmatprep.subr.mxu0 0.0
    %5391 = vmatpush1.msra.mxu0 0.0
    %5392 = vmatprep.subr.mxu0 0.0
    %5393 = vmatpush1.msra.mxu0 0.0
    %5394 = vmatprep.subr.mxu0 0.0
    %5395 = vmatpush1.msra.mxu0 0.0
    %5396 = vmatprep.subr.mxu0 0.0
    %5397 = vmatpush1.msra.mxu0 0.0
    %5398 = vmatprep.subr.mxu0 0.0
    %5399 = vmatpush1.msra.mxu0 0.0
    %5400 = vmatprep.subr.mxu0 0.0
    %5401 = vmatpush1.msra.mxu0 0.0
    %5402 = vmatprep.subr.mxu0 0.0
    %5403 = vmatpush1.msra.mxu0 0.0
    %5404 = vmatprep.subr.mxu0 0.0
    %5405 = vmatpush1.msra.mxu0 0.0
    %5406 = vmatprep.subr.mxu0 0.0
    %5407 = vmatpush1.msra.mxu0 0.0
    %5408 = vmatprep.mubr.f32.mxu0 0.0
    %5409 = vmatmul.mubr.f32.gmra.mrb[0].mxu0 %v5342
    %v5410 = vpop.f32.mrb[0].mxu0
    %v5411 = vadd.f32 0.0, %v5410
    %v5412 = vpop.f32.mrb[0].mxu0
    %5413 = vdwg.mxu0
    %v5414 = vrot.slane %v5305, 7
    %v5415 = vsel %vm570, %v5414, %v5304
    %5417 = vmatprep.subr.mxu0 0.0
    %5418 = vmatpush1.msra.mxu0 %v5306
    %5419 = vmatprep.subr.mxu0 0.0
    %5420 = vmatpush1.msra.mxu0 %v5307
    %5421 = vmatprep.subr.mxu0 0.0
    %5422 = vmatpush1.msra.mxu0 %v5308
    %5423 = vmatprep.subr.mxu0 0.0
    %5424 = vmatpush1.msra.mxu0 %v5309
    %5425 = vmatprep.subr.mxu0 0.0
    %5426 = vmatpush1.msra.mxu0 %v5310
    %5427 = vmatprep.subr.mxu0 0.0
    %5428 = vmatpush1.msra.mxu0 %v5311
    %5429 = vmatprep.subr.mxu0 0.0
    %5430 = vmatpush1.msra.mxu0 %v5312
    %5431 = vmatprep.subr.mxu0 0.0
    %5432 = vmatpush1.msra.mxu0 %v5313
    %5433 = vmatprep.subr.mxu0 0.0
    %5434 = vmatpush1.msra.mxu0 %v5314
    %5435 = vmatprep.subr.mxu0 0.0
    %5436 = vmatpush1.msra.mxu0 %v5315
    %5437 = vmatprep.subr.mxu0 0.0
    %5438 = vmatpush1.msra.mxu0 %v5316
    %5439 = vmatprep.subr.mxu0 0.0
    %5440 = vmatpush1.msra.mxu0 %v5317
    %5441 = vmatprep.subr.mxu0 0.0
    %5442 = vmatpush1.msra.mxu0 %v5318
    %5443 = vmatprep.subr.mxu0 0.0
    %5444 = vmatpush1.msra.mxu0 %v5319
    %5445 = vmatprep.subr.mxu0 0.0
    %5446 = vmatpush1.msra.mxu0 %v5320
    %5447 = vmatprep.subr.mxu0 0.0
    %5448 = vmatpush1.msra.mxu0 %v5321
    %5449 = vmatprep.subr.mxu0 0.0
    %5450 = vmatpush1.msra.mxu0 0.0
    %5451 = vmatprep.subr.mxu0 0.0
    %5452 = vmatpush1.msra.mxu0 0.0
    %5453 = vmatprep.subr.mxu0 0.0
    %5454 = vmatpush1.msra.mxu0 0.0
    %5455 = vmatprep.subr.mxu0 0.0
    %5456 = vmatpush1.msra.mxu0 0.0
    %5457 = vmatprep.subr.mxu0 0.0
    %5458 = vmatpush1.msra.mxu0 0.0
    %5459 = vmatprep.subr.mxu0 0.0
    %5460 = vmatpush1.msra.mxu0 0.0
    %5461 = vmatprep.subr.mxu0 0.0
    %5462 = vmatpush1.msra.mxu0 0.0
    %5463 = vmatprep.subr.mxu0 0.0
    %5464 = vmatpush1.msra.mxu0 0.0
    %5465 = vmatprep.subr.mxu0 0.0
    %5466 = vmatpush1.msra.mxu0 0.0
    %5467 = vmatprep.subr.mxu0 0.0
    %5468 = vmatpush1.msra.mxu0 0.0
    %5469 = vmatprep.subr.mxu0 0.0
    %5470 = vmatpush1.msra.mxu0 0.0
    %5471 = vmatprep.subr.mxu0 0.0
    %5472 = vmatpush1.msra.mxu0 0.0
    %5473 = vmatprep.subr.mxu0 0.0
    %5474 = vmatpush1.msra.mxu0 0.0
    %5475 = vmatprep.subr.mxu0 0.0
    %5476 = vmatpush1.msra.mxu0 0.0
    %5477 = vmatprep.subr.mxu0 0.0
    %5478 = vmatpush1.msra.mxu0 0.0
    %5479 = vmatprep.subr.mxu0 0.0
    %5480 = vmatpush1.msra.mxu0 0.0
    %5481 = vmatprep.mubr.f32.mxu0 0.0
    %5482 = vmatmul.mubr.f32.gmra.mrb[0].mxu0 %v5415
    %v5483 = vpop.f32.mrb[0].mxu0
    %v5484 = vadd.f32 %v5411, %v5483
    %v5485 = vpop.f32.mrb[0].mxu0
    %5486 = vdwg.mxu0
    %s5487 = scalar_lea.vmem %s9, 256
    %v5488 = vld [vmem:[%s5487] sm:$0xff]
    %v5489 = vld [vmem:[%s5487 + $0x8] sm:$0xff]
    %v5490 = vld [vmem:[%s5487 + $0x10] sm:$0xff]
    %v5491 = vld [vmem:[%s5487 + $0x18] sm:$0xff]
    %v5492 = vld [vmem:[%s5487 + $0x20] sm:$0xff]
    %v5493 = vld [vmem:[%s5487 + $0x28] sm:$0xff]
    %v5494 = vld [vmem:[%s5487 + $0x30] sm:$0xff]
    %v5495 = vld [vmem:[%s5487 + $0x38] sm:$0xff]
    %v5496 = vld [vmem:[%s5487 + $0x40] sm:$0xff]
    %v5497 = vld [vmem:[%s5487 + $0x48] sm:$0xff]
    %v5498 = vld [vmem:[%s5487 + $0x50] sm:$0xff]
    %v5499 = vld [vmem:[%s5487 + $0x58] sm:$0xff]
    %v5500 = vld [vmem:[%s5487 + $0x60] sm:$0xff]
    %v5501 = vld [vmem:[%s5487 + $0x68] sm:$0xff]
    %v5502 = vld [vmem:[%s5487 + $0x70] sm:$0xff]
    %v5503 = vld [vmem:[%s5487 + $0x78] sm:$0xff]
    %v5504 = vrot.slane %v5304, 2
    %v5505 = vrot.slane %v5305, 1
    %v5506 = vsel %vm570, %v5505, %v5504
    %5508 = vmatprep.subr.mxu0 0.0
    %5509 = vmatpush1.msra.mxu0 %v5488
    %5510 = vmatprep.subr.mxu0 0.0
    %5511 = vmatpush1.msra.mxu0 %v5489
    %5512 = vmatprep.subr.mxu0 0.0
    %5513 = vmatpush1.msra.mxu0 %v5490
    %5514 = vmatprep.subr.mxu0 0.0
    %5515 = vmatpush1.msra.mxu0 %v5491
    %5516 = vmatprep.subr.mxu0 0.0
    %5517 = vmatpush1.msra.mxu0 %v5492
    %5518 = vmatprep.subr.mxu0 0.0
    %5519 = vmatpush1.msra.mxu0 %v5493
    %5520 = vmatprep.subr.mxu0 0.0
    %5521 = vmatpush1.msra.mxu0 %v5494
    %5522 = vmatprep.subr.mxu0 0.0
    %5523 = vmatpush1.msra.mxu0 %v5495
    %5524 = vmatprep.subr.mxu0 0.0
    %5525 = vmatpush1.msra.mxu0 %v5496
    %5526 = vmatprep.subr.mxu0 0.0
    %5527 = vmatpush1.msra.mxu0 %v5497
    %5528 = vmatprep.subr.mxu0 0.0
    %5529 = vmatpush1.msra.mxu0 %v5498
    %5530 = vmatprep.subr.mxu0 0.0
    %5531 = vmatpush1.msra.mxu0 %v5499
    %5532 = vmatprep.subr.mxu0 0.0
    %5533 = vmatpush1.msra.mxu0 %v5500
    %5534 = vmatprep.subr.mxu0 0.0
    %5535 = vmatpush1.msra.mxu0 %v5501
    %5536 = vmatprep.subr.mxu0 0.0
    %5537 = vmatpush1.msra.mxu0 %v5502
    %5538 = vmatprep.subr.mxu0 0.0
    %5539 = vmatpush1.msra.mxu0 %v5503
    %5540 = vmatprep.subr.mxu0 0.0
    %5541 = vmatpush1.msra.mxu0 0.0
    %5542 = vmatprep.subr.mxu0 0.0
    %5543 = vmatpush1.msra.mxu0 0.0
    %5544 = vmatprep.subr.mxu0 0.0
    %5545 = vmatpush1.msra.mxu0 0.0
    %5546 = vmatprep.subr.mxu0 0.0
    %5547 = vmatpush1.msra.mxu0 0.0
    %5548 = vmatprep.subr.mxu0 0.0
    %5549 = vmatpush1.msra.mxu0 0.0
    %5550 = vmatprep.subr.mxu0 0.0
    %5551 = vmatpush1.msra.mxu0 0.0
    %5552 = vmatprep.subr.mxu0 0.0
    %5553 = vmatpush1.msra.mxu0 0.0
    %5554 = vmatprep.subr.mxu0 0.0
    %5555 = vmatpush1.msra.mxu0 0.0
    %5556 = vmatprep.subr.mxu0 0.0
    %5557 = vmatpush1.msra.mxu0 0.0
    %5558 = vmatprep.subr.mxu0 0.0
    %5559 = vmatpush1.msra.mxu0 0.0
    %5560 = vmatprep.subr.mxu0 0.0
    %5561 = vmatpush1.msra.mxu0 0.0
    %5562 = vmatprep.subr.mxu0 0.0
    %5563 = vmatpush1.msra.mxu0 0.0
    %5564 = vmatprep.subr.mxu0 0.0
    %5565 = vmatpush1.msra.mxu0 0.0
    %5566 = vmatprep.subr.mxu0 0.0
    %5567 = vmatpush1.msra.mxu0 0.0
    %5568 = vmatprep.subr.mxu0 0.0
    %5569 = vmatpush1.msra.mxu0 0.0
    %5570 = vmatprep.subr.mxu0 0.0
    %5571 = vmatpush1.msra.mxu0 0.0
    %5572 = vmatprep.mubr.f32.mxu0 0.0
    %5573 = vmatmul.mubr.f32.gmra.mrb[0].mxu0 %v5506
    %v5574 = vpop.f32.mrb[0].mxu0
    %v5575 = vadd.f32 0.0, %v5574
    %v5576 = vpop.f32.mrb[0].mxu0
    %5577 = vdwg.mxu0
    %v5578 = vadd.f32 %v5484, %v5575
    %s5579 = scalar_lea.vmem %s9, 384
    %v5580 = vld [vmem:[%s5579] sm:$0xff]
    %v5581 = vld [vmem:[%s5579 + $0x8] sm:$0xff]
    %v5582 = vld [vmem:[%s5579 + $0x10] sm:$0xff]
    %v5583 = vld [vmem:[%s5579 + $0x18] sm:$0xff]
    %v5584 = vld [vmem:[%s5579 + $0x20] sm:$0xff]
    %v5585 = vld [vmem:[%s5579 + $0x28] sm:$0xff]
    %v5586 = vld [vmem:[%s5579 + $0x30] sm:$0xff]
    %v5587 = vld [vmem:[%s5579 + $0x38] sm:$0xff]
    %v5588 = vld [vmem:[%s5579 + $0x40] sm:$0xff]
    %v5589 = vld [vmem:[%s5579 + $0x48] sm:$0xff]
    %v5590 = vld [vmem:[%s5579 + $0x50] sm:$0xff]
    %v5591 = vld [vmem:[%s5579 + $0x58] sm:$0xff]
    %v5592 = vld [vmem:[%s5579 + $0x60] sm:$0xff]
    %v5593 = vld [vmem:[%s5579 + $0x68] sm:$0xff]
    %v5594 = vld [vmem:[%s5579 + $0x70] sm:$0xff]
    %v5595 = vld [vmem:[%s5579 + $0x78] sm:$0xff]
    %v5596 = vrot.slane %v5304, 3
    %v5597 = vrot.slane %v5305, 2
    %v5598 = vsel %vm570, %v5597, %v5596
    %5600 = vmatprep.subr.mxu0 0.0
    %5601 = vmatpush1.msra.mxu0 %v5580
    %5602 = vmatprep.subr.mxu0 0.0
    %5603 = vmatpush1.msra.mxu0 %v5581
    %5604 = vmatprep.subr.mxu0 0.0
    %5605 = vmatpush1.msra.mxu0 %v5582
    %5606 = vmatprep.subr.mxu0 0.0
    %5607 = vmatpush1.msra.mxu0 %v5583
    %5608 = vmatprep.subr.mxu0 0.0
    %5609 = vmatpush1.msra.mxu0 %v5584
    %5610 = vmatprep.subr.mxu0 0.0
    %5611 = vmatpush1.msra.mxu0 %v5585
    %5612 = vmatprep.subr.mxu0 0.0
    %5613 = vmatpush1.msra.mxu0 %v5586
    %5614 = vmatprep.subr.mxu0 0.0
    %5615 = vmatpush1.msra.mxu0 %v5587
    %5616 = vmatprep.subr.mxu0 0.0
    %5617 = vmatpush1.msra.mxu0 %v5588
    %5618 = vmatprep.subr.mxu0 0.0
    %5619 = vmatpush1.msra.mxu0 %v5589
    %5620 = vmatprep.subr.mxu0 0.0
    %5621 = vmatpush1.msra.mxu0 %v5590
    %5622 = vmatprep.subr.mxu0 0.0
    %5623 = vmatpush1.msra.mxu0 %v5591
    %5624 = vmatprep.subr.mxu0 0.0
    %5625 = vmatpush1.msra.mxu0 %v5592
    %5626 = vmatprep.subr.mxu0 0.0
    %5627 = vmatpush1.msra.mxu0 %v5593
    %5628 = vmatprep.subr.mxu0 0.0
    %5629 = vmatpush1.msra.mxu0 %v5594
    %5630 = vmatprep.subr.mxu0 0.0
    %5631 = vmatpush1.msra.mxu0 %v5595
    %5632 = vmatprep.subr.mxu0 0.0
    %5633 = vmatpush1.msra.mxu0 0.0
    %5634 = vmatprep.subr.mxu0 0.0
    %5635 = vmatpush1.msra.mxu0 0.0
    %5636 = vmatprep.subr.mxu0 0.0
    %5637 = vmatpush1.msra.mxu0 0.0
    %5638 = vmatprep.subr.mxu0 0.0
    %5639 = vmatpush1.msra.mxu0 0.0
    %5640 = vmatprep.subr.mxu0 0.0
    %5641 = vmatpush1.msra.mxu0 0.0
    %5642 = vmatprep.subr.mxu0 0.0
    %5643 = vmatpush1.msra.mxu0 0.0
    %5644 = vmatprep.subr.mxu0 0.0
    %5645 = vmatpush1.msra.mxu0 0.0
    %5646 = vmatprep.subr.mxu0 0.0
    %5647 = vmatpush1.msra.mxu0 0.0
    %5648 = vmatprep.subr.mxu0 0.0
    %5649 = vmatpush1.msra.mxu0 0.0
    %5650 = vmatprep.subr.mxu0 0.0
    %5651 = vmatpush1.msra.mxu0 0.0
    %5652 = vmatprep.subr.mxu0 0.0
    %5653 = vmatpush1.msra.mxu0 0.0
    %5654 = vmatprep.subr.mxu0 0.0
    %5655 = vmatpush1.msra.mxu0 0.0
    %5656 = vmatprep.subr.mxu0 0.0
    %5657 = vmatpush1.msra.mxu0 0.0
    %5658 = vmatprep.subr.mxu0 0.0
    %5659 = vmatpush1.msra.mxu0 0.0
    %5660 = vmatprep.subr.mxu0 0.0
    %5661 = vmatpush1.msra.mxu0 0.0
    %5662 = vmatprep.subr.mxu0 0.0
    %5663 = vmatpush1.msra.mxu0 0.0
    %5664 = vmatprep.mubr.f32.mxu0 0.0
    %5665 = vmatmul.mubr.f32.gmra.mrb[0].mxu0 %v5598
    %v5666 = vpop.f32.mrb[0].mxu0
    %v5667 = vadd.f32 0.0, %v5666
    %v5668 = vpop.f32.mrb[0].mxu0
    %5669 = vdwg.mxu0
    %v5670 = vadd.f32 %v5578, %v5667
    %s5671 = scalar_lea.vmem %s9, 512
    %v5672 = vld [vmem:[%s5671] sm:$0xff]
    %v5673 = vld [vmem:[%s5671 + $0x8] sm:$0xff]
    %v5674 = vld [vmem:[%s5671 + $0x10] sm:$0xff]
    %v5675 = vld [vmem:[%s5671 + $0x18] sm:$0xff]
    %v5676 = vld [vmem:[%s5671 + $0x20] sm:$0xff]
    %v5677 = vld [vmem:[%s5671 + $0x28] sm:$0xff]
    %v5678 = vld [vmem:[%s5671 + $0x30] sm:$0xff]
    %v5679 = vld [vmem:[%s5671 + $0x38] sm:$0xff]
    %v5680 = vld [vmem:[%s5671 + $0x40] sm:$0xff]
    %v5681 = vld [vmem:[%s5671 + $0x48] sm:$0xff]
    %v5682 = vld [vmem:[%s5671 + $0x50] sm:$0xff]
    %v5683 = vld [vmem:[%s5671 + $0x58] sm:$0xff]
    %v5684 = vld [vmem:[%s5671 + $0x60] sm:$0xff]
    %v5685 = vld [vmem:[%s5671 + $0x68] sm:$0xff]
    %v5686 = vld [vmem:[%s5671 + $0x70] sm:$0xff]
    %v5687 = vld [vmem:[%s5671 + $0x78] sm:$0xff]
    %v5688 = vrot.slane %v5304, 4
    %v5689 = vrot.slane %v5305, 3
    %v5690 = vsel %vm570, %v5689, %v5688
    %5692 = vmatprep.subr.mxu0 0.0
    %5693 = vmatpush1.msra.mxu0 %v5672
    %5694 = vmatprep.subr.mxu0 0.0
    %5695 = vmatpush1.msra.mxu0 %v5673
    %5696 = vmatprep.subr.mxu0 0.0
    %5697 = vmatpush1.msra.mxu0 %v5674
    %5698 = vmatprep.subr.mxu0 0.0
    %5699 = vmatpush1.msra.mxu0 %v5675
    %5700 = vmatprep.subr.mxu0 0.0
    %5701 = vmatpush1.msra.mxu0 %v5676
    %5702 = vmatprep.subr.mxu0 0.0
    %5703 = vmatpush1.msra.mxu0 %v5677
    %5704 = vmatprep.subr.mxu0 0.0
    %5705 = vmatpush1.msra.mxu0 %v5678
    %5706 = vmatprep.subr.mxu0 0.0
    %5707 = vmatpush1.msra.mxu0 %v5679
    %5708 = vmatprep.subr.mxu0 0.0
    %5709 = vmatpush1.msra.mxu0 %v5680
    %5710 = vmatprep.subr.mxu0 0.0
    %5711 = vmatpush1.msra.mxu0 %v5681
    %5712 = vmatprep.subr.mxu0 0.0
    %5713 = vmatpush1.msra.mxu0 %v5682
    %5714 = vmatprep.subr.mxu0 0.0
    %5715 = vmatpush1.msra.mxu0 %v5683
    %5716 = vmatprep.subr.mxu0 0.0
    %5717 = vmatpush1.msra.mxu0 %v5684
    %5718 = vmatprep.subr.mxu0 0.0
    %5719 = vmatpush1.msra.mxu0 %v5685
    %5720 = vmatprep.subr.mxu0 0.0
    %5721 = vmatpush1.msra.mxu0 %v5686
    %5722 = vmatprep.subr.mxu0 0.0
    %5723 = vmatpush1.msra.mxu0 %v5687
    %5724 = vmatprep.subr.mxu0 0.0
    %5725 = vmatpush1.msra.mxu0 0.0
    %5726 = vmatprep.subr.mxu0 0.0
    %5727 = vmatpush1.msra.mxu0 0.0
    %5728 = vmatprep.subr.mxu0 0.0
    %5729 = vmatpush1.msra.mxu0 0.0
    %5730 = vmatprep.subr.mxu0 0.0
    %5731 = vmatpush1.msra.mxu0 0.0
    %5732 = vmatprep.subr.mxu0 0.0
    %5733 = vmatpush1.msra.mxu0 0.0
    %5734 = vmatprep.subr.mxu0 0.0
    %5735 = vmatpush1.msra.mxu0 0.0
    %5736 = vmatprep.subr.mxu0 0.0
    %5737 = vmatpush1.msra.mxu0 0.0
    %5738 = vmatprep.subr.mxu0 0.0
    %5739 = vmatpush1.msra.mxu0 0.0
    %5740 = vmatprep.subr.mxu0 0.0
    %5741 = vmatpush1.msra.mxu0 0.0
    %5742 = vmatprep.subr.mxu0 0.0
    %5743 = vmatpush1.msra.mxu0 0.0
    %5744 = vmatprep.subr.mxu0 0.0
    %5745 = vmatpush1.msra.mxu0 0.0
    %5746 = vmatprep.subr.mxu0 0.0
    %5747 = vmatpush1.msra.mxu0 0.0
    %5748 = vmatprep.subr.mxu0 0.0
    %5749 = vmatpush1.msra.mxu0 0.0
    %5750 = vmatprep.subr.mxu0 0.0
    %5751 = vmatpush1.msra.mxu0 0.0
    %5752 = vmatprep.subr.mxu0 0.0
    %5753 = vmatpush1.msra.mxu0 0.0
    %5754 = vmatprep.subr.mxu0 0.0
    %5755 = vmatpush1.msra.mxu0 0.0
    %5756 = vmatprep.mubr.f32.mxu0 0.0
    %5757 = vmatmul.mubr.f32.gmra.mrb[0].mxu0 %v5690
    %v5758 = vpop.f32.mrb[0].mxu0
    %v5759 = vadd.f32 0.0, %v5758
    %v5760 = vpop.f32.mrb[0].mxu0
    %5761 = vdwg.mxu0
    %v5762 = vadd.f32 %v5670, %v5759
    %s5763 = scalar_lea.vmem %s9, 640
    %v5764 = vld [vmem:[%s5763] sm:$0xff]
    %v5765 = vld [vmem:[%s5763 + $0x8] sm:$0xff]
    %v5766 = vld [vmem:[%s5763 + $0x10] sm:$0xff]
    %v5767 = vld [vmem:[%s5763 + $0x18] sm:$0xff]
    %v5768 = vld [vmem:[%s5763 + $0x20] sm:$0xff]
    %v5769 = vld [vmem:[%s5763 + $0x28] sm:$0xff]
    %v5770 = vld [vmem:[%s5763 + $0x30] sm:$0xff]
    %v5771 = vld [vmem:[%s5763 + $0x38] sm:$0xff]
    %v5772 = vld [vmem:[%s5763 + $0x40] sm:$0xff]
    %v5773 = vld [vmem:[%s5763 + $0x48] sm:$0xff]
    %v5774 = vld [vmem:[%s5763 + $0x50] sm:$0xff]
    %v5775 = vld [vmem:[%s5763 + $0x58] sm:$0xff]
    %v5776 = vld [vmem:[%s5763 + $0x60] sm:$0xff]
    %v5777 = vld [vmem:[%s5763 + $0x68] sm:$0xff]
    %v5778 = vld [vmem:[%s5763 + $0x70] sm:$0xff]
    %v5779 = vld [vmem:[%s5763 + $0x78] sm:$0xff]
    %v5780 = vrot.slane %v5304, 5
    %v5781 = vrot.slane %v5305, 4
    %v5782 = vsel %vm570, %v5781, %v5780
    %5784 = vmatprep.subr.mxu0 0.0
    %5785 = vmatpush1.msra.mxu0 %v5764
    %5786 = vmatprep.subr.mxu0 0.0
    %5787 = vmatpush1.msra.mxu0 %v5765
    %5788 = vmatprep.subr.mxu0 0.0
    %5789 = vmatpush1.msra.mxu0 %v5766
    %5790 = vmatprep.subr.mxu0 0.0
    %5791 = vmatpush1.msra.mxu0 %v5767
    %5792 = vmatprep.subr.mxu0 0.0
    %5793 = vmatpush1.msra.mxu0 %v5768
    %5794 = vmatprep.subr.mxu0 0.0
    %5795 = vmatpush1.msra.mxu0 %v5769
    %5796 = vmatprep.subr.mxu0 0.0
    %5797 = vmatpush1.msra.mxu0 %v5770
    %5798 = vmatprep.subr.mxu0 0.0
    %5799 = vmatpush1.msra.mxu0 %v5771
    %5800 = vmatprep.subr.mxu0 0.0
    %5801 = vmatpush1.msra.mxu0 %v5772
    %5802 = vmatprep.subr.mxu0 0.0
    %5803 = vmatpush1.msra.mxu0 %v5773
    %5804 = vmatprep.subr.mxu0 0.0
    %5805 = vmatpush1.msra.mxu0 %v5774
    %5806 = vmatprep.subr.mxu0 0.0
    %5807 = vmatpush1.msra.mxu0 %v5775
    %5808 = vmatprep.subr.mxu0 0.0
    %5809 = vmatpush1.msra.mxu0 %v5776
    %5810 = vmatprep.subr.mxu0 0.0
    %5811 = vmatpush1.msra.mxu0 %v5777
    %5812 = vmatprep.subr.mxu0 0.0
    %5813 = vmatpush1.msra.mxu0 %v5778
    %5814 = vmatprep.subr.mxu0 0.0
    %5815 = vmatpush1.msra.mxu0 %v5779
    %5816 = vmatprep.subr.mxu0 0.0
    %5817 = vmatpush1.msra.mxu0 0.0
    %5818 = vmatprep.subr.mxu0 0.0
    %5819 = vmatpush1.msra.mxu0 0.0
    %5820 = vmatprep.subr.mxu0 0.0
    %5821 = vmatpush1.msra.mxu0 0.0
    %5822 = vmatprep.subr.mxu0 0.0
    %5823 = vmatpush1.msra.mxu0 0.0
    %5824 = vmatprep.subr.mxu0 0.0
    %5825 = vmatpush1.msra.mxu0 0.0
    %5826 = vmatprep.subr.mxu0 0.0
    %5827 = vmatpush1.msra.mxu0 0.0
    %5828 = vmatprep.subr.mxu0 0.0
    %5829 = vmatpush1.msra.mxu0 0.0
    %5830 = vmatprep.subr.mxu0 0.0
    %5831 = vmatpush1.msra.mxu0 0.0
    %5832 = vmatprep.subr.mxu0 0.0
    %5833 = vmatpush1.msra.mxu0 0.0
    %5834 = vmatprep.subr.mxu0 0.0
    %5835 = vmatpush1.msra.mxu0 0.0
    %5836 = vmatprep.subr.mxu0 0.0
    %5837 = vmatpush1.msra.mxu0 0.0
    %5838 = vmatprep.subr.mxu0 0.0
    %5839 = vmatpush1.msra.mxu0 0.0
    %5840 = vmatprep.subr.mxu0 0.0
    %5841 = vmatpush1.msra.mxu0 0.0
    %5842 = vmatprep.subr.mxu0 0.0
    %5843 = vmatpush1.msra.mxu0 0.0
    %5844 = vmatprep.subr.mxu0 0.0
    %5845 = vmatpush1.msra.mxu0 0.0
    %5846 = vmatprep.subr.mxu0 0.0
    %5847 = vmatpush1.msra.mxu0 0.0
    %5848 = vmatprep.mubr.f32.mxu0 0.0
    %5849 = vmatmul.mubr.f32.gmra.mrb[0].mxu0 %v5782
    %v5850 = vpop.f32.mrb[0].mxu0
    %v5851 = vadd.f32 0.0, %v5850
    %v5852 = vpop.f32.mrb[0].mxu0
    %5853 = vdwg.mxu0
    %v5854 = vadd.f32 %v5762, %v5851
    %s5855 = scalar_lea.vmem %s9, 768
    %v5856 = vld [vmem:[%s5855] sm:$0xff]
    %v5857 = vld [vmem:[%s5855 + $0x8] sm:$0xff]
    %v5858 = vld [vmem:[%s5855 + $0x10] sm:$0xff]
    %v5859 = vld [vmem:[%s5855 + $0x18] sm:$0xff]
    %v5860 = vld [vmem:[%s5855 + $0x20] sm:$0xff]
    %v5861 = vld [vmem:[%s5855 + $0x28] sm:$0xff]
    %v5862 = vld [vmem:[%s5855 + $0x30] sm:$0xff]
    %v5863 = vld [vmem:[%s5855 + $0x38] sm:$0xff]
    %v5864 = vld [vmem:[%s5855 + $0x40] sm:$0xff]
    %v5865 = vld [vmem:[%s5855 + $0x48] sm:$0xff]
    %v5866 = vld [vmem:[%s5855 + $0x50] sm:$0xff]
    %v5867 = vld [vmem:[%s5855 + $0x58] sm:$0xff]
    %v5868 = vld [vmem:[%s5855 + $0x60] sm:$0xff]
    %v5869 = vld [vmem:[%s5855 + $0x68] sm:$0xff]
    %v5870 = vld [vmem:[%s5855 + $0x70] sm:$0xff]
    %v5871 = vld [vmem:[%s5855 + $0x78] sm:$0xff]
    %v5872 = vrot.slane %v5304, 6
    %v5873 = vrot.slane %v5305, 5
    %v5874 = vsel %vm570, %v5873, %v5872
    %5876 = vmatprep.subr.mxu0 0.0
    %5877 = vmatpush1.msra.mxu0 %v5856
    %5878 = vmatprep.subr.mxu0 0.0
    %5879 = vmatpush1.msra.mxu0 %v5857
    %5880 = vmatprep.subr.mxu0 0.0
    %5881 = vmatpush1.msra.mxu0 %v5858
    %5882 = vmatprep.subr.mxu0 0.0
    %5883 = vmatpush1.msra.mxu0 %v5859
    %5884 = vmatprep.subr.mxu0 0.0
    %5885 = vmatpush1.msra.mxu0 %v5860
    %5886 = vmatprep.subr.mxu0 0.0
    %5887 = vmatpush1.msra.mxu0 %v5861
    %5888 = vmatprep.subr.mxu0 0.0
    %5889 = vmatpush1.msra.mxu0 %v5862
    %5890 = vmatprep.subr.mxu0 0.0
    %5891 = vmatpush1.msra.mxu0 %v5863
    %5892 = vmatprep.subr.mxu0 0.0
    %5893 = vmatpush1.msra.mxu0 %v5864
    %5894 = vmatprep.subr.mxu0 0.0
    %5895 = vmatpush1.msra.mxu0 %v5865
    %5896 = vmatprep.subr.mxu0 0.0
    %5897 = vmatpush1.msra.mxu0 %v5866
    %5898 = vmatprep.subr.mxu0 0.0
    %5899 = vmatpush1.msra.mxu0 %v5867
    %5900 = vmatprep.subr.mxu0 0.0
    %5901 = vmatpush1.msra.mxu0 %v5868
    %5902 = vmatprep.subr.mxu0 0.0
    %5903 = vmatpush1.msra.mxu0 %v5869
    %5904 = vmatprep.subr.mxu0 0.0
    %5905 = vmatpush1.msra.mxu0 %v5870
    %5906 = vmatprep.subr.mxu0 0.0
    %5907 = vmatpush1.msra.mxu0 %v5871
    %5908 = vmatprep.subr.mxu0 0.0
    %5909 = vmatpush1.msra.mxu0 0.0
    %5910 = vmatprep.subr.mxu0 0.0
    %5911 = vmatpush1.msra.mxu0 0.0
    %5912 = vmatprep.subr.mxu0 0.0
    %5913 = vmatpush1.msra.mxu0 0.0
    %5914 = vmatprep.subr.mxu0 0.0
    %5915 = vmatpush1.msra.mxu0 0.0
    %5916 = vmatprep.subr.mxu0 0.0
    %5917 = vmatpush1.msra.mxu0 0.0
    %5918 = vmatprep.subr.mxu0 0.0
    %5919 = vmatpush1.msra.mxu0 0.0
    %5920 = vmatprep.subr.mxu0 0.0
    %5921 = vmatpush1.msra.mxu0 0.0
    %5922 = vmatprep.subr.mxu0 0.0
    %5923 = vmatpush1.msra.mxu0 0.0
    %5924 = vmatprep.subr.mxu0 0.0
    %5925 = vmatpush1.msra.mxu0 0.0
    %5926 = vmatprep.subr.mxu0 0.0
    %5927 = vmatpush1.msra.mxu0 0.0
    %5928 = vmatprep.subr.mxu0 0.0
    %5929 = vmatpush1.msra.mxu0 0.0
    %5930 = vmatprep.subr.mxu0 0.0
    %5931 = vmatpush1.msra.mxu0 0.0
    %5932 = vmatprep.subr.mxu0 0.0
    %5933 = vmatpush1.msra.mxu0 0.0
    %5934 = vmatprep.subr.mxu0 0.0
    %5935 = vmatpush1.msra.mxu0 0.0
    %5936 = vmatprep.subr.mxu0 0.0
    %5937 = vmatpush1.msra.mxu0 0.0
    %5938 = vmatprep.subr.mxu0 0.0
    %5939 = vmatpush1.msra.mxu0 0.0
    %5940 = vmatprep.mubr.f32.mxu0 0.0
    %5941 = vmatmul.mubr.f32.gmra.mrb[0].mxu0 %v5874
    %v5942 = vpop.f32.mrb[0].mxu0
    %v5943 = vadd.f32 0.0, %v5942
    %v5944 = vpop.f32.mrb[0].mxu0
    %5945 = vdwg.mxu0
    %v5946 = vadd.f32 %v5854, %v5943
    %s5947 = scalar_lea.vmem %s9, 896
    %v5948 = vld [vmem:[%s5947] sm:$0xff]
    %v5949 = vld [vmem:[%s5947 + $0x8] sm:$0xff]
    %v5950 = vld [vmem:[%s5947 + $0x10] sm:$0xff]
    %v5951 = vld [vmem:[%s5947 + $0x18] sm:$0xff]
    %v5952 = vld [vmem:[%s5947 + $0x20] sm:$0xff]
    %v5953 = vld [vmem:[%s5947 + $0x28] sm:$0xff]
    %v5954 = vld [vmem:[%s5947 + $0x30] sm:$0xff]
    %v5955 = vld [vmem:[%s5947 + $0x38] sm:$0xff]
    %v5956 = vld [vmem:[%s5947 + $0x40] sm:$0xff]
    %v5957 = vld [vmem:[%s5947 + $0x48] sm:$0xff]
    %v5958 = vld [vmem:[%s5947 + $0x50] sm:$0xff]
    %v5959 = vld [vmem:[%s5947 + $0x58] sm:$0xff]
    %v5960 = vld [vmem:[%s5947 + $0x60] sm:$0xff]
    %v5961 = vld [vmem:[%s5947 + $0x68] sm:$0xff]
    %v5962 = vld [vmem:[%s5947 + $0x70] sm:$0xff]
    %v5963 = vld [vmem:[%s5947 + $0x78] sm:$0xff]
    %v5964 = vrot.slane %v5304, 7
    %v5965 = vrot.slane %v5305, 6
    %v5966 = vsel %vm570, %v5965, %v5964
    %5968 = vmatprep.subr.mxu0 0.0
    %5969 = vmatpush1.msra.mxu0 %v5948
    %5970 = vmatprep.subr.mxu0 0.0
    %5971 = vmatpush1.msra.mxu0 %v5949
    %5972 = vmatprep.subr.mxu0 0.0
    %5973 = vmatpush1.msra.mxu0 %v5950
    %5974 = vmatprep.subr.mxu0 0.0
    %5975 = vmatpush1.msra.mxu0 %v5951
    %5976 = vmatprep.subr.mxu0 0.0
    %5977 = vmatpush1.msra.mxu0 %v5952
    %5978 = vmatprep.subr.mxu0 0.0
    %5979 = vmatpush1.msra.mxu0 %v5953
    %5980 = vmatprep.subr.mxu0 0.0
    %5981 = vmatpush1.msra.mxu0 %v5954
    %5982 = vmatprep.subr.mxu0 0.0
    %5983 = vmatpush1.msra.mxu0 %v5955
    %5984 = vmatprep.subr.mxu0 0.0
    %5985 = vmatpush1.msra.mxu0 %v5956
    %5986 = vmatprep.subr.mxu0 0.0
    %5987 = vmatpush1.msra.mxu0 %v5957
    %5988 = vmatprep.subr.mxu0 0.0
    %5989 = vmatpush1.msra.mxu0 %v5958
    %5990 = vmatprep.subr.mxu0 0.0
    %5991 = vmatpush1.msra.mxu0 %v5959
    %5992 = vmatprep.subr.mxu0 0.0
    %5993 = vmatpush1.msra.mxu0 %v5960
    %5994 = vmatprep.subr.mxu0 0.0
    %5995 = vmatpush1.msra.mxu0 %v5961
    %5996 = vmatprep.subr.mxu0 0.0
    %5997 = vmatpush1.msra.mxu0 %v5962
    %5998 = vmatprep.subr.mxu0 0.0
    %5999 = vmatpush1.msra.mxu0 %v5963
    %6000 = vmatprep.subr.mxu0 0.0
    %6001 = vmatpush1.msra.mxu0 0.0
    %6002 = vmatprep.subr.mxu0 0.0
    %6003 = vmatpush1.msra.mxu0 0.0
    %6004 = vmatprep.subr.mxu0 0.0
    %6005 = vmatpush1.msra.mxu0 0.0
    %6006 = vmatprep.subr.mxu0 0.0
    %6007 = vmatpush1.msra.mxu0 0.0
    %6008 = vmatprep.subr.mxu0 0.0
    %6009 = vmatpush1.msra.mxu0 0.0
    %6010 = vmatprep.subr.mxu0 0.0
    %6011 = vmatpush1.msra.mxu0 0.0
    %6012 = vmatprep.subr.mxu0 0.0
    %6013 = vmatpush1.msra.mxu0 0.0
    %6014 = vmatprep.subr.mxu0 0.0
    %6015 = vmatpush1.msra.mxu0 0.0
    %6016 = vmatprep.subr.mxu0 0.0
    %6017 = vmatpush1.msra.mxu0 0.0
    %6018 = vmatprep.subr.mxu0 0.0
    %6019 = vmatpush1.msra.mxu0 0.0
    %6020 = vmatprep.subr.mxu0 0.0
    %6021 = vmatpush1.msra.mxu0 0.0
    %6022 = vmatprep.subr.mxu0 0.0
    %6023 = vmatpush1.msra.mxu0 0.0
    %6024 = vmatprep.subr.mxu0 0.0
    %6025 = vmatpush1.msra.mxu0 0.0
    %6026 = vmatprep.subr.mxu0 0.0
    %6027 = vmatpush1.msra.mxu0 0.0
    %6028 = vmatprep.subr.mxu0 0.0
    %6029 = vmatpush1.msra.mxu0 0.0
    %6030 = vmatprep.subr.mxu0 0.0
    %6031 = vmatpush1.msra.mxu0 0.0
    %6032 = vmatprep.mubr.f32.mxu0 0.0
    %6033 = vmatmul.mubr.f32.gmra.mrb[0].mxu0 %v5966
    %v6034 = vpop.f32.mrb[0].mxu0
    %v6035 = vadd.f32 0.0, %v6034
    %v6036 = vpop.f32.mrb[0].mxu0
    %6037 = vdwg.mxu0
    %v6038 = vadd.f32 %v5946, %v6035
    %v6039 = vld [vmem:[%s10] sm:$0x1]
    %v6041 = vlaneseq
    %v6042 = vshrl.u32 %v6041, 7
    %v6043 = vsub.s32 0, %v6042
    %v6044 = vrot.slane %v6039, %v6043
    %v6046 = vadd.f32 %v6038, %v6044
    %v6047 = vsub.f32 0.0, %v6046
    %v6048 = vmul.f32 %v6047, 1.442695
    %v6049 = vpow.pop %v6048
    %v6050 = vadd.f32 %v6049, 1.0
    %v6051 = vrcp.pop %v6050
    %v6052 = vld [vmem:[%s11] sm:$0xff]
    %v6053 = vld [vmem:[%s11 + $0x8] sm:$0xff]
    %v6054 = vld [vmem:[%s11 + $0x10] sm:$0xff]
    %v6055 = vld [vmem:[%s11 + $0x18] sm:$0xff]
    %v6056 = vld [vmem:[%s11 + $0x20] sm:$0xff]
    %v6057 = vld [vmem:[%s11 + $0x28] sm:$0xff]
    %v6058 = vld [vmem:[%s11 + $0x30] sm:$0xff]
    %v6059 = vld [vmem:[%s11 + $0x38] sm:$0xff]
    %v6060 = vld [vmem:[%s11 + $0x40] sm:$0xff]
    %v6061 = vld [vmem:[%s11 + $0x48] sm:$0xff]
    %v6062 = vld [vmem:[%s11 + $0x50] sm:$0xff]
    %v6063 = vld [vmem:[%s11 + $0x58] sm:$0xff]
    %v6064 = vld [vmem:[%s11 + $0x60] sm:$0xff]
    %v6065 = vld [vmem:[%s11 + $0x68] sm:$0xff]
    %v6066 = vld [vmem:[%s11 + $0x70] sm:$0xff]
    %v6067 = vld [vmem:[%s11 + $0x78] sm:$0xff]
    %v6068 = vld [vmem:[%s12] sm:$0x1]
    %v6070 = vlaneseq
    %v6071 = vshrl.u32 %v6070, 7
    %v6072 = vsub.s32 0, %v6071
    %v6073 = vrot.slane %v6068, %v6072
    %6075 = vmatprep.subr.mxu0 0.0
    %6076 = vmatpush1.msra.mxu0 %v6052
    %6077 = vmatprep.subr.mxu0 0.0
    %6078 = vmatpush1.msra.mxu0 %v6053
    %6079 = vmatprep.subr.mxu0 0.0
    %6080 = vmatpush1.msra.mxu0 %v6054
    %6081 = vmatprep.subr.mxu0 0.0
    %6082 = vmatpush1.msra.mxu0 %v6055
    %6083 = vmatprep.subr.mxu0 0.0
    %6084 = vmatpush1.msra.mxu0 %v6056
    %6085 = vmatprep.subr.mxu0 0.0
    %6086 = vmatpush1.msra.mxu0 %v6057
    %6087 = vmatprep.subr.mxu0 0.0
    %6088 = vmatpush1.msra.mxu0 %v6058
    %6089 = vmatprep.subr.mxu0 0.0
    %6090 = vmatpush1.msra.mxu0 %v6059
    %6091 = vmatprep.subr.mxu0 0.0
    %6092 = vmatpush1.msra.mxu0 %v6060
    %6093 = vmatprep.subr.mxu0 0.0
    %6094 = vmatpush1.msra.mxu0 %v6061
    %6095 = vmatprep.subr.mxu0 0.0
    %6096 = vmatpush1.msra.mxu0 %v6062
    %6097 = vmatprep.subr.mxu0 0.0
    %6098 = vmatpush1.msra.mxu0 %v6063
    %6099 = vmatprep.subr.mxu0 0.0
    %6100 = vmatpush1.msra.mxu0 %v6064
    %6101 = vmatprep.subr.mxu0 0.0
    %6102 = vmatpush1.msra.mxu0 %v6065
    %6103 = vmatprep.subr.mxu0 0.0
    %6104 = vmatpush1.msra.mxu0 %v6066
    %6105 = vmatprep.subr.mxu0 0.0
    %6106 = vmatpush1.msra.mxu0 %v6067
    %6107 = vmatprep.subr.mxu0 0.0
    %6108 = vmatpush1.msra.mxu0 0.0
    %6109 = vmatprep.subr.mxu0 0.0
    %6110 = vmatpush1.msra.mxu0 0.0
    %6111 = vmatprep.subr.mxu0 0.0
    %6112 = vmatpush1.msra.mxu0 0.0
    %6113 = vmatprep.subr.mxu0 0.0
    %6114 = vmatpush1.msra.mxu0 0.0
    %6115 = vmatprep.subr.mxu0 0.0
    %6116 = vmatpush1.msra.mxu0 0.0
    %6117 = vmatprep.subr.mxu0 0.0
    %6118 = vmatpush1.msra.mxu0 0.0
    %6119 = vmatprep.subr.mxu0 0.0
    %6120 = vmatpush1.msra.mxu0 0.0
    %6121 = vmatprep.subr.mxu0 0.0
    %6122 = vmatpush1.msra.mxu0 0.0
    %6123 = vmatprep.subr.mxu0 0.0
    %6124 = vmatpush1.msra.mxu0 0.0
    %6125 = vmatprep.subr.mxu0 0.0
    %6126 = vmatpush1.msra.mxu0 0.0
    %6127 = vmatprep.subr.mxu0 0.0
    %6128 = vmatpush1.msra.mxu0 0.0
    %6129 = vmatprep.subr.mxu0 0.0
    %6130 = vmatpush1.msra.mxu0 0.0
    %6131 = vmatprep.subr.mxu0 0.0
    %6132 = vmatpush1.msra.mxu0 0.0
    %6133 = vmatprep.subr.mxu0 0.0
    %6134 = vmatpush1.msra.mxu0 0.0
    %6135 = vmatprep.subr.mxu0 0.0
    %6136 = vmatpush1.msra.mxu0 0.0
    %6137 = vmatprep.subr.mxu0 0.0
    %6138 = vmatpush1.msra.mxu0 0.0
    %6139 = vmatprep.mubr.f32.mxu0 0.0
    %6140 = vmatmul.mubr.f32.gmra.mrb[0].mxu0 %v6051
    %v6141 = vpop.f32.mrb[0].mxu0
    %v6142 = vadd.f32 %v6073, %v6141
    %v6143 = vpop.f32.mrb[0].mxu0
    %6144 = vdwg.mxu0
    %6145 = vst [vmem:[#allocation10] sm:$0x3] %v6142
    // Predicated region
    $region62: #{lenet_svhn_forward.1} parent=1 // pred_check
      _
    $region63: #{lenet_svhn_forward.1} parent=1 // pred_check_branch
      %6147 = sbr.rel (0) target = $region65
    $region64: #{lenet_svhn_forward.1} parent=1 // pred_region
      %s6149 = ssub.s32 32, 32
      %6150 = vsyncadd [#allocation7], %s6149
      %s6152 = sshll.u32 [#allocation10], 4
      %s6153 = int_to_ptr.vmem [resolvable:$true] %s6152
      %6155 = dma.vmem_to_hbm [thread:$0]  %s6153, 32, %s13, [#allocation7]
    $region65: #{lenet_svhn_forward.1} parent=1 // pred_fallthru
      _
    // Predicated region
    $region66: #{lenet_svhn_forward.1} parent=1 // pred_check
      _
    $region67: #{lenet_svhn_forward.1} parent=1 // pred_check_branch
      %6157 = sbr.rel (0) target = $region69
    $region68: #{lenet_svhn_forward.1} parent=1 // pred_region
      %6158 = dma.done [#allocation7], 32
    $region69: #{lenet_svhn_forward.1} parent=1 // pred_fallthru
      _
    %6159 = vsyncpa [#allocation6], 1
    %6160 = vsyncpa [#allocation9], 1
    %6161 = vsyncpa [#allocation7], 1

</llo_original>
